<compile_context>
chip_gen: v7x
topology: tpu7x:2x2x1
jax: 0.10.0
libtpu: 0.0.40
codegen_flags: <defaults>
</compile_context>

<pallas_src>
import functools

import jax
import jax.numpy as jnp
from jax.experimental import pallas as pl
from jax.experimental.pallas import tpu as pltpu

VOCAB_SIZE = 655
VOCAB_PAD = 768          # 655 padded up to a multiple of 128 for the MXU K axis
EMB_DIM = 1024
OUT_DIM = 768
TARGET_LEN = 1000        # the module pads / truncates every sequence to 1000 rows
LN_EPS = 1e-5


def _round_up(x, m):
    return (x + m - 1) // m * m


def _erf(x):
    # Abramowitz & Stegun 7.1.26, |error| < 1.5e-7 -> matches torch's exact (erf) GELU.
    a1, a2, a3, a4, a5 = 0.254829592, -0.284496736, 1.421413741, -1.453152027, 1.061405429
    p = 0.3275911
    sign = jnp.where(x >= 0.0, 1.0, -1.0)
    ax = jnp.abs(x)
    t = 1.0 / (1.0 + p * ax)
    poly = ((((a5 * t + a4) * t + a3) * t + a2) * t + a1) * t
    return sign * (1.0 - poly * jnp.exp(-ax * ax))


def _gelu_exact(x):
    return 0.5 * x * (1.0 + _erf(x * 0.7071067811865476))


def _melody_kernel(hist_ref, emb_ref, wp_ref, bp_ref, g_ref, beta_ref,
                   w1_ref, b1_ref, w2_ref, b2_ref, out_ref, *, inv_len):
    f32 = jnp.float32
    # mean over the zero-padded (1000, 1024) token embeddings == (histogram @ table) / 1000
    pooled = jnp.dot(hist_ref[...], emb_ref[...], preferred_element_type=f32) * inv_len
    # MelodyPooler.dense : Linear(1024, 1024)
    x = jnp.dot(pooled, wp_ref[...], preferred_element_type=f32) + bp_ref[...]
    # LayerNorm(1024, eps=1e-5), stats in f32
    mu = jnp.mean(x, axis=-1, keepdims=True)
    xc = x - mu
    var = jnp.mean(xc * xc, axis=-1, keepdims=True)
    x = xc * jax.lax.rsqrt(var + LN_EPS)
    x = x * g_ref[...] + beta_ref[...]
    # mlp_1024_to_768 -> GELU(exact)
    h = jnp.dot(x, w1_ref[...], preferred_element_type=f32) + b1_ref[...]
    h = _gelu_exact(h)
    # fc1 -> GELU(exact)
    h = jnp.dot(h, w2_ref[...], preferred_element_type=f32) + b2_ref[...]
    h = _gelu_exact(h)
    out_ref[...] = h.astype(out_ref.dtype)


def melody_head(hist, emb_pad, wp_t, bp, gamma, beta, w1_t, b1, w2_t, b2, *, b_tile=None):
    """Fused (hist@emb)/1000 -> pooler dense -> LayerNorm -> MLP head. hist: (B, VOCAB_PAD) f32."""
    B = hist.shape[0]
    if b_tile is None:
        # >=8 for sublane alignment; 128 rows fill an MXU pass when the batch is large.
        b_tile = min(128, _round_up(max(B, 1), 8))
    b_pad = _round_up(B, b_tile)
    if b_pad != B:
        hist = jnp.pad(hist, ((0, b_pad - B), (0, 0)))

    const = lambda i: (0, 0)   # weights: constant block index -> DMA'd once, VMEM-resident

    out = pl.pallas_call(
        functools.partial(_melody_kernel, inv_len=1.0 / float(TARGET_LEN)),
        out_shape=jax.ShapeDtypeStruct((b_pad, OUT_DIM), jnp.float32),
        grid_spec=pltpu.PrefetchScalarGridSpec(
            num_scalar_prefetch=0,
            grid=(b_pad // b_tile,),
            in_specs=[
                pl.BlockSpec((b_tile, VOCAB_PAD), lambda i: (i, 0)),   # token histogram
                pl.BlockSpec((VOCAB_PAD, EMB_DIM), const),             # embedding table (padded)
                pl.BlockSpec((EMB_DIM, EMB_DIM), const),               # pooler dense W^T
                pl.BlockSpec((1, EMB_DIM), const),                     # pooler dense b
                pl.BlockSpec((1, EMB_DIM), const),                     # LN gamma
                pl.BlockSpec((1, EMB_DIM), const),                     # LN beta
                pl.BlockSpec((EMB_DIM, OUT_DIM), const),               # mlp_1024_to_768 W^T
                pl.BlockSpec((1, OUT_DIM), const),                     # mlp_1024_to_768 b
                pl.BlockSpec((OUT_DIM, OUT_DIM), const),               # fc1 W^T
                pl.BlockSpec((1, OUT_DIM), const),                     # fc1 b
            ],
            out_specs=pl.BlockSpec((b_tile, OUT_DIM), lambda i: (i, 0)),  # lane-dense (768)
        ),
        compiler_params=pltpu.CompilerParams(
            dimension_semantics=("parallel",),     # shard batch tiles across TCs (v7x)
            vmem_limit_bytes=40 * 1024 * 1024,     # explicit; fits v7x's 64 MiB VMEM part
        ),
    )(hist, emb_pad, wp_t, bp, gamma, beta, w1_t, b1, w2_t, b2)
    return out[:B]


def tokens_to_histogram(tokens, lengths):
    """Per-sequence token-count histogram over the first min(length, 1000) tokens (plain-JAX glue)."""
    tokens = jnp.asarray(tokens, jnp.int32)
    lengths = jnp.asarray(lengths, jnp.int32)
    B, L = tokens.shape
    pos = jnp.arange(L, dtype=jnp.int32)[None, :]
    valid = (pos < lengths[:, None]) & (pos < TARGET_LEN)     # truncation at 1000 tokens
    tok = jnp.clip(tokens, 0, VOCAB_SIZE - 1)
    hist = jnp.zeros((B, VOCAB_PAD), jnp.float32)
    hist = hist.at[jnp.arange(B)[:, None], tok].add(valid.astype(jnp.float32))
    return hist


def melody_forward(tokens, lengths, params):
    """JAX/Pallas equivalent of Melody.forward (integer token ids instead of melody_texts)."""
    hist = tokens_to_histogram(tokens, lengths)
    emb_pad = jnp.pad(params["emb"], ((0, VOCAB_PAD - VOCAB_SIZE), (0, 0)))
    return melody_head(
        hist, emb_pad,
        params["pooler_w"].T, params["pooler_b"][None, :],
        params["ln_gamma"][None, :], params["ln_beta"][None, :],
        params["w_1024_768"].T, params["b_1024_768"][None, :],
        params["fc1_w"].T, params["fc1_b"][None, :],
    )


def melody_reference(tokens, lengths, params):
    """Pure-JAX replica of the PyTorch forward (embed -> pad to 1000 -> mean -> dense -> LN -> MLP)."""
    tokens = jnp.asarray(tokens, jnp.int32)
    lengths = jnp.asarray(lengths, jnp.int32)
    B, L = tokens.shape
    emb = params["emb"][jnp.clip(tokens, 0, VOCAB_SIZE - 1)]            # (B, L, 1024)
    pos = jnp.arange(L)[None, :, None]
    mask = (pos < lengths[:, None, None]) & (pos < TARGET_LEN)
    emb = jnp.where(mask, emb, 0.0)
    pooled = emb.sum(axis=1) / float(TARGET_LEN)     # mean over the zero-padded 1000 rows
    x = pooled @ params["pooler_w"].T + params["pooler_b"]
    mu = x.mean(-1, keepdims=True)
    var = ((x - mu) ** 2).mean(-1, keepdims=True)
    x = (x - mu) / jnp.sqrt(var + LN_EPS) * params["ln_gamma"] + params["ln_beta"]
    h = jax.nn.gelu(x @ params["w_1024_768"].T + params["b_1024_768"], approximate=False)
    h = jax.nn.gelu(h @ params["fc1_w"].T + params["fc1_b"], approximate=False)
    return h


if __name__ == "__main__":
    key = jax.random.PRNGKey(0)
    ks = jax.random.split(key, 10)

    B, L = 4, 16   # small token sequences; the module itself pads/truncates to 1000
    tokens = jax.random.randint(ks[0], (B, L), 0, VOCAB_SIZE, dtype=jnp.int32)
    lengths = jnp.array([16, 13, 9, 5], dtype=jnp.int32)

    params = {
        "emb":        jax.random.normal(ks[1], (VOCAB_SIZE, EMB_DIM), jnp.float32),       # nn.Embedding default ~N(0,1)
        "pooler_w":   0.03 * jax.random.normal(ks[2], (EMB_DIM, EMB_DIM), jnp.float32),   # torch layout (out, in)
        "pooler_b":   0.01 * jax.random.normal(ks[3], (EMB_DIM,), jnp.float32),
        "ln_gamma":   1.0 + 0.1 * jax.random.normal(ks[4], (EMB_DIM,), jnp.float32),
        "ln_beta":    0.05 * jax.random.normal(ks[5], (EMB_DIM,), jnp.float32),
        "w_1024_768": 0.03 * jax.random.normal(ks[6], (OUT_DIM, EMB_DIM), jnp.float32),   # torch layout (768, 1024)
        "b_1024_768": 0.01 * jax.random.normal(ks[7], (OUT_DIM,), jnp.float32),
        "fc1_w":      0.03 * jax.random.normal(ks[8], (OUT_DIM, OUT_DIM), jnp.float32),
        "fc1_b":      0.01 * jax.random.normal(ks[9], (OUT_DIM,), jnp.float32),
    }

    out = jax.block_until_ready(melody_forward(tokens, lengths, params))
    ref = jax.block_until_ready(melody_reference(tokens, lengths, params))

    assert out.shape == (B, OUT_DIM), out.shape
    max_err = float(jnp.max(jnp.abs(out - ref)))
    assert max_err < 3e-2, f"max |kernel - reference| = {max_err}"
    print("KERNEL_OK")
</pallas_src>

<mosaic_0001>
module attributes {stable_mosaic.version = 11 : i64} {
  func.func @_melody_kernel(%arg0: i32, %arg1: memref<8x768xf32, #tpu.memory_space<vmem>>, %arg2: memref<768x1024xf32, #tpu.memory_space<vmem>>, %arg3: memref<1024x1024xf32, #tpu.memory_space<vmem>>, %arg4: memref<1x1024xf32, #tpu.memory_space<vmem>>, %arg5: memref<1x1024xf32, #tpu.memory_space<vmem>>, %arg6: memref<1x1024xf32, #tpu.memory_space<vmem>>, %arg7: memref<1024x768xf32, #tpu.memory_space<vmem>>, %arg8: memref<1x768xf32, #tpu.memory_space<vmem>>, %arg9: memref<768x768xf32, #tpu.memory_space<vmem>>, %arg10: memref<1x768xf32, #tpu.memory_space<vmem>>, %arg11: memref<8x768xf32, #tpu.memory_space<vmem>>) attributes {dimension_semantics = [#tpu.dimension_semantics<parallel>], iteration_bounds = array<i64: 1>, scalar_prefetch = 0 : i64, scratch_operands = 0 : i64, tpu.core_type = #tpu.core_type<tc>, window_params = [{transform_indices = @transform_0, window_bounds = array<i64: 8, 768>}, {pipeline_mode = #tpu.pipeline_mode<synchronous>, transform_indices = @transform_1, window_bounds = array<i64: 768, 1024>}, {pipeline_mode = #tpu.pipeline_mode<synchronous>, transform_indices = @transform_2, window_bounds = array<i64: 1024, 1024>}, {pipeline_mode = #tpu.pipeline_mode<synchronous>, transform_indices = @transform_3, window_bounds = array<i64: 1, 1024>}, {pipeline_mode = #tpu.pipeline_mode<synchronous>, transform_indices = @transform_4, window_bounds = array<i64: 1, 1024>}, {pipeline_mode = #tpu.pipeline_mode<synchronous>, transform_indices = @transform_5, window_bounds = array<i64: 1, 1024>}, {pipeline_mode = #tpu.pipeline_mode<synchronous>, transform_indices = @transform_6, window_bounds = array<i64: 1024, 768>}, {pipeline_mode = #tpu.pipeline_mode<synchronous>, transform_indices = @transform_7, window_bounds = array<i64: 1, 768>}, {pipeline_mode = #tpu.pipeline_mode<synchronous>, transform_indices = @transform_8, window_bounds = array<i64: 768, 768>}, {pipeline_mode = #tpu.pipeline_mode<synchronous>, transform_indices = @transform_9, window_bounds = array<i64: 1, 768>}, {transform_indices = @transform_10, window_bounds = array<i64: 8, 768>}]} {
    %c0 = arith.constant 0 : index
    %c0_0 = arith.constant 0 : index
    %0 = vector.load %arg1[%c0, %c0_0] : memref<8x768xf32, #tpu.memory_space<vmem>>, vector<8x768xf32>
    %c0_1 = arith.constant 0 : index
    %c0_2 = arith.constant 0 : index
    %1 = vector.load %arg2[%c0_1, %c0_2] : memref<768x1024xf32, #tpu.memory_space<vmem>>, vector<768x1024xf32>
    %cst = arith.constant dense<0.000000e+00> : vector<8x1024xf32>
    %2 = tpu.matmul %0, %1, %cst {dimension_numbers = #tpu.dot_dimension_numbers<[1], [0], [0], [1], [0, 0, 1, 1], [], []>} : vector<8x768xf32>, vector<768x1024xf32>, vector<8x1024xf32> -> vector<8x1024xf32>
    %cst_3 = arith.constant 1.000000e-03 : f32
    %3 = vector.broadcast %cst_3 : f32 to vector<8x1024xf32>
    %4 = arith.mulf %2, %3 : vector<8x1024xf32>
    %c0_4 = arith.constant 0 : index
    %c0_5 = arith.constant 0 : index
    %5 = vector.load %arg3[%c0_4, %c0_5] : memref<1024x1024xf32, #tpu.memory_space<vmem>>, vector<1024x1024xf32>
    %cst_6 = arith.constant dense<0.000000e+00> : vector<8x1024xf32>
    %6 = tpu.matmul %4, %5, %cst_6 {dimension_numbers = #tpu.dot_dimension_numbers<[1], [0], [0], [1], [0, 0, 1, 1], [], []>} : vector<8x1024xf32>, vector<1024x1024xf32>, vector<8x1024xf32> -> vector<8x1024xf32>
    %c0_7 = arith.constant 0 : index
    %c0_8 = arith.constant 0 : index
    %7 = vector.load %arg4[%c0_7, %c0_8] : memref<1x1024xf32, #tpu.memory_space<vmem>>, vector<1x1024xf32>
    %8 = vector.broadcast %7 : vector<1x1024xf32> to vector<8x1024xf32>
    %9 = arith.addf %6, %8 : vector<8x1024xf32>
    %cst_9 = arith.constant dense<0.000000e+00> : vector<8xf32>
    %10 = vector.multi_reduction <add>, %9, %cst_9 [1] : vector<8x1024xf32> to vector<8xf32>
    %11 = vector.shape_cast %10 : vector<8xf32> to vector<8x1xf32>
    %cst_10 = arith.constant 1.024000e+03 : f32
    %12 = vector.broadcast %cst_10 : f32 to vector<8x1xf32>
    %13 = arith.divf %11, %12 : vector<8x1xf32>
    %14 = vector.broadcast %13 : vector<8x1xf32> to vector<8x1024xf32>
    %15 = arith.subf %9, %14 : vector<8x1024xf32>
    %16 = arith.mulf %15, %15 : vector<8x1024xf32>
    %cst_11 = arith.constant dense<0.000000e+00> : vector<8xf32>
    %17 = vector.multi_reduction <add>, %16, %cst_11 [1] : vector<8x1024xf32> to vector<8xf32>
    %18 = vector.shape_cast %17 : vector<8xf32> to vector<8x1xf32>
    %cst_12 = arith.constant 1.024000e+03 : f32
    %19 = vector.broadcast %cst_12 : f32 to vector<8x1xf32>
    %20 = arith.divf %18, %19 : vector<8x1xf32>
    %cst_13 = arith.constant 9.99999974E-6 : f32
    %21 = vector.broadcast %cst_13 : f32 to vector<8x1xf32>
    %22 = arith.addf %20, %21 : vector<8x1xf32>
    %23 = math.rsqrt %22 : vector<8x1xf32>
    %24 = vector.broadcast %23 : vector<8x1xf32> to vector<8x1024xf32>
    %25 = arith.mulf %15, %24 : vector<8x1024xf32>
    %c0_14 = arith.constant 0 : index
    %c0_15 = arith.constant 0 : index
    %26 = vector.load %arg5[%c0_14, %c0_15] : memref<1x1024xf32, #tpu.memory_space<vmem>>, vector<1x1024xf32>
    %27 = vector.broadcast %26 : vector<1x1024xf32> to vector<8x1024xf32>
    %28 = arith.mulf %25, %27 : vector<8x1024xf32>
    %c0_16 = arith.constant 0 : index
    %c0_17 = arith.constant 0 : index
    %29 = vector.load %arg6[%c0_16, %c0_17] : memref<1x1024xf32, #tpu.memory_space<vmem>>, vector<1x1024xf32>
    %30 = vector.broadcast %29 : vector<1x1024xf32> to vector<8x1024xf32>
    %31 = arith.addf %28, %30 : vector<8x1024xf32>
    %c0_18 = arith.constant 0 : index
    %c0_19 = arith.constant 0 : index
    %32 = vector.load %arg7[%c0_18, %c0_19] : memref<1024x768xf32, #tpu.memory_space<vmem>>, vector<1024x768xf32>
    %cst_20 = arith.constant dense<0.000000e+00> : vector<8x768xf32>
    %33 = tpu.matmul %31, %32, %cst_20 {dimension_numbers = #tpu.dot_dimension_numbers<[1], [0], [0], [1], [0, 0, 1, 1], [], []>} : vector<8x1024xf32>, vector<1024x768xf32>, vector<8x768xf32> -> vector<8x768xf32>
    %c0_21 = arith.constant 0 : index
    %c0_22 = arith.constant 0 : index
    %34 = vector.load %arg8[%c0_21, %c0_22] : memref<1x768xf32, #tpu.memory_space<vmem>>, vector<1x768xf32>
    %35 = vector.broadcast %34 : vector<1x768xf32> to vector<8x768xf32>
    %36 = arith.addf %33, %35 : vector<8x768xf32>
    %cst_23 = arith.constant 5.000000e-01 : f32
    %37 = vector.broadcast %cst_23 : f32 to vector<8x768xf32>
    %38 = arith.mulf %37, %36 : vector<8x768xf32>
    %cst_24 = arith.constant 0.707106769 : f32
    %39 = vector.broadcast %cst_24 : f32 to vector<8x768xf32>
    %40 = arith.mulf %36, %39 : vector<8x768xf32>
    %cst_25 = arith.constant 0.000000e+00 : f32
    %41 = vector.broadcast %cst_25 : f32 to vector<8x768xf32>
    %42 = arith.cmpf oge, %40, %41 : vector<8x768xf32>
    %cst_26 = arith.constant 1.000000e+00 : f32
    %cst_27 = arith.constant -1.000000e+00 : f32
    %43 = vector.broadcast %cst_26 : f32 to vector<8x768xf32>
    %44 = vector.broadcast %cst_27 : f32 to vector<8x768xf32>
    %45 = arith.select %42, %43, %44 : vector<8x768xi1>, vector<8x768xf32>
    %46 = math.absf %40 : vector<8x768xf32>
    %cst_28 = arith.constant 0.327591091 : f32
    %47 = vector.broadcast %cst_28 : f32 to vector<8x768xf32>
    %48 = arith.mulf %47, %46 : vector<8x768xf32>
    %cst_29 = arith.constant 1.000000e+00 : f32
    %49 = vector.broadcast %cst_29 : f32 to vector<8x768xf32>
    %50 = arith.addf %49, %48 : vector<8x768xf32>
    %cst_30 = arith.constant 1.000000e+00 : f32
    %51 = vector.broadcast %cst_30 : f32 to vector<8x768xf32>
    %52 = arith.divf %51, %50 : vector<8x768xf32>
    %cst_31 = arith.constant 1.06140542 : f32
    %53 = vector.broadcast %cst_31 : f32 to vector<8x768xf32>
    %54 = arith.mulf %53, %52 : vector<8x768xf32>
    %cst_32 = arith.constant -1.45315206 : f32
    %55 = vector.broadcast %cst_32 : f32 to vector<8x768xf32>
    %56 = arith.addf %54, %55 : vector<8x768xf32>
    %57 = arith.mulf %56, %52 : vector<8x768xf32>
    %cst_33 = arith.constant 1.42141378 : f32
    %58 = vector.broadcast %cst_33 : f32 to vector<8x768xf32>
    %59 = arith.addf %57, %58 : vector<8x768xf32>
    %60 = arith.mulf %59, %52 : vector<8x768xf32>
    %cst_34 = arith.constant -0.284496725 : f32
    %61 = vector.broadcast %cst_34 : f32 to vector<8x768xf32>
    %62 = arith.addf %60, %61 : vector<8x768xf32>
    %63 = arith.mulf %62, %52 : vector<8x768xf32>
    %cst_35 = arith.constant 0.254829586 : f32
    %64 = vector.broadcast %cst_35 : f32 to vector<8x768xf32>
    %65 = arith.addf %63, %64 : vector<8x768xf32>
    %66 = arith.mulf %65, %52 : vector<8x768xf32>
    %cst_36 = arith.constant 0.000000e+00 : f32
    %67 = vector.broadcast %cst_36 : f32 to vector<8x768xf32>
    %68 = arith.subf %67, %46 : vector<8x768xf32>
    %69 = arith.mulf %68, %46 : vector<8x768xf32>
    %70 = math.exp %69 : vector<8x768xf32>
    %71 = arith.mulf %66, %70 : vector<8x768xf32>
    %cst_37 = arith.constant 1.000000e+00 : f32
    %72 = vector.broadcast %cst_37 : f32 to vector<8x768xf32>
    %73 = arith.subf %72, %71 : vector<8x768xf32>
    %74 = arith.mulf %45, %73 : vector<8x768xf32>
    %cst_38 = arith.constant 1.000000e+00 : f32
    %75 = vector.broadcast %cst_38 : f32 to vector<8x768xf32>
    %76 = arith.addf %75, %74 : vector<8x768xf32>
    %77 = arith.mulf %38, %76 : vector<8x768xf32>
    %c0_39 = arith.constant 0 : index
    %c0_40 = arith.constant 0 : index
    %78 = vector.load %arg9[%c0_39, %c0_40] : memref<768x768xf32, #tpu.memory_space<vmem>>, vector<768x768xf32>
    %cst_41 = arith.constant dense<0.000000e+00> : vector<8x768xf32>
    %79 = tpu.matmul %77, %78, %cst_41 {dimension_numbers = #tpu.dot_dimension_numbers<[1], [0], [0], [1], [0, 0, 1, 1], [], []>} : vector<8x768xf32>, vector<768x768xf32>, vector<8x768xf32> -> vector<8x768xf32>
    %c0_42 = arith.constant 0 : index
    %c0_43 = arith.constant 0 : index
    %80 = vector.load %arg10[%c0_42, %c0_43] : memref<1x768xf32, #tpu.memory_space<vmem>>, vector<1x768xf32>
    %81 = vector.broadcast %80 : vector<1x768xf32> to vector<8x768xf32>
    %82 = arith.addf %79, %81 : vector<8x768xf32>
    %cst_44 = arith.constant 5.000000e-01 : f32
    %83 = vector.broadcast %cst_44 : f32 to vector<8x768xf32>
    %84 = arith.mulf %83, %82 : vector<8x768xf32>
    %cst_45 = arith.constant 0.707106769 : f32
    %85 = vector.broadcast %cst_45 : f32 to vector<8x768xf32>
    %86 = arith.mulf %82, %85 : vector<8x768xf32>
    %cst_46 = arith.constant 0.000000e+00 : f32
    %87 = vector.broadcast %cst_46 : f32 to vector<8x768xf32>
    %88 = arith.cmpf oge, %86, %87 : vector<8x768xf32>
    %cst_47 = arith.constant 1.000000e+00 : f32
    %cst_48 = arith.constant -1.000000e+00 : f32
    %89 = vector.broadcast %cst_47 : f32 to vector<8x768xf32>
    %90 = vector.broadcast %cst_48 : f32 to vector<8x768xf32>
    %91 = arith.select %88, %89, %90 : vector<8x768xi1>, vector<8x768xf32>
    %92 = math.absf %86 : vector<8x768xf32>
    %cst_49 = arith.constant 0.327591091 : f32
    %93 = vector.broadcast %cst_49 : f32 to vector<8x768xf32>
    %94 = arith.mulf %93, %92 : vector<8x768xf32>
    %cst_50 = arith.constant 1.000000e+00 : f32
    %95 = vector.broadcast %cst_50 : f32 to vector<8x768xf32>
    %96 = arith.addf %95, %94 : vector<8x768xf32>
    %cst_51 = arith.constant 1.000000e+00 : f32
    %97 = vector.broadcast %cst_51 : f32 to vector<8x768xf32>
    %98 = arith.divf %97, %96 : vector<8x768xf32>
    %cst_52 = arith.constant 1.06140542 : f32
    %99 = vector.broadcast %cst_52 : f32 to vector<8x768xf32>
    %100 = arith.mulf %99, %98 : vector<8x768xf32>
    %cst_53 = arith.constant -1.45315206 : f32
    %101 = vector.broadcast %cst_53 : f32 to vector<8x768xf32>
    %102 = arith.addf %100, %101 : vector<8x768xf32>
    %103 = arith.mulf %102, %98 : vector<8x768xf32>
    %cst_54 = arith.constant 1.42141378 : f32
    %104 = vector.broadcast %cst_54 : f32 to vector<8x768xf32>
    %105 = arith.addf %103, %104 : vector<8x768xf32>
    %106 = arith.mulf %105, %98 : vector<8x768xf32>
    %cst_55 = arith.constant -0.284496725 : f32
    %107 = vector.broadcast %cst_55 : f32 to vector<8x768xf32>
    %108 = arith.addf %106, %107 : vector<8x768xf32>
    %109 = arith.mulf %108, %98 : vector<8x768xf32>
    %cst_56 = arith.constant 0.254829586 : f32
    %110 = vector.broadcast %cst_56 : f32 to vector<8x768xf32>
    %111 = arith.addf %109, %110 : vector<8x768xf32>
    %112 = arith.mulf %111, %98 : vector<8x768xf32>
    %cst_57 = arith.constant 0.000000e+00 : f32
    %113 = vector.broadcast %cst_57 : f32 to vector<8x768xf32>
    %114 = arith.subf %113, %92 : vector<8x768xf32>
    %115 = arith.mulf %114, %92 : vector<8x768xf32>
    %116 = math.exp %115 : vector<8x768xf32>
    %117 = arith.mulf %112, %116 : vector<8x768xf32>
    %cst_58 = arith.constant 1.000000e+00 : f32
    %118 = vector.broadcast %cst_58 : f32 to vector<8x768xf32>
    %119 = arith.subf %118, %117 : vector<8x768xf32>
    %120 = arith.mulf %91, %119 : vector<8x768xf32>
    %cst_59 = arith.constant 1.000000e+00 : f32
    %121 = vector.broadcast %cst_59 : f32 to vector<8x768xf32>
    %122 = arith.addf %121, %120 : vector<8x768xf32>
    %123 = arith.mulf %84, %122 : vector<8x768xf32>
    %c0_60 = arith.constant 0 : index
    %c0_61 = arith.constant 0 : index
    %124 = vector.load %arg11[%c0_60, %c0_61] : memref<8x768xf32, #tpu.memory_space<vmem>>, vector<8x768xf32>
    tpu.vector_store %arg11[%c0_60, %c0_61], %123 {strides = array<i32>} : memref<8x768xf32, #tpu.memory_space<vmem>>, vector<8x768xf32>,
    return
  }
  func.func @transform_0(%arg0: i32) -> (i32, i32) {
    %c0_i32 = arith.constant 0 : i32
    %c0_i32_0 = arith.constant 0 : i32
    return %arg0, %c0_i32 : i32, i32
  }
  func.func @transform_1(%arg0: i32) -> (i32, i32) {
    %c0_i32 = arith.constant 0 : i32
    %c0_i32_0 = arith.constant 0 : i32
    %c0_i32_1 = arith.constant 0 : i32
    return %c0_i32, %c0_i32_0 : i32, i32
  }
  func.func @transform_2(%arg0: i32) -> (i32, i32) {
    %c0_i32 = arith.constant 0 : i32
    %c0_i32_0 = arith.constant 0 : i32
    %c0_i32_1 = arith.constant 0 : i32
    return %c0_i32, %c0_i32_0 : i32, i32
  }
  func.func @transform_3(%arg0: i32) -> (i32, i32) {
    %c0_i32 = arith.constant 0 : i32
    %c0_i32_0 = arith.constant 0 : i32
    %c0_i32_1 = arith.constant 0 : i32
    return %c0_i32, %c0_i32_0 : i32, i32
  }
  func.func @transform_4(%arg0: i32) -> (i32, i32) {
    %c0_i32 = arith.constant 0 : i32
    %c0_i32_0 = arith.constant 0 : i32
    %c0_i32_1 = arith.constant 0 : i32
    return %c0_i32, %c0_i32_0 : i32, i32
  }
  func.func @transform_5(%arg0: i32) -> (i32, i32) {
    %c0_i32 = arith.constant 0 : i32
    %c0_i32_0 = arith.constant 0 : i32
    %c0_i32_1 = arith.constant 0 : i32
    return %c0_i32, %c0_i32_0 : i32, i32
  }
  func.func @transform_6(%arg0: i32) -> (i32, i32) {
    %c0_i32 = arith.constant 0 : i32
    %c0_i32_0 = arith.constant 0 : i32
    %c0_i32_1 = arith.constant 0 : i32
    return %c0_i32, %c0_i32_0 : i32, i32
  }
  func.func @transform_7(%arg0: i32) -> (i32, i32) {
    %c0_i32 = arith.constant 0 : i32
    %c0_i32_0 = arith.constant 0 : i32
    %c0_i32_1 = arith.constant 0 : i32
    return %c0_i32, %c0_i32_0 : i32, i32
  }
  func.func @transform_8(%arg0: i32) -> (i32, i32) {
    %c0_i32 = arith.constant 0 : i32
    %c0_i32_0 = arith.constant 0 : i32
    %c0_i32_1 = arith.constant 0 : i32
    return %c0_i32, %c0_i32_0 : i32, i32
  }
  func.func @transform_9(%arg0: i32) -> (i32, i32) {
    %c0_i32 = arith.constant 0 : i32
    %c0_i32_0 = arith.constant 0 : i32
    %c0_i32_1 = arith.constant 0 : i32
    return %c0_i32, %c0_i32_0 : i32, i32
  }
  func.func @transform_10(%arg0: i32) -> (i32, i32) {
    %c0_i32 = arith.constant 0 : i32
    %c0_i32_0 = arith.constant 0 : i32
    return %arg0, %c0_i32 : i32, i32
  }
}

</mosaic_0001>

<llo_original>
// kernel: tpu_custom_call.1
$region0: #{tpu_custom_call.1}
  #allocation0 [shape = 'u32[]', space=smem, size = 0x4, offset = 0x4, fixed_abs, tag = 'smem constant byte address 0x4 - core index']
  #allocation1 [shape = 'u32[144,128]{1,0:T(1,128)}', space=vmem, size = 0x12000, scoped, tag = 'internal scratch']
  %s0 = inlined_call_operand.hbm [shape: f32[8,768], index: 0, kind: input, shape index: {}]
  %s1 = inlined_call_operand.hbm [shape: f32[768,1024], index: 1, kind: input, shape index: {}]
  %s2 = inlined_call_operand.hbm [shape: f32[1024,1024], index: 2, kind: input, shape index: {}]
  %s3 = inlined_call_operand.hbm [shape: f32[1,1024], index: 3, kind: input, shape index: {}]
  %s4 = inlined_call_operand.hbm [shape: f32[1,1024], index: 4, kind: input, shape index: {}]
  %s5 = inlined_call_operand.hbm [shape: f32[1,1024], index: 5, kind: input, shape index: {}]
  %s6 = inlined_call_operand.hbm [shape: f32[1024,768], index: 6, kind: input, shape index: {}]
  %s7 = inlined_call_operand.hbm [shape: f32[1,768], index: 7, kind: input, shape index: {}]
  %s8 = inlined_call_operand.hbm [shape: f32[768,768], index: 8, kind: input, shape index: {}]
  %s9 = inlined_call_operand.hbm [shape: f32[1,768], index: 9, kind: input, shape index: {}]
  %s10 = inlined_call_operand.hbm [shape: f32[8,768], index: 10, kind: output, shape index: {}]
  %s11 = sld [smem:[#allocation0]]
  $region90: #{tpu_custom_call.1} parent=0
    _
  %s13 = ssub.s32 1, %s11
  %s14 = scalar_select 0, %s13, %s11
  $region1: #{tpu_custom_call.1} parent=0
    #allocation2 [shape = 'u8[24576]{0}', space=vmem, size = 0x6000, scoped, tag = 'input window, operand 0, single buffered']
    #allocation3 [shape = 's32[1]{0}', space=sflag, size = 0x4, scoped, tag = 'scoped memory for tpu_custom_call.1']
    #allocation4 [shape = 's32[1]{0}', space=sflag, size = 0x4, scoped, tag = 'scoped memory for tpu_custom_call.1']
    #allocation5 [shape = 'u8[3145728]{0}', space=vmem, size = 0x300000, scoped, tag = 'input window, operand 1, single buffered']
    #allocation6 [shape = 's32[1]{0}', space=sflag, size = 0x4, scoped, tag = 'scoped memory for tpu_custom_call.1']
    #allocation7 [shape = 'u8[4194304]{0}', space=vmem, size = 0x400000, scoped, tag = 'input window, operand 2, single buffered']
    #allocation8 [shape = 'u8[4096]{0}', space=vmem, size = 0x1000, scoped, tag = 'input window, operand 3, single buffered']
    #allocation9 [shape = 's32[1]{0}', space=sflag, size = 0x4, scoped, tag = 'scoped memory for tpu_custom_call.1']
    #allocation10 [shape = 'u8[4096]{0}', space=vmem, size = 0x1000, scoped, tag = 'input window, operand 4, single buffered']
    #allocation11 [shape = 'u8[4096]{0}', space=vmem, size = 0x1000, scoped, tag = 'input window, operand 5, single buffered']
    #allocation12 [shape = 's32[1]{0}', space=sflag, size = 0x4, scoped, tag = 'scoped memory for tpu_custom_call.1']
    #allocation13 [shape = 'u8[3145728]{0}', space=vmem, size = 0x300000, scoped, tag = 'input window, operand 6, single buffered']
    #allocation14 [shape = 'u8[3072]{0}', space=vmem, size = 0xc00, scoped, tag = 'input window, operand 7, single buffered']
    #allocation15 [shape = 's32[1]{0}', space=sflag, size = 0x4, scoped, tag = 'scoped memory for tpu_custom_call.1']
    #allocation16 [shape = 'u8[2359296]{0}', space=vmem, size = 0x240000, scoped, tag = 'input window, operand 8, single buffered']
    #allocation17 [shape = 'u8[3072]{0}', space=vmem, size = 0xc00, scoped, tag = 'input window, operand 9, single buffered']
    #allocation18 [shape = 's32[1]{0}', space=sflag, size = 0x4, scoped, tag = 'scoped memory for tpu_custom_call.1']
    #allocation19 [shape = 'u8[24576]{0}', space=vmem, size = 0x6000, scoped, tag = 'output window, operand 0, single buffered']
    %15 = vsyncpa [#allocation3], 0
    %16 = vsyncpa [#allocation6], 0
    %17 = vsyncpa [#allocation9], 0
    %18 = vsyncpa [#allocation12], 0
    %19 = vsyncpa [#allocation15], 0
    %20 = vsyncpa [#allocation18], 0
    %21 = vsyncpa [#allocation4], 0
    // Predicated region
    $region2: #{tpu_custom_call.1} parent=1 // pred_check
      _
    $region3: #{tpu_custom_call.1} parent=1 // pred_check_branch
      %23 = sbr.rel (0) target = $region5
    $region4: #{tpu_custom_call.1} parent=1 // pred_region
      %s25 = ssub.s32 768, 768
      %26 = vsyncadd [#allocation3], %s25
      %s28 = sshll.u32 [#allocation2], 4
      %s29 = int_to_ptr.vmem [resolvable:$true] %s28
      %31 = dma.hbm_to_vmem [thread:$0]  %s0, 768, %s29, [#allocation3]
    $region5: #{tpu_custom_call.1} parent=1 // pred_fallthru
      _
    // Predicated region
    $region6: #{tpu_custom_call.1} parent=1 // pred_check
      _
    $region7: #{tpu_custom_call.1} parent=1 // pred_check_branch
      %33 = sbr.rel (0) target = $region9
    $region8: #{tpu_custom_call.1} parent=1 // pred_region
      %s35 = ssub.s32 98304, 98304
      %36 = vsyncadd [#allocation6], %s35
      %s37 = sshll.u32 [#allocation5], 4
      %s38 = int_to_ptr.vmem [resolvable:$true] %s37
      %43 = dma.hbm_to_vmem [thread:$0]  %s1, 98304, %s38, [#allocation6], 1024, 1024, 64
    $region9: #{tpu_custom_call.1} parent=1 // pred_fallthru
      _
    // Predicated region
    $region10: #{tpu_custom_call.1} parent=1 // pred_check
      _
    $region11: #{tpu_custom_call.1} parent=1 // pred_check_branch
      %45 = sbr.rel (0) target = $region13
    $region12: #{tpu_custom_call.1} parent=1 // pred_region
      %s47 = ssub.s32 131072, 131072
      %48 = vsyncadd [#allocation6], %s47
      %s49 = sshll.u32 [#allocation7], 4
      %s50 = int_to_ptr.vmem [resolvable:$true] %s49
      %55 = dma.hbm_to_vmem [thread:$0]  %s2, 131072, %s50, [#allocation6], 1024, 1024, 64
    $region13: #{tpu_custom_call.1} parent=1 // pred_fallthru
      _
    // Predicated region
    $region14: #{tpu_custom_call.1} parent=1 // pred_check
      _
    $region15: #{tpu_custom_call.1} parent=1 // pred_check_branch
      %57 = sbr.rel (0) target = $region17
    $region16: #{tpu_custom_call.1} parent=1 // pred_region
      %s59 = ssub.s32 128, 128
      %60 = vsyncadd [#allocation9], %s59
      %s62 = sshll.u32 [#allocation8], 4
      %s63 = int_to_ptr.vmem [resolvable:$true] %s62
      %65 = dma.hbm_to_vmem [thread:$0]  %s3, 128, %s63, [#allocation9]
    $region17: #{tpu_custom_call.1} parent=1 // pred_fallthru
      _
    // Predicated region
    $region18: #{tpu_custom_call.1} parent=1 // pred_check
      _
    $region19: #{tpu_custom_call.1} parent=1 // pred_check_branch
      %67 = sbr.rel (0) target = $region21
    $region20: #{tpu_custom_call.1} parent=1 // pred_region
      %s69 = ssub.s32 128, 128
      %70 = vsyncadd [#allocation9], %s69
      %s72 = sshll.u32 [#allocation10], 4
      %s73 = int_to_ptr.vmem [resolvable:$true] %s72
      %75 = dma.hbm_to_vmem [thread:$0]  %s4, 128, %s73, [#allocation9]
    $region21: #{tpu_custom_call.1} parent=1 // pred_fallthru
      _
    // Predicated region
    $region22: #{tpu_custom_call.1} parent=1 // pred_check
      _
    $region23: #{tpu_custom_call.1} parent=1 // pred_check_branch
      %77 = sbr.rel (0) target = $region25
    $region24: #{tpu_custom_call.1} parent=1 // pred_region
      %s79 = ssub.s32 128, 128
      %80 = vsyncadd [#allocation12], %s79
      %s82 = sshll.u32 [#allocation11], 4
      %s83 = int_to_ptr.vmem [resolvable:$true] %s82
      %85 = dma.hbm_to_vmem [thread:$0]  %s5, 128, %s83, [#allocation12]
    $region25: #{tpu_custom_call.1} parent=1 // pred_fallthru
      _
    // Predicated region
    $region26: #{tpu_custom_call.1} parent=1 // pred_check
      _
    $region27: #{tpu_custom_call.1} parent=1 // pred_check_branch
      %87 = sbr.rel (0) target = $region29
    $region28: #{tpu_custom_call.1} parent=1 // pred_region
      %s89 = ssub.s32 98304, 98304
      %90 = vsyncadd [#allocation12], %s89
      %s91 = sshll.u32 [#allocation13], 4
      %s92 = int_to_ptr.vmem [resolvable:$true] %s91
      %97 = dma.hbm_to_vmem [thread:$0]  %s6, 98304, %s92, [#allocation12], 768, 768, 48
    $region29: #{tpu_custom_call.1} parent=1 // pred_fallthru
      _
    // Predicated region
    $region30: #{tpu_custom_call.1} parent=1 // pred_check
      _
    $region31: #{tpu_custom_call.1} parent=1 // pred_check_branch
      %99 = sbr.rel (0) target = $region33
    $region32: #{tpu_custom_call.1} parent=1 // pred_region
      %s101 = ssub.s32 96, 96
      %102 = vsyncadd [#allocation15], %s101
      %s104 = sshll.u32 [#allocation14], 4
      %s105 = int_to_ptr.vmem [resolvable:$true] %s104
      %107 = dma.hbm_to_vmem [thread:$0]  %s7, 96, %s105, [#allocation15]
    $region33: #{tpu_custom_call.1} parent=1 // pred_fallthru
      _
    // Predicated region
    $region34: #{tpu_custom_call.1} parent=1 // pred_check
      _
    $region35: #{tpu_custom_call.1} parent=1 // pred_check_branch
      %109 = sbr.rel (0) target = $region37
    $region36: #{tpu_custom_call.1} parent=1 // pred_region
      %s111 = ssub.s32 73728, 73728
      %112 = vsyncadd [#allocation15], %s111
      %s113 = sshll.u32 [#allocation16], 4
      %s114 = int_to_ptr.vmem [resolvable:$true] %s113
      %119 = dma.hbm_to_vmem [thread:$0]  %s8, 73728, %s114, [#allocation15], 768, 768, 48
    $region37: #{tpu_custom_call.1} parent=1 // pred_fallthru
      _
    // Predicated region
    $region38: #{tpu_custom_call.1} parent=1 // pred_check
      _
    $region39: #{tpu_custom_call.1} parent=1 // pred_check_branch
      %121 = sbr.rel (0) target = $region41
    $region40: #{tpu_custom_call.1} parent=1 // pred_region
      %s123 = ssub.s32 96, 96
      %124 = vsyncadd [#allocation18], %s123
      %s126 = sshll.u32 [#allocation17], 4
      %s127 = int_to_ptr.vmem [resolvable:$true] %s126
      %129 = dma.hbm_to_vmem [thread:$0]  %s9, 96, %s127, [#allocation18]
    $region41: #{tpu_custom_call.1} parent=1 // pred_fallthru
      _
    // Predicated region
    $region42: #{tpu_custom_call.1} parent=1 // pred_check
      _
    $region43: #{tpu_custom_call.1} parent=1 // pred_check_branch
      %131 = sbr.rel (0) target = $region45
    $region44: #{tpu_custom_call.1} parent=1 // pred_region
      %132 = dma.done [#allocation3], 768
    $region45: #{tpu_custom_call.1} parent=1 // pred_fallthru
      _
    // Predicated region
    $region46: #{tpu_custom_call.1} parent=1 // pred_check
      _
    $region47: #{tpu_custom_call.1} parent=1 // pred_check_branch
      %134 = sbr.rel (0) target = $region49
    $region48: #{tpu_custom_call.1} parent=1 // pred_region
      %135 = dma.done [#allocation6], 98304
    $region49: #{tpu_custom_call.1} parent=1 // pred_fallthru
      _
    // Predicated region
    $region50: #{tpu_custom_call.1} parent=1 // pred_check
      _
    $region51: #{tpu_custom_call.1} parent=1 // pred_check_branch
      %137 = sbr.rel (0) target = $region53
    $region52: #{tpu_custom_call.1} parent=1 // pred_region
      %138 = dma.done [#allocation6], 131072
    $region53: #{tpu_custom_call.1} parent=1 // pred_fallthru
      _
    // Predicated region
    $region54: #{tpu_custom_call.1} parent=1 // pred_check
      _
    $region55: #{tpu_custom_call.1} parent=1 // pred_check_branch
      %140 = sbr.rel (0) target = $region57
    $region56: #{tpu_custom_call.1} parent=1 // pred_region
      %141 = dma.done [#allocation9], 128
    $region57: #{tpu_custom_call.1} parent=1 // pred_fallthru
      _
    // Predicated region
    $region58: #{tpu_custom_call.1} parent=1 // pred_check
      _
    $region59: #{tpu_custom_call.1} parent=1 // pred_check_branch
      %143 = sbr.rel (0) target = $region61
    $region60: #{tpu_custom_call.1} parent=1 // pred_region
      %144 = dma.done [#allocation9], 128
    $region61: #{tpu_custom_call.1} parent=1 // pred_fallthru
      _
    // Predicated region
    $region62: #{tpu_custom_call.1} parent=1 // pred_check
      _
    $region63: #{tpu_custom_call.1} parent=1 // pred_check_branch
      %146 = sbr.rel (0) target = $region65
    $region64: #{tpu_custom_call.1} parent=1 // pred_region
      %147 = dma.done [#allocation12], 128
    $region65: #{tpu_custom_call.1} parent=1 // pred_fallthru
      _
    // Predicated region
    $region66: #{tpu_custom_call.1} parent=1 // pred_check
      _
    $region67: #{tpu_custom_call.1} parent=1 // pred_check_branch
      %149 = sbr.rel (0) target = $region69
    $region68: #{tpu_custom_call.1} parent=1 // pred_region
      %150 = dma.done [#allocation12], 98304
    $region69: #{tpu_custom_call.1} parent=1 // pred_fallthru
      _
    // Predicated region
    $region70: #{tpu_custom_call.1} parent=1 // pred_check
      _
    $region71: #{tpu_custom_call.1} parent=1 // pred_check_branch
      %152 = sbr.rel (0) target = $region73
    $region72: #{tpu_custom_call.1} parent=1 // pred_region
      %153 = dma.done [#allocation15], 96
    $region73: #{tpu_custom_call.1} parent=1 // pred_fallthru
      _
    // Predicated region
    $region74: #{tpu_custom_call.1} parent=1 // pred_check
      _
    $region75: #{tpu_custom_call.1} parent=1 // pred_check_branch
      %155 = sbr.rel (0) target = $region77
    $region76: #{tpu_custom_call.1} parent=1 // pred_region
      %156 = dma.done [#allocation15], 73728
    $region77: #{tpu_custom_call.1} parent=1 // pred_fallthru
      _
    // Predicated region
    $region78: #{tpu_custom_call.1} parent=1 // pred_check
      _
    $region79: #{tpu_custom_call.1} parent=1 // pred_check_branch
      %158 = sbr.rel (0) target = $region81
    $region80: #{tpu_custom_call.1} parent=1 // pred_region
      %159 = dma.done [#allocation18], 96
    $region81: #{tpu_custom_call.1} parent=1 // pred_fallthru
      _
    %v160 = vld [vmem:[#allocation2] sm:$0xff]
    %v161 = vld [vmem:[#allocation2 + $0x8] sm:$0xff]
    %v162 = vld [vmem:[#allocation2 + $0x10] sm:$0xff]
    %v163 = vld [vmem:[#allocation2 + $0x18] sm:$0xff]
    %v164 = vld [vmem:[#allocation2 + $0x20] sm:$0xff]
    %v165 = vld [vmem:[#allocation2 + $0x28] sm:$0xff]
    %v166 = vld [vmem:[#allocation5] sm:$0xff]
    %v167 = vld [vmem:[#allocation5 + $0x8] sm:$0xff]
    %v168 = vld [vmem:[#allocation5 + $0x10] sm:$0xff]
    %v169 = vld [vmem:[#allocation5 + $0x18] sm:$0xff]
    %v170 = vld [vmem:[#allocation5 + $0x20] sm:$0xff]
    %v171 = vld [vmem:[#allocation5 + $0x28] sm:$0xff]
    %v172 = vld [vmem:[#allocation5 + $0x30] sm:$0xff]
    %v173 = vld [vmem:[#allocation5 + $0x38] sm:$0xff]
    %v174 = vld [vmem:[#allocation5 + $0x40] sm:$0xff]
    %v175 = vld [vmem:[#allocation5 + $0x48] sm:$0xff]
    %v176 = vld [vmem:[#allocation5 + $0x50] sm:$0xff]
    %v177 = vld [vmem:[#allocation5 + $0x58] sm:$0xff]
    %v178 = vld [vmem:[#allocation5 + $0x60] sm:$0xff]
    %v179 = vld [vmem:[#allocation5 + $0x68] sm:$0xff]
    %v180 = vld [vmem:[#allocation5 + $0x70] sm:$0xff]
    %v181 = vld [vmem:[#allocation5 + $0x78] sm:$0xff]
    %v182 = vld [vmem:[#allocation5 + $0x80] sm:$0xff]
    %v183 = vld [vmem:[#allocation5 + $0x88] sm:$0xff]
    %v184 = vld [vmem:[#allocation5 + $0x90] sm:$0xff]
    %v185 = vld [vmem:[#allocation5 + $0x98] sm:$0xff]
    %v186 = vld [vmem:[#allocation5 + $0xa0] sm:$0xff]
    %v187 = vld [vmem:[#allocation5 + $0xa8] sm:$0xff]
    %v188 = vld [vmem:[#allocation5 + $0xb0] sm:$0xff]
    %v189 = vld [vmem:[#allocation5 + $0xb8] sm:$0xff]
    %v190 = vld [vmem:[#allocation5 + $0xc0] sm:$0xff]
    %v191 = vld [vmem:[#allocation5 + $0xc8] sm:$0xff]
    %v192 = vld [vmem:[#allocation5 + $0xd0] sm:$0xff]
    %v193 = vld [vmem:[#allocation5 + $0xd8] sm:$0xff]
    %v194 = vld [vmem:[#allocation5 + $0xe0] sm:$0xff]
    %v195 = vld [vmem:[#allocation5 + $0xe8] sm:$0xff]
    %v196 = vld [vmem:[#allocation5 + $0xf0] sm:$0xff]
    %v197 = vld [vmem:[#allocation5 + $0xf8] sm:$0xff]
    %v198 = vld [vmem:[#allocation5 + $0x100] sm:$0xff]
    %v199 = vld [vmem:[#allocation5 + $0x108] sm:$0xff]
    %v200 = vld [vmem:[#allocation5 + $0x110] sm:$0xff]
    %v201 = vld [vmem:[#allocation5 + $0x118] sm:$0xff]
    %v202 = vld [vmem:[#allocation5 + $0x120] sm:$0xff]
    %v203 = vld [vmem:[#allocation5 + $0x128] sm:$0xff]
    %v204 = vld [vmem:[#allocation5 + $0x130] sm:$0xff]
    %v205 = vld [vmem:[#allocation5 + $0x138] sm:$0xff]
    %v206 = vld [vmem:[#allocation5 + $0x140] sm:$0xff]
    %v207 = vld [vmem:[#allocation5 + $0x148] sm:$0xff]
    %v208 = vld [vmem:[#allocation5 + $0x150] sm:$0xff]
    %v209 = vld [vmem:[#allocation5 + $0x158] sm:$0xff]
    %v210 = vld [vmem:[#allocation5 + $0x160] sm:$0xff]
    %v211 = vld [vmem:[#allocation5 + $0x168] sm:$0xff]
    %v212 = vld [vmem:[#allocation5 + $0x170] sm:$0xff]
    %v213 = vld [vmem:[#allocation5 + $0x178] sm:$0xff]
    %v214 = vld [vmem:[#allocation5 + $0x180] sm:$0xff]
    %v215 = vld [vmem:[#allocation5 + $0x188] sm:$0xff]
    %v216 = vld [vmem:[#allocation5 + $0x190] sm:$0xff]
    %v217 = vld [vmem:[#allocation5 + $0x198] sm:$0xff]
    %v218 = vld [vmem:[#allocation5 + $0x1a0] sm:$0xff]
    %v219 = vld [vmem:[#allocation5 + $0x1a8] sm:$0xff]
    %v220 = vld [vmem:[#allocation5 + $0x1b0] sm:$0xff]
    %v221 = vld [vmem:[#allocation5 + $0x1b8] sm:$0xff]
    %v222 = vld [vmem:[#allocation5 + $0x1c0] sm:$0xff]
    %v223 = vld [vmem:[#allocation5 + $0x1c8] sm:$0xff]
    %v224 = vld [vmem:[#allocation5 + $0x1d0] sm:$0xff]
    %v225 = vld [vmem:[#allocation5 + $0x1d8] sm:$0xff]
    %v226 = vld [vmem:[#allocation5 + $0x1e0] sm:$0xff]
    %v227 = vld [vmem:[#allocation5 + $0x1e8] sm:$0xff]
    %v228 = vld [vmem:[#allocation5 + $0x1f0] sm:$0xff]
    %v229 = vld [vmem:[#allocation5 + $0x1f8] sm:$0xff]
    %v230 = vld [vmem:[#allocation5 + $0x200] sm:$0xff]
    %v231 = vld [vmem:[#allocation5 + $0x208] sm:$0xff]
    %v232 = vld [vmem:[#allocation5 + $0x210] sm:$0xff]
    %v233 = vld [vmem:[#allocation5 + $0x218] sm:$0xff]
    %v234 = vld [vmem:[#allocation5 + $0x220] sm:$0xff]
    %v235 = vld [vmem:[#allocation5 + $0x228] sm:$0xff]
    %v236 = vld [vmem:[#allocation5 + $0x230] sm:$0xff]
    %v237 = vld [vmem:[#allocation5 + $0x238] sm:$0xff]
    %v238 = vld [vmem:[#allocation5 + $0x240] sm:$0xff]
    %v239 = vld [vmem:[#allocation5 + $0x248] sm:$0xff]
    %v240 = vld [vmem:[#allocation5 + $0x250] sm:$0xff]
    %v241 = vld [vmem:[#allocation5 + $0x258] sm:$0xff]
    %v242 = vld [vmem:[#allocation5 + $0x260] sm:$0xff]
    %v243 = vld [vmem:[#allocation5 + $0x268] sm:$0xff]
    %v244 = vld [vmem:[#allocation5 + $0x270] sm:$0xff]
    %v245 = vld [vmem:[#allocation5 + $0x278] sm:$0xff]
    %v246 = vld [vmem:[#allocation5 + $0x280] sm:$0xff]
    %v247 = vld [vmem:[#allocation5 + $0x288] sm:$0xff]
    %v248 = vld [vmem:[#allocation5 + $0x290] sm:$0xff]
    %v249 = vld [vmem:[#allocation5 + $0x298] sm:$0xff]
    %v250 = vld [vmem:[#allocation5 + $0x2a0] sm:$0xff]
    %v251 = vld [vmem:[#allocation5 + $0x2a8] sm:$0xff]
    %v252 = vld [vmem:[#allocation5 + $0x2b0] sm:$0xff]
    %v253 = vld [vmem:[#allocation5 + $0x2b8] sm:$0xff]
    %v254 = vld [vmem:[#allocation5 + $0x2c0] sm:$0xff]
    %v255 = vld [vmem:[#allocation5 + $0x2c8] sm:$0xff]
    %v256 = vld [vmem:[#allocation5 + $0x2d0] sm:$0xff]
    %v257 = vld [vmem:[#allocation5 + $0x2d8] sm:$0xff]
    %v258 = vld [vmem:[#allocation5 + $0x2e0] sm:$0xff]
    %v259 = vld [vmem:[#allocation5 + $0x2e8] sm:$0xff]
    %v260 = vld [vmem:[#allocation5 + $0x2f0] sm:$0xff]
    %v261 = vld [vmem:[#allocation5 + $0x2f8] sm:$0xff]
    %v262 = vld [vmem:[#allocation5 + $0x300] sm:$0xff]
    %v263 = vld [vmem:[#allocation5 + $0x308] sm:$0xff]
    %v264 = vld [vmem:[#allocation5 + $0x310] sm:$0xff]
    %v265 = vld [vmem:[#allocation5 + $0x318] sm:$0xff]
    %v266 = vld [vmem:[#allocation5 + $0x320] sm:$0xff]
    %v267 = vld [vmem:[#allocation5 + $0x328] sm:$0xff]
    %v268 = vld [vmem:[#allocation5 + $0x330] sm:$0xff]
    %v269 = vld [vmem:[#allocation5 + $0x338] sm:$0xff]
    %v270 = vld [vmem:[#allocation5 + $0x340] sm:$0xff]
    %v271 = vld [vmem:[#allocation5 + $0x348] sm:$0xff]
    %v272 = vld [vmem:[#allocation5 + $0x350] sm:$0xff]
    %v273 = vld [vmem:[#allocation5 + $0x358] sm:$0xff]
    %v274 = vld [vmem:[#allocation5 + $0x360] sm:$0xff]
    %v275 = vld [vmem:[#allocation5 + $0x368] sm:$0xff]
    %v276 = vld [vmem:[#allocation5 + $0x370] sm:$0xff]
    %v277 = vld [vmem:[#allocation5 + $0x378] sm:$0xff]
    %v278 = vld [vmem:[#allocation5 + $0x380] sm:$0xff]
    %v279 = vld [vmem:[#allocation5 + $0x388] sm:$0xff]
    %v280 = vld [vmem:[#allocation5 + $0x390] sm:$0xff]
    %v281 = vld [vmem:[#allocation5 + $0x398] sm:$0xff]
    %v282 = vld [vmem:[#allocation5 + $0x3a0] sm:$0xff]
    %v283 = vld [vmem:[#allocation5 + $0x3a8] sm:$0xff]
    %v284 = vld [vmem:[#allocation5 + $0x3b0] sm:$0xff]
    %v285 = vld [vmem:[#allocation5 + $0x3b8] sm:$0xff]
    %v286 = vld [vmem:[#allocation5 + $0x3c0] sm:$0xff]
    %v287 = vld [vmem:[#allocation5 + $0x3c8] sm:$0xff]
    %v288 = vld [vmem:[#allocation5 + $0x3d0] sm:$0xff]
    %v289 = vld [vmem:[#allocation5 + $0x3d8] sm:$0xff]
    %v290 = vld [vmem:[#allocation5 + $0x3e0] sm:$0xff]
    %v291 = vld [vmem:[#allocation5 + $0x3e8] sm:$0xff]
    %v292 = vld [vmem:[#allocation5 + $0x3f0] sm:$0xff]
    %v293 = vld [vmem:[#allocation5 + $0x3f8] sm:$0xff]
    %v294 = vld [vmem:[#allocation5 + $0x400] sm:$0xff]
    %v295 = vld [vmem:[#allocation5 + $0x408] sm:$0xff]
    %v296 = vld [vmem:[#allocation5 + $0x410] sm:$0xff]
    %v297 = vld [vmem:[#allocation5 + $0x418] sm:$0xff]
    %v298 = vld [vmem:[#allocation5 + $0x420] sm:$0xff]
    %v299 = vld [vmem:[#allocation5 + $0x428] sm:$0xff]
    %v300 = vld [vmem:[#allocation5 + $0x430] sm:$0xff]
    %v301 = vld [vmem:[#allocation5 + $0x438] sm:$0xff]
    %v302 = vld [vmem:[#allocation5 + $0x440] sm:$0xff]
    %v303 = vld [vmem:[#allocation5 + $0x448] sm:$0xff]
    %v304 = vld [vmem:[#allocation5 + $0x450] sm:$0xff]
    %v305 = vld [vmem:[#allocation5 + $0x458] sm:$0xff]
    %v306 = vld [vmem:[#allocation5 + $0x460] sm:$0xff]
    %v307 = vld [vmem:[#allocation5 + $0x468] sm:$0xff]
    %v308 = vld [vmem:[#allocation5 + $0x470] sm:$0xff]
    %v309 = vld [vmem:[#allocation5 + $0x478] sm:$0xff]
    %v310 = vld [vmem:[#allocation5 + $0x480] sm:$0xff]
    %v311 = vld [vmem:[#allocation5 + $0x488] sm:$0xff]
    %v312 = vld [vmem:[#allocation5 + $0x490] sm:$0xff]
    %v313 = vld [vmem:[#allocation5 + $0x498] sm:$0xff]
    %v314 = vld [vmem:[#allocation5 + $0x4a0] sm:$0xff]
    %v315 = vld [vmem:[#allocation5 + $0x4a8] sm:$0xff]
    %v316 = vld [vmem:[#allocation5 + $0x4b0] sm:$0xff]
    %v317 = vld [vmem:[#allocation5 + $0x4b8] sm:$0xff]
    %v318 = vld [vmem:[#allocation5 + $0x4c0] sm:$0xff]
    %v319 = vld [vmem:[#allocation5 + $0x4c8] sm:$0xff]
    %v320 = vld [vmem:[#allocation5 + $0x4d0] sm:$0xff]
    %v321 = vld [vmem:[#allocation5 + $0x4d8] sm:$0xff]
    %v322 = vld [vmem:[#allocation5 + $0x4e0] sm:$0xff]
    %v323 = vld [vmem:[#allocation5 + $0x4e8] sm:$0xff]
    %v324 = vld [vmem:[#allocation5 + $0x4f0] sm:$0xff]
    %v325 = vld [vmem:[#allocation5 + $0x4f8] sm:$0xff]
    %v326 = vld [vmem:[#allocation5 + $0x500] sm:$0xff]
    %v327 = vld [vmem:[#allocation5 + $0x508] sm:$0xff]
    %v328 = vld [vmem:[#allocation5 + $0x510] sm:$0xff]
    %v329 = vld [vmem:[#allocation5 + $0x518] sm:$0xff]
    %v330 = vld [vmem:[#allocation5 + $0x520] sm:$0xff]
    %v331 = vld [vmem:[#allocation5 + $0x528] sm:$0xff]
    %v332 = vld [vmem:[#allocation5 + $0x530] sm:$0xff]
    %v333 = vld [vmem:[#allocation5 + $0x538] sm:$0xff]
    %v334 = vld [vmem:[#allocation5 + $0x540] sm:$0xff]
    %v335 = vld [vmem:[#allocation5 + $0x548] sm:$0xff]
    %v336 = vld [vmem:[#allocation5 + $0x550] sm:$0xff]
    %v337 = vld [vmem:[#allocation5 + $0x558] sm:$0xff]
    %v338 = vld [vmem:[#allocation5 + $0x560] sm:$0xff]
    %v339 = vld [vmem:[#allocation5 + $0x568] sm:$0xff]
    %v340 = vld [vmem:[#allocation5 + $0x570] sm:$0xff]
    %v341 = vld [vmem:[#allocation5 + $0x578] sm:$0xff]
    %v342 = vld [vmem:[#allocation5 + $0x580] sm:$0xff]
    %v343 = vld [vmem:[#allocation5 + $0x588] sm:$0xff]
    %v344 = vld [vmem:[#allocation5 + $0x590] sm:$0xff]
    %v345 = vld [vmem:[#allocation5 + $0x598] sm:$0xff]
    %v346 = vld [vmem:[#allocation5 + $0x5a0] sm:$0xff]
    %v347 = vld [vmem:[#allocation5 + $0x5a8] sm:$0xff]
    %v348 = vld [vmem:[#allocation5 + $0x5b0] sm:$0xff]
    %v349 = vld [vmem:[#allocation5 + $0x5b8] sm:$0xff]
    %v350 = vld [vmem:[#allocation5 + $0x5c0] sm:$0xff]
    %v351 = vld [vmem:[#allocation5 + $0x5c8] sm:$0xff]
    %v352 = vld [vmem:[#allocation5 + $0x5d0] sm:$0xff]
    %v353 = vld [vmem:[#allocation5 + $0x5d8] sm:$0xff]
    %v354 = vld [vmem:[#allocation5 + $0x5e0] sm:$0xff]
    %v355 = vld [vmem:[#allocation5 + $0x5e8] sm:$0xff]
    %v356 = vld [vmem:[#allocation5 + $0x5f0] sm:$0xff]
    %v357 = vld [vmem:[#allocation5 + $0x5f8] sm:$0xff]
    %v358 = vld [vmem:[#allocation5 + $0x600] sm:$0xff]
    %v359 = vld [vmem:[#allocation5 + $0x608] sm:$0xff]
    %v360 = vld [vmem:[#allocation5 + $0x610] sm:$0xff]
    %v361 = vld [vmem:[#allocation5 + $0x618] sm:$0xff]
    %v362 = vld [vmem:[#allocation5 + $0x620] sm:$0xff]
    %v363 = vld [vmem:[#allocation5 + $0x628] sm:$0xff]
    %v364 = vld [vmem:[#allocation5 + $0x630] sm:$0xff]
    %v365 = vld [vmem:[#allocation5 + $0x638] sm:$0xff]
    %v366 = vld [vmem:[#allocation5 + $0x640] sm:$0xff]
    %v367 = vld [vmem:[#allocation5 + $0x648] sm:$0xff]
    %v368 = vld [vmem:[#allocation5 + $0x650] sm:$0xff]
    %v369 = vld [vmem:[#allocation5 + $0x658] sm:$0xff]
    %v370 = vld [vmem:[#allocation5 + $0x660] sm:$0xff]
    %v371 = vld [vmem:[#allocation5 + $0x668] sm:$0xff]
    %v372 = vld [vmem:[#allocation5 + $0x670] sm:$0xff]
    %v373 = vld [vmem:[#allocation5 + $0x678] sm:$0xff]
    %v374 = vld [vmem:[#allocation5 + $0x680] sm:$0xff]
    %v375 = vld [vmem:[#allocation5 + $0x688] sm:$0xff]
    %v376 = vld [vmem:[#allocation5 + $0x690] sm:$0xff]
    %v377 = vld [vmem:[#allocation5 + $0x698] sm:$0xff]
    %v378 = vld [vmem:[#allocation5 + $0x6a0] sm:$0xff]
    %v379 = vld [vmem:[#allocation5 + $0x6a8] sm:$0xff]
    %v380 = vld [vmem:[#allocation5 + $0x6b0] sm:$0xff]
    %v381 = vld [vmem:[#allocation5 + $0x6b8] sm:$0xff]
    %v382 = vld [vmem:[#allocation5 + $0x6c0] sm:$0xff]
    %v383 = vld [vmem:[#allocation5 + $0x6c8] sm:$0xff]
    %v384 = vld [vmem:[#allocation5 + $0x6d0] sm:$0xff]
    %v385 = vld [vmem:[#allocation5 + $0x6d8] sm:$0xff]
    %v386 = vld [vmem:[#allocation5 + $0x6e0] sm:$0xff]
    %v387 = vld [vmem:[#allocation5 + $0x6e8] sm:$0xff]
    %v388 = vld [vmem:[#allocation5 + $0x6f0] sm:$0xff]
    %v389 = vld [vmem:[#allocation5 + $0x6f8] sm:$0xff]
    %v390 = vld [vmem:[#allocation5 + $0x700] sm:$0xff]
    %v391 = vld [vmem:[#allocation5 + $0x708] sm:$0xff]
    %v392 = vld [vmem:[#allocation5 + $0x710] sm:$0xff]
    %v393 = vld [vmem:[#allocation5 + $0x718] sm:$0xff]
    %v394 = vld [vmem:[#allocation5 + $0x720] sm:$0xff]
    %v395 = vld [vmem:[#allocation5 + $0x728] sm:$0xff]
    %v396 = vld [vmem:[#allocation5 + $0x730] sm:$0xff]
    %v397 = vld [vmem:[#allocation5 + $0x738] sm:$0xff]
    %v398 = vld [vmem:[#allocation5 + $0x740] sm:$0xff]
    %v399 = vld [vmem:[#allocation5 + $0x748] sm:$0xff]
    %v400 = vld [vmem:[#allocation5 + $0x750] sm:$0xff]
    %v401 = vld [vmem:[#allocation5 + $0x758] sm:$0xff]
    %v402 = vld [vmem:[#allocation5 + $0x760] sm:$0xff]
    %v403 = vld [vmem:[#allocation5 + $0x768] sm:$0xff]
    %v404 = vld [vmem:[#allocation5 + $0x770] sm:$0xff]
    %v405 = vld [vmem:[#allocation5 + $0x778] sm:$0xff]
    %v406 = vld [vmem:[#allocation5 + $0x780] sm:$0xff]
    %v407 = vld [vmem:[#allocation5 + $0x788] sm:$0xff]
    %v408 = vld [vmem:[#allocation5 + $0x790] sm:$0xff]
    %v409 = vld [vmem:[#allocation5 + $0x798] sm:$0xff]
    %v410 = vld [vmem:[#allocation5 + $0x7a0] sm:$0xff]
    %v411 = vld [vmem:[#allocation5 + $0x7a8] sm:$0xff]
    %v412 = vld [vmem:[#allocation5 + $0x7b0] sm:$0xff]
    %v413 = vld [vmem:[#allocation5 + $0x7b8] sm:$0xff]
    %v414 = vld [vmem:[#allocation5 + $0x7c0] sm:$0xff]
    %v415 = vld [vmem:[#allocation5 + $0x7c8] sm:$0xff]
    %v416 = vld [vmem:[#allocation5 + $0x7d0] sm:$0xff]
    %v417 = vld [vmem:[#allocation5 + $0x7d8] sm:$0xff]
    %v418 = vld [vmem:[#allocation5 + $0x7e0] sm:$0xff]
    %v419 = vld [vmem:[#allocation5 + $0x7e8] sm:$0xff]
    %v420 = vld [vmem:[#allocation5 + $0x7f0] sm:$0xff]
    %v421 = vld [vmem:[#allocation5 + $0x7f8] sm:$0xff]
    %v422 = vld [vmem:[#allocation5 + $0x800] sm:$0xff]
    %v423 = vld [vmem:[#allocation5 + $0x808] sm:$0xff]
    %v424 = vld [vmem:[#allocation5 + $0x810] sm:$0xff]
    %v425 = vld [vmem:[#allocation5 + $0x818] sm:$0xff]
    %v426 = vld [vmem:[#allocation5 + $0x820] sm:$0xff]
    %v427 = vld [vmem:[#allocation5 + $0x828] sm:$0xff]
    %v428 = vld [vmem:[#allocation5 + $0x830] sm:$0xff]
    %v429 = vld [vmem:[#allocation5 + $0x838] sm:$0xff]
    %v430 = vld [vmem:[#allocation5 + $0x840] sm:$0xff]
    %v431 = vld [vmem:[#allocation5 + $0x848] sm:$0xff]
    %v432 = vld [vmem:[#allocation5 + $0x850] sm:$0xff]
    %v433 = vld [vmem:[#allocation5 + $0x858] sm:$0xff]
    %v434 = vld [vmem:[#allocation5 + $0x860] sm:$0xff]
    %v435 = vld [vmem:[#allocation5 + $0x868] sm:$0xff]
    %v436 = vld [vmem:[#allocation5 + $0x870] sm:$0xff]
    %v437 = vld [vmem:[#allocation5 + $0x878] sm:$0xff]
    %v438 = vld [vmem:[#allocation5 + $0x880] sm:$0xff]
    %v439 = vld [vmem:[#allocation5 + $0x888] sm:$0xff]
    %v440 = vld [vmem:[#allocation5 + $0x890] sm:$0xff]
    %v441 = vld [vmem:[#allocation5 + $0x898] sm:$0xff]
    %v442 = vld [vmem:[#allocation5 + $0x8a0] sm:$0xff]
    %v443 = vld [vmem:[#allocation5 + $0x8a8] sm:$0xff]
    %v444 = vld [vmem:[#allocation5 + $0x8b0] sm:$0xff]
    %v445 = vld [vmem:[#allocation5 + $0x8b8] sm:$0xff]
    %v446 = vld [vmem:[#allocation5 + $0x8c0] sm:$0xff]
    %v447 = vld [vmem:[#allocation5 + $0x8c8] sm:$0xff]
    %v448 = vld [vmem:[#allocation5 + $0x8d0] sm:$0xff]
    %v449 = vld [vmem:[#allocation5 + $0x8d8] sm:$0xff]
    %v450 = vld [vmem:[#allocation5 + $0x8e0] sm:$0xff]
    %v451 = vld [vmem:[#allocation5 + $0x8e8] sm:$0xff]
    %v452 = vld [vmem:[#allocation5 + $0x8f0] sm:$0xff]
    %v453 = vld [vmem:[#allocation5 + $0x8f8] sm:$0xff]
    %v454 = vld [vmem:[#allocation5 + $0x900] sm:$0xff]
    %v455 = vld [vmem:[#allocation5 + $0x908] sm:$0xff]
    %v456 = vld [vmem:[#allocation5 + $0x910] sm:$0xff]
    %v457 = vld [vmem:[#allocation5 + $0x918] sm:$0xff]
    %v458 = vld [vmem:[#allocation5 + $0x920] sm:$0xff]
    %v459 = vld [vmem:[#allocation5 + $0x928] sm:$0xff]
    %v460 = vld [vmem:[#allocation5 + $0x930] sm:$0xff]
    %v461 = vld [vmem:[#allocation5 + $0x938] sm:$0xff]
    %v462 = vld [vmem:[#allocation5 + $0x940] sm:$0xff]
    %v463 = vld [vmem:[#allocation5 + $0x948] sm:$0xff]
    %v464 = vld [vmem:[#allocation5 + $0x950] sm:$0xff]
    %v465 = vld [vmem:[#allocation5 + $0x958] sm:$0xff]
    %v466 = vld [vmem:[#allocation5 + $0x960] sm:$0xff]
    %v467 = vld [vmem:[#allocation5 + $0x968] sm:$0xff]
    %v468 = vld [vmem:[#allocation5 + $0x970] sm:$0xff]
    %v469 = vld [vmem:[#allocation5 + $0x978] sm:$0xff]
    %v470 = vld [vmem:[#allocation5 + $0x980] sm:$0xff]
    %v471 = vld [vmem:[#allocation5 + $0x988] sm:$0xff]
    %v472 = vld [vmem:[#allocation5 + $0x990] sm:$0xff]
    %v473 = vld [vmem:[#allocation5 + $0x998] sm:$0xff]
    %v474 = vld [vmem:[#allocation5 + $0x9a0] sm:$0xff]
    %v475 = vld [vmem:[#allocation5 + $0x9a8] sm:$0xff]
    %v476 = vld [vmem:[#allocation5 + $0x9b0] sm:$0xff]
    %v477 = vld [vmem:[#allocation5 + $0x9b8] sm:$0xff]
    %v478 = vld [vmem:[#allocation5 + $0x9c0] sm:$0xff]
    %v479 = vld [vmem:[#allocation5 + $0x9c8] sm:$0xff]
    %v480 = vld [vmem:[#allocation5 + $0x9d0] sm:$0xff]
    %v481 = vld [vmem:[#allocation5 + $0x9d8] sm:$0xff]
    %v482 = vld [vmem:[#allocation5 + $0x9e0] sm:$0xff]
    %v483 = vld [vmem:[#allocation5 + $0x9e8] sm:$0xff]
    %v484 = vld [vmem:[#allocation5 + $0x9f0] sm:$0xff]
    %v485 = vld [vmem:[#allocation5 + $0x9f8] sm:$0xff]
    %v486 = vld [vmem:[#allocation5 + $0xa00] sm:$0xff]
    %v487 = vld [vmem:[#allocation5 + $0xa08] sm:$0xff]
    %v488 = vld [vmem:[#allocation5 + $0xa10] sm:$0xff]
    %v489 = vld [vmem:[#allocation5 + $0xa18] sm:$0xff]
    %v490 = vld [vmem:[#allocation5 + $0xa20] sm:$0xff]
    %v491 = vld [vmem:[#allocation5 + $0xa28] sm:$0xff]
    %v492 = vld [vmem:[#allocation5 + $0xa30] sm:$0xff]
    %v493 = vld [vmem:[#allocation5 + $0xa38] sm:$0xff]
    %v494 = vld [vmem:[#allocation5 + $0xa40] sm:$0xff]
    %v495 = vld [vmem:[#allocation5 + $0xa48] sm:$0xff]
    %v496 = vld [vmem:[#allocation5 + $0xa50] sm:$0xff]
    %v497 = vld [vmem:[#allocation5 + $0xa58] sm:$0xff]
    %v498 = vld [vmem:[#allocation5 + $0xa60] sm:$0xff]
    %v499 = vld [vmem:[#allocation5 + $0xa68] sm:$0xff]
    %v500 = vld [vmem:[#allocation5 + $0xa70] sm:$0xff]
    %v501 = vld [vmem:[#allocation5 + $0xa78] sm:$0xff]
    %v502 = vld [vmem:[#allocation5 + $0xa80] sm:$0xff]
    %v503 = vld [vmem:[#allocation5 + $0xa88] sm:$0xff]
    %v504 = vld [vmem:[#allocation5 + $0xa90] sm:$0xff]
    %v505 = vld [vmem:[#allocation5 + $0xa98] sm:$0xff]
    %v506 = vld [vmem:[#allocation5 + $0xaa0] sm:$0xff]
    %v507 = vld [vmem:[#allocation5 + $0xaa8] sm:$0xff]
    %v508 = vld [vmem:[#allocation5 + $0xab0] sm:$0xff]
    %v509 = vld [vmem:[#allocation5 + $0xab8] sm:$0xff]
    %v510 = vld [vmem:[#allocation5 + $0xac0] sm:$0xff]
    %v511 = vld [vmem:[#allocation5 + $0xac8] sm:$0xff]
    %v512 = vld [vmem:[#allocation5 + $0xad0] sm:$0xff]
    %v513 = vld [vmem:[#allocation5 + $0xad8] sm:$0xff]
    %v514 = vld [vmem:[#allocation5 + $0xae0] sm:$0xff]
    %v515 = vld [vmem:[#allocation5 + $0xae8] sm:$0xff]
    %v516 = vld [vmem:[#allocation5 + $0xaf0] sm:$0xff]
    %v517 = vld [vmem:[#allocation5 + $0xaf8] sm:$0xff]
    %v518 = vld [vmem:[#allocation5 + $0xb00] sm:$0xff]
    %v519 = vld [vmem:[#allocation5 + $0xb08] sm:$0xff]
    %v520 = vld [vmem:[#allocation5 + $0xb10] sm:$0xff]
    %v521 = vld [vmem:[#allocation5 + $0xb18] sm:$0xff]
    %v522 = vld [vmem:[#allocation5 + $0xb20] sm:$0xff]
    %v523 = vld [vmem:[#allocation5 + $0xb28] sm:$0xff]
    %v524 = vld [vmem:[#allocation5 + $0xb30] sm:$0xff]
    %v525 = vld [vmem:[#allocation5 + $0xb38] sm:$0xff]
    %v526 = vld [vmem:[#allocation5 + $0xb40] sm:$0xff]
    %v527 = vld [vmem:[#allocation5 + $0xb48] sm:$0xff]
    %v528 = vld [vmem:[#allocation5 + $0xb50] sm:$0xff]
    %v529 = vld [vmem:[#allocation5 + $0xb58] sm:$0xff]
    %v530 = vld [vmem:[#allocation5 + $0xb60] sm:$0xff]
    %v531 = vld [vmem:[#allocation5 + $0xb68] sm:$0xff]
    %v532 = vld [vmem:[#allocation5 + $0xb70] sm:$0xff]
    %v533 = vld [vmem:[#allocation5 + $0xb78] sm:$0xff]
    %v534 = vld [vmem:[#allocation5 + $0xb80] sm:$0xff]
    %v535 = vld [vmem:[#allocation5 + $0xb88] sm:$0xff]
    %v536 = vld [vmem:[#allocation5 + $0xb90] sm:$0xff]
    %v537 = vld [vmem:[#allocation5 + $0xb98] sm:$0xff]
    %v538 = vld [vmem:[#allocation5 + $0xba0] sm:$0xff]
    %v539 = vld [vmem:[#allocation5 + $0xba8] sm:$0xff]
    %v540 = vld [vmem:[#allocation5 + $0xbb0] sm:$0xff]
    %v541 = vld [vmem:[#allocation5 + $0xbb8] sm:$0xff]
    %v542 = vld [vmem:[#allocation5 + $0xbc0] sm:$0xff]
    %v543 = vld [vmem:[#allocation5 + $0xbc8] sm:$0xff]
    %v544 = vld [vmem:[#allocation5 + $0xbd0] sm:$0xff]
    %v545 = vld [vmem:[#allocation5 + $0xbd8] sm:$0xff]
    %v546 = vld [vmem:[#allocation5 + $0xbe0] sm:$0xff]
    %v547 = vld [vmem:[#allocation5 + $0xbe8] sm:$0xff]
    %v548 = vld [vmem:[#allocation5 + $0xbf0] sm:$0xff]
    %v549 = vld [vmem:[#allocation5 + $0xbf8] sm:$0xff]
    %v550 = vld [vmem:[#allocation5 + $0xc00] sm:$0xff]
    %v551 = vld [vmem:[#allocation5 + $0xc08] sm:$0xff]
    %v552 = vld [vmem:[#allocation5 + $0xc10] sm:$0xff]
    %v553 = vld [vmem:[#allocation5 + $0xc18] sm:$0xff]
    %v554 = vld [vmem:[#allocation5 + $0xc20] sm:$0xff]
    %v555 = vld [vmem:[#allocation5 + $0xc28] sm:$0xff]
    %v556 = vld [vmem:[#allocation5 + $0xc30] sm:$0xff]
    %v557 = vld [vmem:[#allocation5 + $0xc38] sm:$0xff]
    %v558 = vld [vmem:[#allocation5 + $0xc40] sm:$0xff]
    %v559 = vld [vmem:[#allocation5 + $0xc48] sm:$0xff]
    %v560 = vld [vmem:[#allocation5 + $0xc50] sm:$0xff]
    %v561 = vld [vmem:[#allocation5 + $0xc58] sm:$0xff]
    %v562 = vld [vmem:[#allocation5 + $0xc60] sm:$0xff]
    %v563 = vld [vmem:[#allocation5 + $0xc68] sm:$0xff]
    %v564 = vld [vmem:[#allocation5 + $0xc70] sm:$0xff]
    %v565 = vld [vmem:[#allocation5 + $0xc78] sm:$0xff]
    %v566 = vld [vmem:[#allocation5 + $0xc80] sm:$0xff]
    %v567 = vld [vmem:[#allocation5 + $0xc88] sm:$0xff]
    %v568 = vld [vmem:[#allocation5 + $0xc90] sm:$0xff]
    %v569 = vld [vmem:[#allocation5 + $0xc98] sm:$0xff]
    %v570 = vld [vmem:[#allocation5 + $0xca0] sm:$0xff]
    %v571 = vld [vmem:[#allocation5 + $0xca8] sm:$0xff]
    %v572 = vld [vmem:[#allocation5 + $0xcb0] sm:$0xff]
    %v573 = vld [vmem:[#allocation5 + $0xcb8] sm:$0xff]
    %v574 = vld [vmem:[#allocation5 + $0xcc0] sm:$0xff]
    %v575 = vld [vmem:[#allocation5 + $0xcc8] sm:$0xff]
    %v576 = vld [vmem:[#allocation5 + $0xcd0] sm:$0xff]
    %v577 = vld [vmem:[#allocation5 + $0xcd8] sm:$0xff]
    %v578 = vld [vmem:[#allocation5 + $0xce0] sm:$0xff]
    %v579 = vld [vmem:[#allocation5 + $0xce8] sm:$0xff]
    %v580 = vld [vmem:[#allocation5 + $0xcf0] sm:$0xff]
    %v581 = vld [vmem:[#allocation5 + $0xcf8] sm:$0xff]
    %v582 = vld [vmem:[#allocation5 + $0xd00] sm:$0xff]
    %v583 = vld [vmem:[#allocation5 + $0xd08] sm:$0xff]
    %v584 = vld [vmem:[#allocation5 + $0xd10] sm:$0xff]
    %v585 = vld [vmem:[#allocation5 + $0xd18] sm:$0xff]
    %v586 = vld [vmem:[#allocation5 + $0xd20] sm:$0xff]
    %v587 = vld [vmem:[#allocation5 + $0xd28] sm:$0xff]
    %v588 = vld [vmem:[#allocation5 + $0xd30] sm:$0xff]
    %v589 = vld [vmem:[#allocation5 + $0xd38] sm:$0xff]
    %v590 = vld [vmem:[#allocation5 + $0xd40] sm:$0xff]
    %v591 = vld [vmem:[#allocation5 + $0xd48] sm:$0xff]
    %v592 = vld [vmem:[#allocation5 + $0xd50] sm:$0xff]
    %v593 = vld [vmem:[#allocation5 + $0xd58] sm:$0xff]
    %v594 = vld [vmem:[#allocation5 + $0xd60] sm:$0xff]
    %v595 = vld [vmem:[#allocation5 + $0xd68] sm:$0xff]
    %v596 = vld [vmem:[#allocation5 + $0xd70] sm:$0xff]
    %v597 = vld [vmem:[#allocation5 + $0xd78] sm:$0xff]
    %v598 = vld [vmem:[#allocation5 + $0xd80] sm:$0xff]
    %v599 = vld [vmem:[#allocation5 + $0xd88] sm:$0xff]
    %v600 = vld [vmem:[#allocation5 + $0xd90] sm:$0xff]
    %v601 = vld [vmem:[#allocation5 + $0xd98] sm:$0xff]
    %v602 = vld [vmem:[#allocation5 + $0xda0] sm:$0xff]
    %v603 = vld [vmem:[#allocation5 + $0xda8] sm:$0xff]
    %v604 = vld [vmem:[#allocation5 + $0xdb0] sm:$0xff]
    %v605 = vld [vmem:[#allocation5 + $0xdb8] sm:$0xff]
    %v606 = vld [vmem:[#allocation5 + $0xdc0] sm:$0xff]
    %v607 = vld [vmem:[#allocation5 + $0xdc8] sm:$0xff]
    %v608 = vld [vmem:[#allocation5 + $0xdd0] sm:$0xff]
    %v609 = vld [vmem:[#allocation5 + $0xdd8] sm:$0xff]
    %v610 = vld [vmem:[#allocation5 + $0xde0] sm:$0xff]
    %v611 = vld [vmem:[#allocation5 + $0xde8] sm:$0xff]
    %v612 = vld [vmem:[#allocation5 + $0xdf0] sm:$0xff]
    %v613 = vld [vmem:[#allocation5 + $0xdf8] sm:$0xff]
    %v614 = vld [vmem:[#allocation5 + $0xe00] sm:$0xff]
    %v615 = vld [vmem:[#allocation5 + $0xe08] sm:$0xff]
    %v616 = vld [vmem:[#allocation5 + $0xe10] sm:$0xff]
    %v617 = vld [vmem:[#allocation5 + $0xe18] sm:$0xff]
    %v618 = vld [vmem:[#allocation5 + $0xe20] sm:$0xff]
    %v619 = vld [vmem:[#allocation5 + $0xe28] sm:$0xff]
    %v620 = vld [vmem:[#allocation5 + $0xe30] sm:$0xff]
    %v621 = vld [vmem:[#allocation5 + $0xe38] sm:$0xff]
    %v622 = vld [vmem:[#allocation5 + $0xe40] sm:$0xff]
    %v623 = vld [vmem:[#allocation5 + $0xe48] sm:$0xff]
    %v624 = vld [vmem:[#allocation5 + $0xe50] sm:$0xff]
    %v625 = vld [vmem:[#allocation5 + $0xe58] sm:$0xff]
    %v626 = vld [vmem:[#allocation5 + $0xe60] sm:$0xff]
    %v627 = vld [vmem:[#allocation5 + $0xe68] sm:$0xff]
    %v628 = vld [vmem:[#allocation5 + $0xe70] sm:$0xff]
    %v629 = vld [vmem:[#allocation5 + $0xe78] sm:$0xff]
    %v630 = vld [vmem:[#allocation5 + $0xe80] sm:$0xff]
    %v631 = vld [vmem:[#allocation5 + $0xe88] sm:$0xff]
    %v632 = vld [vmem:[#allocation5 + $0xe90] sm:$0xff]
    %v633 = vld [vmem:[#allocation5 + $0xe98] sm:$0xff]
    %v634 = vld [vmem:[#allocation5 + $0xea0] sm:$0xff]
    %v635 = vld [vmem:[#allocation5 + $0xea8] sm:$0xff]
    %v636 = vld [vmem:[#allocation5 + $0xeb0] sm:$0xff]
    %v637 = vld [vmem:[#allocation5 + $0xeb8] sm:$0xff]
    %v638 = vld [vmem:[#allocation5 + $0xec0] sm:$0xff]
    %v639 = vld [vmem:[#allocation5 + $0xec8] sm:$0xff]
    %v640 = vld [vmem:[#allocation5 + $0xed0] sm:$0xff]
    %v641 = vld [vmem:[#allocation5 + $0xed8] sm:$0xff]
    %v642 = vld [vmem:[#allocation5 + $0xee0] sm:$0xff]
    %v643 = vld [vmem:[#allocation5 + $0xee8] sm:$0xff]
    %v644 = vld [vmem:[#allocation5 + $0xef0] sm:$0xff]
    %v645 = vld [vmem:[#allocation5 + $0xef8] sm:$0xff]
    %v646 = vld [vmem:[#allocation5 + $0xf00] sm:$0xff]
    %v647 = vld [vmem:[#allocation5 + $0xf08] sm:$0xff]
    %v648 = vld [vmem:[#allocation5 + $0xf10] sm:$0xff]
    %v649 = vld [vmem:[#allocation5 + $0xf18] sm:$0xff]
    %v650 = vld [vmem:[#allocation5 + $0xf20] sm:$0xff]
    %v651 = vld [vmem:[#allocation5 + $0xf28] sm:$0xff]
    %v652 = vld [vmem:[#allocation5 + $0xf30] sm:$0xff]
    %v653 = vld [vmem:[#allocation5 + $0xf38] sm:$0xff]
    %v654 = vld [vmem:[#allocation5 + $0xf40] sm:$0xff]
    %v655 = vld [vmem:[#allocation5 + $0xf48] sm:$0xff]
    %v656 = vld [vmem:[#allocation5 + $0xf50] sm:$0xff]
    %v657 = vld [vmem:[#allocation5 + $0xf58] sm:$0xff]
    %v658 = vld [vmem:[#allocation5 + $0xf60] sm:$0xff]
    %v659 = vld [vmem:[#allocation5 + $0xf68] sm:$0xff]
    %v660 = vld [vmem:[#allocation5 + $0xf70] sm:$0xff]
    %v661 = vld [vmem:[#allocation5 + $0xf78] sm:$0xff]
    %v662 = vld [vmem:[#allocation5 + $0xf80] sm:$0xff]
    %v663 = vld [vmem:[#allocation5 + $0xf88] sm:$0xff]
    %v664 = vld [vmem:[#allocation5 + $0xf90] sm:$0xff]
    %v665 = vld [vmem:[#allocation5 + $0xf98] sm:$0xff]
    %v666 = vld [vmem:[#allocation5 + $0xfa0] sm:$0xff]
    %v667 = vld [vmem:[#allocation5 + $0xfa8] sm:$0xff]
    %v668 = vld [vmem:[#allocation5 + $0xfb0] sm:$0xff]
    %v669 = vld [vmem:[#allocation5 + $0xfb8] sm:$0xff]
    %v670 = vld [vmem:[#allocation5 + $0xfc0] sm:$0xff]
    %v671 = vld [vmem:[#allocation5 + $0xfc8] sm:$0xff]
    %v672 = vld [vmem:[#allocation5 + $0xfd0] sm:$0xff]
    %v673 = vld [vmem:[#allocation5 + $0xfd8] sm:$0xff]
    %v674 = vld [vmem:[#allocation5 + $0xfe0] sm:$0xff]
    %v675 = vld [vmem:[#allocation5 + $0xfe8] sm:$0xff]
    %v676 = vld [vmem:[#allocation5 + $0xff0] sm:$0xff]
    %v677 = vld [vmem:[#allocation5 + $0xff8] sm:$0xff]
    %v678 = vld [vmem:[#allocation5 + $0x1000] sm:$0xff]
    %v679 = vld [vmem:[#allocation5 + $0x1008] sm:$0xff]
    %v680 = vld [vmem:[#allocation5 + $0x1010] sm:$0xff]
    %v681 = vld [vmem:[#allocation5 + $0x1018] sm:$0xff]
    %v682 = vld [vmem:[#allocation5 + $0x1020] sm:$0xff]
    %v683 = vld [vmem:[#allocation5 + $0x1028] sm:$0xff]
    %v684 = vld [vmem:[#allocation5 + $0x1030] sm:$0xff]
    %v685 = vld [vmem:[#allocation5 + $0x1038] sm:$0xff]
    %v686 = vld [vmem:[#allocation5 + $0x1040] sm:$0xff]
    %v687 = vld [vmem:[#allocation5 + $0x1048] sm:$0xff]
    %v688 = vld [vmem:[#allocation5 + $0x1050] sm:$0xff]
    %v689 = vld [vmem:[#allocation5 + $0x1058] sm:$0xff]
    %v690 = vld [vmem:[#allocation5 + $0x1060] sm:$0xff]
    %v691 = vld [vmem:[#allocation5 + $0x1068] sm:$0xff]
    %v692 = vld [vmem:[#allocation5 + $0x1070] sm:$0xff]
    %v693 = vld [vmem:[#allocation5 + $0x1078] sm:$0xff]
    %v694 = vld [vmem:[#allocation5 + $0x1080] sm:$0xff]
    %v695 = vld [vmem:[#allocation5 + $0x1088] sm:$0xff]
    %v696 = vld [vmem:[#allocation5 + $0x1090] sm:$0xff]
    %v697 = vld [vmem:[#allocation5 + $0x1098] sm:$0xff]
    %v698 = vld [vmem:[#allocation5 + $0x10a0] sm:$0xff]
    %v699 = vld [vmem:[#allocation5 + $0x10a8] sm:$0xff]
    %v700 = vld [vmem:[#allocation5 + $0x10b0] sm:$0xff]
    %v701 = vld [vmem:[#allocation5 + $0x10b8] sm:$0xff]
    %v702 = vld [vmem:[#allocation5 + $0x10c0] sm:$0xff]
    %v703 = vld [vmem:[#allocation5 + $0x10c8] sm:$0xff]
    %v704 = vld [vmem:[#allocation5 + $0x10d0] sm:$0xff]
    %v705 = vld [vmem:[#allocation5 + $0x10d8] sm:$0xff]
    %v706 = vld [vmem:[#allocation5 + $0x10e0] sm:$0xff]
    %v707 = vld [vmem:[#allocation5 + $0x10e8] sm:$0xff]
    %v708 = vld [vmem:[#allocation5 + $0x10f0] sm:$0xff]
    %v709 = vld [vmem:[#allocation5 + $0x10f8] sm:$0xff]
    %v710 = vld [vmem:[#allocation5 + $0x1100] sm:$0xff]
    %v711 = vld [vmem:[#allocation5 + $0x1108] sm:$0xff]
    %v712 = vld [vmem:[#allocation5 + $0x1110] sm:$0xff]
    %v713 = vld [vmem:[#allocation5 + $0x1118] sm:$0xff]
    %v714 = vld [vmem:[#allocation5 + $0x1120] sm:$0xff]
    %v715 = vld [vmem:[#allocation5 + $0x1128] sm:$0xff]
    %v716 = vld [vmem:[#allocation5 + $0x1130] sm:$0xff]
    %v717 = vld [vmem:[#allocation5 + $0x1138] sm:$0xff]
    %v718 = vld [vmem:[#allocation5 + $0x1140] sm:$0xff]
    %v719 = vld [vmem:[#allocation5 + $0x1148] sm:$0xff]
    %v720 = vld [vmem:[#allocation5 + $0x1150] sm:$0xff]
    %v721 = vld [vmem:[#allocation5 + $0x1158] sm:$0xff]
    %v722 = vld [vmem:[#allocation5 + $0x1160] sm:$0xff]
    %v723 = vld [vmem:[#allocation5 + $0x1168] sm:$0xff]
    %v724 = vld [vmem:[#allocation5 + $0x1170] sm:$0xff]
    %v725 = vld [vmem:[#allocation5 + $0x1178] sm:$0xff]
    %v726 = vld [vmem:[#allocation5 + $0x1180] sm:$0xff]
    %v727 = vld [vmem:[#allocation5 + $0x1188] sm:$0xff]
    %v728 = vld [vmem:[#allocation5 + $0x1190] sm:$0xff]
    %v729 = vld [vmem:[#allocation5 + $0x1198] sm:$0xff]
    %v730 = vld [vmem:[#allocation5 + $0x11a0] sm:$0xff]
    %v731 = vld [vmem:[#allocation5 + $0x11a8] sm:$0xff]
    %v732 = vld [vmem:[#allocation5 + $0x11b0] sm:$0xff]
    %v733 = vld [vmem:[#allocation5 + $0x11b8] sm:$0xff]
    %v734 = vld [vmem:[#allocation5 + $0x11c0] sm:$0xff]
    %v735 = vld [vmem:[#allocation5 + $0x11c8] sm:$0xff]
    %v736 = vld [vmem:[#allocation5 + $0x11d0] sm:$0xff]
    %v737 = vld [vmem:[#allocation5 + $0x11d8] sm:$0xff]
    %v738 = vld [vmem:[#allocation5 + $0x11e0] sm:$0xff]
    %v739 = vld [vmem:[#allocation5 + $0x11e8] sm:$0xff]
    %v740 = vld [vmem:[#allocation5 + $0x11f0] sm:$0xff]
    %v741 = vld [vmem:[#allocation5 + $0x11f8] sm:$0xff]
    %v742 = vld [vmem:[#allocation5 + $0x1200] sm:$0xff]
    %v743 = vld [vmem:[#allocation5 + $0x1208] sm:$0xff]
    %v744 = vld [vmem:[#allocation5 + $0x1210] sm:$0xff]
    %v745 = vld [vmem:[#allocation5 + $0x1218] sm:$0xff]
    %v746 = vld [vmem:[#allocation5 + $0x1220] sm:$0xff]
    %v747 = vld [vmem:[#allocation5 + $0x1228] sm:$0xff]
    %v748 = vld [vmem:[#allocation5 + $0x1230] sm:$0xff]
    %v749 = vld [vmem:[#allocation5 + $0x1238] sm:$0xff]
    %v750 = vld [vmem:[#allocation5 + $0x1240] sm:$0xff]
    %v751 = vld [vmem:[#allocation5 + $0x1248] sm:$0xff]
    %v752 = vld [vmem:[#allocation5 + $0x1250] sm:$0xff]
    %v753 = vld [vmem:[#allocation5 + $0x1258] sm:$0xff]
    %v754 = vld [vmem:[#allocation5 + $0x1260] sm:$0xff]
    %v755 = vld [vmem:[#allocation5 + $0x1268] sm:$0xff]
    %v756 = vld [vmem:[#allocation5 + $0x1270] sm:$0xff]
    %v757 = vld [vmem:[#allocation5 + $0x1278] sm:$0xff]
    %v758 = vld [vmem:[#allocation5 + $0x1280] sm:$0xff]
    %v759 = vld [vmem:[#allocation5 + $0x1288] sm:$0xff]
    %v760 = vld [vmem:[#allocation5 + $0x1290] sm:$0xff]
    %v761 = vld [vmem:[#allocation5 + $0x1298] sm:$0xff]
    %v762 = vld [vmem:[#allocation5 + $0x12a0] sm:$0xff]
    %v763 = vld [vmem:[#allocation5 + $0x12a8] sm:$0xff]
    %v764 = vld [vmem:[#allocation5 + $0x12b0] sm:$0xff]
    %v765 = vld [vmem:[#allocation5 + $0x12b8] sm:$0xff]
    %v766 = vld [vmem:[#allocation5 + $0x12c0] sm:$0xff]
    %v767 = vld [vmem:[#allocation5 + $0x12c8] sm:$0xff]
    %v768 = vld [vmem:[#allocation5 + $0x12d0] sm:$0xff]
    %v769 = vld [vmem:[#allocation5 + $0x12d8] sm:$0xff]
    %v770 = vld [vmem:[#allocation5 + $0x12e0] sm:$0xff]
    %v771 = vld [vmem:[#allocation5 + $0x12e8] sm:$0xff]
    %v772 = vld [vmem:[#allocation5 + $0x12f0] sm:$0xff]
    %v773 = vld [vmem:[#allocation5 + $0x12f8] sm:$0xff]
    %v774 = vld [vmem:[#allocation5 + $0x1300] sm:$0xff]
    %v775 = vld [vmem:[#allocation5 + $0x1308] sm:$0xff]
    %v776 = vld [vmem:[#allocation5 + $0x1310] sm:$0xff]
    %v777 = vld [vmem:[#allocation5 + $0x1318] sm:$0xff]
    %v778 = vld [vmem:[#allocation5 + $0x1320] sm:$0xff]
    %v779 = vld [vmem:[#allocation5 + $0x1328] sm:$0xff]
    %v780 = vld [vmem:[#allocation5 + $0x1330] sm:$0xff]
    %v781 = vld [vmem:[#allocation5 + $0x1338] sm:$0xff]
    %v782 = vld [vmem:[#allocation5 + $0x1340] sm:$0xff]
    %v783 = vld [vmem:[#allocation5 + $0x1348] sm:$0xff]
    %v784 = vld [vmem:[#allocation5 + $0x1350] sm:$0xff]
    %v785 = vld [vmem:[#allocation5 + $0x1358] sm:$0xff]
    %v786 = vld [vmem:[#allocation5 + $0x1360] sm:$0xff]
    %v787 = vld [vmem:[#allocation5 + $0x1368] sm:$0xff]
    %v788 = vld [vmem:[#allocation5 + $0x1370] sm:$0xff]
    %v789 = vld [vmem:[#allocation5 + $0x1378] sm:$0xff]
    %v790 = vld [vmem:[#allocation5 + $0x1380] sm:$0xff]
    %v791 = vld [vmem:[#allocation5 + $0x1388] sm:$0xff]
    %v792 = vld [vmem:[#allocation5 + $0x1390] sm:$0xff]
    %v793 = vld [vmem:[#allocation5 + $0x1398] sm:$0xff]
    %v794 = vld [vmem:[#allocation5 + $0x13a0] sm:$0xff]
    %v795 = vld [vmem:[#allocation5 + $0x13a8] sm:$0xff]
    %v796 = vld [vmem:[#allocation5 + $0x13b0] sm:$0xff]
    %v797 = vld [vmem:[#allocation5 + $0x13b8] sm:$0xff]
    %v798 = vld [vmem:[#allocation5 + $0x13c0] sm:$0xff]
    %v799 = vld [vmem:[#allocation5 + $0x13c8] sm:$0xff]
    %v800 = vld [vmem:[#allocation5 + $0x13d0] sm:$0xff]
    %v801 = vld [vmem:[#allocation5 + $0x13d8] sm:$0xff]
    %v802 = vld [vmem:[#allocation5 + $0x13e0] sm:$0xff]
    %v803 = vld [vmem:[#allocation5 + $0x13e8] sm:$0xff]
    %v804 = vld [vmem:[#allocation5 + $0x13f0] sm:$0xff]
    %v805 = vld [vmem:[#allocation5 + $0x13f8] sm:$0xff]
    %v806 = vld [vmem:[#allocation5 + $0x1400] sm:$0xff]
    %v807 = vld [vmem:[#allocation5 + $0x1408] sm:$0xff]
    %v808 = vld [vmem:[#allocation5 + $0x1410] sm:$0xff]
    %v809 = vld [vmem:[#allocation5 + $0x1418] sm:$0xff]
    %v810 = vld [vmem:[#allocation5 + $0x1420] sm:$0xff]
    %v811 = vld [vmem:[#allocation5 + $0x1428] sm:$0xff]
    %v812 = vld [vmem:[#allocation5 + $0x1430] sm:$0xff]
    %v813 = vld [vmem:[#allocation5 + $0x1438] sm:$0xff]
    %v814 = vld [vmem:[#allocation5 + $0x1440] sm:$0xff]
    %v815 = vld [vmem:[#allocation5 + $0x1448] sm:$0xff]
    %v816 = vld [vmem:[#allocation5 + $0x1450] sm:$0xff]
    %v817 = vld [vmem:[#allocation5 + $0x1458] sm:$0xff]
    %v818 = vld [vmem:[#allocation5 + $0x1460] sm:$0xff]
    %v819 = vld [vmem:[#allocation5 + $0x1468] sm:$0xff]
    %v820 = vld [vmem:[#allocation5 + $0x1470] sm:$0xff]
    %v821 = vld [vmem:[#allocation5 + $0x1478] sm:$0xff]
    %v822 = vld [vmem:[#allocation5 + $0x1480] sm:$0xff]
    %v823 = vld [vmem:[#allocation5 + $0x1488] sm:$0xff]
    %v824 = vld [vmem:[#allocation5 + $0x1490] sm:$0xff]
    %v825 = vld [vmem:[#allocation5 + $0x1498] sm:$0xff]
    %v826 = vld [vmem:[#allocation5 + $0x14a0] sm:$0xff]
    %v827 = vld [vmem:[#allocation5 + $0x14a8] sm:$0xff]
    %v828 = vld [vmem:[#allocation5 + $0x14b0] sm:$0xff]
    %v829 = vld [vmem:[#allocation5 + $0x14b8] sm:$0xff]
    %v830 = vld [vmem:[#allocation5 + $0x14c0] sm:$0xff]
    %v831 = vld [vmem:[#allocation5 + $0x14c8] sm:$0xff]
    %v832 = vld [vmem:[#allocation5 + $0x14d0] sm:$0xff]
    %v833 = vld [vmem:[#allocation5 + $0x14d8] sm:$0xff]
    %v834 = vld [vmem:[#allocation5 + $0x14e0] sm:$0xff]
    %v835 = vld [vmem:[#allocation5 + $0x14e8] sm:$0xff]
    %v836 = vld [vmem:[#allocation5 + $0x14f0] sm:$0xff]
    %v837 = vld [vmem:[#allocation5 + $0x14f8] sm:$0xff]
    %v838 = vld [vmem:[#allocation5 + $0x1500] sm:$0xff]
    %v839 = vld [vmem:[#allocation5 + $0x1508] sm:$0xff]
    %v840 = vld [vmem:[#allocation5 + $0x1510] sm:$0xff]
    %v841 = vld [vmem:[#allocation5 + $0x1518] sm:$0xff]
    %v842 = vld [vmem:[#allocation5 + $0x1520] sm:$0xff]
    %v843 = vld [vmem:[#allocation5 + $0x1528] sm:$0xff]
    %v844 = vld [vmem:[#allocation5 + $0x1530] sm:$0xff]
    %v845 = vld [vmem:[#allocation5 + $0x1538] sm:$0xff]
    %v846 = vld [vmem:[#allocation5 + $0x1540] sm:$0xff]
    %v847 = vld [vmem:[#allocation5 + $0x1548] sm:$0xff]
    %v848 = vld [vmem:[#allocation5 + $0x1550] sm:$0xff]
    %v849 = vld [vmem:[#allocation5 + $0x1558] sm:$0xff]
    %v850 = vld [vmem:[#allocation5 + $0x1560] sm:$0xff]
    %v851 = vld [vmem:[#allocation5 + $0x1568] sm:$0xff]
    %v852 = vld [vmem:[#allocation5 + $0x1570] sm:$0xff]
    %v853 = vld [vmem:[#allocation5 + $0x1578] sm:$0xff]
    %v854 = vld [vmem:[#allocation5 + $0x1580] sm:$0xff]
    %v855 = vld [vmem:[#allocation5 + $0x1588] sm:$0xff]
    %v856 = vld [vmem:[#allocation5 + $0x1590] sm:$0xff]
    %v857 = vld [vmem:[#allocation5 + $0x1598] sm:$0xff]
    %v858 = vld [vmem:[#allocation5 + $0x15a0] sm:$0xff]
    %v859 = vld [vmem:[#allocation5 + $0x15a8] sm:$0xff]
    %v860 = vld [vmem:[#allocation5 + $0x15b0] sm:$0xff]
    %v861 = vld [vmem:[#allocation5 + $0x15b8] sm:$0xff]
    %v862 = vld [vmem:[#allocation5 + $0x15c0] sm:$0xff]
    %v863 = vld [vmem:[#allocation5 + $0x15c8] sm:$0xff]
    %v864 = vld [vmem:[#allocation5 + $0x15d0] sm:$0xff]
    %v865 = vld [vmem:[#allocation5 + $0x15d8] sm:$0xff]
    %v866 = vld [vmem:[#allocation5 + $0x15e0] sm:$0xff]
    %v867 = vld [vmem:[#allocation5 + $0x15e8] sm:$0xff]
    %v868 = vld [vmem:[#allocation5 + $0x15f0] sm:$0xff]
    %v869 = vld [vmem:[#allocation5 + $0x15f8] sm:$0xff]
    %v870 = vld [vmem:[#allocation5 + $0x1600] sm:$0xff]
    %v871 = vld [vmem:[#allocation5 + $0x1608] sm:$0xff]
    %v872 = vld [vmem:[#allocation5 + $0x1610] sm:$0xff]
    %v873 = vld [vmem:[#allocation5 + $0x1618] sm:$0xff]
    %v874 = vld [vmem:[#allocation5 + $0x1620] sm:$0xff]
    %v875 = vld [vmem:[#allocation5 + $0x1628] sm:$0xff]
    %v876 = vld [vmem:[#allocation5 + $0x1630] sm:$0xff]
    %v877 = vld [vmem:[#allocation5 + $0x1638] sm:$0xff]
    %v878 = vld [vmem:[#allocation5 + $0x1640] sm:$0xff]
    %v879 = vld [vmem:[#allocation5 + $0x1648] sm:$0xff]
    %v880 = vld [vmem:[#allocation5 + $0x1650] sm:$0xff]
    %v881 = vld [vmem:[#allocation5 + $0x1658] sm:$0xff]
    %v882 = vld [vmem:[#allocation5 + $0x1660] sm:$0xff]
    %v883 = vld [vmem:[#allocation5 + $0x1668] sm:$0xff]
    %v884 = vld [vmem:[#allocation5 + $0x1670] sm:$0xff]
    %v885 = vld [vmem:[#allocation5 + $0x1678] sm:$0xff]
    %v886 = vld [vmem:[#allocation5 + $0x1680] sm:$0xff]
    %v887 = vld [vmem:[#allocation5 + $0x1688] sm:$0xff]
    %v888 = vld [vmem:[#allocation5 + $0x1690] sm:$0xff]
    %v889 = vld [vmem:[#allocation5 + $0x1698] sm:$0xff]
    %v890 = vld [vmem:[#allocation5 + $0x16a0] sm:$0xff]
    %v891 = vld [vmem:[#allocation5 + $0x16a8] sm:$0xff]
    %v892 = vld [vmem:[#allocation5 + $0x16b0] sm:$0xff]
    %v893 = vld [vmem:[#allocation5 + $0x16b8] sm:$0xff]
    %v894 = vld [vmem:[#allocation5 + $0x16c0] sm:$0xff]
    %v895 = vld [vmem:[#allocation5 + $0x16c8] sm:$0xff]
    %v896 = vld [vmem:[#allocation5 + $0x16d0] sm:$0xff]
    %v897 = vld [vmem:[#allocation5 + $0x16d8] sm:$0xff]
    %v898 = vld [vmem:[#allocation5 + $0x16e0] sm:$0xff]
    %v899 = vld [vmem:[#allocation5 + $0x16e8] sm:$0xff]
    %v900 = vld [vmem:[#allocation5 + $0x16f0] sm:$0xff]
    %v901 = vld [vmem:[#allocation5 + $0x16f8] sm:$0xff]
    %v902 = vld [vmem:[#allocation5 + $0x1700] sm:$0xff]
    %v903 = vld [vmem:[#allocation5 + $0x1708] sm:$0xff]
    %v904 = vld [vmem:[#allocation5 + $0x1710] sm:$0xff]
    %v905 = vld [vmem:[#allocation5 + $0x1718] sm:$0xff]
    %v906 = vld [vmem:[#allocation5 + $0x1720] sm:$0xff]
    %v907 = vld [vmem:[#allocation5 + $0x1728] sm:$0xff]
    %v908 = vld [vmem:[#allocation5 + $0x1730] sm:$0xff]
    %v909 = vld [vmem:[#allocation5 + $0x1738] sm:$0xff]
    %v910 = vld [vmem:[#allocation5 + $0x1740] sm:$0xff]
    %v911 = vld [vmem:[#allocation5 + $0x1748] sm:$0xff]
    %v912 = vld [vmem:[#allocation5 + $0x1750] sm:$0xff]
    %v913 = vld [vmem:[#allocation5 + $0x1758] sm:$0xff]
    %v914 = vld [vmem:[#allocation5 + $0x1760] sm:$0xff]
    %v915 = vld [vmem:[#allocation5 + $0x1768] sm:$0xff]
    %v916 = vld [vmem:[#allocation5 + $0x1770] sm:$0xff]
    %v917 = vld [vmem:[#allocation5 + $0x1778] sm:$0xff]
    %v918 = vld [vmem:[#allocation5 + $0x1780] sm:$0xff]
    %v919 = vld [vmem:[#allocation5 + $0x1788] sm:$0xff]
    %v920 = vld [vmem:[#allocation5 + $0x1790] sm:$0xff]
    %v921 = vld [vmem:[#allocation5 + $0x1798] sm:$0xff]
    %v922 = vld [vmem:[#allocation5 + $0x17a0] sm:$0xff]
    %v923 = vld [vmem:[#allocation5 + $0x17a8] sm:$0xff]
    %v924 = vld [vmem:[#allocation5 + $0x17b0] sm:$0xff]
    %v925 = vld [vmem:[#allocation5 + $0x17b8] sm:$0xff]
    %v926 = vld [vmem:[#allocation5 + $0x17c0] sm:$0xff]
    %v927 = vld [vmem:[#allocation5 + $0x17c8] sm:$0xff]
    %v928 = vld [vmem:[#allocation5 + $0x17d0] sm:$0xff]
    %v929 = vld [vmem:[#allocation5 + $0x17d8] sm:$0xff]
    %v930 = vld [vmem:[#allocation5 + $0x17e0] sm:$0xff]
    %v931 = vld [vmem:[#allocation5 + $0x17e8] sm:$0xff]
    %v932 = vld [vmem:[#allocation5 + $0x17f0] sm:$0xff]
    %v933 = vld [vmem:[#allocation5 + $0x17f8] sm:$0xff]
    %934 = vmatprep.subr.mxu0 %v167
    %935 = vmatpush1.msra.mxu0 %v166
    %936 = vmatprep.subr.mxu0 %v175
    %937 = vmatpush1.msra.mxu0 %v174
    %938 = vmatprep.subr.mxu0 %v183
    %939 = vmatpush1.msra.mxu0 %v182
    %940 = vmatprep.subr.mxu0 %v191
    %941 = vmatpush1.msra.mxu0 %v190
    %942 = vmatprep.subr.mxu0 %v199
    %943 = vmatpush1.msra.mxu0 %v198
    %944 = vmatprep.subr.mxu0 %v207
    %945 = vmatpush1.msra.mxu0 %v206
    %946 = vmatprep.subr.mxu0 %v215
    %947 = vmatpush1.msra.mxu0 %v214
    %948 = vmatprep.subr.mxu0 %v223
    %949 = vmatpush1.msra.mxu0 %v222
    %950 = vmatprep.subr.mxu0 %v231
    %951 = vmatpush1.msra.mxu0 %v230
    %952 = vmatprep.subr.mxu0 %v239
    %953 = vmatpush1.msra.mxu0 %v238
    %954 = vmatprep.subr.mxu0 %v247
    %955 = vmatpush1.msra.mxu0 %v246
    %956 = vmatprep.subr.mxu0 %v255
    %957 = vmatpush1.msra.mxu0 %v254
    %958 = vmatprep.subr.mxu0 %v263
    %959 = vmatpush1.msra.mxu0 %v262
    %960 = vmatprep.subr.mxu0 %v271
    %961 = vmatpush1.msra.mxu0 %v270
    %962 = vmatprep.subr.mxu0 %v279
    %963 = vmatpush1.msra.mxu0 %v278
    %964 = vmatprep.subr.mxu0 %v287
    %965 = vmatpush1.msra.mxu0 %v286
    %966 = vmatprep.subr.mxu0 %v295
    %967 = vmatpush1.msra.mxu0 %v294
    %968 = vmatprep.subr.mxu0 %v303
    %969 = vmatpush1.msra.mxu0 %v302
    %970 = vmatprep.subr.mxu0 %v311
    %971 = vmatpush1.msra.mxu0 %v310
    %972 = vmatprep.subr.mxu0 %v319
    %973 = vmatpush1.msra.mxu0 %v318
    %974 = vmatprep.subr.mxu0 %v327
    %975 = vmatpush1.msra.mxu0 %v326
    %976 = vmatprep.subr.mxu0 %v335
    %977 = vmatpush1.msra.mxu0 %v334
    %978 = vmatprep.subr.mxu0 %v343
    %979 = vmatpush1.msra.mxu0 %v342
    %980 = vmatprep.subr.mxu0 %v351
    %981 = vmatpush1.msra.mxu0 %v350
    %982 = vmatprep.subr.mxu0 %v359
    %983 = vmatpush1.msra.mxu0 %v358
    %984 = vmatprep.subr.mxu0 %v367
    %985 = vmatpush1.msra.mxu0 %v366
    %986 = vmatprep.subr.mxu0 %v375
    %987 = vmatpush1.msra.mxu0 %v374
    %988 = vmatprep.subr.mxu0 %v383
    %989 = vmatpush1.msra.mxu0 %v382
    %990 = vmatprep.subr.mxu0 %v391
    %991 = vmatpush1.msra.mxu0 %v390
    %992 = vmatprep.subr.mxu0 %v399
    %993 = vmatpush1.msra.mxu0 %v398
    %994 = vmatprep.subr.mxu0 %v407
    %995 = vmatpush1.msra.mxu0 %v406
    %996 = vmatprep.subr.mxu0 %v415
    %997 = vmatpush1.msra.mxu0 %v414
    %998 = vmatprep.mubr.f32.mxu0 %v161
    %999 = vmatmul.mubr.f32.gmra.mrb[0].mxu0 %v160
    %v1000 = vpop.f32.mrb[0].mxu0
    %v1001 = vadd.f32 0.0, %v1000
    %v1002 = vpop.f32.mrb[0].mxu0
    %v1003 = vadd.f32 0.0, %v1002
    %1004 = vdwg.mxu0
    %1005 = vmatprep.subr.mxu0 %v423
    %1006 = vmatpush1.msra.mxu0 %v422
    %1007 = vmatprep.subr.mxu0 %v431
    %1008 = vmatpush1.msra.mxu0 %v430
    %1009 = vmatprep.subr.mxu0 %v439
    %1010 = vmatpush1.msra.mxu0 %v438
    %1011 = vmatprep.subr.mxu0 %v447
    %1012 = vmatpush1.msra.mxu0 %v446
    %1013 = vmatprep.subr.mxu0 %v455
    %1014 = vmatpush1.msra.mxu0 %v454
    %1015 = vmatprep.subr.mxu0 %v463
    %1016 = vmatpush1.msra.mxu0 %v462
    %1017 = vmatprep.subr.mxu0 %v471
    %1018 = vmatpush1.msra.mxu0 %v470
    %1019 = vmatprep.subr.mxu0 %v479
    %1020 = vmatpush1.msra.mxu0 %v478
    %1021 = vmatprep.subr.mxu0 %v487
    %1022 = vmatpush1.msra.mxu0 %v486
    %1023 = vmatprep.subr.mxu0 %v495
    %1024 = vmatpush1.msra.mxu0 %v494
    %1025 = vmatprep.subr.mxu0 %v503
    %1026 = vmatpush1.msra.mxu0 %v502
    %1027 = vmatprep.subr.mxu0 %v511
    %1028 = vmatpush1.msra.mxu0 %v510
    %1029 = vmatprep.subr.mxu0 %v519
    %1030 = vmatpush1.msra.mxu0 %v518
    %1031 = vmatprep.subr.mxu0 %v527
    %1032 = vmatpush1.msra.mxu0 %v526
    %1033 = vmatprep.subr.mxu0 %v535
    %1034 = vmatpush1.msra.mxu0 %v534
    %1035 = vmatprep.subr.mxu0 %v543
    %1036 = vmatpush1.msra.mxu0 %v542
    %1037 = vmatprep.subr.mxu0 %v551
    %1038 = vmatpush1.msra.mxu0 %v550
    %1039 = vmatprep.subr.mxu0 %v559
    %1040 = vmatpush1.msra.mxu0 %v558
    %1041 = vmatprep.subr.mxu0 %v567
    %1042 = vmatpush1.msra.mxu0 %v566
    %1043 = vmatprep.subr.mxu0 %v575
    %1044 = vmatpush1.msra.mxu0 %v574
    %1045 = vmatprep.subr.mxu0 %v583
    %1046 = vmatpush1.msra.mxu0 %v582
    %1047 = vmatprep.subr.mxu0 %v591
    %1048 = vmatpush1.msra.mxu0 %v590
    %1049 = vmatprep.subr.mxu0 %v599
    %1050 = vmatpush1.msra.mxu0 %v598
    %1051 = vmatprep.subr.mxu0 %v607
    %1052 = vmatpush1.msra.mxu0 %v606
    %1053 = vmatprep.subr.mxu0 %v615
    %1054 = vmatpush1.msra.mxu0 %v614
    %1055 = vmatprep.subr.mxu0 %v623
    %1056 = vmatpush1.msra.mxu0 %v622
    %1057 = vmatprep.subr.mxu0 %v631
    %1058 = vmatpush1.msra.mxu0 %v630
    %1059 = vmatprep.subr.mxu0 %v639
    %1060 = vmatpush1.msra.mxu0 %v638
    %1061 = vmatprep.subr.mxu0 %v647
    %1062 = vmatpush1.msra.mxu0 %v646
    %1063 = vmatprep.subr.mxu0 %v655
    %1064 = vmatpush1.msra.mxu0 %v654
    %1065 = vmatprep.subr.mxu0 %v663
    %1066 = vmatpush1.msra.mxu0 %v662
    %1067 = vmatprep.subr.mxu0 %v671
    %1068 = vmatpush1.msra.mxu0 %v670
    %1069 = vmatprep.mubr.f32.mxu0 %v163
    %1070 = vmatmul.mubr.f32.gmra.mrb[0].mxu0 %v162
    %v1071 = vpop.f32.mrb[0].mxu0
    %v1072 = vadd.f32 %v1001, %v1071
    %v1073 = vpop.f32.mrb[0].mxu0
    %v1074 = vadd.f32 %v1003, %v1073
    %1075 = vdwg.mxu0
    %1076 = vmatprep.subr.mxu0 %v679
    %1077 = vmatpush1.msra.mxu0 %v678
    %1078 = vmatprep.subr.mxu0 %v687
    %1079 = vmatpush1.msra.mxu0 %v686
    %1080 = vmatprep.subr.mxu0 %v695
    %1081 = vmatpush1.msra.mxu0 %v694
    %1082 = vmatprep.subr.mxu0 %v703
    %1083 = vmatpush1.msra.mxu0 %v702
    %1084 = vmatprep.subr.mxu0 %v711
    %1085 = vmatpush1.msra.mxu0 %v710
    %1086 = vmatprep.subr.mxu0 %v719
    %1087 = vmatpush1.msra.mxu0 %v718
    %1088 = vmatprep.subr.mxu0 %v727
    %1089 = vmatpush1.msra.mxu0 %v726
    %1090 = vmatprep.subr.mxu0 %v735
    %1091 = vmatpush1.msra.mxu0 %v734
    %1092 = vmatprep.subr.mxu0 %v743
    %1093 = vmatpush1.msra.mxu0 %v742
    %1094 = vmatprep.subr.mxu0 %v751
    %1095 = vmatpush1.msra.mxu0 %v750
    %1096 = vmatprep.subr.mxu0 %v759
    %1097 = vmatpush1.msra.mxu0 %v758
    %1098 = vmatprep.subr.mxu0 %v767
    %1099 = vmatpush1.msra.mxu0 %v766
    %1100 = vmatprep.subr.mxu0 %v775
    %1101 = vmatpush1.msra.mxu0 %v774
    %1102 = vmatprep.subr.mxu0 %v783
    %1103 = vmatpush1.msra.mxu0 %v782
    %1104 = vmatprep.subr.mxu0 %v791
    %1105 = vmatpush1.msra.mxu0 %v790
    %1106 = vmatprep.subr.mxu0 %v799
    %1107 = vmatpush1.msra.mxu0 %v798
    %1108 = vmatprep.subr.mxu0 %v807
    %1109 = vmatpush1.msra.mxu0 %v806
    %1110 = vmatprep.subr.mxu0 %v815
    %1111 = vmatpush1.msra.mxu0 %v814
    %1112 = vmatprep.subr.mxu0 %v823
    %1113 = vmatpush1.msra.mxu0 %v822
    %1114 = vmatprep.subr.mxu0 %v831
    %1115 = vmatpush1.msra.mxu0 %v830
    %1116 = vmatprep.subr.mxu0 %v839
    %1117 = vmatpush1.msra.mxu0 %v838
    %1118 = vmatprep.subr.mxu0 %v847
    %1119 = vmatpush1.msra.mxu0 %v846
    %1120 = vmatprep.subr.mxu0 %v855
    %1121 = vmatpush1.msra.mxu0 %v854
    %1122 = vmatprep.subr.mxu0 %v863
    %1123 = vmatpush1.msra.mxu0 %v862
    %1124 = vmatprep.subr.mxu0 %v871
    %1125 = vmatpush1.msra.mxu0 %v870
    %1126 = vmatprep.subr.mxu0 %v879
    %1127 = vmatpush1.msra.mxu0 %v878
    %1128 = vmatprep.subr.mxu0 %v887
    %1129 = vmatpush1.msra.mxu0 %v886
    %1130 = vmatprep.subr.mxu0 %v895
    %1131 = vmatpush1.msra.mxu0 %v894
    %1132 = vmatprep.subr.mxu0 %v903
    %1133 = vmatpush1.msra.mxu0 %v902
    %1134 = vmatprep.subr.mxu0 %v911
    %1135 = vmatpush1.msra.mxu0 %v910
    %1136 = vmatprep.subr.mxu0 %v919
    %1137 = vmatpush1.msra.mxu0 %v918
    %1138 = vmatprep.subr.mxu0 %v927
    %1139 = vmatpush1.msra.mxu0 %v926
    %1140 = vmatprep.mubr.f32.mxu0 %v165
    %1141 = vmatmul.mubr.f32.gmra.mrb[0].mxu0 %v164
    %v1142 = vpop.f32.mrb[0].mxu0
    %v1143 = vadd.f32 %v1072, %v1142
    %v1144 = vpop.f32.mrb[0].mxu0
    %v1145 = vadd.f32 %v1074, %v1144
    %1146 = vdwg.mxu0
    %1147 = vmatprep.subr.mxu0 %v169
    %1148 = vmatpush1.msra.mxu0 %v168
    %1149 = vmatprep.subr.mxu0 %v177
    %1150 = vmatpush1.msra.mxu0 %v176
    %1151 = vmatprep.subr.mxu0 %v185
    %1152 = vmatpush1.msra.mxu0 %v184
    %1153 = vmatprep.subr.mxu0 %v193
    %1154 = vmatpush1.msra.mxu0 %v192
    %1155 = vmatprep.subr.mxu0 %v201
    %1156 = vmatpush1.msra.mxu0 %v200
    %1157 = vmatprep.subr.mxu0 %v209
    %1158 = vmatpush1.msra.mxu0 %v208
    %1159 = vmatprep.subr.mxu0 %v217
    %1160 = vmatpush1.msra.mxu0 %v216
    %1161 = vmatprep.subr.mxu0 %v225
    %1162 = vmatpush1.msra.mxu0 %v224
    %1163 = vmatprep.subr.mxu0 %v233
    %1164 = vmatpush1.msra.mxu0 %v232
    %1165 = vmatprep.subr.mxu0 %v241
    %1166 = vmatpush1.msra.mxu0 %v240
    %1167 = vmatprep.subr.mxu0 %v249
    %1168 = vmatpush1.msra.mxu0 %v248
    %1169 = vmatprep.subr.mxu0 %v257
    %1170 = vmatpush1.msra.mxu0 %v256
    %1171 = vmatprep.subr.mxu0 %v265
    %1172 = vmatpush1.msra.mxu0 %v264
    %1173 = vmatprep.subr.mxu0 %v273
    %1174 = vmatpush1.msra.mxu0 %v272
    %1175 = vmatprep.subr.mxu0 %v281
    %1176 = vmatpush1.msra.mxu0 %v280
    %1177 = vmatprep.subr.mxu0 %v289
    %1178 = vmatpush1.msra.mxu0 %v288
    %1179 = vmatprep.subr.mxu0 %v297
    %1180 = vmatpush1.msra.mxu0 %v296
    %1181 = vmatprep.subr.mxu0 %v305
    %1182 = vmatpush1.msra.mxu0 %v304
    %1183 = vmatprep.subr.mxu0 %v313
    %1184 = vmatpush1.msra.mxu0 %v312
    %1185 = vmatprep.subr.mxu0 %v321
    %1186 = vmatpush1.msra.mxu0 %v320
    %1187 = vmatprep.subr.mxu0 %v329
    %1188 = vmatpush1.msra.mxu0 %v328
    %1189 = vmatprep.subr.mxu0 %v337
    %1190 = vmatpush1.msra.mxu0 %v336
    %1191 = vmatprep.subr.mxu0 %v345
    %1192 = vmatpush1.msra.mxu0 %v344
    %1193 = vmatprep.subr.mxu0 %v353
    %1194 = vmatpush1.msra.mxu0 %v352
    %1195 = vmatprep.subr.mxu0 %v361
    %1196 = vmatpush1.msra.mxu0 %v360
    %1197 = vmatprep.subr.mxu0 %v369
    %1198 = vmatpush1.msra.mxu0 %v368
    %1199 = vmatprep.subr.mxu0 %v377
    %1200 = vmatpush1.msra.mxu0 %v376
    %1201 = vmatprep.subr.mxu0 %v385
    %1202 = vmatpush1.msra.mxu0 %v384
    %1203 = vmatprep.subr.mxu0 %v393
    %1204 = vmatpush1.msra.mxu0 %v392
    %1205 = vmatprep.subr.mxu0 %v401
    %1206 = vmatpush1.msra.mxu0 %v400
    %1207 = vmatprep.subr.mxu0 %v409
    %1208 = vmatpush1.msra.mxu0 %v408
    %1209 = vmatprep.subr.mxu0 %v417
    %1210 = vmatpush1.msra.mxu0 %v416
    %1211 = vmatprep.mubr.f32.mxu0 %v161
    %1212 = vmatmul.mubr.f32.gmra.mrb[0].mxu0 %v160
    %v1213 = vpop.f32.mrb[0].mxu0
    %v1214 = vadd.f32 0.0, %v1213
    %v1215 = vpop.f32.mrb[0].mxu0
    %v1216 = vadd.f32 0.0, %v1215
    %1217 = vdwg.mxu0
    %1218 = vmatprep.subr.mxu0 %v425
    %1219 = vmatpush1.msra.mxu0 %v424
    %1220 = vmatprep.subr.mxu0 %v433
    %1221 = vmatpush1.msra.mxu0 %v432
    %1222 = vmatprep.subr.mxu0 %v441
    %1223 = vmatpush1.msra.mxu0 %v440
    %1224 = vmatprep.subr.mxu0 %v449
    %1225 = vmatpush1.msra.mxu0 %v448
    %1226 = vmatprep.subr.mxu0 %v457
    %1227 = vmatpush1.msra.mxu0 %v456
    %1228 = vmatprep.subr.mxu0 %v465
    %1229 = vmatpush1.msra.mxu0 %v464
    %1230 = vmatprep.subr.mxu0 %v473
    %1231 = vmatpush1.msra.mxu0 %v472
    %1232 = vmatprep.subr.mxu0 %v481
    %1233 = vmatpush1.msra.mxu0 %v480
    %1234 = vmatprep.subr.mxu0 %v489
    %1235 = vmatpush1.msra.mxu0 %v488
    %1236 = vmatprep.subr.mxu0 %v497
    %1237 = vmatpush1.msra.mxu0 %v496
    %1238 = vmatprep.subr.mxu0 %v505
    %1239 = vmatpush1.msra.mxu0 %v504
    %1240 = vmatprep.subr.mxu0 %v513
    %1241 = vmatpush1.msra.mxu0 %v512
    %1242 = vmatprep.subr.mxu0 %v521
    %1243 = vmatpush1.msra.mxu0 %v520
    %1244 = vmatprep.subr.mxu0 %v529
    %1245 = vmatpush1.msra.mxu0 %v528
    %1246 = vmatprep.subr.mxu0 %v537
    %1247 = vmatpush1.msra.mxu0 %v536
    %1248 = vmatprep.subr.mxu0 %v545
    %1249 = vmatpush1.msra.mxu0 %v544
    %1250 = vmatprep.subr.mxu0 %v553
    %1251 = vmatpush1.msra.mxu0 %v552
    %1252 = vmatprep.subr.mxu0 %v561
    %1253 = vmatpush1.msra.mxu0 %v560
    %1254 = vmatprep.subr.mxu0 %v569
    %1255 = vmatpush1.msra.mxu0 %v568
    %1256 = vmatprep.subr.mxu0 %v577
    %1257 = vmatpush1.msra.mxu0 %v576
    %1258 = vmatprep.subr.mxu0 %v585
    %1259 = vmatpush1.msra.mxu0 %v584
    %1260 = vmatprep.subr.mxu0 %v593
    %1261 = vmatpush1.msra.mxu0 %v592
    %1262 = vmatprep.subr.mxu0 %v601
    %1263 = vmatpush1.msra.mxu0 %v600
    %1264 = vmatprep.subr.mxu0 %v609
    %1265 = vmatpush1.msra.mxu0 %v608
    %1266 = vmatprep.subr.mxu0 %v617
    %1267 = vmatpush1.msra.mxu0 %v616
    %1268 = vmatprep.subr.mxu0 %v625
    %1269 = vmatpush1.msra.mxu0 %v624
    %1270 = vmatprep.subr.mxu0 %v633
    %1271 = vmatpush1.msra.mxu0 %v632
    %1272 = vmatprep.subr.mxu0 %v641
    %1273 = vmatpush1.msra.mxu0 %v640
    %1274 = vmatprep.subr.mxu0 %v649
    %1275 = vmatpush1.msra.mxu0 %v648
    %1276 = vmatprep.subr.mxu0 %v657
    %1277 = vmatpush1.msra.mxu0 %v656
    %1278 = vmatprep.subr.mxu0 %v665
    %1279 = vmatpush1.msra.mxu0 %v664
    %1280 = vmatprep.subr.mxu0 %v673
    %1281 = vmatpush1.msra.mxu0 %v672
    %1282 = vmatprep.mubr.f32.mxu0 %v163
    %1283 = vmatmul.mubr.f32.gmra.mrb[0].mxu0 %v162
    %v1284 = vpop.f32.mrb[0].mxu0
    %v1285 = vadd.f32 %v1214, %v1284
    %v1286 = vpop.f32.mrb[0].mxu0
    %v1287 = vadd.f32 %v1216, %v1286
    %1288 = vdwg.mxu0
    %1289 = vmatprep.subr.mxu0 %v681
    %1290 = vmatpush1.msra.mxu0 %v680
    %1291 = vmatprep.subr.mxu0 %v689
    %1292 = vmatpush1.msra.mxu0 %v688
    %1293 = vmatprep.subr.mxu0 %v697
    %1294 = vmatpush1.msra.mxu0 %v696
    %1295 = vmatprep.subr.mxu0 %v705
    %1296 = vmatpush1.msra.mxu0 %v704
    %1297 = vmatprep.subr.mxu0 %v713
    %1298 = vmatpush1.msra.mxu0 %v712
    %1299 = vmatprep.subr.mxu0 %v721
    %1300 = vmatpush1.msra.mxu0 %v720
    %1301 = vmatprep.subr.mxu0 %v729
    %1302 = vmatpush1.msra.mxu0 %v728
    %1303 = vmatprep.subr.mxu0 %v737
    %1304 = vmatpush1.msra.mxu0 %v736
    %1305 = vmatprep.subr.mxu0 %v745
    %1306 = vmatpush1.msra.mxu0 %v744
    %1307 = vmatprep.subr.mxu0 %v753
    %1308 = vmatpush1.msra.mxu0 %v752
    %1309 = vmatprep.subr.mxu0 %v761
    %1310 = vmatpush1.msra.mxu0 %v760
    %1311 = vmatprep.subr.mxu0 %v769
    %1312 = vmatpush1.msra.mxu0 %v768
    %1313 = vmatprep.subr.mxu0 %v777
    %1314 = vmatpush1.msra.mxu0 %v776
    %1315 = vmatprep.subr.mxu0 %v785
    %1316 = vmatpush1.msra.mxu0 %v784
    %1317 = vmatprep.subr.mxu0 %v793
    %1318 = vmatpush1.msra.mxu0 %v792
    %1319 = vmatprep.subr.mxu0 %v801
    %1320 = vmatpush1.msra.mxu0 %v800
    %1321 = vmatprep.subr.mxu0 %v809
    %1322 = vmatpush1.msra.mxu0 %v808
    %1323 = vmatprep.subr.mxu0 %v817
    %1324 = vmatpush1.msra.mxu0 %v816
    %1325 = vmatprep.subr.mxu0 %v825
    %1326 = vmatpush1.msra.mxu0 %v824
    %1327 = vmatprep.subr.mxu0 %v833
    %1328 = vmatpush1.msra.mxu0 %v832
    %1329 = vmatprep.subr.mxu0 %v841
    %1330 = vmatpush1.msra.mxu0 %v840
    %1331 = vmatprep.subr.mxu0 %v849
    %1332 = vmatpush1.msra.mxu0 %v848
    %1333 = vmatprep.subr.mxu0 %v857
    %1334 = vmatpush1.msra.mxu0 %v856
    %1335 = vmatprep.subr.mxu0 %v865
    %1336 = vmatpush1.msra.mxu0 %v864
    %1337 = vmatprep.subr.mxu0 %v873
    %1338 = vmatpush1.msra.mxu0 %v872
    %1339 = vmatprep.subr.mxu0 %v881
    %1340 = vmatpush1.msra.mxu0 %v880
    %1341 = vmatprep.subr.mxu0 %v889
    %1342 = vmatpush1.msra.mxu0 %v888
    %1343 = vmatprep.subr.mxu0 %v897
    %1344 = vmatpush1.msra.mxu0 %v896
    %1345 = vmatprep.subr.mxu0 %v905
    %1346 = vmatpush1.msra.mxu0 %v904
    %1347 = vmatprep.subr.mxu0 %v913
    %1348 = vmatpush1.msra.mxu0 %v912
    %1349 = vmatprep.subr.mxu0 %v921
    %1350 = vmatpush1.msra.mxu0 %v920
    %1351 = vmatprep.subr.mxu0 %v929
    %1352 = vmatpush1.msra.mxu0 %v928
    %1353 = vmatprep.mubr.f32.mxu0 %v165
    %1354 = vmatmul.mubr.f32.gmra.mrb[0].mxu0 %v164
    %v1355 = vpop.f32.mrb[0].mxu0
    %v1356 = vadd.f32 %v1285, %v1355
    %v1357 = vpop.f32.mrb[0].mxu0
    %v1358 = vadd.f32 %v1287, %v1357
    %1359 = vdwg.mxu0
    %1360 = vmatprep.subr.mxu0 %v171
    %1361 = vmatpush1.msra.mxu0 %v170
    %1362 = vmatprep.subr.mxu0 %v179
    %1363 = vmatpush1.msra.mxu0 %v178
    %1364 = vmatprep.subr.mxu0 %v187
    %1365 = vmatpush1.msra.mxu0 %v186
    %1366 = vmatprep.subr.mxu0 %v195
    %1367 = vmatpush1.msra.mxu0 %v194
    %1368 = vmatprep.subr.mxu0 %v203
    %1369 = vmatpush1.msra.mxu0 %v202
    %1370 = vmatprep.subr.mxu0 %v211
    %1371 = vmatpush1.msra.mxu0 %v210
    %1372 = vmatprep.subr.mxu0 %v219
    %1373 = vmatpush1.msra.mxu0 %v218
    %1374 = vmatprep.subr.mxu0 %v227
    %1375 = vmatpush1.msra.mxu0 %v226
    %1376 = vmatprep.subr.mxu0 %v235
    %1377 = vmatpush1.msra.mxu0 %v234
    %1378 = vmatprep.subr.mxu0 %v243
    %1379 = vmatpush1.msra.mxu0 %v242
    %1380 = vmatprep.subr.mxu0 %v251
    %1381 = vmatpush1.msra.mxu0 %v250
    %1382 = vmatprep.subr.mxu0 %v259
    %1383 = vmatpush1.msra.mxu0 %v258
    %1384 = vmatprep.subr.mxu0 %v267
    %1385 = vmatpush1.msra.mxu0 %v266
    %1386 = vmatprep.subr.mxu0 %v275
    %1387 = vmatpush1.msra.mxu0 %v274
    %1388 = vmatprep.subr.mxu0 %v283
    %1389 = vmatpush1.msra.mxu0 %v282
    %1390 = vmatprep.subr.mxu0 %v291
    %1391 = vmatpush1.msra.mxu0 %v290
    %1392 = vmatprep.subr.mxu0 %v299
    %1393 = vmatpush1.msra.mxu0 %v298
    %1394 = vmatprep.subr.mxu0 %v307
    %1395 = vmatpush1.msra.mxu0 %v306
    %1396 = vmatprep.subr.mxu0 %v315
    %1397 = vmatpush1.msra.mxu0 %v314
    %1398 = vmatprep.subr.mxu0 %v323
    %1399 = vmatpush1.msra.mxu0 %v322
    %1400 = vmatprep.subr.mxu0 %v331
    %1401 = vmatpush1.msra.mxu0 %v330
    %1402 = vmatprep.subr.mxu0 %v339
    %1403 = vmatpush1.msra.mxu0 %v338
    %1404 = vmatprep.subr.mxu0 %v347
    %1405 = vmatpush1.msra.mxu0 %v346
    %1406 = vmatprep.subr.mxu0 %v355
    %1407 = vmatpush1.msra.mxu0 %v354
    %1408 = vmatprep.subr.mxu0 %v363
    %1409 = vmatpush1.msra.mxu0 %v362
    %1410 = vmatprep.subr.mxu0 %v371
    %1411 = vmatpush1.msra.mxu0 %v370
    %1412 = vmatprep.subr.mxu0 %v379
    %1413 = vmatpush1.msra.mxu0 %v378
    %1414 = vmatprep.subr.mxu0 %v387
    %1415 = vmatpush1.msra.mxu0 %v386
    %1416 = vmatprep.subr.mxu0 %v395
    %1417 = vmatpush1.msra.mxu0 %v394
    %1418 = vmatprep.subr.mxu0 %v403
    %1419 = vmatpush1.msra.mxu0 %v402
    %1420 = vmatprep.subr.mxu0 %v411
    %1421 = vmatpush1.msra.mxu0 %v410
    %1422 = vmatprep.subr.mxu0 %v419
    %1423 = vmatpush1.msra.mxu0 %v418
    %1424 = vmatprep.mubr.f32.mxu0 %v161
    %1425 = vmatmul.mubr.f32.gmra.mrb[0].mxu0 %v160
    %v1426 = vpop.f32.mrb[0].mxu0
    %v1427 = vadd.f32 0.0, %v1426
    %v1428 = vpop.f32.mrb[0].mxu0
    %v1429 = vadd.f32 0.0, %v1428
    %1430 = vdwg.mxu0
    %1431 = vmatprep.subr.mxu0 %v427
    %1432 = vmatpush1.msra.mxu0 %v426
    %1433 = vmatprep.subr.mxu0 %v435
    %1434 = vmatpush1.msra.mxu0 %v434
    %1435 = vmatprep.subr.mxu0 %v443
    %1436 = vmatpush1.msra.mxu0 %v442
    %1437 = vmatprep.subr.mxu0 %v451
    %1438 = vmatpush1.msra.mxu0 %v450
    %1439 = vmatprep.subr.mxu0 %v459
    %1440 = vmatpush1.msra.mxu0 %v458
    %1441 = vmatprep.subr.mxu0 %v467
    %1442 = vmatpush1.msra.mxu0 %v466
    %1443 = vmatprep.subr.mxu0 %v475
    %1444 = vmatpush1.msra.mxu0 %v474
    %1445 = vmatprep.subr.mxu0 %v483
    %1446 = vmatpush1.msra.mxu0 %v482
    %1447 = vmatprep.subr.mxu0 %v491
    %1448 = vmatpush1.msra.mxu0 %v490
    %1449 = vmatprep.subr.mxu0 %v499
    %1450 = vmatpush1.msra.mxu0 %v498
    %1451 = vmatprep.subr.mxu0 %v507
    %1452 = vmatpush1.msra.mxu0 %v506
    %1453 = vmatprep.subr.mxu0 %v515
    %1454 = vmatpush1.msra.mxu0 %v514
    %1455 = vmatprep.subr.mxu0 %v523
    %1456 = vmatpush1.msra.mxu0 %v522
    %1457 = vmatprep.subr.mxu0 %v531
    %1458 = vmatpush1.msra.mxu0 %v530
    %1459 = vmatprep.subr.mxu0 %v539
    %1460 = vmatpush1.msra.mxu0 %v538
    %1461 = vmatprep.subr.mxu0 %v547
    %1462 = vmatpush1.msra.mxu0 %v546
    %1463 = vmatprep.subr.mxu0 %v555
    %1464 = vmatpush1.msra.mxu0 %v554
    %1465 = vmatprep.subr.mxu0 %v563
    %1466 = vmatpush1.msra.mxu0 %v562
    %1467 = vmatprep.subr.mxu0 %v571
    %1468 = vmatpush1.msra.mxu0 %v570
    %1469 = vmatprep.subr.mxu0 %v579
    %1470 = vmatpush1.msra.mxu0 %v578
    %1471 = vmatprep.subr.mxu0 %v587
    %1472 = vmatpush1.msra.mxu0 %v586
    %1473 = vmatprep.subr.mxu0 %v595
    %1474 = vmatpush1.msra.mxu0 %v594
    %1475 = vmatprep.subr.mxu0 %v603
    %1476 = vmatpush1.msra.mxu0 %v602
    %1477 = vmatprep.subr.mxu0 %v611
    %1478 = vmatpush1.msra.mxu0 %v610
    %1479 = vmatprep.subr.mxu0 %v619
    %1480 = vmatpush1.msra.mxu0 %v618
    %1481 = vmatprep.subr.mxu0 %v627
    %1482 = vmatpush1.msra.mxu0 %v626
    %1483 = vmatprep.subr.mxu0 %v635
    %1484 = vmatpush1.msra.mxu0 %v634
    %1485 = vmatprep.subr.mxu0 %v643
    %1486 = vmatpush1.msra.mxu0 %v642
    %1487 = vmatprep.subr.mxu0 %v651
    %1488 = vmatpush1.msra.mxu0 %v650
    %1489 = vmatprep.subr.mxu0 %v659
    %1490 = vmatpush1.msra.mxu0 %v658
    %1491 = vmatprep.subr.mxu0 %v667
    %1492 = vmatpush1.msra.mxu0 %v666
    %1493 = vmatprep.subr.mxu0 %v675
    %1494 = vmatpush1.msra.mxu0 %v674
    %1495 = vmatprep.mubr.f32.mxu0 %v163
    %1496 = vmatmul.mubr.f32.gmra.mrb[0].mxu0 %v162
    %v1497 = vpop.f32.mrb[0].mxu0
    %v1498 = vadd.f32 %v1427, %v1497
    %v1499 = vpop.f32.mrb[0].mxu0
    %v1500 = vadd.f32 %v1429, %v1499
    %1501 = vdwg.mxu0
    %1502 = vmatprep.subr.mxu0 %v683
    %1503 = vmatpush1.msra.mxu0 %v682
    %1504 = vmatprep.subr.mxu0 %v691
    %1505 = vmatpush1.msra.mxu0 %v690
    %1506 = vmatprep.subr.mxu0 %v699
    %1507 = vmatpush1.msra.mxu0 %v698
    %1508 = vmatprep.subr.mxu0 %v707
    %1509 = vmatpush1.msra.mxu0 %v706
    %1510 = vmatprep.subr.mxu0 %v715
    %1511 = vmatpush1.msra.mxu0 %v714
    %1512 = vmatprep.subr.mxu0 %v723
    %1513 = vmatpush1.msra.mxu0 %v722
    %1514 = vmatprep.subr.mxu0 %v731
    %1515 = vmatpush1.msra.mxu0 %v730
    %1516 = vmatprep.subr.mxu0 %v739
    %1517 = vmatpush1.msra.mxu0 %v738
    %1518 = vmatprep.subr.mxu0 %v747
    %1519 = vmatpush1.msra.mxu0 %v746
    %1520 = vmatprep.subr.mxu0 %v755
    %1521 = vmatpush1.msra.mxu0 %v754
    %1522 = vmatprep.subr.mxu0 %v763
    %1523 = vmatpush1.msra.mxu0 %v762
    %1524 = vmatprep.subr.mxu0 %v771
    %1525 = vmatpush1.msra.mxu0 %v770
    %1526 = vmatprep.subr.mxu0 %v779
    %1527 = vmatpush1.msra.mxu0 %v778
    %1528 = vmatprep.subr.mxu0 %v787
    %1529 = vmatpush1.msra.mxu0 %v786
    %1530 = vmatprep.subr.mxu0 %v795
    %1531 = vmatpush1.msra.mxu0 %v794
    %1532 = vmatprep.subr.mxu0 %v803
    %1533 = vmatpush1.msra.mxu0 %v802
    %1534 = vmatprep.subr.mxu0 %v811
    %1535 = vmatpush1.msra.mxu0 %v810
    %1536 = vmatprep.subr.mxu0 %v819
    %1537 = vmatpush1.msra.mxu0 %v818
    %1538 = vmatprep.subr.mxu0 %v827
    %1539 = vmatpush1.msra.mxu0 %v826
    %1540 = vmatprep.subr.mxu0 %v835
    %1541 = vmatpush1.msra.mxu0 %v834
    %1542 = vmatprep.subr.mxu0 %v843
    %1543 = vmatpush1.msra.mxu0 %v842
    %1544 = vmatprep.subr.mxu0 %v851
    %1545 = vmatpush1.msra.mxu0 %v850
    %1546 = vmatprep.subr.mxu0 %v859
    %1547 = vmatpush1.msra.mxu0 %v858
    %1548 = vmatprep.subr.mxu0 %v867
    %1549 = vmatpush1.msra.mxu0 %v866
    %1550 = vmatprep.subr.mxu0 %v875
    %1551 = vmatpush1.msra.mxu0 %v874
    %1552 = vmatprep.subr.mxu0 %v883
    %1553 = vmatpush1.msra.mxu0 %v882
    %1554 = vmatprep.subr.mxu0 %v891
    %1555 = vmatpush1.msra.mxu0 %v890
    %1556 = vmatprep.subr.mxu0 %v899
    %1557 = vmatpush1.msra.mxu0 %v898
    %1558 = vmatprep.subr.mxu0 %v907
    %1559 = vmatpush1.msra.mxu0 %v906
    %1560 = vmatprep.subr.mxu0 %v915
    %1561 = vmatpush1.msra.mxu0 %v914
    %1562 = vmatprep.subr.mxu0 %v923
    %1563 = vmatpush1.msra.mxu0 %v922
    %1564 = vmatprep.subr.mxu0 %v931
    %1565 = vmatpush1.msra.mxu0 %v930
    %1566 = vmatprep.mubr.f32.mxu0 %v165
    %1567 = vmatmul.mubr.f32.gmra.mrb[0].mxu0 %v164
    %v1568 = vpop.f32.mrb[0].mxu0
    %v1569 = vadd.f32 %v1498, %v1568
    %v1570 = vpop.f32.mrb[0].mxu0
    %v1571 = vadd.f32 %v1500, %v1570
    %1572 = vdwg.mxu0
    %1573 = vmatprep.subr.mxu0 %v173
    %1574 = vmatpush1.msra.mxu0 %v172
    %1575 = vmatprep.subr.mxu0 %v181
    %1576 = vmatpush1.msra.mxu0 %v180
    %1577 = vmatprep.subr.mxu0 %v189
    %1578 = vmatpush1.msra.mxu0 %v188
    %1579 = vmatprep.subr.mxu0 %v197
    %1580 = vmatpush1.msra.mxu0 %v196
    %1581 = vmatprep.subr.mxu0 %v205
    %1582 = vmatpush1.msra.mxu0 %v204
    %1583 = vmatprep.subr.mxu0 %v213
    %1584 = vmatpush1.msra.mxu0 %v212
    %1585 = vmatprep.subr.mxu0 %v221
    %1586 = vmatpush1.msra.mxu0 %v220
    %1587 = vmatprep.subr.mxu0 %v229
    %1588 = vmatpush1.msra.mxu0 %v228
    %1589 = vmatprep.subr.mxu0 %v237
    %1590 = vmatpush1.msra.mxu0 %v236
    %1591 = vmatprep.subr.mxu0 %v245
    %1592 = vmatpush1.msra.mxu0 %v244
    %1593 = vmatprep.subr.mxu0 %v253
    %1594 = vmatpush1.msra.mxu0 %v252
    %1595 = vmatprep.subr.mxu0 %v261
    %1596 = vmatpush1.msra.mxu0 %v260
    %1597 = vmatprep.subr.mxu0 %v269
    %1598 = vmatpush1.msra.mxu0 %v268
    %1599 = vmatprep.subr.mxu0 %v277
    %1600 = vmatpush1.msra.mxu0 %v276
    %1601 = vmatprep.subr.mxu0 %v285
    %1602 = vmatpush1.msra.mxu0 %v284
    %1603 = vmatprep.subr.mxu0 %v293
    %1604 = vmatpush1.msra.mxu0 %v292
    %1605 = vmatprep.subr.mxu0 %v301
    %1606 = vmatpush1.msra.mxu0 %v300
    %1607 = vmatprep.subr.mxu0 %v309
    %1608 = vmatpush1.msra.mxu0 %v308
    %1609 = vmatprep.subr.mxu0 %v317
    %1610 = vmatpush1.msra.mxu0 %v316
    %1611 = vmatprep.subr.mxu0 %v325
    %1612 = vmatpush1.msra.mxu0 %v324
    %1613 = vmatprep.subr.mxu0 %v333
    %1614 = vmatpush1.msra.mxu0 %v332
    %1615 = vmatprep.subr.mxu0 %v341
    %1616 = vmatpush1.msra.mxu0 %v340
    %1617 = vmatprep.subr.mxu0 %v349
    %1618 = vmatpush1.msra.mxu0 %v348
    %1619 = vmatprep.subr.mxu0 %v357
    %1620 = vmatpush1.msra.mxu0 %v356
    %1621 = vmatprep.subr.mxu0 %v365
    %1622 = vmatpush1.msra.mxu0 %v364
    %1623 = vmatprep.subr.mxu0 %v373
    %1624 = vmatpush1.msra.mxu0 %v372
    %1625 = vmatprep.subr.mxu0 %v381
    %1626 = vmatpush1.msra.mxu0 %v380
    %1627 = vmatprep.subr.mxu0 %v389
    %1628 = vmatpush1.msra.mxu0 %v388
    %1629 = vmatprep.subr.mxu0 %v397
    %1630 = vmatpush1.msra.mxu0 %v396
    %1631 = vmatprep.subr.mxu0 %v405
    %1632 = vmatpush1.msra.mxu0 %v404
    %1633 = vmatprep.subr.mxu0 %v413
    %1634 = vmatpush1.msra.mxu0 %v412
    %1635 = vmatprep.subr.mxu0 %v421
    %1636 = vmatpush1.msra.mxu0 %v420
    %1637 = vmatprep.mubr.f32.mxu0 %v161
    %1638 = vmatmul.mubr.f32.gmra.mrb[0].mxu0 %v160
    %v1639 = vpop.f32.mrb[0].mxu0
    %v1640 = vadd.f32 0.0, %v1639
    %v1641 = vpop.f32.mrb[0].mxu0
    %v1642 = vadd.f32 0.0, %v1641
    %1643 = vdwg.mxu0
    %1644 = vmatprep.subr.mxu0 %v429
    %1645 = vmatpush1.msra.mxu0 %v428
    %1646 = vmatprep.subr.mxu0 %v437
    %1647 = vmatpush1.msra.mxu0 %v436
    %1648 = vmatprep.subr.mxu0 %v445
    %1649 = vmatpush1.msra.mxu0 %v444
    %1650 = vmatprep.subr.mxu0 %v453
    %1651 = vmatpush1.msra.mxu0 %v452
    %1652 = vmatprep.subr.mxu0 %v461
    %1653 = vmatpush1.msra.mxu0 %v460
    %1654 = vmatprep.subr.mxu0 %v469
    %1655 = vmatpush1.msra.mxu0 %v468
    %1656 = vmatprep.subr.mxu0 %v477
    %1657 = vmatpush1.msra.mxu0 %v476
    %1658 = vmatprep.subr.mxu0 %v485
    %1659 = vmatpush1.msra.mxu0 %v484
    %1660 = vmatprep.subr.mxu0 %v493
    %1661 = vmatpush1.msra.mxu0 %v492
    %1662 = vmatprep.subr.mxu0 %v501
    %1663 = vmatpush1.msra.mxu0 %v500
    %1664 = vmatprep.subr.mxu0 %v509
    %1665 = vmatpush1.msra.mxu0 %v508
    %1666 = vmatprep.subr.mxu0 %v517
    %1667 = vmatpush1.msra.mxu0 %v516
    %1668 = vmatprep.subr.mxu0 %v525
    %1669 = vmatpush1.msra.mxu0 %v524
    %1670 = vmatprep.subr.mxu0 %v533
    %1671 = vmatpush1.msra.mxu0 %v532
    %1672 = vmatprep.subr.mxu0 %v541
    %1673 = vmatpush1.msra.mxu0 %v540
    %1674 = vmatprep.subr.mxu0 %v549
    %1675 = vmatpush1.msra.mxu0 %v548
    %1676 = vmatprep.subr.mxu0 %v557
    %1677 = vmatpush1.msra.mxu0 %v556
    %1678 = vmatprep.subr.mxu0 %v565
    %1679 = vmatpush1.msra.mxu0 %v564
    %1680 = vmatprep.subr.mxu0 %v573
    %1681 = vmatpush1.msra.mxu0 %v572
    %1682 = vmatprep.subr.mxu0 %v581
    %1683 = vmatpush1.msra.mxu0 %v580
    %1684 = vmatprep.subr.mxu0 %v589
    %1685 = vmatpush1.msra.mxu0 %v588
    %1686 = vmatprep.subr.mxu0 %v597
    %1687 = vmatpush1.msra.mxu0 %v596
    %1688 = vmatprep.subr.mxu0 %v605
    %1689 = vmatpush1.msra.mxu0 %v604
    %1690 = vmatprep.subr.mxu0 %v613
    %1691 = vmatpush1.msra.mxu0 %v612
    %1692 = vmatprep.subr.mxu0 %v621
    %1693 = vmatpush1.msra.mxu0 %v620
    %1694 = vmatprep.subr.mxu0 %v629
    %1695 = vmatpush1.msra.mxu0 %v628
    %1696 = vmatprep.subr.mxu0 %v637
    %1697 = vmatpush1.msra.mxu0 %v636
    %1698 = vmatprep.subr.mxu0 %v645
    %1699 = vmatpush1.msra.mxu0 %v644
    %1700 = vmatprep.subr.mxu0 %v653
    %1701 = vmatpush1.msra.mxu0 %v652
    %1702 = vmatprep.subr.mxu0 %v661
    %1703 = vmatpush1.msra.mxu0 %v660
    %1704 = vmatprep.subr.mxu0 %v669
    %1705 = vmatpush1.msra.mxu0 %v668
    %1706 = vmatprep.subr.mxu0 %v677
    %1707 = vmatpush1.msra.mxu0 %v676
    %1708 = vmatprep.mubr.f32.mxu0 %v163
    %1709 = vmatmul.mubr.f32.gmra.mrb[0].mxu0 %v162
    %v1710 = vpop.f32.mrb[0].mxu0
    %v1711 = vadd.f32 %v1640, %v1710
    %v1712 = vpop.f32.mrb[0].mxu0
    %v1713 = vadd.f32 %v1642, %v1712
    %1714 = vdwg.mxu0
    %1715 = vmatprep.subr.mxu0 %v685
    %1716 = vmatpush1.msra.mxu0 %v684
    %1717 = vmatprep.subr.mxu0 %v693
    %1718 = vmatpush1.msra.mxu0 %v692
    %1719 = vmatprep.subr.mxu0 %v701
    %1720 = vmatpush1.msra.mxu0 %v700
    %1721 = vmatprep.subr.mxu0 %v709
    %1722 = vmatpush1.msra.mxu0 %v708
    %1723 = vmatprep.subr.mxu0 %v717
    %1724 = vmatpush1.msra.mxu0 %v716
    %1725 = vmatprep.subr.mxu0 %v725
    %1726 = vmatpush1.msra.mxu0 %v724
    %1727 = vmatprep.subr.mxu0 %v733
    %1728 = vmatpush1.msra.mxu0 %v732
    %1729 = vmatprep.subr.mxu0 %v741
    %1730 = vmatpush1.msra.mxu0 %v740
    %1731 = vmatprep.subr.mxu0 %v749
    %1732 = vmatpush1.msra.mxu0 %v748
    %1733 = vmatprep.subr.mxu0 %v757
    %1734 = vmatpush1.msra.mxu0 %v756
    %1735 = vmatprep.subr.mxu0 %v765
    %1736 = vmatpush1.msra.mxu0 %v764
    %1737 = vmatprep.subr.mxu0 %v773
    %1738 = vmatpush1.msra.mxu0 %v772
    %1739 = vmatprep.subr.mxu0 %v781
    %1740 = vmatpush1.msra.mxu0 %v780
    %1741 = vmatprep.subr.mxu0 %v789
    %1742 = vmatpush1.msra.mxu0 %v788
    %1743 = vmatprep.subr.mxu0 %v797
    %1744 = vmatpush1.msra.mxu0 %v796
    %1745 = vmatprep.subr.mxu0 %v805
    %1746 = vmatpush1.msra.mxu0 %v804
    %1747 = vmatprep.subr.mxu0 %v813
    %1748 = vmatpush1.msra.mxu0 %v812
    %1749 = vmatprep.subr.mxu0 %v821
    %1750 = vmatpush1.msra.mxu0 %v820
    %1751 = vmatprep.subr.mxu0 %v829
    %1752 = vmatpush1.msra.mxu0 %v828
    %1753 = vmatprep.subr.mxu0 %v837
    %1754 = vmatpush1.msra.mxu0 %v836
    %1755 = vmatprep.subr.mxu0 %v845
    %1756 = vmatpush1.msra.mxu0 %v844
    %1757 = vmatprep.subr.mxu0 %v853
    %1758 = vmatpush1.msra.mxu0 %v852
    %1759 = vmatprep.subr.mxu0 %v861
    %1760 = vmatpush1.msra.mxu0 %v860
    %1761 = vmatprep.subr.mxu0 %v869
    %1762 = vmatpush1.msra.mxu0 %v868
    %1763 = vmatprep.subr.mxu0 %v877
    %1764 = vmatpush1.msra.mxu0 %v876
    %1765 = vmatprep.subr.mxu0 %v885
    %1766 = vmatpush1.msra.mxu0 %v884
    %1767 = vmatprep.subr.mxu0 %v893
    %1768 = vmatpush1.msra.mxu0 %v892
    %1769 = vmatprep.subr.mxu0 %v901
    %1770 = vmatpush1.msra.mxu0 %v900
    %1771 = vmatprep.subr.mxu0 %v909
    %1772 = vmatpush1.msra.mxu0 %v908
    %1773 = vmatprep.subr.mxu0 %v917
    %1774 = vmatpush1.msra.mxu0 %v916
    %1775 = vmatprep.subr.mxu0 %v925
    %1776 = vmatpush1.msra.mxu0 %v924
    %1777 = vmatprep.subr.mxu0 %v933
    %1778 = vmatpush1.msra.mxu0 %v932
    %1779 = vmatprep.mubr.f32.mxu0 %v165
    %1780 = vmatmul.mubr.f32.gmra.mrb[0].mxu0 %v164
    %v1781 = vpop.f32.mrb[0].mxu0
    %v1782 = vadd.f32 %v1711, %v1781
    %v1783 = vpop.f32.mrb[0].mxu0
    %v1784 = vadd.f32 %v1713, %v1783
    %1785 = vdwg.mxu0
    %v1786 = vmul.f32 %v1143, 0.001
    %v1787 = vmul.f32 %v1145, 0.001
    %v1788 = vmul.f32 %v1356, 0.001
    %v1789 = vmul.f32 %v1358, 0.001
    %v1790 = vmul.f32 %v1569, 0.001
    %v1791 = vmul.f32 %v1571, 0.001
    %v1792 = vmul.f32 %v1782, 0.001
    %v1793 = vmul.f32 %v1784, 0.001
    %v1794 = vld [vmem:[#allocation7] sm:$0xff]
    %v1795 = vld [vmem:[#allocation7 + $0x8] sm:$0xff]
    %v1796 = vld [vmem:[#allocation7 + $0x10] sm:$0xff]
    %v1797 = vld [vmem:[#allocation7 + $0x18] sm:$0xff]
    %v1798 = vld [vmem:[#allocation7 + $0x20] sm:$0xff]
    %v1799 = vld [vmem:[#allocation7 + $0x28] sm:$0xff]
    %v1800 = vld [vmem:[#allocation7 + $0x30] sm:$0xff]
    %v1801 = vld [vmem:[#allocation7 + $0x38] sm:$0xff]
    %v1802 = vld [vmem:[#allocation7 + $0x40] sm:$0xff]
    %v1803 = vld [vmem:[#allocation7 + $0x48] sm:$0xff]
    %v1804 = vld [vmem:[#allocation7 + $0x50] sm:$0xff]
    %v1805 = vld [vmem:[#allocation7 + $0x58] sm:$0xff]
    %v1806 = vld [vmem:[#allocation7 + $0x60] sm:$0xff]
    %v1807 = vld [vmem:[#allocation7 + $0x68] sm:$0xff]
    %v1808 = vld [vmem:[#allocation7 + $0x70] sm:$0xff]
    %v1809 = vld [vmem:[#allocation7 + $0x78] sm:$0xff]
    %v1810 = vld [vmem:[#allocation7 + $0x80] sm:$0xff]
    %v1811 = vld [vmem:[#allocation7 + $0x88] sm:$0xff]
    %v1812 = vld [vmem:[#allocation7 + $0x90] sm:$0xff]
    %v1813 = vld [vmem:[#allocation7 + $0x98] sm:$0xff]
    %v1814 = vld [vmem:[#allocation7 + $0xa0] sm:$0xff]
    %v1815 = vld [vmem:[#allocation7 + $0xa8] sm:$0xff]
    %v1816 = vld [vmem:[#allocation7 + $0xb0] sm:$0xff]
    %v1817 = vld [vmem:[#allocation7 + $0xb8] sm:$0xff]
    %v1818 = vld [vmem:[#allocation7 + $0xc0] sm:$0xff]
    %v1819 = vld [vmem:[#allocation7 + $0xc8] sm:$0xff]
    %v1820 = vld [vmem:[#allocation7 + $0xd0] sm:$0xff]
    %v1821 = vld [vmem:[#allocation7 + $0xd8] sm:$0xff]
    %v1822 = vld [vmem:[#allocation7 + $0xe0] sm:$0xff]
    %v1823 = vld [vmem:[#allocation7 + $0xe8] sm:$0xff]
    %v1824 = vld [vmem:[#allocation7 + $0xf0] sm:$0xff]
    %v1825 = vld [vmem:[#allocation7 + $0xf8] sm:$0xff]
    %v1826 = vld [vmem:[#allocation7 + $0x100] sm:$0xff]
    %v1827 = vld [vmem:[#allocation7 + $0x108] sm:$0xff]
    %v1828 = vld [vmem:[#allocation7 + $0x110] sm:$0xff]
    %v1829 = vld [vmem:[#allocation7 + $0x118] sm:$0xff]
    %v1830 = vld [vmem:[#allocation7 + $0x120] sm:$0xff]
    %v1831 = vld [vmem:[#allocation7 + $0x128] sm:$0xff]
    %v1832 = vld [vmem:[#allocation7 + $0x130] sm:$0xff]
    %v1833 = vld [vmem:[#allocation7 + $0x138] sm:$0xff]
    %v1834 = vld [vmem:[#allocation7 + $0x140] sm:$0xff]
    %v1835 = vld [vmem:[#allocation7 + $0x148] sm:$0xff]
    %v1836 = vld [vmem:[#allocation7 + $0x150] sm:$0xff]
    %v1837 = vld [vmem:[#allocation7 + $0x158] sm:$0xff]
    %v1838 = vld [vmem:[#allocation7 + $0x160] sm:$0xff]
    %v1839 = vld [vmem:[#allocation7 + $0x168] sm:$0xff]
    %v1840 = vld [vmem:[#allocation7 + $0x170] sm:$0xff]
    %v1841 = vld [vmem:[#allocation7 + $0x178] sm:$0xff]
    %v1842 = vld [vmem:[#allocation7 + $0x180] sm:$0xff]
    %v1843 = vld [vmem:[#allocation7 + $0x188] sm:$0xff]
    %v1844 = vld [vmem:[#allocation7 + $0x190] sm:$0xff]
    %v1845 = vld [vmem:[#allocation7 + $0x198] sm:$0xff]
    %v1846 = vld [vmem:[#allocation7 + $0x1a0] sm:$0xff]
    %v1847 = vld [vmem:[#allocation7 + $0x1a8] sm:$0xff]
    %v1848 = vld [vmem:[#allocation7 + $0x1b0] sm:$0xff]
    %v1849 = vld [vmem:[#allocation7 + $0x1b8] sm:$0xff]
    %v1850 = vld [vmem:[#allocation7 + $0x1c0] sm:$0xff]
    %v1851 = vld [vmem:[#allocation7 + $0x1c8] sm:$0xff]
    %v1852 = vld [vmem:[#allocation7 + $0x1d0] sm:$0xff]
    %v1853 = vld [vmem:[#allocation7 + $0x1d8] sm:$0xff]
    %v1854 = vld [vmem:[#allocation7 + $0x1e0] sm:$0xff]
    %v1855 = vld [vmem:[#allocation7 + $0x1e8] sm:$0xff]
    %v1856 = vld [vmem:[#allocation7 + $0x1f0] sm:$0xff]
    %v1857 = vld [vmem:[#allocation7 + $0x1f8] sm:$0xff]
    %v1858 = vld [vmem:[#allocation7 + $0x200] sm:$0xff]
    %v1859 = vld [vmem:[#allocation7 + $0x208] sm:$0xff]
    %v1860 = vld [vmem:[#allocation7 + $0x210] sm:$0xff]
    %v1861 = vld [vmem:[#allocation7 + $0x218] sm:$0xff]
    %v1862 = vld [vmem:[#allocation7 + $0x220] sm:$0xff]
    %v1863 = vld [vmem:[#allocation7 + $0x228] sm:$0xff]
    %v1864 = vld [vmem:[#allocation7 + $0x230] sm:$0xff]
    %v1865 = vld [vmem:[#allocation7 + $0x238] sm:$0xff]
    %v1866 = vld [vmem:[#allocation7 + $0x240] sm:$0xff]
    %v1867 = vld [vmem:[#allocation7 + $0x248] sm:$0xff]
    %v1868 = vld [vmem:[#allocation7 + $0x250] sm:$0xff]
    %v1869 = vld [vmem:[#allocation7 + $0x258] sm:$0xff]
    %v1870 = vld [vmem:[#allocation7 + $0x260] sm:$0xff]
    %v1871 = vld [vmem:[#allocation7 + $0x268] sm:$0xff]
    %v1872 = vld [vmem:[#allocation7 + $0x270] sm:$0xff]
    %v1873 = vld [vmem:[#allocation7 + $0x278] sm:$0xff]
    %v1874 = vld [vmem:[#allocation7 + $0x280] sm:$0xff]
    %v1875 = vld [vmem:[#allocation7 + $0x288] sm:$0xff]
    %v1876 = vld [vmem:[#allocation7 + $0x290] sm:$0xff]
    %v1877 = vld [vmem:[#allocation7 + $0x298] sm:$0xff]
    %v1878 = vld [vmem:[#allocation7 + $0x2a0] sm:$0xff]
    %v1879 = vld [vmem:[#allocation7 + $0x2a8] sm:$0xff]
    %v1880 = vld [vmem:[#allocation7 + $0x2b0] sm:$0xff]
    %v1881 = vld [vmem:[#allocation7 + $0x2b8] sm:$0xff]
    %v1882 = vld [vmem:[#allocation7 + $0x2c0] sm:$0xff]
    %v1883 = vld [vmem:[#allocation7 + $0x2c8] sm:$0xff]
    %v1884 = vld [vmem:[#allocation7 + $0x2d0] sm:$0xff]
    %v1885 = vld [vmem:[#allocation7 + $0x2d8] sm:$0xff]
    %v1886 = vld [vmem:[#allocation7 + $0x2e0] sm:$0xff]
    %v1887 = vld [vmem:[#allocation7 + $0x2e8] sm:$0xff]
    %v1888 = vld [vmem:[#allocation7 + $0x2f0] sm:$0xff]
    %v1889 = vld [vmem:[#allocation7 + $0x2f8] sm:$0xff]
    %v1890 = vld [vmem:[#allocation7 + $0x300] sm:$0xff]
    %v1891 = vld [vmem:[#allocation7 + $0x308] sm:$0xff]
    %v1892 = vld [vmem:[#allocation7 + $0x310] sm:$0xff]
    %v1893 = vld [vmem:[#allocation7 + $0x318] sm:$0xff]
    %v1894 = vld [vmem:[#allocation7 + $0x320] sm:$0xff]
    %v1895 = vld [vmem:[#allocation7 + $0x328] sm:$0xff]
    %v1896 = vld [vmem:[#allocation7 + $0x330] sm:$0xff]
    %v1897 = vld [vmem:[#allocation7 + $0x338] sm:$0xff]
    %v1898 = vld [vmem:[#allocation7 + $0x340] sm:$0xff]
    %v1899 = vld [vmem:[#allocation7 + $0x348] sm:$0xff]
    %v1900 = vld [vmem:[#allocation7 + $0x350] sm:$0xff]
    %v1901 = vld [vmem:[#allocation7 + $0x358] sm:$0xff]
    %v1902 = vld [vmem:[#allocation7 + $0x360] sm:$0xff]
    %v1903 = vld [vmem:[#allocation7 + $0x368] sm:$0xff]
    %v1904 = vld [vmem:[#allocation7 + $0x370] sm:$0xff]
    %v1905 = vld [vmem:[#allocation7 + $0x378] sm:$0xff]
    %v1906 = vld [vmem:[#allocation7 + $0x380] sm:$0xff]
    %v1907 = vld [vmem:[#allocation7 + $0x388] sm:$0xff]
    %v1908 = vld [vmem:[#allocation7 + $0x390] sm:$0xff]
    %v1909 = vld [vmem:[#allocation7 + $0x398] sm:$0xff]
    %v1910 = vld [vmem:[#allocation7 + $0x3a0] sm:$0xff]
    %v1911 = vld [vmem:[#allocation7 + $0x3a8] sm:$0xff]
    %v1912 = vld [vmem:[#allocation7 + $0x3b0] sm:$0xff]
    %v1913 = vld [vmem:[#allocation7 + $0x3b8] sm:$0xff]
    %v1914 = vld [vmem:[#allocation7 + $0x3c0] sm:$0xff]
    %v1915 = vld [vmem:[#allocation7 + $0x3c8] sm:$0xff]
    %v1916 = vld [vmem:[#allocation7 + $0x3d0] sm:$0xff]
    %v1917 = vld [vmem:[#allocation7 + $0x3d8] sm:$0xff]
    %v1918 = vld [vmem:[#allocation7 + $0x3e0] sm:$0xff]
    %v1919 = vld [vmem:[#allocation7 + $0x3e8] sm:$0xff]
    %v1920 = vld [vmem:[#allocation7 + $0x3f0] sm:$0xff]
    %v1921 = vld [vmem:[#allocation7 + $0x3f8] sm:$0xff]
    %v1922 = vld [vmem:[#allocation7 + $0x400] sm:$0xff]
    %v1923 = vld [vmem:[#allocation7 + $0x408] sm:$0xff]
    %v1924 = vld [vmem:[#allocation7 + $0x410] sm:$0xff]
    %v1925 = vld [vmem:[#allocation7 + $0x418] sm:$0xff]
    %v1926 = vld [vmem:[#allocation7 + $0x420] sm:$0xff]
    %v1927 = vld [vmem:[#allocation7 + $0x428] sm:$0xff]
    %v1928 = vld [vmem:[#allocation7 + $0x430] sm:$0xff]
    %v1929 = vld [vmem:[#allocation7 + $0x438] sm:$0xff]
    %v1930 = vld [vmem:[#allocation7 + $0x440] sm:$0xff]
    %v1931 = vld [vmem:[#allocation7 + $0x448] sm:$0xff]
    %v1932 = vld [vmem:[#allocation7 + $0x450] sm:$0xff]
    %v1933 = vld [vmem:[#allocation7 + $0x458] sm:$0xff]
    %v1934 = vld [vmem:[#allocation7 + $0x460] sm:$0xff]
    %v1935 = vld [vmem:[#allocation7 + $0x468] sm:$0xff]
    %v1936 = vld [vmem:[#allocation7 + $0x470] sm:$0xff]
    %v1937 = vld [vmem:[#allocation7 + $0x478] sm:$0xff]
    %v1938 = vld [vmem:[#allocation7 + $0x480] sm:$0xff]
    %v1939 = vld [vmem:[#allocation7 + $0x488] sm:$0xff]
    %v1940 = vld [vmem:[#allocation7 + $0x490] sm:$0xff]
    %v1941 = vld [vmem:[#allocation7 + $0x498] sm:$0xff]
    %v1942 = vld [vmem:[#allocation7 + $0x4a0] sm:$0xff]
    %v1943 = vld [vmem:[#allocation7 + $0x4a8] sm:$0xff]
    %v1944 = vld [vmem:[#allocation7 + $0x4b0] sm:$0xff]
    %v1945 = vld [vmem:[#allocation7 + $0x4b8] sm:$0xff]
    %v1946 = vld [vmem:[#allocation7 + $0x4c0] sm:$0xff]
    %v1947 = vld [vmem:[#allocation7 + $0x4c8] sm:$0xff]
    %v1948 = vld [vmem:[#allocation7 + $0x4d0] sm:$0xff]
    %v1949 = vld [vmem:[#allocation7 + $0x4d8] sm:$0xff]
    %v1950 = vld [vmem:[#allocation7 + $0x4e0] sm:$0xff]
    %v1951 = vld [vmem:[#allocation7 + $0x4e8] sm:$0xff]
    %v1952 = vld [vmem:[#allocation7 + $0x4f0] sm:$0xff]
    %v1953 = vld [vmem:[#allocation7 + $0x4f8] sm:$0xff]
    %v1954 = vld [vmem:[#allocation7 + $0x500] sm:$0xff]
    %v1955 = vld [vmem:[#allocation7 + $0x508] sm:$0xff]
    %v1956 = vld [vmem:[#allocation7 + $0x510] sm:$0xff]
    %v1957 = vld [vmem:[#allocation7 + $0x518] sm:$0xff]
    %v1958 = vld [vmem:[#allocation7 + $0x520] sm:$0xff]
    %v1959 = vld [vmem:[#allocation7 + $0x528] sm:$0xff]
    %v1960 = vld [vmem:[#allocation7 + $0x530] sm:$0xff]
    %v1961 = vld [vmem:[#allocation7 + $0x538] sm:$0xff]
    %v1962 = vld [vmem:[#allocation7 + $0x540] sm:$0xff]
    %v1963 = vld [vmem:[#allocation7 + $0x548] sm:$0xff]
    %v1964 = vld [vmem:[#allocation7 + $0x550] sm:$0xff]
    %v1965 = vld [vmem:[#allocation7 + $0x558] sm:$0xff]
    %v1966 = vld [vmem:[#allocation7 + $0x560] sm:$0xff]
    %v1967 = vld [vmem:[#allocation7 + $0x568] sm:$0xff]
    %v1968 = vld [vmem:[#allocation7 + $0x570] sm:$0xff]
    %v1969 = vld [vmem:[#allocation7 + $0x578] sm:$0xff]
    %v1970 = vld [vmem:[#allocation7 + $0x580] sm:$0xff]
    %v1971 = vld [vmem:[#allocation7 + $0x588] sm:$0xff]
    %v1972 = vld [vmem:[#allocation7 + $0x590] sm:$0xff]
    %v1973 = vld [vmem:[#allocation7 + $0x598] sm:$0xff]
    %v1974 = vld [vmem:[#allocation7 + $0x5a0] sm:$0xff]
    %v1975 = vld [vmem:[#allocation7 + $0x5a8] sm:$0xff]
    %v1976 = vld [vmem:[#allocation7 + $0x5b0] sm:$0xff]
    %v1977 = vld [vmem:[#allocation7 + $0x5b8] sm:$0xff]
    %v1978 = vld [vmem:[#allocation7 + $0x5c0] sm:$0xff]
    %v1979 = vld [vmem:[#allocation7 + $0x5c8] sm:$0xff]
    %v1980 = vld [vmem:[#allocation7 + $0x5d0] sm:$0xff]
    %v1981 = vld [vmem:[#allocation7 + $0x5d8] sm:$0xff]
    %v1982 = vld [vmem:[#allocation7 + $0x5e0] sm:$0xff]
    %v1983 = vld [vmem:[#allocation7 + $0x5e8] sm:$0xff]
    %v1984 = vld [vmem:[#allocation7 + $0x5f0] sm:$0xff]
    %v1985 = vld [vmem:[#allocation7 + $0x5f8] sm:$0xff]
    %v1986 = vld [vmem:[#allocation7 + $0x600] sm:$0xff]
    %v1987 = vld [vmem:[#allocation7 + $0x608] sm:$0xff]
    %v1988 = vld [vmem:[#allocation7 + $0x610] sm:$0xff]
    %v1989 = vld [vmem:[#allocation7 + $0x618] sm:$0xff]
    %v1990 = vld [vmem:[#allocation7 + $0x620] sm:$0xff]
    %v1991 = vld [vmem:[#allocation7 + $0x628] sm:$0xff]
    %v1992 = vld [vmem:[#allocation7 + $0x630] sm:$0xff]
    %v1993 = vld [vmem:[#allocation7 + $0x638] sm:$0xff]
    %v1994 = vld [vmem:[#allocation7 + $0x640] sm:$0xff]
    %v1995 = vld [vmem:[#allocation7 + $0x648] sm:$0xff]
    %v1996 = vld [vmem:[#allocation7 + $0x650] sm:$0xff]
    %v1997 = vld [vmem:[#allocation7 + $0x658] sm:$0xff]
    %v1998 = vld [vmem:[#allocation7 + $0x660] sm:$0xff]
    %v1999 = vld [vmem:[#allocation7 + $0x668] sm:$0xff]
    %v2000 = vld [vmem:[#allocation7 + $0x670] sm:$0xff]
    %v2001 = vld [vmem:[#allocation7 + $0x678] sm:$0xff]
    %v2002 = vld [vmem:[#allocation7 + $0x680] sm:$0xff]
    %v2003 = vld [vmem:[#allocation7 + $0x688] sm:$0xff]
    %v2004 = vld [vmem:[#allocation7 + $0x690] sm:$0xff]
    %v2005 = vld [vmem:[#allocation7 + $0x698] sm:$0xff]
    %v2006 = vld [vmem:[#allocation7 + $0x6a0] sm:$0xff]
    %v2007 = vld [vmem:[#allocation7 + $0x6a8] sm:$0xff]
    %v2008 = vld [vmem:[#allocation7 + $0x6b0] sm:$0xff]
    %v2009 = vld [vmem:[#allocation7 + $0x6b8] sm:$0xff]
    %v2010 = vld [vmem:[#allocation7 + $0x6c0] sm:$0xff]
    %v2011 = vld [vmem:[#allocation7 + $0x6c8] sm:$0xff]
    %v2012 = vld [vmem:[#allocation7 + $0x6d0] sm:$0xff]
    %v2013 = vld [vmem:[#allocation7 + $0x6d8] sm:$0xff]
    %v2014 = vld [vmem:[#allocation7 + $0x6e0] sm:$0xff]
    %v2015 = vld [vmem:[#allocation7 + $0x6e8] sm:$0xff]
    %v2016 = vld [vmem:[#allocation7 + $0x6f0] sm:$0xff]
    %v2017 = vld [vmem:[#allocation7 + $0x6f8] sm:$0xff]
    %v2018 = vld [vmem:[#allocation7 + $0x700] sm:$0xff]
    %v2019 = vld [vmem:[#allocation7 + $0x708] sm:$0xff]
    %v2020 = vld [vmem:[#allocation7 + $0x710] sm:$0xff]
    %v2021 = vld [vmem:[#allocation7 + $0x718] sm:$0xff]
    %v2022 = vld [vmem:[#allocation7 + $0x720] sm:$0xff]
    %v2023 = vld [vmem:[#allocation7 + $0x728] sm:$0xff]
    %v2024 = vld [vmem:[#allocation7 + $0x730] sm:$0xff]
    %v2025 = vld [vmem:[#allocation7 + $0x738] sm:$0xff]
    %v2026 = vld [vmem:[#allocation7 + $0x740] sm:$0xff]
    %v2027 = vld [vmem:[#allocation7 + $0x748] sm:$0xff]
    %v2028 = vld [vmem:[#allocation7 + $0x750] sm:$0xff]
    %v2029 = vld [vmem:[#allocation7 + $0x758] sm:$0xff]
    %v2030 = vld [vmem:[#allocation7 + $0x760] sm:$0xff]
    %v2031 = vld [vmem:[#allocation7 + $0x768] sm:$0xff]
    %v2032 = vld [vmem:[#allocation7 + $0x770] sm:$0xff]
    %v2033 = vld [vmem:[#allocation7 + $0x778] sm:$0xff]
    %v2034 = vld [vmem:[#allocation7 + $0x780] sm:$0xff]
    %v2035 = vld [vmem:[#allocation7 + $0x788] sm:$0xff]
    %v2036 = vld [vmem:[#allocation7 + $0x790] sm:$0xff]
    %v2037 = vld [vmem:[#allocation7 + $0x798] sm:$0xff]
    %v2038 = vld [vmem:[#allocation7 + $0x7a0] sm:$0xff]
    %v2039 = vld [vmem:[#allocation7 + $0x7a8] sm:$0xff]
    %v2040 = vld [vmem:[#allocation7 + $0x7b0] sm:$0xff]
    %v2041 = vld [vmem:[#allocation7 + $0x7b8] sm:$0xff]
    %v2042 = vld [vmem:[#allocation7 + $0x7c0] sm:$0xff]
    %v2043 = vld [vmem:[#allocation7 + $0x7c8] sm:$0xff]
    %v2044 = vld [vmem:[#allocation7 + $0x7d0] sm:$0xff]
    %v2045 = vld [vmem:[#allocation7 + $0x7d8] sm:$0xff]
    %v2046 = vld [vmem:[#allocation7 + $0x7e0] sm:$0xff]
    %v2047 = vld [vmem:[#allocation7 + $0x7e8] sm:$0xff]
    %v2048 = vld [vmem:[#allocation7 + $0x7f0] sm:$0xff]
    %v2049 = vld [vmem:[#allocation7 + $0x7f8] sm:$0xff]
    %v2050 = vld [vmem:[#allocation7 + $0x800] sm:$0xff]
    %v2051 = vld [vmem:[#allocation7 + $0x808] sm:$0xff]
    %v2052 = vld [vmem:[#allocation7 + $0x810] sm:$0xff]
    %v2053 = vld [vmem:[#allocation7 + $0x818] sm:$0xff]
    %v2054 = vld [vmem:[#allocation7 + $0x820] sm:$0xff]
    %v2055 = vld [vmem:[#allocation7 + $0x828] sm:$0xff]
    %v2056 = vld [vmem:[#allocation7 + $0x830] sm:$0xff]
    %v2057 = vld [vmem:[#allocation7 + $0x838] sm:$0xff]
    %v2058 = vld [vmem:[#allocation7 + $0x840] sm:$0xff]
    %v2059 = vld [vmem:[#allocation7 + $0x848] sm:$0xff]
    %v2060 = vld [vmem:[#allocation7 + $0x850] sm:$0xff]
    %v2061 = vld [vmem:[#allocation7 + $0x858] sm:$0xff]
    %v2062 = vld [vmem:[#allocation7 + $0x860] sm:$0xff]
    %v2063 = vld [vmem:[#allocation7 + $0x868] sm:$0xff]
    %v2064 = vld [vmem:[#allocation7 + $0x870] sm:$0xff]
    %v2065 = vld [vmem:[#allocation7 + $0x878] sm:$0xff]
    %v2066 = vld [vmem:[#allocation7 + $0x880] sm:$0xff]
    %v2067 = vld [vmem:[#allocation7 + $0x888] sm:$0xff]
    %v2068 = vld [vmem:[#allocation7 + $0x890] sm:$0xff]
    %v2069 = vld [vmem:[#allocation7 + $0x898] sm:$0xff]
    %v2070 = vld [vmem:[#allocation7 + $0x8a0] sm:$0xff]
    %v2071 = vld [vmem:[#allocation7 + $0x8a8] sm:$0xff]
    %v2072 = vld [vmem:[#allocation7 + $0x8b0] sm:$0xff]
    %v2073 = vld [vmem:[#allocation7 + $0x8b8] sm:$0xff]
    %v2074 = vld [vmem:[#allocation7 + $0x8c0] sm:$0xff]
    %v2075 = vld [vmem:[#allocation7 + $0x8c8] sm:$0xff]
    %v2076 = vld [vmem:[#allocation7 + $0x8d0] sm:$0xff]
    %v2077 = vld [vmem:[#allocation7 + $0x8d8] sm:$0xff]
    %v2078 = vld [vmem:[#allocation7 + $0x8e0] sm:$0xff]
    %v2079 = vld [vmem:[#allocation7 + $0x8e8] sm:$0xff]
    %v2080 = vld [vmem:[#allocation7 + $0x8f0] sm:$0xff]
    %v2081 = vld [vmem:[#allocation7 + $0x8f8] sm:$0xff]
    %v2082 = vld [vmem:[#allocation7 + $0x900] sm:$0xff]
    %v2083 = vld [vmem:[#allocation7 + $0x908] sm:$0xff]
    %v2084 = vld [vmem:[#allocation7 + $0x910] sm:$0xff]
    %v2085 = vld [vmem:[#allocation7 + $0x918] sm:$0xff]
    %v2086 = vld [vmem:[#allocation7 + $0x920] sm:$0xff]
    %v2087 = vld [vmem:[#allocation7 + $0x928] sm:$0xff]
    %v2088 = vld [vmem:[#allocation7 + $0x930] sm:$0xff]
    %v2089 = vld [vmem:[#allocation7 + $0x938] sm:$0xff]
    %v2090 = vld [vmem:[#allocation7 + $0x940] sm:$0xff]
    %v2091 = vld [vmem:[#allocation7 + $0x948] sm:$0xff]
    %v2092 = vld [vmem:[#allocation7 + $0x950] sm:$0xff]
    %v2093 = vld [vmem:[#allocation7 + $0x958] sm:$0xff]
    %v2094 = vld [vmem:[#allocation7 + $0x960] sm:$0xff]
    %v2095 = vld [vmem:[#allocation7 + $0x968] sm:$0xff]
    %v2096 = vld [vmem:[#allocation7 + $0x970] sm:$0xff]
    %v2097 = vld [vmem:[#allocation7 + $0x978] sm:$0xff]
    %v2098 = vld [vmem:[#allocation7 + $0x980] sm:$0xff]
    %v2099 = vld [vmem:[#allocation7 + $0x988] sm:$0xff]
    %v2100 = vld [vmem:[#allocation7 + $0x990] sm:$0xff]
    %v2101 = vld [vmem:[#allocation7 + $0x998] sm:$0xff]
    %v2102 = vld [vmem:[#allocation7 + $0x9a0] sm:$0xff]
    %v2103 = vld [vmem:[#allocation7 + $0x9a8] sm:$0xff]
    %v2104 = vld [vmem:[#allocation7 + $0x9b0] sm:$0xff]
    %v2105 = vld [vmem:[#allocation7 + $0x9b8] sm:$0xff]
    %v2106 = vld [vmem:[#allocation7 + $0x9c0] sm:$0xff]
    %v2107 = vld [vmem:[#allocation7 + $0x9c8] sm:$0xff]
    %v2108 = vld [vmem:[#allocation7 + $0x9d0] sm:$0xff]
    %v2109 = vld [vmem:[#allocation7 + $0x9d8] sm:$0xff]
    %v2110 = vld [vmem:[#allocation7 + $0x9e0] sm:$0xff]
    %v2111 = vld [vmem:[#allocation7 + $0x9e8] sm:$0xff]
    %v2112 = vld [vmem:[#allocation7 + $0x9f0] sm:$0xff]
    %v2113 = vld [vmem:[#allocation7 + $0x9f8] sm:$0xff]
    %v2114 = vld [vmem:[#allocation7 + $0xa00] sm:$0xff]
    %v2115 = vld [vmem:[#allocation7 + $0xa08] sm:$0xff]
    %v2116 = vld [vmem:[#allocation7 + $0xa10] sm:$0xff]
    %v2117 = vld [vmem:[#allocation7 + $0xa18] sm:$0xff]
    %v2118 = vld [vmem:[#allocation7 + $0xa20] sm:$0xff]
    %v2119 = vld [vmem:[#allocation7 + $0xa28] sm:$0xff]
    %v2120 = vld [vmem:[#allocation7 + $0xa30] sm:$0xff]
    %v2121 = vld [vmem:[#allocation7 + $0xa38] sm:$0xff]
    %v2122 = vld [vmem:[#allocation7 + $0xa40] sm:$0xff]
    %v2123 = vld [vmem:[#allocation7 + $0xa48] sm:$0xff]
    %v2124 = vld [vmem:[#allocation7 + $0xa50] sm:$0xff]
    %v2125 = vld [vmem:[#allocation7 + $0xa58] sm:$0xff]
    %v2126 = vld [vmem:[#allocation7 + $0xa60] sm:$0xff]
    %v2127 = vld [vmem:[#allocation7 + $0xa68] sm:$0xff]
    %v2128 = vld [vmem:[#allocation7 + $0xa70] sm:$0xff]
    %v2129 = vld [vmem:[#allocation7 + $0xa78] sm:$0xff]
    %v2130 = vld [vmem:[#allocation7 + $0xa80] sm:$0xff]
    %v2131 = vld [vmem:[#allocation7 + $0xa88] sm:$0xff]
    %v2132 = vld [vmem:[#allocation7 + $0xa90] sm:$0xff]
    %v2133 = vld [vmem:[#allocation7 + $0xa98] sm:$0xff]
    %v2134 = vld [vmem:[#allocation7 + $0xaa0] sm:$0xff]
    %v2135 = vld [vmem:[#allocation7 + $0xaa8] sm:$0xff]
    %v2136 = vld [vmem:[#allocation7 + $0xab0] sm:$0xff]
    %v2137 = vld [vmem:[#allocation7 + $0xab8] sm:$0xff]
    %v2138 = vld [vmem:[#allocation7 + $0xac0] sm:$0xff]
    %v2139 = vld [vmem:[#allocation7 + $0xac8] sm:$0xff]
    %v2140 = vld [vmem:[#allocation7 + $0xad0] sm:$0xff]
    %v2141 = vld [vmem:[#allocation7 + $0xad8] sm:$0xff]
    %v2142 = vld [vmem:[#allocation7 + $0xae0] sm:$0xff]
    %v2143 = vld [vmem:[#allocation7 + $0xae8] sm:$0xff]
    %v2144 = vld [vmem:[#allocation7 + $0xaf0] sm:$0xff]
    %v2145 = vld [vmem:[#allocation7 + $0xaf8] sm:$0xff]
    %v2146 = vld [vmem:[#allocation7 + $0xb00] sm:$0xff]
    %v2147 = vld [vmem:[#allocation7 + $0xb08] sm:$0xff]
    %v2148 = vld [vmem:[#allocation7 + $0xb10] sm:$0xff]
    %v2149 = vld [vmem:[#allocation7 + $0xb18] sm:$0xff]
    %v2150 = vld [vmem:[#allocation7 + $0xb20] sm:$0xff]
    %v2151 = vld [vmem:[#allocation7 + $0xb28] sm:$0xff]
    %v2152 = vld [vmem:[#allocation7 + $0xb30] sm:$0xff]
    %v2153 = vld [vmem:[#allocation7 + $0xb38] sm:$0xff]
    %v2154 = vld [vmem:[#allocation7 + $0xb40] sm:$0xff]
    %v2155 = vld [vmem:[#allocation7 + $0xb48] sm:$0xff]
    %v2156 = vld [vmem:[#allocation7 + $0xb50] sm:$0xff]
    %v2157 = vld [vmem:[#allocation7 + $0xb58] sm:$0xff]
    %v2158 = vld [vmem:[#allocation7 + $0xb60] sm:$0xff]
    %v2159 = vld [vmem:[#allocation7 + $0xb68] sm:$0xff]
    %v2160 = vld [vmem:[#allocation7 + $0xb70] sm:$0xff]
    %v2161 = vld [vmem:[#allocation7 + $0xb78] sm:$0xff]
    %v2162 = vld [vmem:[#allocation7 + $0xb80] sm:$0xff]
    %v2163 = vld [vmem:[#allocation7 + $0xb88] sm:$0xff]
    %v2164 = vld [vmem:[#allocation7 + $0xb90] sm:$0xff]
    %v2165 = vld [vmem:[#allocation7 + $0xb98] sm:$0xff]
    %v2166 = vld [vmem:[#allocation7 + $0xba0] sm:$0xff]
    %v2167 = vld [vmem:[#allocation7 + $0xba8] sm:$0xff]
    %v2168 = vld [vmem:[#allocation7 + $0xbb0] sm:$0xff]
    %v2169 = vld [vmem:[#allocation7 + $0xbb8] sm:$0xff]
    %v2170 = vld [vmem:[#allocation7 + $0xbc0] sm:$0xff]
    %v2171 = vld [vmem:[#allocation7 + $0xbc8] sm:$0xff]
    %v2172 = vld [vmem:[#allocation7 + $0xbd0] sm:$0xff]
    %v2173 = vld [vmem:[#allocation7 + $0xbd8] sm:$0xff]
    %v2174 = vld [vmem:[#allocation7 + $0xbe0] sm:$0xff]
    %v2175 = vld [vmem:[#allocation7 + $0xbe8] sm:$0xff]
    %v2176 = vld [vmem:[#allocation7 + $0xbf0] sm:$0xff]
    %v2177 = vld [vmem:[#allocation7 + $0xbf8] sm:$0xff]
    %v2178 = vld [vmem:[#allocation7 + $0xc00] sm:$0xff]
    %v2179 = vld [vmem:[#allocation7 + $0xc08] sm:$0xff]
    %v2180 = vld [vmem:[#allocation7 + $0xc10] sm:$0xff]
    %v2181 = vld [vmem:[#allocation7 + $0xc18] sm:$0xff]
    %v2182 = vld [vmem:[#allocation7 + $0xc20] sm:$0xff]
    %v2183 = vld [vmem:[#allocation7 + $0xc28] sm:$0xff]
    %v2184 = vld [vmem:[#allocation7 + $0xc30] sm:$0xff]
    %v2185 = vld [vmem:[#allocation7 + $0xc38] sm:$0xff]
    %v2186 = vld [vmem:[#allocation7 + $0xc40] sm:$0xff]
    %v2187 = vld [vmem:[#allocation7 + $0xc48] sm:$0xff]
    %v2188 = vld [vmem:[#allocation7 + $0xc50] sm:$0xff]
    %v2189 = vld [vmem:[#allocation7 + $0xc58] sm:$0xff]
    %v2190 = vld [vmem:[#allocation7 + $0xc60] sm:$0xff]
    %v2191 = vld [vmem:[#allocation7 + $0xc68] sm:$0xff]
    %v2192 = vld [vmem:[#allocation7 + $0xc70] sm:$0xff]
    %v2193 = vld [vmem:[#allocation7 + $0xc78] sm:$0xff]
    %v2194 = vld [vmem:[#allocation7 + $0xc80] sm:$0xff]
    %v2195 = vld [vmem:[#allocation7 + $0xc88] sm:$0xff]
    %v2196 = vld [vmem:[#allocation7 + $0xc90] sm:$0xff]
    %v2197 = vld [vmem:[#allocation7 + $0xc98] sm:$0xff]
    %v2198 = vld [vmem:[#allocation7 + $0xca0] sm:$0xff]
    %v2199 = vld [vmem:[#allocation7 + $0xca8] sm:$0xff]
    %v2200 = vld [vmem:[#allocation7 + $0xcb0] sm:$0xff]
    %v2201 = vld [vmem:[#allocation7 + $0xcb8] sm:$0xff]
    %v2202 = vld [vmem:[#allocation7 + $0xcc0] sm:$0xff]
    %v2203 = vld [vmem:[#allocation7 + $0xcc8] sm:$0xff]
    %v2204 = vld [vmem:[#allocation7 + $0xcd0] sm:$0xff]
    %v2205 = vld [vmem:[#allocation7 + $0xcd8] sm:$0xff]
    %v2206 = vld [vmem:[#allocation7 + $0xce0] sm:$0xff]
    %v2207 = vld [vmem:[#allocation7 + $0xce8] sm:$0xff]
    %v2208 = vld [vmem:[#allocation7 + $0xcf0] sm:$0xff]
    %v2209 = vld [vmem:[#allocation7 + $0xcf8] sm:$0xff]
    %v2210 = vld [vmem:[#allocation7 + $0xd00] sm:$0xff]
    %v2211 = vld [vmem:[#allocation7 + $0xd08] sm:$0xff]
    %v2212 = vld [vmem:[#allocation7 + $0xd10] sm:$0xff]
    %v2213 = vld [vmem:[#allocation7 + $0xd18] sm:$0xff]
    %v2214 = vld [vmem:[#allocation7 + $0xd20] sm:$0xff]
    %v2215 = vld [vmem:[#allocation7 + $0xd28] sm:$0xff]
    %v2216 = vld [vmem:[#allocation7 + $0xd30] sm:$0xff]
    %v2217 = vld [vmem:[#allocation7 + $0xd38] sm:$0xff]
    %v2218 = vld [vmem:[#allocation7 + $0xd40] sm:$0xff]
    %v2219 = vld [vmem:[#allocation7 + $0xd48] sm:$0xff]
    %v2220 = vld [vmem:[#allocation7 + $0xd50] sm:$0xff]
    %v2221 = vld [vmem:[#allocation7 + $0xd58] sm:$0xff]
    %v2222 = vld [vmem:[#allocation7 + $0xd60] sm:$0xff]
    %v2223 = vld [vmem:[#allocation7 + $0xd68] sm:$0xff]
    %v2224 = vld [vmem:[#allocation7 + $0xd70] sm:$0xff]
    %v2225 = vld [vmem:[#allocation7 + $0xd78] sm:$0xff]
    %v2226 = vld [vmem:[#allocation7 + $0xd80] sm:$0xff]
    %v2227 = vld [vmem:[#allocation7 + $0xd88] sm:$0xff]
    %v2228 = vld [vmem:[#allocation7 + $0xd90] sm:$0xff]
    %v2229 = vld [vmem:[#allocation7 + $0xd98] sm:$0xff]
    %v2230 = vld [vmem:[#allocation7 + $0xda0] sm:$0xff]
    %v2231 = vld [vmem:[#allocation7 + $0xda8] sm:$0xff]
    %v2232 = vld [vmem:[#allocation7 + $0xdb0] sm:$0xff]
    %v2233 = vld [vmem:[#allocation7 + $0xdb8] sm:$0xff]
    %v2234 = vld [vmem:[#allocation7 + $0xdc0] sm:$0xff]
    %v2235 = vld [vmem:[#allocation7 + $0xdc8] sm:$0xff]
    %v2236 = vld [vmem:[#allocation7 + $0xdd0] sm:$0xff]
    %v2237 = vld [vmem:[#allocation7 + $0xdd8] sm:$0xff]
    %v2238 = vld [vmem:[#allocation7 + $0xde0] sm:$0xff]
    %v2239 = vld [vmem:[#allocation7 + $0xde8] sm:$0xff]
    %v2240 = vld [vmem:[#allocation7 + $0xdf0] sm:$0xff]
    %v2241 = vld [vmem:[#allocation7 + $0xdf8] sm:$0xff]
    %v2242 = vld [vmem:[#allocation7 + $0xe00] sm:$0xff]
    %v2243 = vld [vmem:[#allocation7 + $0xe08] sm:$0xff]
    %v2244 = vld [vmem:[#allocation7 + $0xe10] sm:$0xff]
    %v2245 = vld [vmem:[#allocation7 + $0xe18] sm:$0xff]
    %v2246 = vld [vmem:[#allocation7 + $0xe20] sm:$0xff]
    %v2247 = vld [vmem:[#allocation7 + $0xe28] sm:$0xff]
    %v2248 = vld [vmem:[#allocation7 + $0xe30] sm:$0xff]
    %v2249 = vld [vmem:[#allocation7 + $0xe38] sm:$0xff]
    %v2250 = vld [vmem:[#allocation7 + $0xe40] sm:$0xff]
    %v2251 = vld [vmem:[#allocation7 + $0xe48] sm:$0xff]
    %v2252 = vld [vmem:[#allocation7 + $0xe50] sm:$0xff]
    %v2253 = vld [vmem:[#allocation7 + $0xe58] sm:$0xff]
    %v2254 = vld [vmem:[#allocation7 + $0xe60] sm:$0xff]
    %v2255 = vld [vmem:[#allocation7 + $0xe68] sm:$0xff]
    %v2256 = vld [vmem:[#allocation7 + $0xe70] sm:$0xff]
    %v2257 = vld [vmem:[#allocation7 + $0xe78] sm:$0xff]
    %v2258 = vld [vmem:[#allocation7 + $0xe80] sm:$0xff]
    %v2259 = vld [vmem:[#allocation7 + $0xe88] sm:$0xff]
    %v2260 = vld [vmem:[#allocation7 + $0xe90] sm:$0xff]
    %v2261 = vld [vmem:[#allocation7 + $0xe98] sm:$0xff]
    %v2262 = vld [vmem:[#allocation7 + $0xea0] sm:$0xff]
    %v2263 = vld [vmem:[#allocation7 + $0xea8] sm:$0xff]
    %v2264 = vld [vmem:[#allocation7 + $0xeb0] sm:$0xff]
    %v2265 = vld [vmem:[#allocation7 + $0xeb8] sm:$0xff]
    %v2266 = vld [vmem:[#allocation7 + $0xec0] sm:$0xff]
    %v2267 = vld [vmem:[#allocation7 + $0xec8] sm:$0xff]
    %v2268 = vld [vmem:[#allocation7 + $0xed0] sm:$0xff]
    %v2269 = vld [vmem:[#allocation7 + $0xed8] sm:$0xff]
    %v2270 = vld [vmem:[#allocation7 + $0xee0] sm:$0xff]
    %v2271 = vld [vmem:[#allocation7 + $0xee8] sm:$0xff]
    %v2272 = vld [vmem:[#allocation7 + $0xef0] sm:$0xff]
    %v2273 = vld [vmem:[#allocation7 + $0xef8] sm:$0xff]
    %v2274 = vld [vmem:[#allocation7 + $0xf00] sm:$0xff]
    %v2275 = vld [vmem:[#allocation7 + $0xf08] sm:$0xff]
    %v2276 = vld [vmem:[#allocation7 + $0xf10] sm:$0xff]
    %v2277 = vld [vmem:[#allocation7 + $0xf18] sm:$0xff]
    %v2278 = vld [vmem:[#allocation7 + $0xf20] sm:$0xff]
    %v2279 = vld [vmem:[#allocation7 + $0xf28] sm:$0xff]
    %v2280 = vld [vmem:[#allocation7 + $0xf30] sm:$0xff]
    %v2281 = vld [vmem:[#allocation7 + $0xf38] sm:$0xff]
    %v2282 = vld [vmem:[#allocation7 + $0xf40] sm:$0xff]
    %v2283 = vld [vmem:[#allocation7 + $0xf48] sm:$0xff]
    %v2284 = vld [vmem:[#allocation7 + $0xf50] sm:$0xff]
    %v2285 = vld [vmem:[#allocation7 + $0xf58] sm:$0xff]
    %v2286 = vld [vmem:[#allocation7 + $0xf60] sm:$0xff]
    %v2287 = vld [vmem:[#allocation7 + $0xf68] sm:$0xff]
    %v2288 = vld [vmem:[#allocation7 + $0xf70] sm:$0xff]
    %v2289 = vld [vmem:[#allocation7 + $0xf78] sm:$0xff]
    %v2290 = vld [vmem:[#allocation7 + $0xf80] sm:$0xff]
    %v2291 = vld [vmem:[#allocation7 + $0xf88] sm:$0xff]
    %v2292 = vld [vmem:[#allocation7 + $0xf90] sm:$0xff]
    %v2293 = vld [vmem:[#allocation7 + $0xf98] sm:$0xff]
    %v2294 = vld [vmem:[#allocation7 + $0xfa0] sm:$0xff]
    %v2295 = vld [vmem:[#allocation7 + $0xfa8] sm:$0xff]
    %v2296 = vld [vmem:[#allocation7 + $0xfb0] sm:$0xff]
    %v2297 = vld [vmem:[#allocation7 + $0xfb8] sm:$0xff]
    %v2298 = vld [vmem:[#allocation7 + $0xfc0] sm:$0xff]
    %v2299 = vld [vmem:[#allocation7 + $0xfc8] sm:$0xff]
    %v2300 = vld [vmem:[#allocation7 + $0xfd0] sm:$0xff]
    %v2301 = vld [vmem:[#allocation7 + $0xfd8] sm:$0xff]
    %v2302 = vld [vmem:[#allocation7 + $0xfe0] sm:$0xff]
    %v2303 = vld [vmem:[#allocation7 + $0xfe8] sm:$0xff]
    %v2304 = vld [vmem:[#allocation7 + $0xff0] sm:$0xff]
    %v2305 = vld [vmem:[#allocation7 + $0xff8] sm:$0xff]
    %v2306 = vld [vmem:[#allocation7 + $0x1000] sm:$0xff]
    %v2307 = vld [vmem:[#allocation7 + $0x1008] sm:$0xff]
    %v2308 = vld [vmem:[#allocation7 + $0x1010] sm:$0xff]
    %v2309 = vld [vmem:[#allocation7 + $0x1018] sm:$0xff]
    %v2310 = vld [vmem:[#allocation7 + $0x1020] sm:$0xff]
    %v2311 = vld [vmem:[#allocation7 + $0x1028] sm:$0xff]
    %v2312 = vld [vmem:[#allocation7 + $0x1030] sm:$0xff]
    %v2313 = vld [vmem:[#allocation7 + $0x1038] sm:$0xff]
    %v2314 = vld [vmem:[#allocation7 + $0x1040] sm:$0xff]
    %v2315 = vld [vmem:[#allocation7 + $0x1048] sm:$0xff]
    %v2316 = vld [vmem:[#allocation7 + $0x1050] sm:$0xff]
    %v2317 = vld [vmem:[#allocation7 + $0x1058] sm:$0xff]
    %v2318 = vld [vmem:[#allocation7 + $0x1060] sm:$0xff]
    %v2319 = vld [vmem:[#allocation7 + $0x1068] sm:$0xff]
    %v2320 = vld [vmem:[#allocation7 + $0x1070] sm:$0xff]
    %v2321 = vld [vmem:[#allocation7 + $0x1078] sm:$0xff]
    %v2322 = vld [vmem:[#allocation7 + $0x1080] sm:$0xff]
    %v2323 = vld [vmem:[#allocation7 + $0x1088] sm:$0xff]
    %v2324 = vld [vmem:[#allocation7 + $0x1090] sm:$0xff]
    %v2325 = vld [vmem:[#allocation7 + $0x1098] sm:$0xff]
    %v2326 = vld [vmem:[#allocation7 + $0x10a0] sm:$0xff]
    %v2327 = vld [vmem:[#allocation7 + $0x10a8] sm:$0xff]
    %v2328 = vld [vmem:[#allocation7 + $0x10b0] sm:$0xff]
    %v2329 = vld [vmem:[#allocation7 + $0x10b8] sm:$0xff]
    %v2330 = vld [vmem:[#allocation7 + $0x10c0] sm:$0xff]
    %v2331 = vld [vmem:[#allocation7 + $0x10c8] sm:$0xff]
    %v2332 = vld [vmem:[#allocation7 + $0x10d0] sm:$0xff]
    %v2333 = vld [vmem:[#allocation7 + $0x10d8] sm:$0xff]
    %v2334 = vld [vmem:[#allocation7 + $0x10e0] sm:$0xff]
    %v2335 = vld [vmem:[#allocation7 + $0x10e8] sm:$0xff]
    %v2336 = vld [vmem:[#allocation7 + $0x10f0] sm:$0xff]
    %v2337 = vld [vmem:[#allocation7 + $0x10f8] sm:$0xff]
    %v2338 = vld [vmem:[#allocation7 + $0x1100] sm:$0xff]
    %v2339 = vld [vmem:[#allocation7 + $0x1108] sm:$0xff]
    %v2340 = vld [vmem:[#allocation7 + $0x1110] sm:$0xff]
    %v2341 = vld [vmem:[#allocation7 + $0x1118] sm:$0xff]
    %v2342 = vld [vmem:[#allocation7 + $0x1120] sm:$0xff]
    %v2343 = vld [vmem:[#allocation7 + $0x1128] sm:$0xff]
    %v2344 = vld [vmem:[#allocation7 + $0x1130] sm:$0xff]
    %v2345 = vld [vmem:[#allocation7 + $0x1138] sm:$0xff]
    %v2346 = vld [vmem:[#allocation7 + $0x1140] sm:$0xff]
    %v2347 = vld [vmem:[#allocation7 + $0x1148] sm:$0xff]
    %v2348 = vld [vmem:[#allocation7 + $0x1150] sm:$0xff]
    %v2349 = vld [vmem:[#allocation7 + $0x1158] sm:$0xff]
    %v2350 = vld [vmem:[#allocation7 + $0x1160] sm:$0xff]
    %v2351 = vld [vmem:[#allocation7 + $0x1168] sm:$0xff]
    %v2352 = vld [vmem:[#allocation7 + $0x1170] sm:$0xff]
    %v2353 = vld [vmem:[#allocation7 + $0x1178] sm:$0xff]
    %v2354 = vld [vmem:[#allocation7 + $0x1180] sm:$0xff]
    %v2355 = vld [vmem:[#allocation7 + $0x1188] sm:$0xff]
    %v2356 = vld [vmem:[#allocation7 + $0x1190] sm:$0xff]
    %v2357 = vld [vmem:[#allocation7 + $0x1198] sm:$0xff]
    %v2358 = vld [vmem:[#allocation7 + $0x11a0] sm:$0xff]
    %v2359 = vld [vmem:[#allocation7 + $0x11a8] sm:$0xff]
    %v2360 = vld [vmem:[#allocation7 + $0x11b0] sm:$0xff]
    %v2361 = vld [vmem:[#allocation7 + $0x11b8] sm:$0xff]
    %v2362 = vld [vmem:[#allocation7 + $0x11c0] sm:$0xff]
    %v2363 = vld [vmem:[#allocation7 + $0x11c8] sm:$0xff]
    %v2364 = vld [vmem:[#allocation7 + $0x11d0] sm:$0xff]
    %v2365 = vld [vmem:[#allocation7 + $0x11d8] sm:$0xff]
    %v2366 = vld [vmem:[#allocation7 + $0x11e0] sm:$0xff]
    %v2367 = vld [vmem:[#allocation7 + $0x11e8] sm:$0xff]
    %v2368 = vld [vmem:[#allocation7 + $0x11f0] sm:$0xff]
    %v2369 = vld [vmem:[#allocation7 + $0x11f8] sm:$0xff]
    %v2370 = vld [vmem:[#allocation7 + $0x1200] sm:$0xff]
    %v2371 = vld [vmem:[#allocation7 + $0x1208] sm:$0xff]
    %v2372 = vld [vmem:[#allocation7 + $0x1210] sm:$0xff]
    %v2373 = vld [vmem:[#allocation7 + $0x1218] sm:$0xff]
    %v2374 = vld [vmem:[#allocation7 + $0x1220] sm:$0xff]
    %v2375 = vld [vmem:[#allocation7 + $0x1228] sm:$0xff]
    %v2376 = vld [vmem:[#allocation7 + $0x1230] sm:$0xff]
    %v2377 = vld [vmem:[#allocation7 + $0x1238] sm:$0xff]
    %v2378 = vld [vmem:[#allocation7 + $0x1240] sm:$0xff]
    %v2379 = vld [vmem:[#allocation7 + $0x1248] sm:$0xff]
    %v2380 = vld [vmem:[#allocation7 + $0x1250] sm:$0xff]
    %v2381 = vld [vmem:[#allocation7 + $0x1258] sm:$0xff]
    %v2382 = vld [vmem:[#allocation7 + $0x1260] sm:$0xff]
    %v2383 = vld [vmem:[#allocation7 + $0x1268] sm:$0xff]
    %v2384 = vld [vmem:[#allocation7 + $0x1270] sm:$0xff]
    %v2385 = vld [vmem:[#allocation7 + $0x1278] sm:$0xff]
    %v2386 = vld [vmem:[#allocation7 + $0x1280] sm:$0xff]
    %v2387 = vld [vmem:[#allocation7 + $0x1288] sm:$0xff]
    %v2388 = vld [vmem:[#allocation7 + $0x1290] sm:$0xff]
    %v2389 = vld [vmem:[#allocation7 + $0x1298] sm:$0xff]
    %v2390 = vld [vmem:[#allocation7 + $0x12a0] sm:$0xff]
    %v2391 = vld [vmem:[#allocation7 + $0x12a8] sm:$0xff]
    %v2392 = vld [vmem:[#allocation7 + $0x12b0] sm:$0xff]
    %v2393 = vld [vmem:[#allocation7 + $0x12b8] sm:$0xff]
    %v2394 = vld [vmem:[#allocation7 + $0x12c0] sm:$0xff]
    %v2395 = vld [vmem:[#allocation7 + $0x12c8] sm:$0xff]
    %v2396 = vld [vmem:[#allocation7 + $0x12d0] sm:$0xff]
    %v2397 = vld [vmem:[#allocation7 + $0x12d8] sm:$0xff]
    %v2398 = vld [vmem:[#allocation7 + $0x12e0] sm:$0xff]
    %v2399 = vld [vmem:[#allocation7 + $0x12e8] sm:$0xff]
    %v2400 = vld [vmem:[#allocation7 + $0x12f0] sm:$0xff]
    %v2401 = vld [vmem:[#allocation7 + $0x12f8] sm:$0xff]
    %v2402 = vld [vmem:[#allocation7 + $0x1300] sm:$0xff]
    %v2403 = vld [vmem:[#allocation7 + $0x1308] sm:$0xff]
    %v2404 = vld [vmem:[#allocation7 + $0x1310] sm:$0xff]
    %v2405 = vld [vmem:[#allocation7 + $0x1318] sm:$0xff]
    %v2406 = vld [vmem:[#allocation7 + $0x1320] sm:$0xff]
    %v2407 = vld [vmem:[#allocation7 + $0x1328] sm:$0xff]
    %v2408 = vld [vmem:[#allocation7 + $0x1330] sm:$0xff]
    %v2409 = vld [vmem:[#allocation7 + $0x1338] sm:$0xff]
    %v2410 = vld [vmem:[#allocation7 + $0x1340] sm:$0xff]
    %v2411 = vld [vmem:[#allocation7 + $0x1348] sm:$0xff]
    %v2412 = vld [vmem:[#allocation7 + $0x1350] sm:$0xff]
    %v2413 = vld [vmem:[#allocation7 + $0x1358] sm:$0xff]
    %v2414 = vld [vmem:[#allocation7 + $0x1360] sm:$0xff]
    %v2415 = vld [vmem:[#allocation7 + $0x1368] sm:$0xff]
    %v2416 = vld [vmem:[#allocation7 + $0x1370] sm:$0xff]
    %v2417 = vld [vmem:[#allocation7 + $0x1378] sm:$0xff]
    %v2418 = vld [vmem:[#allocation7 + $0x1380] sm:$0xff]
    %v2419 = vld [vmem:[#allocation7 + $0x1388] sm:$0xff]
    %v2420 = vld [vmem:[#allocation7 + $0x1390] sm:$0xff]
    %v2421 = vld [vmem:[#allocation7 + $0x1398] sm:$0xff]
    %v2422 = vld [vmem:[#allocation7 + $0x13a0] sm:$0xff]
    %v2423 = vld [vmem:[#allocation7 + $0x13a8] sm:$0xff]
    %v2424 = vld [vmem:[#allocation7 + $0x13b0] sm:$0xff]
    %v2425 = vld [vmem:[#allocation7 + $0x13b8] sm:$0xff]
    %v2426 = vld [vmem:[#allocation7 + $0x13c0] sm:$0xff]
    %v2427 = vld [vmem:[#allocation7 + $0x13c8] sm:$0xff]
    %v2428 = vld [vmem:[#allocation7 + $0x13d0] sm:$0xff]
    %v2429 = vld [vmem:[#allocation7 + $0x13d8] sm:$0xff]
    %v2430 = vld [vmem:[#allocation7 + $0x13e0] sm:$0xff]
    %v2431 = vld [vmem:[#allocation7 + $0x13e8] sm:$0xff]
    %v2432 = vld [vmem:[#allocation7 + $0x13f0] sm:$0xff]
    %v2433 = vld [vmem:[#allocation7 + $0x13f8] sm:$0xff]
    %v2434 = vld [vmem:[#allocation7 + $0x1400] sm:$0xff]
    %v2435 = vld [vmem:[#allocation7 + $0x1408] sm:$0xff]
    %v2436 = vld [vmem:[#allocation7 + $0x1410] sm:$0xff]
    %v2437 = vld [vmem:[#allocation7 + $0x1418] sm:$0xff]
    %v2438 = vld [vmem:[#allocation7 + $0x1420] sm:$0xff]
    %v2439 = vld [vmem:[#allocation7 + $0x1428] sm:$0xff]
    %v2440 = vld [vmem:[#allocation7 + $0x1430] sm:$0xff]
    %v2441 = vld [vmem:[#allocation7 + $0x1438] sm:$0xff]
    %v2442 = vld [vmem:[#allocation7 + $0x1440] sm:$0xff]
    %v2443 = vld [vmem:[#allocation7 + $0x1448] sm:$0xff]
    %v2444 = vld [vmem:[#allocation7 + $0x1450] sm:$0xff]
    %v2445 = vld [vmem:[#allocation7 + $0x1458] sm:$0xff]
    %v2446 = vld [vmem:[#allocation7 + $0x1460] sm:$0xff]
    %v2447 = vld [vmem:[#allocation7 + $0x1468] sm:$0xff]
    %v2448 = vld [vmem:[#allocation7 + $0x1470] sm:$0xff]
    %v2449 = vld [vmem:[#allocation7 + $0x1478] sm:$0xff]
    %v2450 = vld [vmem:[#allocation7 + $0x1480] sm:$0xff]
    %v2451 = vld [vmem:[#allocation7 + $0x1488] sm:$0xff]
    %v2452 = vld [vmem:[#allocation7 + $0x1490] sm:$0xff]
    %v2453 = vld [vmem:[#allocation7 + $0x1498] sm:$0xff]
    %v2454 = vld [vmem:[#allocation7 + $0x14a0] sm:$0xff]
    %v2455 = vld [vmem:[#allocation7 + $0x14a8] sm:$0xff]
    %v2456 = vld [vmem:[#allocation7 + $0x14b0] sm:$0xff]
    %v2457 = vld [vmem:[#allocation7 + $0x14b8] sm:$0xff]
    %v2458 = vld [vmem:[#allocation7 + $0x14c0] sm:$0xff]
    %v2459 = vld [vmem:[#allocation7 + $0x14c8] sm:$0xff]
    %v2460 = vld [vmem:[#allocation7 + $0x14d0] sm:$0xff]
    %v2461 = vld [vmem:[#allocation7 + $0x14d8] sm:$0xff]
    %v2462 = vld [vmem:[#allocation7 + $0x14e0] sm:$0xff]
    %v2463 = vld [vmem:[#allocation7 + $0x14e8] sm:$0xff]
    %v2464 = vld [vmem:[#allocation7 + $0x14f0] sm:$0xff]
    %v2465 = vld [vmem:[#allocation7 + $0x14f8] sm:$0xff]
    %v2466 = vld [vmem:[#allocation7 + $0x1500] sm:$0xff]
    %v2467 = vld [vmem:[#allocation7 + $0x1508] sm:$0xff]
    %v2468 = vld [vmem:[#allocation7 + $0x1510] sm:$0xff]
    %v2469 = vld [vmem:[#allocation7 + $0x1518] sm:$0xff]
    %v2470 = vld [vmem:[#allocation7 + $0x1520] sm:$0xff]
    %v2471 = vld [vmem:[#allocation7 + $0x1528] sm:$0xff]
    %v2472 = vld [vmem:[#allocation7 + $0x1530] sm:$0xff]
    %v2473 = vld [vmem:[#allocation7 + $0x1538] sm:$0xff]
    %v2474 = vld [vmem:[#allocation7 + $0x1540] sm:$0xff]
    %v2475 = vld [vmem:[#allocation7 + $0x1548] sm:$0xff]
    %v2476 = vld [vmem:[#allocation7 + $0x1550] sm:$0xff]
    %v2477 = vld [vmem:[#allocation7 + $0x1558] sm:$0xff]
    %v2478 = vld [vmem:[#allocation7 + $0x1560] sm:$0xff]
    %v2479 = vld [vmem:[#allocation7 + $0x1568] sm:$0xff]
    %v2480 = vld [vmem:[#allocation7 + $0x1570] sm:$0xff]
    %v2481 = vld [vmem:[#allocation7 + $0x1578] sm:$0xff]
    %v2482 = vld [vmem:[#allocation7 + $0x1580] sm:$0xff]
    %v2483 = vld [vmem:[#allocation7 + $0x1588] sm:$0xff]
    %v2484 = vld [vmem:[#allocation7 + $0x1590] sm:$0xff]
    %v2485 = vld [vmem:[#allocation7 + $0x1598] sm:$0xff]
    %v2486 = vld [vmem:[#allocation7 + $0x15a0] sm:$0xff]
    %v2487 = vld [vmem:[#allocation7 + $0x15a8] sm:$0xff]
    %v2488 = vld [vmem:[#allocation7 + $0x15b0] sm:$0xff]
    %v2489 = vld [vmem:[#allocation7 + $0x15b8] sm:$0xff]
    %v2490 = vld [vmem:[#allocation7 + $0x15c0] sm:$0xff]
    %v2491 = vld [vmem:[#allocation7 + $0x15c8] sm:$0xff]
    %v2492 = vld [vmem:[#allocation7 + $0x15d0] sm:$0xff]
    %v2493 = vld [vmem:[#allocation7 + $0x15d8] sm:$0xff]
    %v2494 = vld [vmem:[#allocation7 + $0x15e0] sm:$0xff]
    %v2495 = vld [vmem:[#allocation7 + $0x15e8] sm:$0xff]
    %v2496 = vld [vmem:[#allocation7 + $0x15f0] sm:$0xff]
    %v2497 = vld [vmem:[#allocation7 + $0x15f8] sm:$0xff]
    %v2498 = vld [vmem:[#allocation7 + $0x1600] sm:$0xff]
    %v2499 = vld [vmem:[#allocation7 + $0x1608] sm:$0xff]
    %v2500 = vld [vmem:[#allocation7 + $0x1610] sm:$0xff]
    %v2501 = vld [vmem:[#allocation7 + $0x1618] sm:$0xff]
    %v2502 = vld [vmem:[#allocation7 + $0x1620] sm:$0xff]
    %v2503 = vld [vmem:[#allocation7 + $0x1628] sm:$0xff]
    %v2504 = vld [vmem:[#allocation7 + $0x1630] sm:$0xff]
    %v2505 = vld [vmem:[#allocation7 + $0x1638] sm:$0xff]
    %v2506 = vld [vmem:[#allocation7 + $0x1640] sm:$0xff]
    %v2507 = vld [vmem:[#allocation7 + $0x1648] sm:$0xff]
    %v2508 = vld [vmem:[#allocation7 + $0x1650] sm:$0xff]
    %v2509 = vld [vmem:[#allocation7 + $0x1658] sm:$0xff]
    %v2510 = vld [vmem:[#allocation7 + $0x1660] sm:$0xff]
    %v2511 = vld [vmem:[#allocation7 + $0x1668] sm:$0xff]
    %v2512 = vld [vmem:[#allocation7 + $0x1670] sm:$0xff]
    %v2513 = vld [vmem:[#allocation7 + $0x1678] sm:$0xff]
    %v2514 = vld [vmem:[#allocation7 + $0x1680] sm:$0xff]
    %v2515 = vld [vmem:[#allocation7 + $0x1688] sm:$0xff]
    %v2516 = vld [vmem:[#allocation7 + $0x1690] sm:$0xff]
    %v2517 = vld [vmem:[#allocation7 + $0x1698] sm:$0xff]
    %v2518 = vld [vmem:[#allocation7 + $0x16a0] sm:$0xff]
    %v2519 = vld [vmem:[#allocation7 + $0x16a8] sm:$0xff]
    %v2520 = vld [vmem:[#allocation7 + $0x16b0] sm:$0xff]
    %v2521 = vld [vmem:[#allocation7 + $0x16b8] sm:$0xff]
    %v2522 = vld [vmem:[#allocation7 + $0x16c0] sm:$0xff]
    %v2523 = vld [vmem:[#allocation7 + $0x16c8] sm:$0xff]
    %v2524 = vld [vmem:[#allocation7 + $0x16d0] sm:$0xff]
    %v2525 = vld [vmem:[#allocation7 + $0x16d8] sm:$0xff]
    %v2526 = vld [vmem:[#allocation7 + $0x16e0] sm:$0xff]
    %v2527 = vld [vmem:[#allocation7 + $0x16e8] sm:$0xff]
    %v2528 = vld [vmem:[#allocation7 + $0x16f0] sm:$0xff]
    %v2529 = vld [vmem:[#allocation7 + $0x16f8] sm:$0xff]
    %v2530 = vld [vmem:[#allocation7 + $0x1700] sm:$0xff]
    %v2531 = vld [vmem:[#allocation7 + $0x1708] sm:$0xff]
    %v2532 = vld [vmem:[#allocation7 + $0x1710] sm:$0xff]
    %v2533 = vld [vmem:[#allocation7 + $0x1718] sm:$0xff]
    %v2534 = vld [vmem:[#allocation7 + $0x1720] sm:$0xff]
    %v2535 = vld [vmem:[#allocation7 + $0x1728] sm:$0xff]
    %v2536 = vld [vmem:[#allocation7 + $0x1730] sm:$0xff]
    %v2537 = vld [vmem:[#allocation7 + $0x1738] sm:$0xff]
    %v2538 = vld [vmem:[#allocation7 + $0x1740] sm:$0xff]
    %v2539 = vld [vmem:[#allocation7 + $0x1748] sm:$0xff]
    %v2540 = vld [vmem:[#allocation7 + $0x1750] sm:$0xff]
    %v2541 = vld [vmem:[#allocation7 + $0x1758] sm:$0xff]
    %v2542 = vld [vmem:[#allocation7 + $0x1760] sm:$0xff]
    %v2543 = vld [vmem:[#allocation7 + $0x1768] sm:$0xff]
    %v2544 = vld [vmem:[#allocation7 + $0x1770] sm:$0xff]
    %v2545 = vld [vmem:[#allocation7 + $0x1778] sm:$0xff]
    %v2546 = vld [vmem:[#allocation7 + $0x1780] sm:$0xff]
    %v2547 = vld [vmem:[#allocation7 + $0x1788] sm:$0xff]
    %v2548 = vld [vmem:[#allocation7 + $0x1790] sm:$0xff]
    %v2549 = vld [vmem:[#allocation7 + $0x1798] sm:$0xff]
    %v2550 = vld [vmem:[#allocation7 + $0x17a0] sm:$0xff]
    %v2551 = vld [vmem:[#allocation7 + $0x17a8] sm:$0xff]
    %v2552 = vld [vmem:[#allocation7 + $0x17b0] sm:$0xff]
    %v2553 = vld [vmem:[#allocation7 + $0x17b8] sm:$0xff]
    %v2554 = vld [vmem:[#allocation7 + $0x17c0] sm:$0xff]
    %v2555 = vld [vmem:[#allocation7 + $0x17c8] sm:$0xff]
    %v2556 = vld [vmem:[#allocation7 + $0x17d0] sm:$0xff]
    %v2557 = vld [vmem:[#allocation7 + $0x17d8] sm:$0xff]
    %v2558 = vld [vmem:[#allocation7 + $0x17e0] sm:$0xff]
    %v2559 = vld [vmem:[#allocation7 + $0x17e8] sm:$0xff]
    %v2560 = vld [vmem:[#allocation7 + $0x17f0] sm:$0xff]
    %v2561 = vld [vmem:[#allocation7 + $0x17f8] sm:$0xff]
    %v2562 = vld [vmem:[#allocation7 + $0x1800] sm:$0xff]
    %v2563 = vld [vmem:[#allocation7 + $0x1808] sm:$0xff]
    %v2564 = vld [vmem:[#allocation7 + $0x1810] sm:$0xff]
    %v2565 = vld [vmem:[#allocation7 + $0x1818] sm:$0xff]
    %v2566 = vld [vmem:[#allocation7 + $0x1820] sm:$0xff]
    %v2567 = vld [vmem:[#allocation7 + $0x1828] sm:$0xff]
    %v2568 = vld [vmem:[#allocation7 + $0x1830] sm:$0xff]
    %v2569 = vld [vmem:[#allocation7 + $0x1838] sm:$0xff]
    %v2570 = vld [vmem:[#allocation7 + $0x1840] sm:$0xff]
    %v2571 = vld [vmem:[#allocation7 + $0x1848] sm:$0xff]
    %v2572 = vld [vmem:[#allocation7 + $0x1850] sm:$0xff]
    %v2573 = vld [vmem:[#allocation7 + $0x1858] sm:$0xff]
    %v2574 = vld [vmem:[#allocation7 + $0x1860] sm:$0xff]
    %v2575 = vld [vmem:[#allocation7 + $0x1868] sm:$0xff]
    %v2576 = vld [vmem:[#allocation7 + $0x1870] sm:$0xff]
    %v2577 = vld [vmem:[#allocation7 + $0x1878] sm:$0xff]
    %v2578 = vld [vmem:[#allocation7 + $0x1880] sm:$0xff]
    %v2579 = vld [vmem:[#allocation7 + $0x1888] sm:$0xff]
    %v2580 = vld [vmem:[#allocation7 + $0x1890] sm:$0xff]
    %v2581 = vld [vmem:[#allocation7 + $0x1898] sm:$0xff]
    %v2582 = vld [vmem:[#allocation7 + $0x18a0] sm:$0xff]
    %v2583 = vld [vmem:[#allocation7 + $0x18a8] sm:$0xff]
    %v2584 = vld [vmem:[#allocation7 + $0x18b0] sm:$0xff]
    %v2585 = vld [vmem:[#allocation7 + $0x18b8] sm:$0xff]
    %v2586 = vld [vmem:[#allocation7 + $0x18c0] sm:$0xff]
    %v2587 = vld [vmem:[#allocation7 + $0x18c8] sm:$0xff]
    %v2588 = vld [vmem:[#allocation7 + $0x18d0] sm:$0xff]
    %v2589 = vld [vmem:[#allocation7 + $0x18d8] sm:$0xff]
    %v2590 = vld [vmem:[#allocation7 + $0x18e0] sm:$0xff]
    %v2591 = vld [vmem:[#allocation7 + $0x18e8] sm:$0xff]
    %v2592 = vld [vmem:[#allocation7 + $0x18f0] sm:$0xff]
    %v2593 = vld [vmem:[#allocation7 + $0x18f8] sm:$0xff]
    %v2594 = vld [vmem:[#allocation7 + $0x1900] sm:$0xff]
    %v2595 = vld [vmem:[#allocation7 + $0x1908] sm:$0xff]
    %v2596 = vld [vmem:[#allocation7 + $0x1910] sm:$0xff]
    %v2597 = vld [vmem:[#allocation7 + $0x1918] sm:$0xff]
    %v2598 = vld [vmem:[#allocation7 + $0x1920] sm:$0xff]
    %v2599 = vld [vmem:[#allocation7 + $0x1928] sm:$0xff]
    %v2600 = vld [vmem:[#allocation7 + $0x1930] sm:$0xff]
    %v2601 = vld [vmem:[#allocation7 + $0x1938] sm:$0xff]
    %v2602 = vld [vmem:[#allocation7 + $0x1940] sm:$0xff]
    %v2603 = vld [vmem:[#allocation7 + $0x1948] sm:$0xff]
    %v2604 = vld [vmem:[#allocation7 + $0x1950] sm:$0xff]
    %v2605 = vld [vmem:[#allocation7 + $0x1958] sm:$0xff]
    %v2606 = vld [vmem:[#allocation7 + $0x1960] sm:$0xff]
    %v2607 = vld [vmem:[#allocation7 + $0x1968] sm:$0xff]
    %v2608 = vld [vmem:[#allocation7 + $0x1970] sm:$0xff]
    %v2609 = vld [vmem:[#allocation7 + $0x1978] sm:$0xff]
    %v2610 = vld [vmem:[#allocation7 + $0x1980] sm:$0xff]
    %v2611 = vld [vmem:[#allocation7 + $0x1988] sm:$0xff]
    %v2612 = vld [vmem:[#allocation7 + $0x1990] sm:$0xff]
    %v2613 = vld [vmem:[#allocation7 + $0x1998] sm:$0xff]
    %v2614 = vld [vmem:[#allocation7 + $0x19a0] sm:$0xff]
    %v2615 = vld [vmem:[#allocation7 + $0x19a8] sm:$0xff]
    %v2616 = vld [vmem:[#allocation7 + $0x19b0] sm:$0xff]
    %v2617 = vld [vmem:[#allocation7 + $0x19b8] sm:$0xff]
    %v2618 = vld [vmem:[#allocation7 + $0x19c0] sm:$0xff]
    %v2619 = vld [vmem:[#allocation7 + $0x19c8] sm:$0xff]
    %v2620 = vld [vmem:[#allocation7 + $0x19d0] sm:$0xff]
    %v2621 = vld [vmem:[#allocation7 + $0x19d8] sm:$0xff]
    %v2622 = vld [vmem:[#allocation7 + $0x19e0] sm:$0xff]
    %v2623 = vld [vmem:[#allocation7 + $0x19e8] sm:$0xff]
    %v2624 = vld [vmem:[#allocation7 + $0x19f0] sm:$0xff]
    %v2625 = vld [vmem:[#allocation7 + $0x19f8] sm:$0xff]
    %v2626 = vld [vmem:[#allocation7 + $0x1a00] sm:$0xff]
    %v2627 = vld [vmem:[#allocation7 + $0x1a08] sm:$0xff]
    %v2628 = vld [vmem:[#allocation7 + $0x1a10] sm:$0xff]
    %v2629 = vld [vmem:[#allocation7 + $0x1a18] sm:$0xff]
    %v2630 = vld [vmem:[#allocation7 + $0x1a20] sm:$0xff]
    %v2631 = vld [vmem:[#allocation7 + $0x1a28] sm:$0xff]
    %v2632 = vld [vmem:[#allocation7 + $0x1a30] sm:$0xff]
    %v2633 = vld [vmem:[#allocation7 + $0x1a38] sm:$0xff]
    %v2634 = vld [vmem:[#allocation7 + $0x1a40] sm:$0xff]
    %v2635 = vld [vmem:[#allocation7 + $0x1a48] sm:$0xff]
    %v2636 = vld [vmem:[#allocation7 + $0x1a50] sm:$0xff]
    %v2637 = vld [vmem:[#allocation7 + $0x1a58] sm:$0xff]
    %v2638 = vld [vmem:[#allocation7 + $0x1a60] sm:$0xff]
    %v2639 = vld [vmem:[#allocation7 + $0x1a68] sm:$0xff]
    %v2640 = vld [vmem:[#allocation7 + $0x1a70] sm:$0xff]
    %v2641 = vld [vmem:[#allocation7 + $0x1a78] sm:$0xff]
    %v2642 = vld [vmem:[#allocation7 + $0x1a80] sm:$0xff]
    %v2643 = vld [vmem:[#allocation7 + $0x1a88] sm:$0xff]
    %v2644 = vld [vmem:[#allocation7 + $0x1a90] sm:$0xff]
    %v2645 = vld [vmem:[#allocation7 + $0x1a98] sm:$0xff]
    %v2646 = vld [vmem:[#allocation7 + $0x1aa0] sm:$0xff]
    %v2647 = vld [vmem:[#allocation7 + $0x1aa8] sm:$0xff]
    %v2648 = vld [vmem:[#allocation7 + $0x1ab0] sm:$0xff]
    %v2649 = vld [vmem:[#allocation7 + $0x1ab8] sm:$0xff]
    %v2650 = vld [vmem:[#allocation7 + $0x1ac0] sm:$0xff]
    %v2651 = vld [vmem:[#allocation7 + $0x1ac8] sm:$0xff]
    %v2652 = vld [vmem:[#allocation7 + $0x1ad0] sm:$0xff]
    %v2653 = vld [vmem:[#allocation7 + $0x1ad8] sm:$0xff]
    %v2654 = vld [vmem:[#allocation7 + $0x1ae0] sm:$0xff]
    %v2655 = vld [vmem:[#allocation7 + $0x1ae8] sm:$0xff]
    %v2656 = vld [vmem:[#allocation7 + $0x1af0] sm:$0xff]
    %v2657 = vld [vmem:[#allocation7 + $0x1af8] sm:$0xff]
    %v2658 = vld [vmem:[#allocation7 + $0x1b00] sm:$0xff]
    %v2659 = vld [vmem:[#allocation7 + $0x1b08] sm:$0xff]
    %v2660 = vld [vmem:[#allocation7 + $0x1b10] sm:$0xff]
    %v2661 = vld [vmem:[#allocation7 + $0x1b18] sm:$0xff]
    %v2662 = vld [vmem:[#allocation7 + $0x1b20] sm:$0xff]
    %v2663 = vld [vmem:[#allocation7 + $0x1b28] sm:$0xff]
    %v2664 = vld [vmem:[#allocation7 + $0x1b30] sm:$0xff]
    %v2665 = vld [vmem:[#allocation7 + $0x1b38] sm:$0xff]
    %v2666 = vld [vmem:[#allocation7 + $0x1b40] sm:$0xff]
    %v2667 = vld [vmem:[#allocation7 + $0x1b48] sm:$0xff]
    %v2668 = vld [vmem:[#allocation7 + $0x1b50] sm:$0xff]
    %v2669 = vld [vmem:[#allocation7 + $0x1b58] sm:$0xff]
    %v2670 = vld [vmem:[#allocation7 + $0x1b60] sm:$0xff]
    %v2671 = vld [vmem:[#allocation7 + $0x1b68] sm:$0xff]
    %v2672 = vld [vmem:[#allocation7 + $0x1b70] sm:$0xff]
    %v2673 = vld [vmem:[#allocation7 + $0x1b78] sm:$0xff]
    %v2674 = vld [vmem:[#allocation7 + $0x1b80] sm:$0xff]
    %v2675 = vld [vmem:[#allocation7 + $0x1b88] sm:$0xff]
    %v2676 = vld [vmem:[#allocation7 + $0x1b90] sm:$0xff]
    %v2677 = vld [vmem:[#allocation7 + $0x1b98] sm:$0xff]
    %v2678 = vld [vmem:[#allocation7 + $0x1ba0] sm:$0xff]
    %v2679 = vld [vmem:[#allocation7 + $0x1ba8] sm:$0xff]
    %v2680 = vld [vmem:[#allocation7 + $0x1bb0] sm:$0xff]
    %v2681 = vld [vmem:[#allocation7 + $0x1bb8] sm:$0xff]
    %v2682 = vld [vmem:[#allocation7 + $0x1bc0] sm:$0xff]
    %v2683 = vld [vmem:[#allocation7 + $0x1bc8] sm:$0xff]
    %v2684 = vld [vmem:[#allocation7 + $0x1bd0] sm:$0xff]
    %v2685 = vld [vmem:[#allocation7 + $0x1bd8] sm:$0xff]
    %v2686 = vld [vmem:[#allocation7 + $0x1be0] sm:$0xff]
    %v2687 = vld [vmem:[#allocation7 + $0x1be8] sm:$0xff]
    %v2688 = vld [vmem:[#allocation7 + $0x1bf0] sm:$0xff]
    %v2689 = vld [vmem:[#allocation7 + $0x1bf8] sm:$0xff]
    %v2690 = vld [vmem:[#allocation7 + $0x1c00] sm:$0xff]
    %v2691 = vld [vmem:[#allocation7 + $0x1c08] sm:$0xff]
    %v2692 = vld [vmem:[#allocation7 + $0x1c10] sm:$0xff]
    %v2693 = vld [vmem:[#allocation7 + $0x1c18] sm:$0xff]
    %v2694 = vld [vmem:[#allocation7 + $0x1c20] sm:$0xff]
    %v2695 = vld [vmem:[#allocation7 + $0x1c28] sm:$0xff]
    %v2696 = vld [vmem:[#allocation7 + $0x1c30] sm:$0xff]
    %v2697 = vld [vmem:[#allocation7 + $0x1c38] sm:$0xff]
    %v2698 = vld [vmem:[#allocation7 + $0x1c40] sm:$0xff]
    %v2699 = vld [vmem:[#allocation7 + $0x1c48] sm:$0xff]
    %v2700 = vld [vmem:[#allocation7 + $0x1c50] sm:$0xff]
    %v2701 = vld [vmem:[#allocation7 + $0x1c58] sm:$0xff]
    %v2702 = vld [vmem:[#allocation7 + $0x1c60] sm:$0xff]
    %v2703 = vld [vmem:[#allocation7 + $0x1c68] sm:$0xff]
    %v2704 = vld [vmem:[#allocation7 + $0x1c70] sm:$0xff]
    %v2705 = vld [vmem:[#allocation7 + $0x1c78] sm:$0xff]
    %v2706 = vld [vmem:[#allocation7 + $0x1c80] sm:$0xff]
    %v2707 = vld [vmem:[#allocation7 + $0x1c88] sm:$0xff]
    %v2708 = vld [vmem:[#allocation7 + $0x1c90] sm:$0xff]
    %v2709 = vld [vmem:[#allocation7 + $0x1c98] sm:$0xff]
    %v2710 = vld [vmem:[#allocation7 + $0x1ca0] sm:$0xff]
    %v2711 = vld [vmem:[#allocation7 + $0x1ca8] sm:$0xff]
    %v2712 = vld [vmem:[#allocation7 + $0x1cb0] sm:$0xff]
    %v2713 = vld [vmem:[#allocation7 + $0x1cb8] sm:$0xff]
    %v2714 = vld [vmem:[#allocation7 + $0x1cc0] sm:$0xff]
    %v2715 = vld [vmem:[#allocation7 + $0x1cc8] sm:$0xff]
    %v2716 = vld [vmem:[#allocation7 + $0x1cd0] sm:$0xff]
    %v2717 = vld [vmem:[#allocation7 + $0x1cd8] sm:$0xff]
    %v2718 = vld [vmem:[#allocation7 + $0x1ce0] sm:$0xff]
    %v2719 = vld [vmem:[#allocation7 + $0x1ce8] sm:$0xff]
    %v2720 = vld [vmem:[#allocation7 + $0x1cf0] sm:$0xff]
    %v2721 = vld [vmem:[#allocation7 + $0x1cf8] sm:$0xff]
    %v2722 = vld [vmem:[#allocation7 + $0x1d00] sm:$0xff]
    %v2723 = vld [vmem:[#allocation7 + $0x1d08] sm:$0xff]
    %v2724 = vld [vmem:[#allocation7 + $0x1d10] sm:$0xff]
    %v2725 = vld [vmem:[#allocation7 + $0x1d18] sm:$0xff]
    %v2726 = vld [vmem:[#allocation7 + $0x1d20] sm:$0xff]
    %v2727 = vld [vmem:[#allocation7 + $0x1d28] sm:$0xff]
    %v2728 = vld [vmem:[#allocation7 + $0x1d30] sm:$0xff]
    %v2729 = vld [vmem:[#allocation7 + $0x1d38] sm:$0xff]
    %v2730 = vld [vmem:[#allocation7 + $0x1d40] sm:$0xff]
    %v2731 = vld [vmem:[#allocation7 + $0x1d48] sm:$0xff]
    %v2732 = vld [vmem:[#allocation7 + $0x1d50] sm:$0xff]
    %v2733 = vld [vmem:[#allocation7 + $0x1d58] sm:$0xff]
    %v2734 = vld [vmem:[#allocation7 + $0x1d60] sm:$0xff]
    %v2735 = vld [vmem:[#allocation7 + $0x1d68] sm:$0xff]
    %v2736 = vld [vmem:[#allocation7 + $0x1d70] sm:$0xff]
    %v2737 = vld [vmem:[#allocation7 + $0x1d78] sm:$0xff]
    %v2738 = vld [vmem:[#allocation7 + $0x1d80] sm:$0xff]
    %v2739 = vld [vmem:[#allocation7 + $0x1d88] sm:$0xff]
    %v2740 = vld [vmem:[#allocation7 + $0x1d90] sm:$0xff]
    %v2741 = vld [vmem:[#allocation7 + $0x1d98] sm:$0xff]
    %v2742 = vld [vmem:[#allocation7 + $0x1da0] sm:$0xff]
    %v2743 = vld [vmem:[#allocation7 + $0x1da8] sm:$0xff]
    %v2744 = vld [vmem:[#allocation7 + $0x1db0] sm:$0xff]
    %v2745 = vld [vmem:[#allocation7 + $0x1db8] sm:$0xff]
    %v2746 = vld [vmem:[#allocation7 + $0x1dc0] sm:$0xff]
    %v2747 = vld [vmem:[#allocation7 + $0x1dc8] sm:$0xff]
    %v2748 = vld [vmem:[#allocation7 + $0x1dd0] sm:$0xff]
    %v2749 = vld [vmem:[#allocation7 + $0x1dd8] sm:$0xff]
    %v2750 = vld [vmem:[#allocation7 + $0x1de0] sm:$0xff]
    %v2751 = vld [vmem:[#allocation7 + $0x1de8] sm:$0xff]
    %v2752 = vld [vmem:[#allocation7 + $0x1df0] sm:$0xff]
    %v2753 = vld [vmem:[#allocation7 + $0x1df8] sm:$0xff]
    %v2754 = vld [vmem:[#allocation7 + $0x1e00] sm:$0xff]
    %v2755 = vld [vmem:[#allocation7 + $0x1e08] sm:$0xff]
    %v2756 = vld [vmem:[#allocation7 + $0x1e10] sm:$0xff]
    %v2757 = vld [vmem:[#allocation7 + $0x1e18] sm:$0xff]
    %v2758 = vld [vmem:[#allocation7 + $0x1e20] sm:$0xff]
    %v2759 = vld [vmem:[#allocation7 + $0x1e28] sm:$0xff]
    %v2760 = vld [vmem:[#allocation7 + $0x1e30] sm:$0xff]
    %v2761 = vld [vmem:[#allocation7 + $0x1e38] sm:$0xff]
    %v2762 = vld [vmem:[#allocation7 + $0x1e40] sm:$0xff]
    %v2763 = vld [vmem:[#allocation7 + $0x1e48] sm:$0xff]
    %v2764 = vld [vmem:[#allocation7 + $0x1e50] sm:$0xff]
    %v2765 = vld [vmem:[#allocation7 + $0x1e58] sm:$0xff]
    %v2766 = vld [vmem:[#allocation7 + $0x1e60] sm:$0xff]
    %v2767 = vld [vmem:[#allocation7 + $0x1e68] sm:$0xff]
    %v2768 = vld [vmem:[#allocation7 + $0x1e70] sm:$0xff]
    %v2769 = vld [vmem:[#allocation7 + $0x1e78] sm:$0xff]
    %v2770 = vld [vmem:[#allocation7 + $0x1e80] sm:$0xff]
    %v2771 = vld [vmem:[#allocation7 + $0x1e88] sm:$0xff]
    %v2772 = vld [vmem:[#allocation7 + $0x1e90] sm:$0xff]
    %v2773 = vld [vmem:[#allocation7 + $0x1e98] sm:$0xff]
    %v2774 = vld [vmem:[#allocation7 + $0x1ea0] sm:$0xff]
    %v2775 = vld [vmem:[#allocation7 + $0x1ea8] sm:$0xff]
    %v2776 = vld [vmem:[#allocation7 + $0x1eb0] sm:$0xff]
    %v2777 = vld [vmem:[#allocation7 + $0x1eb8] sm:$0xff]
    %v2778 = vld [vmem:[#allocation7 + $0x1ec0] sm:$0xff]
    %v2779 = vld [vmem:[#allocation7 + $0x1ec8] sm:$0xff]
    %v2780 = vld [vmem:[#allocation7 + $0x1ed0] sm:$0xff]
    %v2781 = vld [vmem:[#allocation7 + $0x1ed8] sm:$0xff]
    %v2782 = vld [vmem:[#allocation7 + $0x1ee0] sm:$0xff]
    %v2783 = vld [vmem:[#allocation7 + $0x1ee8] sm:$0xff]
    %v2784 = vld [vmem:[#allocation7 + $0x1ef0] sm:$0xff]
    %v2785 = vld [vmem:[#allocation7 + $0x1ef8] sm:$0xff]
    %v2786 = vld [vmem:[#allocation7 + $0x1f00] sm:$0xff]
    %v2787 = vld [vmem:[#allocation7 + $0x1f08] sm:$0xff]
    %v2788 = vld [vmem:[#allocation7 + $0x1f10] sm:$0xff]
    %v2789 = vld [vmem:[#allocation7 + $0x1f18] sm:$0xff]
    %v2790 = vld [vmem:[#allocation7 + $0x1f20] sm:$0xff]
    %v2791 = vld [vmem:[#allocation7 + $0x1f28] sm:$0xff]
    %v2792 = vld [vmem:[#allocation7 + $0x1f30] sm:$0xff]
    %v2793 = vld [vmem:[#allocation7 + $0x1f38] sm:$0xff]
    %v2794 = vld [vmem:[#allocation7 + $0x1f40] sm:$0xff]
    %v2795 = vld [vmem:[#allocation7 + $0x1f48] sm:$0xff]
    %v2796 = vld [vmem:[#allocation7 + $0x1f50] sm:$0xff]
    %v2797 = vld [vmem:[#allocation7 + $0x1f58] sm:$0xff]
    %v2798 = vld [vmem:[#allocation7 + $0x1f60] sm:$0xff]
    %v2799 = vld [vmem:[#allocation7 + $0x1f68] sm:$0xff]
    %v2800 = vld [vmem:[#allocation7 + $0x1f70] sm:$0xff]
    %v2801 = vld [vmem:[#allocation7 + $0x1f78] sm:$0xff]
    %v2802 = vld [vmem:[#allocation7 + $0x1f80] sm:$0xff]
    %v2803 = vld [vmem:[#allocation7 + $0x1f88] sm:$0xff]
    %v2804 = vld [vmem:[#allocation7 + $0x1f90] sm:$0xff]
    %v2805 = vld [vmem:[#allocation7 + $0x1f98] sm:$0xff]
    %v2806 = vld [vmem:[#allocation7 + $0x1fa0] sm:$0xff]
    %v2807 = vld [vmem:[#allocation7 + $0x1fa8] sm:$0xff]
    %v2808 = vld [vmem:[#allocation7 + $0x1fb0] sm:$0xff]
    %v2809 = vld [vmem:[#allocation7 + $0x1fb8] sm:$0xff]
    %v2810 = vld [vmem:[#allocation7 + $0x1fc0] sm:$0xff]
    %v2811 = vld [vmem:[#allocation7 + $0x1fc8] sm:$0xff]
    %v2812 = vld [vmem:[#allocation7 + $0x1fd0] sm:$0xff]
    %v2813 = vld [vmem:[#allocation7 + $0x1fd8] sm:$0xff]
    %v2814 = vld [vmem:[#allocation7 + $0x1fe0] sm:$0xff]
    %v2815 = vld [vmem:[#allocation7 + $0x1fe8] sm:$0xff]
    %v2816 = vld [vmem:[#allocation7 + $0x1ff0] sm:$0xff]
    %v2817 = vld [vmem:[#allocation7 + $0x1ff8] sm:$0xff]
    %v2818 = vld [vmem:[#allocation8] sm:$0xff]
    %v2820 = vlaneseq
    %v2821 = vshrl.u32 %v2820, 7
    %v2822 = vsub.s32 0, %v2821
    %v2823 = vrot.slane %v2818, %v2822
    %v2824 = vlaneseq
    %v2825 = vshrl.u32 %v2824, 7
    %v2826 = vsub.s32 1, %v2825
    %v2827 = vrot.slane %v2818, %v2826
    %v2828 = vlaneseq
    %v2829 = vshrl.u32 %v2828, 7
    %v2830 = vsub.s32 2, %v2829
    %v2831 = vrot.slane %v2818, %v2830
    %v2832 = vlaneseq
    %v2833 = vshrl.u32 %v2832, 7
    %v2834 = vsub.s32 3, %v2833
    %v2835 = vrot.slane %v2818, %v2834
    %v2836 = vlaneseq
    %v2837 = vshrl.u32 %v2836, 7
    %v2838 = vsub.s32 4, %v2837
    %v2839 = vrot.slane %v2818, %v2838
    %v2840 = vlaneseq
    %v2841 = vshrl.u32 %v2840, 7
    %v2842 = vsub.s32 5, %v2841
    %v2843 = vrot.slane %v2818, %v2842
    %v2844 = vlaneseq
    %v2845 = vshrl.u32 %v2844, 7
    %v2846 = vsub.s32 6, %v2845
    %v2847 = vrot.slane %v2818, %v2846
    %v2848 = vlaneseq
    %v2849 = vshrl.u32 %v2848, 7
    %v2850 = vsub.s32 7, %v2849
    %v2851 = vrot.slane %v2818, %v2850
    %2860 = vmatprep.subr.mxu0 %v1795
    %2861 = vmatpush1.msra.mxu0 %v1794
    %2862 = vmatprep.subr.mxu0 %v1803
    %2863 = vmatpush1.msra.mxu0 %v1802
    %2864 = vmatprep.subr.mxu0 %v1811
    %2865 = vmatpush1.msra.mxu0 %v1810
    %2866 = vmatprep.subr.mxu0 %v1819
    %2867 = vmatpush1.msra.mxu0 %v1818
    %2868 = vmatprep.subr.mxu0 %v1827
    %2869 = vmatpush1.msra.mxu0 %v1826
    %2870 = vmatprep.subr.mxu0 %v1835
    %2871 = vmatpush1.msra.mxu0 %v1834
    %2872 = vmatprep.subr.mxu0 %v1843
    %2873 = vmatpush1.msra.mxu0 %v1842
    %2874 = vmatprep.subr.mxu0 %v1851
    %2875 = vmatpush1.msra.mxu0 %v1850
    %2876 = vmatprep.subr.mxu0 %v1859
    %2877 = vmatpush1.msra.mxu0 %v1858
    %2878 = vmatprep.subr.mxu0 %v1867
    %2879 = vmatpush1.msra.mxu0 %v1866
    %2880 = vmatprep.subr.mxu0 %v1875
    %2881 = vmatpush1.msra.mxu0 %v1874
    %2882 = vmatprep.subr.mxu0 %v1883
    %2883 = vmatpush1.msra.mxu0 %v1882
    %2884 = vmatprep.subr.mxu0 %v1891
    %2885 = vmatpush1.msra.mxu0 %v1890
    %2886 = vmatprep.subr.mxu0 %v1899
    %2887 = vmatpush1.msra.mxu0 %v1898
    %2888 = vmatprep.subr.mxu0 %v1907
    %2889 = vmatpush1.msra.mxu0 %v1906
    %2890 = vmatprep.subr.mxu0 %v1915
    %2891 = vmatpush1.msra.mxu0 %v1914
    %2892 = vmatprep.subr.mxu0 %v1923
    %2893 = vmatpush1.msra.mxu0 %v1922
    %2894 = vmatprep.subr.mxu0 %v1931
    %2895 = vmatpush1.msra.mxu0 %v1930
    %2896 = vmatprep.subr.mxu0 %v1939
    %2897 = vmatpush1.msra.mxu0 %v1938
    %2898 = vmatprep.subr.mxu0 %v1947
    %2899 = vmatpush1.msra.mxu0 %v1946
    %2900 = vmatprep.subr.mxu0 %v1955
    %2901 = vmatpush1.msra.mxu0 %v1954
    %2902 = vmatprep.subr.mxu0 %v1963
    %2903 = vmatpush1.msra.mxu0 %v1962
    %2904 = vmatprep.subr.mxu0 %v1971
    %2905 = vmatpush1.msra.mxu0 %v1970
    %2906 = vmatprep.subr.mxu0 %v1979
    %2907 = vmatpush1.msra.mxu0 %v1978
    %2908 = vmatprep.subr.mxu0 %v1987
    %2909 = vmatpush1.msra.mxu0 %v1986
    %2910 = vmatprep.subr.mxu0 %v1995
    %2911 = vmatpush1.msra.mxu0 %v1994
    %2912 = vmatprep.subr.mxu0 %v2003
    %2913 = vmatpush1.msra.mxu0 %v2002
    %2914 = vmatprep.subr.mxu0 %v2011
    %2915 = vmatpush1.msra.mxu0 %v2010
    %2916 = vmatprep.subr.mxu0 %v2019
    %2917 = vmatpush1.msra.mxu0 %v2018
    %2918 = vmatprep.subr.mxu0 %v2027
    %2919 = vmatpush1.msra.mxu0 %v2026
    %2920 = vmatprep.subr.mxu0 %v2035
    %2921 = vmatpush1.msra.mxu0 %v2034
    %2922 = vmatprep.subr.mxu0 %v2043
    %2923 = vmatpush1.msra.mxu0 %v2042
    %2924 = vmatprep.mubr.f32.mxu0 %v1787
    %2925 = vmatmul.mubr.f32.gmra.mrb[0].mxu0 %v1786
    %v2926 = vpop.f32.mrb[0].mxu0
    %v2927 = vadd.f32 %v2823, %v2926
    %v2928 = vpop.f32.mrb[0].mxu0
    %v2929 = vadd.f32 %v2827, %v2928
    %2930 = vdwg.mxu0
    %2931 = vmatprep.subr.mxu0 %v2051
    %2932 = vmatpush1.msra.mxu0 %v2050
    %2933 = vmatprep.subr.mxu0 %v2059
    %2934 = vmatpush1.msra.mxu0 %v2058
    %2935 = vmatprep.subr.mxu0 %v2067
    %2936 = vmatpush1.msra.mxu0 %v2066
    %2937 = vmatprep.subr.mxu0 %v2075
    %2938 = vmatpush1.msra.mxu0 %v2074
    %2939 = vmatprep.subr.mxu0 %v2083
    %2940 = vmatpush1.msra.mxu0 %v2082
    %2941 = vmatprep.subr.mxu0 %v2091
    %2942 = vmatpush1.msra.mxu0 %v2090
    %2943 = vmatprep.subr.mxu0 %v2099
    %2944 = vmatpush1.msra.mxu0 %v2098
    %2945 = vmatprep.subr.mxu0 %v2107
    %2946 = vmatpush1.msra.mxu0 %v2106
    %2947 = vmatprep.subr.mxu0 %v2115
    %2948 = vmatpush1.msra.mxu0 %v2114
    %2949 = vmatprep.subr.mxu0 %v2123
    %2950 = vmatpush1.msra.mxu0 %v2122
    %2951 = vmatprep.subr.mxu0 %v2131
    %2952 = vmatpush1.msra.mxu0 %v2130
    %2953 = vmatprep.subr.mxu0 %v2139
    %2954 = vmatpush1.msra.mxu0 %v2138
    %2955 = vmatprep.subr.mxu0 %v2147
    %2956 = vmatpush1.msra.mxu0 %v2146
    %2957 = vmatprep.subr.mxu0 %v2155
    %2958 = vmatpush1.msra.mxu0 %v2154
    %2959 = vmatprep.subr.mxu0 %v2163
    %2960 = vmatpush1.msra.mxu0 %v2162
    %2961 = vmatprep.subr.mxu0 %v2171
    %2962 = vmatpush1.msra.mxu0 %v2170
    %2963 = vmatprep.subr.mxu0 %v2179
    %2964 = vmatpush1.msra.mxu0 %v2178
    %2965 = vmatprep.subr.mxu0 %v2187
    %2966 = vmatpush1.msra.mxu0 %v2186
    %2967 = vmatprep.subr.mxu0 %v2195
    %2968 = vmatpush1.msra.mxu0 %v2194
    %2969 = vmatprep.subr.mxu0 %v2203
    %2970 = vmatpush1.msra.mxu0 %v2202
    %2971 = vmatprep.subr.mxu0 %v2211
    %2972 = vmatpush1.msra.mxu0 %v2210
    %2973 = vmatprep.subr.mxu0 %v2219
    %2974 = vmatpush1.msra.mxu0 %v2218
    %2975 = vmatprep.subr.mxu0 %v2227
    %2976 = vmatpush1.msra.mxu0 %v2226
    %2977 = vmatprep.subr.mxu0 %v2235
    %2978 = vmatpush1.msra.mxu0 %v2234
    %2979 = vmatprep.subr.mxu0 %v2243
    %2980 = vmatpush1.msra.mxu0 %v2242
    %2981 = vmatprep.subr.mxu0 %v2251
    %2982 = vmatpush1.msra.mxu0 %v2250
    %2983 = vmatprep.subr.mxu0 %v2259
    %2984 = vmatpush1.msra.mxu0 %v2258
    %2985 = vmatprep.subr.mxu0 %v2267
    %2986 = vmatpush1.msra.mxu0 %v2266
    %2987 = vmatprep.subr.mxu0 %v2275
    %2988 = vmatpush1.msra.mxu0 %v2274
    %2989 = vmatprep.subr.mxu0 %v2283
    %2990 = vmatpush1.msra.mxu0 %v2282
    %2991 = vmatprep.subr.mxu0 %v2291
    %2992 = vmatpush1.msra.mxu0 %v2290
    %2993 = vmatprep.subr.mxu0 %v2299
    %2994 = vmatpush1.msra.mxu0 %v2298
    %2995 = vmatprep.mubr.f32.mxu0 %v1789
    %2996 = vmatmul.mubr.f32.gmra.mrb[0].mxu0 %v1788
    %v2997 = vpop.f32.mrb[0].mxu0
    %v2998 = vadd.f32 %v2927, %v2997
    %v2999 = vpop.f32.mrb[0].mxu0
    %v3000 = vadd.f32 %v2929, %v2999
    %3001 = vdwg.mxu0
    %3002 = vmatprep.subr.mxu0 %v2307
    %3003 = vmatpush1.msra.mxu0 %v2306
    %3004 = vmatprep.subr.mxu0 %v2315
    %3005 = vmatpush1.msra.mxu0 %v2314
    %3006 = vmatprep.subr.mxu0 %v2323
    %3007 = vmatpush1.msra.mxu0 %v2322
    %3008 = vmatprep.subr.mxu0 %v2331
    %3009 = vmatpush1.msra.mxu0 %v2330
    %3010 = vmatprep.subr.mxu0 %v2339
    %3011 = vmatpush1.msra.mxu0 %v2338
    %3012 = vmatprep.subr.mxu0 %v2347
    %3013 = vmatpush1.msra.mxu0 %v2346
    %3014 = vmatprep.subr.mxu0 %v2355
    %3015 = vmatpush1.msra.mxu0 %v2354
    %3016 = vmatprep.subr.mxu0 %v2363
    %3017 = vmatpush1.msra.mxu0 %v2362
    %3018 = vmatprep.subr.mxu0 %v2371
    %3019 = vmatpush1.msra.mxu0 %v2370
    %3020 = vmatprep.subr.mxu0 %v2379
    %3021 = vmatpush1.msra.mxu0 %v2378
    %3022 = vmatprep.subr.mxu0 %v2387
    %3023 = vmatpush1.msra.mxu0 %v2386
    %3024 = vmatprep.subr.mxu0 %v2395
    %3025 = vmatpush1.msra.mxu0 %v2394
    %3026 = vmatprep.subr.mxu0 %v2403
    %3027 = vmatpush1.msra.mxu0 %v2402
    %3028 = vmatprep.subr.mxu0 %v2411
    %3029 = vmatpush1.msra.mxu0 %v2410
    %3030 = vmatprep.subr.mxu0 %v2419
    %3031 = vmatpush1.msra.mxu0 %v2418
    %3032 = vmatprep.subr.mxu0 %v2427
    %3033 = vmatpush1.msra.mxu0 %v2426
    %3034 = vmatprep.subr.mxu0 %v2435
    %3035 = vmatpush1.msra.mxu0 %v2434
    %3036 = vmatprep.subr.mxu0 %v2443
    %3037 = vmatpush1.msra.mxu0 %v2442
    %3038 = vmatprep.subr.mxu0 %v2451
    %3039 = vmatpush1.msra.mxu0 %v2450
    %3040 = vmatprep.subr.mxu0 %v2459
    %3041 = vmatpush1.msra.mxu0 %v2458
    %3042 = vmatprep.subr.mxu0 %v2467
    %3043 = vmatpush1.msra.mxu0 %v2466
    %3044 = vmatprep.subr.mxu0 %v2475
    %3045 = vmatpush1.msra.mxu0 %v2474
    %3046 = vmatprep.subr.mxu0 %v2483
    %3047 = vmatpush1.msra.mxu0 %v2482
    %3048 = vmatprep.subr.mxu0 %v2491
    %3049 = vmatpush1.msra.mxu0 %v2490
    %3050 = vmatprep.subr.mxu0 %v2499
    %3051 = vmatpush1.msra.mxu0 %v2498
    %3052 = vmatprep.subr.mxu0 %v2507
    %3053 = vmatpush1.msra.mxu0 %v2506
    %3054 = vmatprep.subr.mxu0 %v2515
    %3055 = vmatpush1.msra.mxu0 %v2514
    %3056 = vmatprep.subr.mxu0 %v2523
    %3057 = vmatpush1.msra.mxu0 %v2522
    %3058 = vmatprep.subr.mxu0 %v2531
    %3059 = vmatpush1.msra.mxu0 %v2530
    %3060 = vmatprep.subr.mxu0 %v2539
    %3061 = vmatpush1.msra.mxu0 %v2538
    %3062 = vmatprep.subr.mxu0 %v2547
    %3063 = vmatpush1.msra.mxu0 %v2546
    %3064 = vmatprep.subr.mxu0 %v2555
    %3065 = vmatpush1.msra.mxu0 %v2554
    %3066 = vmatprep.mubr.f32.mxu0 %v1791
    %3067 = vmatmul.mubr.f32.gmra.mrb[0].mxu0 %v1790
    %v3068 = vpop.f32.mrb[0].mxu0
    %v3069 = vadd.f32 %v2998, %v3068
    %v3070 = vpop.f32.mrb[0].mxu0
    %v3071 = vadd.f32 %v3000, %v3070
    %3072 = vdwg.mxu0
    %3073 = vmatprep.subr.mxu0 %v2563
    %3074 = vmatpush1.msra.mxu0 %v2562
    %3075 = vmatprep.subr.mxu0 %v2571
    %3076 = vmatpush1.msra.mxu0 %v2570
    %3077 = vmatprep.subr.mxu0 %v2579
    %3078 = vmatpush1.msra.mxu0 %v2578
    %3079 = vmatprep.subr.mxu0 %v2587
    %3080 = vmatpush1.msra.mxu0 %v2586
    %3081 = vmatprep.subr.mxu0 %v2595
    %3082 = vmatpush1.msra.mxu0 %v2594
    %3083 = vmatprep.subr.mxu0 %v2603
    %3084 = vmatpush1.msra.mxu0 %v2602
    %3085 = vmatprep.subr.mxu0 %v2611
    %3086 = vmatpush1.msra.mxu0 %v2610
    %3087 = vmatprep.subr.mxu0 %v2619
    %3088 = vmatpush1.msra.mxu0 %v2618
    %3089 = vmatprep.subr.mxu0 %v2627
    %3090 = vmatpush1.msra.mxu0 %v2626
    %3091 = vmatprep.subr.mxu0 %v2635
    %3092 = vmatpush1.msra.mxu0 %v2634
    %3093 = vmatprep.subr.mxu0 %v2643
    %3094 = vmatpush1.msra.mxu0 %v2642
    %3095 = vmatprep.subr.mxu0 %v2651
    %3096 = vmatpush1.msra.mxu0 %v2650
    %3097 = vmatprep.subr.mxu0 %v2659
    %3098 = vmatpush1.msra.mxu0 %v2658
    %3099 = vmatprep.subr.mxu0 %v2667
    %3100 = vmatpush1.msra.mxu0 %v2666
    %3101 = vmatprep.subr.mxu0 %v2675
    %3102 = vmatpush1.msra.mxu0 %v2674
    %3103 = vmatprep.subr.mxu0 %v2683
    %3104 = vmatpush1.msra.mxu0 %v2682
    %3105 = vmatprep.subr.mxu0 %v2691
    %3106 = vmatpush1.msra.mxu0 %v2690
    %3107 = vmatprep.subr.mxu0 %v2699
    %3108 = vmatpush1.msra.mxu0 %v2698
    %3109 = vmatprep.subr.mxu0 %v2707
    %3110 = vmatpush1.msra.mxu0 %v2706
    %3111 = vmatprep.subr.mxu0 %v2715
    %3112 = vmatpush1.msra.mxu0 %v2714
    %3113 = vmatprep.subr.mxu0 %v2723
    %3114 = vmatpush1.msra.mxu0 %v2722
    %3115 = vmatprep.subr.mxu0 %v2731
    %3116 = vmatpush1.msra.mxu0 %v2730
    %3117 = vmatprep.subr.mxu0 %v2739
    %3118 = vmatpush1.msra.mxu0 %v2738
    %3119 = vmatprep.subr.mxu0 %v2747
    %3120 = vmatpush1.msra.mxu0 %v2746
    %3121 = vmatprep.subr.mxu0 %v2755
    %3122 = vmatpush1.msra.mxu0 %v2754
    %3123 = vmatprep.subr.mxu0 %v2763
    %3124 = vmatpush1.msra.mxu0 %v2762
    %3125 = vmatprep.subr.mxu0 %v2771
    %3126 = vmatpush1.msra.mxu0 %v2770
    %3127 = vmatprep.subr.mxu0 %v2779
    %3128 = vmatpush1.msra.mxu0 %v2778
    %3129 = vmatprep.subr.mxu0 %v2787
    %3130 = vmatpush1.msra.mxu0 %v2786
    %3131 = vmatprep.subr.mxu0 %v2795
    %3132 = vmatpush1.msra.mxu0 %v2794
    %3133 = vmatprep.subr.mxu0 %v2803
    %3134 = vmatpush1.msra.mxu0 %v2802
    %3135 = vmatprep.subr.mxu0 %v2811
    %3136 = vmatpush1.msra.mxu0 %v2810
    %3137 = vmatprep.mubr.f32.mxu0 %v1793
    %3138 = vmatmul.mubr.f32.gmra.mrb[0].mxu0 %v1792
    %v3139 = vpop.f32.mrb[0].mxu0
    %v3140 = vadd.f32 %v3069, %v3139
    %v3141 = vpop.f32.mrb[0].mxu0
    %v3142 = vadd.f32 %v3071, %v3141
    %3143 = vdwg.mxu0
    %3144 = vmatprep.subr.mxu0 %v1797
    %3145 = vmatpush1.msra.mxu0 %v1796
    %3146 = vmatprep.subr.mxu0 %v1805
    %3147 = vmatpush1.msra.mxu0 %v1804
    %3148 = vmatprep.subr.mxu0 %v1813
    %3149 = vmatpush1.msra.mxu0 %v1812
    %3150 = vmatprep.subr.mxu0 %v1821
    %3151 = vmatpush1.msra.mxu0 %v1820
    %3152 = vmatprep.subr.mxu0 %v1829
    %3153 = vmatpush1.msra.mxu0 %v1828
    %3154 = vmatprep.subr.mxu0 %v1837
    %3155 = vmatpush1.msra.mxu0 %v1836
    %3156 = vmatprep.subr.mxu0 %v1845
    %3157 = vmatpush1.msra.mxu0 %v1844
    %3158 = vmatprep.subr.mxu0 %v1853
    %3159 = vmatpush1.msra.mxu0 %v1852
    %3160 = vmatprep.subr.mxu0 %v1861
    %3161 = vmatpush1.msra.mxu0 %v1860
    %3162 = vmatprep.subr.mxu0 %v1869
    %3163 = vmatpush1.msra.mxu0 %v1868
    %3164 = vmatprep.subr.mxu0 %v1877
    %3165 = vmatpush1.msra.mxu0 %v1876
    %3166 = vmatprep.subr.mxu0 %v1885
    %3167 = vmatpush1.msra.mxu0 %v1884
    %3168 = vmatprep.subr.mxu0 %v1893
    %3169 = vmatpush1.msra.mxu0 %v1892
    %3170 = vmatprep.subr.mxu0 %v1901
    %3171 = vmatpush1.msra.mxu0 %v1900
    %3172 = vmatprep.subr.mxu0 %v1909
    %3173 = vmatpush1.msra.mxu0 %v1908
    %3174 = vmatprep.subr.mxu0 %v1917
    %3175 = vmatpush1.msra.mxu0 %v1916
    %3176 = vmatprep.subr.mxu0 %v1925
    %3177 = vmatpush1.msra.mxu0 %v1924
    %3178 = vmatprep.subr.mxu0 %v1933
    %3179 = vmatpush1.msra.mxu0 %v1932
    %3180 = vmatprep.subr.mxu0 %v1941
    %3181 = vmatpush1.msra.mxu0 %v1940
    %3182 = vmatprep.subr.mxu0 %v1949
    %3183 = vmatpush1.msra.mxu0 %v1948
    %3184 = vmatprep.subr.mxu0 %v1957
    %3185 = vmatpush1.msra.mxu0 %v1956
    %3186 = vmatprep.subr.mxu0 %v1965
    %3187 = vmatpush1.msra.mxu0 %v1964
    %3188 = vmatprep.subr.mxu0 %v1973
    %3189 = vmatpush1.msra.mxu0 %v1972
    %3190 = vmatprep.subr.mxu0 %v1981
    %3191 = vmatpush1.msra.mxu0 %v1980
    %3192 = vmatprep.subr.mxu0 %v1989
    %3193 = vmatpush1.msra.mxu0 %v1988
    %3194 = vmatprep.subr.mxu0 %v1997
    %3195 = vmatpush1.msra.mxu0 %v1996
    %3196 = vmatprep.subr.mxu0 %v2005
    %3197 = vmatpush1.msra.mxu0 %v2004
    %3198 = vmatprep.subr.mxu0 %v2013
    %3199 = vmatpush1.msra.mxu0 %v2012
    %3200 = vmatprep.subr.mxu0 %v2021
    %3201 = vmatpush1.msra.mxu0 %v2020
    %3202 = vmatprep.subr.mxu0 %v2029
    %3203 = vmatpush1.msra.mxu0 %v2028
    %3204 = vmatprep.subr.mxu0 %v2037
    %3205 = vmatpush1.msra.mxu0 %v2036
    %3206 = vmatprep.subr.mxu0 %v2045
    %3207 = vmatpush1.msra.mxu0 %v2044
    %3208 = vmatprep.mubr.f32.mxu0 %v1787
    %3209 = vmatmul.mubr.f32.gmra.mrb[0].mxu0 %v1786
    %v3210 = vpop.f32.mrb[0].mxu0
    %v3211 = vadd.f32 %v2831, %v3210
    %v3212 = vpop.f32.mrb[0].mxu0
    %v3213 = vadd.f32 %v2835, %v3212
    %3214 = vdwg.mxu0
    %3215 = vmatprep.subr.mxu0 %v2053
    %3216 = vmatpush1.msra.mxu0 %v2052
    %3217 = vmatprep.subr.mxu0 %v2061
    %3218 = vmatpush1.msra.mxu0 %v2060
    %3219 = vmatprep.subr.mxu0 %v2069
    %3220 = vmatpush1.msra.mxu0 %v2068
    %3221 = vmatprep.subr.mxu0 %v2077
    %3222 = vmatpush1.msra.mxu0 %v2076
    %3223 = vmatprep.subr.mxu0 %v2085
    %3224 = vmatpush1.msra.mxu0 %v2084
    %3225 = vmatprep.subr.mxu0 %v2093
    %3226 = vmatpush1.msra.mxu0 %v2092
    %3227 = vmatprep.subr.mxu0 %v2101
    %3228 = vmatpush1.msra.mxu0 %v2100
    %3229 = vmatprep.subr.mxu0 %v2109
    %3230 = vmatpush1.msra.mxu0 %v2108
    %3231 = vmatprep.subr.mxu0 %v2117
    %3232 = vmatpush1.msra.mxu0 %v2116
    %3233 = vmatprep.subr.mxu0 %v2125
    %3234 = vmatpush1.msra.mxu0 %v2124
    %3235 = vmatprep.subr.mxu0 %v2133
    %3236 = vmatpush1.msra.mxu0 %v2132
    %3237 = vmatprep.subr.mxu0 %v2141
    %3238 = vmatpush1.msra.mxu0 %v2140
    %3239 = vmatprep.subr.mxu0 %v2149
    %3240 = vmatpush1.msra.mxu0 %v2148
    %3241 = vmatprep.subr.mxu0 %v2157
    %3242 = vmatpush1.msra.mxu0 %v2156
    %3243 = vmatprep.subr.mxu0 %v2165
    %3244 = vmatpush1.msra.mxu0 %v2164
    %3245 = vmatprep.subr.mxu0 %v2173
    %3246 = vmatpush1.msra.mxu0 %v2172
    %3247 = vmatprep.subr.mxu0 %v2181
    %3248 = vmatpush1.msra.mxu0 %v2180
    %3249 = vmatprep.subr.mxu0 %v2189
    %3250 = vmatpush1.msra.mxu0 %v2188
    %3251 = vmatprep.subr.mxu0 %v2197
    %3252 = vmatpush1.msra.mxu0 %v2196
    %3253 = vmatprep.subr.mxu0 %v2205
    %3254 = vmatpush1.msra.mxu0 %v2204
    %3255 = vmatprep.subr.mxu0 %v2213
    %3256 = vmatpush1.msra.mxu0 %v2212
    %3257 = vmatprep.subr.mxu0 %v2221
    %3258 = vmatpush1.msra.mxu0 %v2220
    %3259 = vmatprep.subr.mxu0 %v2229
    %3260 = vmatpush1.msra.mxu0 %v2228
    %3261 = vmatprep.subr.mxu0 %v2237
    %3262 = vmatpush1.msra.mxu0 %v2236
    %3263 = vmatprep.subr.mxu0 %v2245
    %3264 = vmatpush1.msra.mxu0 %v2244
    %3265 = vmatprep.subr.mxu0 %v2253
    %3266 = vmatpush1.msra.mxu0 %v2252
    %3267 = vmatprep.subr.mxu0 %v2261
    %3268 = vmatpush1.msra.mxu0 %v2260
    %3269 = vmatprep.subr.mxu0 %v2269
    %3270 = vmatpush1.msra.mxu0 %v2268
    %3271 = vmatprep.subr.mxu0 %v2277
    %3272 = vmatpush1.msra.mxu0 %v2276
    %3273 = vmatprep.subr.mxu0 %v2285
    %3274 = vmatpush1.msra.mxu0 %v2284
    %3275 = vmatprep.subr.mxu0 %v2293
    %3276 = vmatpush1.msra.mxu0 %v2292
    %3277 = vmatprep.subr.mxu0 %v2301
    %3278 = vmatpush1.msra.mxu0 %v2300
    %3279 = vmatprep.mubr.f32.mxu0 %v1789
    %3280 = vmatmul.mubr.f32.gmra.mrb[0].mxu0 %v1788
    %v3281 = vpop.f32.mrb[0].mxu0
    %v3282 = vadd.f32 %v3211, %v3281
    %v3283 = vpop.f32.mrb[0].mxu0
    %v3284 = vadd.f32 %v3213, %v3283
    %3285 = vdwg.mxu0
    %3286 = vmatprep.subr.mxu0 %v2309
    %3287 = vmatpush1.msra.mxu0 %v2308
    %3288 = vmatprep.subr.mxu0 %v2317
    %3289 = vmatpush1.msra.mxu0 %v2316
    %3290 = vmatprep.subr.mxu0 %v2325
    %3291 = vmatpush1.msra.mxu0 %v2324
    %3292 = vmatprep.subr.mxu0 %v2333
    %3293 = vmatpush1.msra.mxu0 %v2332
    %3294 = vmatprep.subr.mxu0 %v2341
    %3295 = vmatpush1.msra.mxu0 %v2340
    %3296 = vmatprep.subr.mxu0 %v2349
    %3297 = vmatpush1.msra.mxu0 %v2348
    %3298 = vmatprep.subr.mxu0 %v2357
    %3299 = vmatpush1.msra.mxu0 %v2356
    %3300 = vmatprep.subr.mxu0 %v2365
    %3301 = vmatpush1.msra.mxu0 %v2364
    %3302 = vmatprep.subr.mxu0 %v2373
    %3303 = vmatpush1.msra.mxu0 %v2372
    %3304 = vmatprep.subr.mxu0 %v2381
    %3305 = vmatpush1.msra.mxu0 %v2380
    %3306 = vmatprep.subr.mxu0 %v2389
    %3307 = vmatpush1.msra.mxu0 %v2388
    %3308 = vmatprep.subr.mxu0 %v2397
    %3309 = vmatpush1.msra.mxu0 %v2396
    %3310 = vmatprep.subr.mxu0 %v2405
    %3311 = vmatpush1.msra.mxu0 %v2404
    %3312 = vmatprep.subr.mxu0 %v2413
    %3313 = vmatpush1.msra.mxu0 %v2412
    %3314 = vmatprep.subr.mxu0 %v2421
    %3315 = vmatpush1.msra.mxu0 %v2420
    %3316 = vmatprep.subr.mxu0 %v2429
    %3317 = vmatpush1.msra.mxu0 %v2428
    %3318 = vmatprep.subr.mxu0 %v2437
    %3319 = vmatpush1.msra.mxu0 %v2436
    %3320 = vmatprep.subr.mxu0 %v2445
    %3321 = vmatpush1.msra.mxu0 %v2444
    %3322 = vmatprep.subr.mxu0 %v2453
    %3323 = vmatpush1.msra.mxu0 %v2452
    %3324 = vmatprep.subr.mxu0 %v2461
    %3325 = vmatpush1.msra.mxu0 %v2460
    %3326 = vmatprep.subr.mxu0 %v2469
    %3327 = vmatpush1.msra.mxu0 %v2468
    %3328 = vmatprep.subr.mxu0 %v2477
    %3329 = vmatpush1.msra.mxu0 %v2476
    %3330 = vmatprep.subr.mxu0 %v2485
    %3331 = vmatpush1.msra.mxu0 %v2484
    %3332 = vmatprep.subr.mxu0 %v2493
    %3333 = vmatpush1.msra.mxu0 %v2492
    %3334 = vmatprep.subr.mxu0 %v2501
    %3335 = vmatpush1.msra.mxu0 %v2500
    %3336 = vmatprep.subr.mxu0 %v2509
    %3337 = vmatpush1.msra.mxu0 %v2508
    %3338 = vmatprep.subr.mxu0 %v2517
    %3339 = vmatpush1.msra.mxu0 %v2516
    %3340 = vmatprep.subr.mxu0 %v2525
    %3341 = vmatpush1.msra.mxu0 %v2524
    %3342 = vmatprep.subr.mxu0 %v2533
    %3343 = vmatpush1.msra.mxu0 %v2532
    %3344 = vmatprep.subr.mxu0 %v2541
    %3345 = vmatpush1.msra.mxu0 %v2540
    %3346 = vmatprep.subr.mxu0 %v2549
    %3347 = vmatpush1.msra.mxu0 %v2548
    %3348 = vmatprep.subr.mxu0 %v2557
    %3349 = vmatpush1.msra.mxu0 %v2556
    %3350 = vmatprep.mubr.f32.mxu0 %v1791
    %3351 = vmatmul.mubr.f32.gmra.mrb[0].mxu0 %v1790
    %v3352 = vpop.f32.mrb[0].mxu0
    %v3353 = vadd.f32 %v3282, %v3352
    %v3354 = vpop.f32.mrb[0].mxu0
    %v3355 = vadd.f32 %v3284, %v3354
    %3356 = vdwg.mxu0
    %3357 = vmatprep.subr.mxu0 %v2565
    %3358 = vmatpush1.msra.mxu0 %v2564
    %3359 = vmatprep.subr.mxu0 %v2573
    %3360 = vmatpush1.msra.mxu0 %v2572
    %3361 = vmatprep.subr.mxu0 %v2581
    %3362 = vmatpush1.msra.mxu0 %v2580
    %3363 = vmatprep.subr.mxu0 %v2589
    %3364 = vmatpush1.msra.mxu0 %v2588
    %3365 = vmatprep.subr.mxu0 %v2597
    %3366 = vmatpush1.msra.mxu0 %v2596
    %3367 = vmatprep.subr.mxu0 %v2605
    %3368 = vmatpush1.msra.mxu0 %v2604
    %3369 = vmatprep.subr.mxu0 %v2613
    %3370 = vmatpush1.msra.mxu0 %v2612
    %3371 = vmatprep.subr.mxu0 %v2621
    %3372 = vmatpush1.msra.mxu0 %v2620
    %3373 = vmatprep.subr.mxu0 %v2629
    %3374 = vmatpush1.msra.mxu0 %v2628
    %3375 = vmatprep.subr.mxu0 %v2637
    %3376 = vmatpush1.msra.mxu0 %v2636
    %3377 = vmatprep.subr.mxu0 %v2645
    %3378 = vmatpush1.msra.mxu0 %v2644
    %3379 = vmatprep.subr.mxu0 %v2653
    %3380 = vmatpush1.msra.mxu0 %v2652
    %3381 = vmatprep.subr.mxu0 %v2661
    %3382 = vmatpush1.msra.mxu0 %v2660
    %3383 = vmatprep.subr.mxu0 %v2669
    %3384 = vmatpush1.msra.mxu0 %v2668
    %3385 = vmatprep.subr.mxu0 %v2677
    %3386 = vmatpush1.msra.mxu0 %v2676
    %3387 = vmatprep.subr.mxu0 %v2685
    %3388 = vmatpush1.msra.mxu0 %v2684
    %3389 = vmatprep.subr.mxu0 %v2693
    %3390 = vmatpush1.msra.mxu0 %v2692
    %3391 = vmatprep.subr.mxu0 %v2701
    %3392 = vmatpush1.msra.mxu0 %v2700
    %3393 = vmatprep.subr.mxu0 %v2709
    %3394 = vmatpush1.msra.mxu0 %v2708
    %3395 = vmatprep.subr.mxu0 %v2717
    %3396 = vmatpush1.msra.mxu0 %v2716
    %3397 = vmatprep.subr.mxu0 %v2725
    %3398 = vmatpush1.msra.mxu0 %v2724
    %3399 = vmatprep.subr.mxu0 %v2733
    %3400 = vmatpush1.msra.mxu0 %v2732
    %3401 = vmatprep.subr.mxu0 %v2741
    %3402 = vmatpush1.msra.mxu0 %v2740
    %3403 = vmatprep.subr.mxu0 %v2749
    %3404 = vmatpush1.msra.mxu0 %v2748
    %3405 = vmatprep.subr.mxu0 %v2757
    %3406 = vmatpush1.msra.mxu0 %v2756
    %3407 = vmatprep.subr.mxu0 %v2765
    %3408 = vmatpush1.msra.mxu0 %v2764
    %3409 = vmatprep.subr.mxu0 %v2773
    %3410 = vmatpush1.msra.mxu0 %v2772
    %3411 = vmatprep.subr.mxu0 %v2781
    %3412 = vmatpush1.msra.mxu0 %v2780
    %3413 = vmatprep.subr.mxu0 %v2789
    %3414 = vmatpush1.msra.mxu0 %v2788
    %3415 = vmatprep.subr.mxu0 %v2797
    %3416 = vmatpush1.msra.mxu0 %v2796
    %3417 = vmatprep.subr.mxu0 %v2805
    %3418 = vmatpush1.msra.mxu0 %v2804
    %3419 = vmatprep.subr.mxu0 %v2813
    %3420 = vmatpush1.msra.mxu0 %v2812
    %3421 = vmatprep.mubr.f32.mxu0 %v1793
    %3422 = vmatmul.mubr.f32.gmra.mrb[0].mxu0 %v1792
    %v3423 = vpop.f32.mrb[0].mxu0
    %v3424 = vadd.f32 %v3353, %v3423
    %v3425 = vpop.f32.mrb[0].mxu0
    %v3426 = vadd.f32 %v3355, %v3425
    %3427 = vdwg.mxu0
    %3428 = vmatprep.subr.mxu0 %v1799
    %3429 = vmatpush1.msra.mxu0 %v1798
    %3430 = vmatprep.subr.mxu0 %v1807
    %3431 = vmatpush1.msra.mxu0 %v1806
    %3432 = vmatprep.subr.mxu0 %v1815
    %3433 = vmatpush1.msra.mxu0 %v1814
    %3434 = vmatprep.subr.mxu0 %v1823
    %3435 = vmatpush1.msra.mxu0 %v1822
    %3436 = vmatprep.subr.mxu0 %v1831
    %3437 = vmatpush1.msra.mxu0 %v1830
    %3438 = vmatprep.subr.mxu0 %v1839
    %3439 = vmatpush1.msra.mxu0 %v1838
    %3440 = vmatprep.subr.mxu0 %v1847
    %3441 = vmatpush1.msra.mxu0 %v1846
    %3442 = vmatprep.subr.mxu0 %v1855
    %3443 = vmatpush1.msra.mxu0 %v1854
    %3444 = vmatprep.subr.mxu0 %v1863
    %3445 = vmatpush1.msra.mxu0 %v1862
    %3446 = vmatprep.subr.mxu0 %v1871
    %3447 = vmatpush1.msra.mxu0 %v1870
    %3448 = vmatprep.subr.mxu0 %v1879
    %3449 = vmatpush1.msra.mxu0 %v1878
    %3450 = vmatprep.subr.mxu0 %v1887
    %3451 = vmatpush1.msra.mxu0 %v1886
    %3452 = vmatprep.subr.mxu0 %v1895
    %3453 = vmatpush1.msra.mxu0 %v1894
    %3454 = vmatprep.subr.mxu0 %v1903
    %3455 = vmatpush1.msra.mxu0 %v1902
    %3456 = vmatprep.subr.mxu0 %v1911
    %3457 = vmatpush1.msra.mxu0 %v1910
    %3458 = vmatprep.subr.mxu0 %v1919
    %3459 = vmatpush1.msra.mxu0 %v1918
    %3460 = vmatprep.subr.mxu0 %v1927
    %3461 = vmatpush1.msra.mxu0 %v1926
    %3462 = vmatprep.subr.mxu0 %v1935
    %3463 = vmatpush1.msra.mxu0 %v1934
    %3464 = vmatprep.subr.mxu0 %v1943
    %3465 = vmatpush1.msra.mxu0 %v1942
    %3466 = vmatprep.subr.mxu0 %v1951
    %3467 = vmatpush1.msra.mxu0 %v1950
    %3468 = vmatprep.subr.mxu0 %v1959
    %3469 = vmatpush1.msra.mxu0 %v1958
    %3470 = vmatprep.subr.mxu0 %v1967
    %3471 = vmatpush1.msra.mxu0 %v1966
    %3472 = vmatprep.subr.mxu0 %v1975
    %3473 = vmatpush1.msra.mxu0 %v1974
    %3474 = vmatprep.subr.mxu0 %v1983
    %3475 = vmatpush1.msra.mxu0 %v1982
    %3476 = vmatprep.subr.mxu0 %v1991
    %3477 = vmatpush1.msra.mxu0 %v1990
    %3478 = vmatprep.subr.mxu0 %v1999
    %3479 = vmatpush1.msra.mxu0 %v1998
    %3480 = vmatprep.subr.mxu0 %v2007
    %3481 = vmatpush1.msra.mxu0 %v2006
    %3482 = vmatprep.subr.mxu0 %v2015
    %3483 = vmatpush1.msra.mxu0 %v2014
    %3484 = vmatprep.subr.mxu0 %v2023
    %3485 = vmatpush1.msra.mxu0 %v2022
    %3486 = vmatprep.subr.mxu0 %v2031
    %3487 = vmatpush1.msra.mxu0 %v2030
    %3488 = vmatprep.subr.mxu0 %v2039
    %3489 = vmatpush1.msra.mxu0 %v2038
    %3490 = vmatprep.subr.mxu0 %v2047
    %3491 = vmatpush1.msra.mxu0 %v2046
    %3492 = vmatprep.mubr.f32.mxu0 %v1787
    %3493 = vmatmul.mubr.f32.gmra.mrb[0].mxu0 %v1786
    %v3494 = vpop.f32.mrb[0].mxu0
    %v3495 = vadd.f32 %v2839, %v3494
    %v3496 = vpop.f32.mrb[0].mxu0
    %v3497 = vadd.f32 %v2843, %v3496
    %3498 = vdwg.mxu0
    %3499 = vmatprep.subr.mxu0 %v2055
    %3500 = vmatpush1.msra.mxu0 %v2054
    %3501 = vmatprep.subr.mxu0 %v2063
    %3502 = vmatpush1.msra.mxu0 %v2062
    %3503 = vmatprep.subr.mxu0 %v2071
    %3504 = vmatpush1.msra.mxu0 %v2070
    %3505 = vmatprep.subr.mxu0 %v2079
    %3506 = vmatpush1.msra.mxu0 %v2078
    %3507 = vmatprep.subr.mxu0 %v2087
    %3508 = vmatpush1.msra.mxu0 %v2086
    %3509 = vmatprep.subr.mxu0 %v2095
    %3510 = vmatpush1.msra.mxu0 %v2094
    %3511 = vmatprep.subr.mxu0 %v2103
    %3512 = vmatpush1.msra.mxu0 %v2102
    %3513 = vmatprep.subr.mxu0 %v2111
    %3514 = vmatpush1.msra.mxu0 %v2110
    %3515 = vmatprep.subr.mxu0 %v2119
    %3516 = vmatpush1.msra.mxu0 %v2118
    %3517 = vmatprep.subr.mxu0 %v2127
    %3518 = vmatpush1.msra.mxu0 %v2126
    %3519 = vmatprep.subr.mxu0 %v2135
    %3520 = vmatpush1.msra.mxu0 %v2134
    %3521 = vmatprep.subr.mxu0 %v2143
    %3522 = vmatpush1.msra.mxu0 %v2142
    %3523 = vmatprep.subr.mxu0 %v2151
    %3524 = vmatpush1.msra.mxu0 %v2150
    %3525 = vmatprep.subr.mxu0 %v2159
    %3526 = vmatpush1.msra.mxu0 %v2158
    %3527 = vmatprep.subr.mxu0 %v2167
    %3528 = vmatpush1.msra.mxu0 %v2166
    %3529 = vmatprep.subr.mxu0 %v2175
    %3530 = vmatpush1.msra.mxu0 %v2174
    %3531 = vmatprep.subr.mxu0 %v2183
    %3532 = vmatpush1.msra.mxu0 %v2182
    %3533 = vmatprep.subr.mxu0 %v2191
    %3534 = vmatpush1.msra.mxu0 %v2190
    %3535 = vmatprep.subr.mxu0 %v2199
    %3536 = vmatpush1.msra.mxu0 %v2198
    %3537 = vmatprep.subr.mxu0 %v2207
    %3538 = vmatpush1.msra.mxu0 %v2206
    %3539 = vmatprep.subr.mxu0 %v2215
    %3540 = vmatpush1.msra.mxu0 %v2214
    %3541 = vmatprep.subr.mxu0 %v2223
    %3542 = vmatpush1.msra.mxu0 %v2222
    %3543 = vmatprep.subr.mxu0 %v2231
    %3544 = vmatpush1.msra.mxu0 %v2230
    %3545 = vmatprep.subr.mxu0 %v2239
    %3546 = vmatpush1.msra.mxu0 %v2238
    %3547 = vmatprep.subr.mxu0 %v2247
    %3548 = vmatpush1.msra.mxu0 %v2246
    %3549 = vmatprep.subr.mxu0 %v2255
    %3550 = vmatpush1.msra.mxu0 %v2254
    %3551 = vmatprep.subr.mxu0 %v2263
    %3552 = vmatpush1.msra.mxu0 %v2262
    %3553 = vmatprep.subr.mxu0 %v2271
    %3554 = vmatpush1.msra.mxu0 %v2270
    %3555 = vmatprep.subr.mxu0 %v2279
    %3556 = vmatpush1.msra.mxu0 %v2278
    %3557 = vmatprep.subr.mxu0 %v2287
    %3558 = vmatpush1.msra.mxu0 %v2286
    %3559 = vmatprep.subr.mxu0 %v2295
    %3560 = vmatpush1.msra.mxu0 %v2294
    %3561 = vmatprep.subr.mxu0 %v2303
    %3562 = vmatpush1.msra.mxu0 %v2302
    %3563 = vmatprep.mubr.f32.mxu0 %v1789
    %3564 = vmatmul.mubr.f32.gmra.mrb[0].mxu0 %v1788
    %v3565 = vpop.f32.mrb[0].mxu0
    %v3566 = vadd.f32 %v3495, %v3565
    %v3567 = vpop.f32.mrb[0].mxu0
    %v3568 = vadd.f32 %v3497, %v3567
    %3569 = vdwg.mxu0
    %3570 = vmatprep.subr.mxu0 %v2311
    %3571 = vmatpush1.msra.mxu0 %v2310
    %3572 = vmatprep.subr.mxu0 %v2319
    %3573 = vmatpush1.msra.mxu0 %v2318
    %3574 = vmatprep.subr.mxu0 %v2327
    %3575 = vmatpush1.msra.mxu0 %v2326
    %3576 = vmatprep.subr.mxu0 %v2335
    %3577 = vmatpush1.msra.mxu0 %v2334
    %3578 = vmatprep.subr.mxu0 %v2343
    %3579 = vmatpush1.msra.mxu0 %v2342
    %3580 = vmatprep.subr.mxu0 %v2351
    %3581 = vmatpush1.msra.mxu0 %v2350
    %3582 = vmatprep.subr.mxu0 %v2359
    %3583 = vmatpush1.msra.mxu0 %v2358
    %3584 = vmatprep.subr.mxu0 %v2367
    %3585 = vmatpush1.msra.mxu0 %v2366
    %3586 = vmatprep.subr.mxu0 %v2375
    %3587 = vmatpush1.msra.mxu0 %v2374
    %3588 = vmatprep.subr.mxu0 %v2383
    %3589 = vmatpush1.msra.mxu0 %v2382
    %3590 = vmatprep.subr.mxu0 %v2391
    %3591 = vmatpush1.msra.mxu0 %v2390
    %3592 = vmatprep.subr.mxu0 %v2399
    %3593 = vmatpush1.msra.mxu0 %v2398
    %3594 = vmatprep.subr.mxu0 %v2407
    %3595 = vmatpush1.msra.mxu0 %v2406
    %3596 = vmatprep.subr.mxu0 %v2415
    %3597 = vmatpush1.msra.mxu0 %v2414
    %3598 = vmatprep.subr.mxu0 %v2423
    %3599 = vmatpush1.msra.mxu0 %v2422
    %3600 = vmatprep.subr.mxu0 %v2431
    %3601 = vmatpush1.msra.mxu0 %v2430
    %3602 = vmatprep.subr.mxu0 %v2439
    %3603 = vmatpush1.msra.mxu0 %v2438
    %3604 = vmatprep.subr.mxu0 %v2447
    %3605 = vmatpush1.msra.mxu0 %v2446
    %3606 = vmatprep.subr.mxu0 %v2455
    %3607 = vmatpush1.msra.mxu0 %v2454
    %3608 = vmatprep.subr.mxu0 %v2463
    %3609 = vmatpush1.msra.mxu0 %v2462
    %3610 = vmatprep.subr.mxu0 %v2471
    %3611 = vmatpush1.msra.mxu0 %v2470
    %3612 = vmatprep.subr.mxu0 %v2479
    %3613 = vmatpush1.msra.mxu0 %v2478
    %3614 = vmatprep.subr.mxu0 %v2487
    %3615 = vmatpush1.msra.mxu0 %v2486
    %3616 = vmatprep.subr.mxu0 %v2495
    %3617 = vmatpush1.msra.mxu0 %v2494
    %3618 = vmatprep.subr.mxu0 %v2503
    %3619 = vmatpush1.msra.mxu0 %v2502
    %3620 = vmatprep.subr.mxu0 %v2511
    %3621 = vmatpush1.msra.mxu0 %v2510
    %3622 = vmatprep.subr.mxu0 %v2519
    %3623 = vmatpush1.msra.mxu0 %v2518
    %3624 = vmatprep.subr.mxu0 %v2527
    %3625 = vmatpush1.msra.mxu0 %v2526
    %3626 = vmatprep.subr.mxu0 %v2535
    %3627 = vmatpush1.msra.mxu0 %v2534
    %3628 = vmatprep.subr.mxu0 %v2543
    %3629 = vmatpush1.msra.mxu0 %v2542
    %3630 = vmatprep.subr.mxu0 %v2551
    %3631 = vmatpush1.msra.mxu0 %v2550
    %3632 = vmatprep.subr.mxu0 %v2559
    %3633 = vmatpush1.msra.mxu0 %v2558
    %3634 = vmatprep.mubr.f32.mxu0 %v1791
    %3635 = vmatmul.mubr.f32.gmra.mrb[0].mxu0 %v1790
    %v3636 = vpop.f32.mrb[0].mxu0
    %v3637 = vadd.f32 %v3566, %v3636
    %v3638 = vpop.f32.mrb[0].mxu0
    %v3639 = vadd.f32 %v3568, %v3638
    %3640 = vdwg.mxu0
    %3641 = vmatprep.subr.mxu0 %v2567
    %3642 = vmatpush1.msra.mxu0 %v2566
    %3643 = vmatprep.subr.mxu0 %v2575
    %3644 = vmatpush1.msra.mxu0 %v2574
    %3645 = vmatprep.subr.mxu0 %v2583
    %3646 = vmatpush1.msra.mxu0 %v2582
    %3647 = vmatprep.subr.mxu0 %v2591
    %3648 = vmatpush1.msra.mxu0 %v2590
    %3649 = vmatprep.subr.mxu0 %v2599
    %3650 = vmatpush1.msra.mxu0 %v2598
    %3651 = vmatprep.subr.mxu0 %v2607
    %3652 = vmatpush1.msra.mxu0 %v2606
    %3653 = vmatprep.subr.mxu0 %v2615
    %3654 = vmatpush1.msra.mxu0 %v2614
    %3655 = vmatprep.subr.mxu0 %v2623
    %3656 = vmatpush1.msra.mxu0 %v2622
    %3657 = vmatprep.subr.mxu0 %v2631
    %3658 = vmatpush1.msra.mxu0 %v2630
    %3659 = vmatprep.subr.mxu0 %v2639
    %3660 = vmatpush1.msra.mxu0 %v2638
    %3661 = vmatprep.subr.mxu0 %v2647
    %3662 = vmatpush1.msra.mxu0 %v2646
    %3663 = vmatprep.subr.mxu0 %v2655
    %3664 = vmatpush1.msra.mxu0 %v2654
    %3665 = vmatprep.subr.mxu0 %v2663
    %3666 = vmatpush1.msra.mxu0 %v2662
    %3667 = vmatprep.subr.mxu0 %v2671
    %3668 = vmatpush1.msra.mxu0 %v2670
    %3669 = vmatprep.subr.mxu0 %v2679
    %3670 = vmatpush1.msra.mxu0 %v2678
    %3671 = vmatprep.subr.mxu0 %v2687
    %3672 = vmatpush1.msra.mxu0 %v2686
    %3673 = vmatprep.subr.mxu0 %v2695
    %3674 = vmatpush1.msra.mxu0 %v2694
    %3675 = vmatprep.subr.mxu0 %v2703
    %3676 = vmatpush1.msra.mxu0 %v2702
    %3677 = vmatprep.subr.mxu0 %v2711
    %3678 = vmatpush1.msra.mxu0 %v2710
    %3679 = vmatprep.subr.mxu0 %v2719
    %3680 = vmatpush1.msra.mxu0 %v2718
    %3681 = vmatprep.subr.mxu0 %v2727
    %3682 = vmatpush1.msra.mxu0 %v2726
    %3683 = vmatprep.subr.mxu0 %v2735
    %3684 = vmatpush1.msra.mxu0 %v2734
    %3685 = vmatprep.subr.mxu0 %v2743
    %3686 = vmatpush1.msra.mxu0 %v2742
    %3687 = vmatprep.subr.mxu0 %v2751
    %3688 = vmatpush1.msra.mxu0 %v2750
    %3689 = vmatprep.subr.mxu0 %v2759
    %3690 = vmatpush1.msra.mxu0 %v2758
    %3691 = vmatprep.subr.mxu0 %v2767
    %3692 = vmatpush1.msra.mxu0 %v2766
    %3693 = vmatprep.subr.mxu0 %v2775
    %3694 = vmatpush1.msra.mxu0 %v2774
    %3695 = vmatprep.subr.mxu0 %v2783
    %3696 = vmatpush1.msra.mxu0 %v2782
    %3697 = vmatprep.subr.mxu0 %v2791
    %3698 = vmatpush1.msra.mxu0 %v2790
    %3699 = vmatprep.subr.mxu0 %v2799
    %3700 = vmatpush1.msra.mxu0 %v2798
    %3701 = vmatprep.subr.mxu0 %v2807
    %3702 = vmatpush1.msra.mxu0 %v2806
    %3703 = vmatprep.subr.mxu0 %v2815
    %3704 = vmatpush1.msra.mxu0 %v2814
    %3705 = vmatprep.mubr.f32.mxu0 %v1793
    %3706 = vmatmul.mubr.f32.gmra.mrb[0].mxu0 %v1792
    %v3707 = vpop.f32.mrb[0].mxu0
    %v3708 = vadd.f32 %v3637, %v3707
    %v3709 = vpop.f32.mrb[0].mxu0
    %v3710 = vadd.f32 %v3639, %v3709
    %3711 = vdwg.mxu0
    %3712 = vmatprep.subr.mxu0 %v1801
    %3713 = vmatpush1.msra.mxu0 %v1800
    %3714 = vmatprep.subr.mxu0 %v1809
    %3715 = vmatpush1.msra.mxu0 %v1808
    %3716 = vmatprep.subr.mxu0 %v1817
    %3717 = vmatpush1.msra.mxu0 %v1816
    %3718 = vmatprep.subr.mxu0 %v1825
    %3719 = vmatpush1.msra.mxu0 %v1824
    %3720 = vmatprep.subr.mxu0 %v1833
    %3721 = vmatpush1.msra.mxu0 %v1832
    %3722 = vmatprep.subr.mxu0 %v1841
    %3723 = vmatpush1.msra.mxu0 %v1840
    %3724 = vmatprep.subr.mxu0 %v1849
    %3725 = vmatpush1.msra.mxu0 %v1848
    %3726 = vmatprep.subr.mxu0 %v1857
    %3727 = vmatpush1.msra.mxu0 %v1856
    %3728 = vmatprep.subr.mxu0 %v1865
    %3729 = vmatpush1.msra.mxu0 %v1864
    %3730 = vmatprep.subr.mxu0 %v1873
    %3731 = vmatpush1.msra.mxu0 %v1872
    %3732 = vmatprep.subr.mxu0 %v1881
    %3733 = vmatpush1.msra.mxu0 %v1880
    %3734 = vmatprep.subr.mxu0 %v1889
    %3735 = vmatpush1.msra.mxu0 %v1888
    %3736 = vmatprep.subr.mxu0 %v1897
    %3737 = vmatpush1.msra.mxu0 %v1896
    %3738 = vmatprep.subr.mxu0 %v1905
    %3739 = vmatpush1.msra.mxu0 %v1904
    %3740 = vmatprep.subr.mxu0 %v1913
    %3741 = vmatpush1.msra.mxu0 %v1912
    %3742 = vmatprep.subr.mxu0 %v1921
    %3743 = vmatpush1.msra.mxu0 %v1920
    %3744 = vmatprep.subr.mxu0 %v1929
    %3745 = vmatpush1.msra.mxu0 %v1928
    %3746 = vmatprep.subr.mxu0 %v1937
    %3747 = vmatpush1.msra.mxu0 %v1936
    %3748 = vmatprep.subr.mxu0 %v1945
    %3749 = vmatpush1.msra.mxu0 %v1944
    %3750 = vmatprep.subr.mxu0 %v1953
    %3751 = vmatpush1.msra.mxu0 %v1952
    %3752 = vmatprep.subr.mxu0 %v1961
    %3753 = vmatpush1.msra.mxu0 %v1960
    %3754 = vmatprep.subr.mxu0 %v1969
    %3755 = vmatpush1.msra.mxu0 %v1968
    %3756 = vmatprep.subr.mxu0 %v1977
    %3757 = vmatpush1.msra.mxu0 %v1976
    %3758 = vmatprep.subr.mxu0 %v1985
    %3759 = vmatpush1.msra.mxu0 %v1984
    %3760 = vmatprep.subr.mxu0 %v1993
    %3761 = vmatpush1.msra.mxu0 %v1992
    %3762 = vmatprep.subr.mxu0 %v2001
    %3763 = vmatpush1.msra.mxu0 %v2000
    %3764 = vmatprep.subr.mxu0 %v2009
    %3765 = vmatpush1.msra.mxu0 %v2008
    %3766 = vmatprep.subr.mxu0 %v2017
    %3767 = vmatpush1.msra.mxu0 %v2016
    %3768 = vmatprep.subr.mxu0 %v2025
    %3769 = vmatpush1.msra.mxu0 %v2024
    %3770 = vmatprep.subr.mxu0 %v2033
    %3771 = vmatpush1.msra.mxu0 %v2032
    %3772 = vmatprep.subr.mxu0 %v2041
    %3773 = vmatpush1.msra.mxu0 %v2040
    %3774 = vmatprep.subr.mxu0 %v2049
    %3775 = vmatpush1.msra.mxu0 %v2048
    %3776 = vmatprep.mubr.f32.mxu0 %v1787
    %3777 = vmatmul.mubr.f32.gmra.mrb[0].mxu0 %v1786
    %v3778 = vpop.f32.mrb[0].mxu0
    %v3779 = vadd.f32 %v2847, %v3778
    %v3780 = vpop.f32.mrb[0].mxu0
    %v3781 = vadd.f32 %v2851, %v3780
    %3782 = vdwg.mxu0
    %3783 = vmatprep.subr.mxu0 %v2057
    %3784 = vmatpush1.msra.mxu0 %v2056
    %3785 = vmatprep.subr.mxu0 %v2065
    %3786 = vmatpush1.msra.mxu0 %v2064
    %3787 = vmatprep.subr.mxu0 %v2073
    %3788 = vmatpush1.msra.mxu0 %v2072
    %3789 = vmatprep.subr.mxu0 %v2081
    %3790 = vmatpush1.msra.mxu0 %v2080
    %3791 = vmatprep.subr.mxu0 %v2089
    %3792 = vmatpush1.msra.mxu0 %v2088
    %3793 = vmatprep.subr.mxu0 %v2097
    %3794 = vmatpush1.msra.mxu0 %v2096
    %3795 = vmatprep.subr.mxu0 %v2105
    %3796 = vmatpush1.msra.mxu0 %v2104
    %3797 = vmatprep.subr.mxu0 %v2113
    %3798 = vmatpush1.msra.mxu0 %v2112
    %3799 = vmatprep.subr.mxu0 %v2121
    %3800 = vmatpush1.msra.mxu0 %v2120
    %3801 = vmatprep.subr.mxu0 %v2129
    %3802 = vmatpush1.msra.mxu0 %v2128
    %3803 = vmatprep.subr.mxu0 %v2137
    %3804 = vmatpush1.msra.mxu0 %v2136
    %3805 = vmatprep.subr.mxu0 %v2145
    %3806 = vmatpush1.msra.mxu0 %v2144
    %3807 = vmatprep.subr.mxu0 %v2153
    %3808 = vmatpush1.msra.mxu0 %v2152
    %3809 = vmatprep.subr.mxu0 %v2161
    %3810 = vmatpush1.msra.mxu0 %v2160
    %3811 = vmatprep.subr.mxu0 %v2169
    %3812 = vmatpush1.msra.mxu0 %v2168
    %3813 = vmatprep.subr.mxu0 %v2177
    %3814 = vmatpush1.msra.mxu0 %v2176
    %3815 = vmatprep.subr.mxu0 %v2185
    %3816 = vmatpush1.msra.mxu0 %v2184
    %3817 = vmatprep.subr.mxu0 %v2193
    %3818 = vmatpush1.msra.mxu0 %v2192
    %3819 = vmatprep.subr.mxu0 %v2201
    %3820 = vmatpush1.msra.mxu0 %v2200
    %3821 = vmatprep.subr.mxu0 %v2209
    %3822 = vmatpush1.msra.mxu0 %v2208
    %3823 = vmatprep.subr.mxu0 %v2217
    %3824 = vmatpush1.msra.mxu0 %v2216
    %3825 = vmatprep.subr.mxu0 %v2225
    %3826 = vmatpush1.msra.mxu0 %v2224
    %3827 = vmatprep.subr.mxu0 %v2233
    %3828 = vmatpush1.msra.mxu0 %v2232
    %3829 = vmatprep.subr.mxu0 %v2241
    %3830 = vmatpush1.msra.mxu0 %v2240
    %3831 = vmatprep.subr.mxu0 %v2249
    %3832 = vmatpush1.msra.mxu0 %v2248
    %3833 = vmatprep.subr.mxu0 %v2257
    %3834 = vmatpush1.msra.mxu0 %v2256
    %3835 = vmatprep.subr.mxu0 %v2265
    %3836 = vmatpush1.msra.mxu0 %v2264
    %3837 = vmatprep.subr.mxu0 %v2273
    %3838 = vmatpush1.msra.mxu0 %v2272
    %3839 = vmatprep.subr.mxu0 %v2281
    %3840 = vmatpush1.msra.mxu0 %v2280
    %3841 = vmatprep.subr.mxu0 %v2289
    %3842 = vmatpush1.msra.mxu0 %v2288
    %3843 = vmatprep.subr.mxu0 %v2297
    %3844 = vmatpush1.msra.mxu0 %v2296
    %3845 = vmatprep.subr.mxu0 %v2305
    %3846 = vmatpush1.msra.mxu0 %v2304
    %3847 = vmatprep.mubr.f32.mxu0 %v1789
    %3848 = vmatmul.mubr.f32.gmra.mrb[0].mxu0 %v1788
    %v3849 = vpop.f32.mrb[0].mxu0
    %v3850 = vadd.f32 %v3779, %v3849
    %v3851 = vpop.f32.mrb[0].mxu0
    %v3852 = vadd.f32 %v3781, %v3851
    %3853 = vdwg.mxu0
    %3854 = vmatprep.subr.mxu0 %v2313
    %3855 = vmatpush1.msra.mxu0 %v2312
    %3856 = vmatprep.subr.mxu0 %v2321
    %3857 = vmatpush1.msra.mxu0 %v2320
    %3858 = vmatprep.subr.mxu0 %v2329
    %3859 = vmatpush1.msra.mxu0 %v2328
    %3860 = vmatprep.subr.mxu0 %v2337
    %3861 = vmatpush1.msra.mxu0 %v2336
    %3862 = vmatprep.subr.mxu0 %v2345
    %3863 = vmatpush1.msra.mxu0 %v2344
    %3864 = vmatprep.subr.mxu0 %v2353
    %3865 = vmatpush1.msra.mxu0 %v2352
    %3866 = vmatprep.subr.mxu0 %v2361
    %3867 = vmatpush1.msra.mxu0 %v2360
    %3868 = vmatprep.subr.mxu0 %v2369
    %3869 = vmatpush1.msra.mxu0 %v2368
    %3870 = vmatprep.subr.mxu0 %v2377
    %3871 = vmatpush1.msra.mxu0 %v2376
    %3872 = vmatprep.subr.mxu0 %v2385
    %3873 = vmatpush1.msra.mxu0 %v2384
    %3874 = vmatprep.subr.mxu0 %v2393
    %3875 = vmatpush1.msra.mxu0 %v2392
    %3876 = vmatprep.subr.mxu0 %v2401
    %3877 = vmatpush1.msra.mxu0 %v2400
    %3878 = vmatprep.subr.mxu0 %v2409
    %3879 = vmatpush1.msra.mxu0 %v2408
    %3880 = vmatprep.subr.mxu0 %v2417
    %3881 = vmatpush1.msra.mxu0 %v2416
    %3882 = vmatprep.subr.mxu0 %v2425
    %3883 = vmatpush1.msra.mxu0 %v2424
    %3884 = vmatprep.subr.mxu0 %v2433
    %3885 = vmatpush1.msra.mxu0 %v2432
    %3886 = vmatprep.subr.mxu0 %v2441
    %3887 = vmatpush1.msra.mxu0 %v2440
    %3888 = vmatprep.subr.mxu0 %v2449
    %3889 = vmatpush1.msra.mxu0 %v2448
    %3890 = vmatprep.subr.mxu0 %v2457
    %3891 = vmatpush1.msra.mxu0 %v2456
    %3892 = vmatprep.subr.mxu0 %v2465
    %3893 = vmatpush1.msra.mxu0 %v2464
    %3894 = vmatprep.subr.mxu0 %v2473
    %3895 = vmatpush1.msra.mxu0 %v2472
    %3896 = vmatprep.subr.mxu0 %v2481
    %3897 = vmatpush1.msra.mxu0 %v2480
    %3898 = vmatprep.subr.mxu0 %v2489
    %3899 = vmatpush1.msra.mxu0 %v2488
    %3900 = vmatprep.subr.mxu0 %v2497
    %3901 = vmatpush1.msra.mxu0 %v2496
    %3902 = vmatprep.subr.mxu0 %v2505
    %3903 = vmatpush1.msra.mxu0 %v2504
    %3904 = vmatprep.subr.mxu0 %v2513
    %3905 = vmatpush1.msra.mxu0 %v2512
    %3906 = vmatprep.subr.mxu0 %v2521
    %3907 = vmatpush1.msra.mxu0 %v2520
    %3908 = vmatprep.subr.mxu0 %v2529
    %3909 = vmatpush1.msra.mxu0 %v2528
    %3910 = vmatprep.subr.mxu0 %v2537
    %3911 = vmatpush1.msra.mxu0 %v2536
    %3912 = vmatprep.subr.mxu0 %v2545
    %3913 = vmatpush1.msra.mxu0 %v2544
    %3914 = vmatprep.subr.mxu0 %v2553
    %3915 = vmatpush1.msra.mxu0 %v2552
    %3916 = vmatprep.subr.mxu0 %v2561
    %3917 = vmatpush1.msra.mxu0 %v2560
    %3918 = vmatprep.mubr.f32.mxu0 %v1791
    %3919 = vmatmul.mubr.f32.gmra.mrb[0].mxu0 %v1790
    %v3920 = vpop.f32.mrb[0].mxu0
    %v3921 = vadd.f32 %v3850, %v3920
    %v3922 = vpop.f32.mrb[0].mxu0
    %v3923 = vadd.f32 %v3852, %v3922
    %3924 = vdwg.mxu0
    %3925 = vmatprep.subr.mxu0 %v2569
    %3926 = vmatpush1.msra.mxu0 %v2568
    %3927 = vmatprep.subr.mxu0 %v2577
    %3928 = vmatpush1.msra.mxu0 %v2576
    %3929 = vmatprep.subr.mxu0 %v2585
    %3930 = vmatpush1.msra.mxu0 %v2584
    %3931 = vmatprep.subr.mxu0 %v2593
    %3932 = vmatpush1.msra.mxu0 %v2592
    %3933 = vmatprep.subr.mxu0 %v2601
    %3934 = vmatpush1.msra.mxu0 %v2600
    %3935 = vmatprep.subr.mxu0 %v2609
    %3936 = vmatpush1.msra.mxu0 %v2608
    %3937 = vmatprep.subr.mxu0 %v2617
    %3938 = vmatpush1.msra.mxu0 %v2616
    %3939 = vmatprep.subr.mxu0 %v2625
    %3940 = vmatpush1.msra.mxu0 %v2624
    %3941 = vmatprep.subr.mxu0 %v2633
    %3942 = vmatpush1.msra.mxu0 %v2632
    %3943 = vmatprep.subr.mxu0 %v2641
    %3944 = vmatpush1.msra.mxu0 %v2640
    %3945 = vmatprep.subr.mxu0 %v2649
    %3946 = vmatpush1.msra.mxu0 %v2648
    %3947 = vmatprep.subr.mxu0 %v2657
    %3948 = vmatpush1.msra.mxu0 %v2656
    %3949 = vmatprep.subr.mxu0 %v2665
    %3950 = vmatpush1.msra.mxu0 %v2664
    %3951 = vmatprep.subr.mxu0 %v2673
    %3952 = vmatpush1.msra.mxu0 %v2672
    %3953 = vmatprep.subr.mxu0 %v2681
    %3954 = vmatpush1.msra.mxu0 %v2680
    %3955 = vmatprep.subr.mxu0 %v2689
    %3956 = vmatpush1.msra.mxu0 %v2688
    %3957 = vmatprep.subr.mxu0 %v2697
    %3958 = vmatpush1.msra.mxu0 %v2696
    %3959 = vmatprep.subr.mxu0 %v2705
    %3960 = vmatpush1.msra.mxu0 %v2704
    %3961 = vmatprep.subr.mxu0 %v2713
    %3962 = vmatpush1.msra.mxu0 %v2712
    %3963 = vmatprep.subr.mxu0 %v2721
    %3964 = vmatpush1.msra.mxu0 %v2720
    %3965 = vmatprep.subr.mxu0 %v2729
    %3966 = vmatpush1.msra.mxu0 %v2728
    %3967 = vmatprep.subr.mxu0 %v2737
    %3968 = vmatpush1.msra.mxu0 %v2736
    %3969 = vmatprep.subr.mxu0 %v2745
    %3970 = vmatpush1.msra.mxu0 %v2744
    %3971 = vmatprep.subr.mxu0 %v2753
    %3972 = vmatpush1.msra.mxu0 %v2752
    %3973 = vmatprep.subr.mxu0 %v2761
    %3974 = vmatpush1.msra.mxu0 %v2760
    %3975 = vmatprep.subr.mxu0 %v2769
    %3976 = vmatpush1.msra.mxu0 %v2768
    %3977 = vmatprep.subr.mxu0 %v2777
    %3978 = vmatpush1.msra.mxu0 %v2776
    %3979 = vmatprep.subr.mxu0 %v2785
    %3980 = vmatpush1.msra.mxu0 %v2784
    %3981 = vmatprep.subr.mxu0 %v2793
    %3982 = vmatpush1.msra.mxu0 %v2792
    %3983 = vmatprep.subr.mxu0 %v2801
    %3984 = vmatpush1.msra.mxu0 %v2800
    %3985 = vmatprep.subr.mxu0 %v2809
    %3986 = vmatpush1.msra.mxu0 %v2808
    %3987 = vmatprep.subr.mxu0 %v2817
    %3988 = vmatpush1.msra.mxu0 %v2816
    %3989 = vmatprep.mubr.f32.mxu0 %v1793
    %3990 = vmatmul.mubr.f32.gmra.mrb[0].mxu0 %v1792
    %v3991 = vpop.f32.mrb[0].mxu0
    %v3992 = vadd.f32 %v3921, %v3991
    %v3993 = vpop.f32.mrb[0].mxu0
    %v3994 = vadd.f32 %v3923, %v3993
    %3995 = vdwg.mxu0
    %v3996 = vadd.f32 %v3140, %v3142
    %v3997 = vadd.f32 %v3996, %v3424
    %v3998 = vadd.f32 %v3997, %v3426
    %v3999 = vadd.f32 %v3998, %v3708
    %v4000 = vadd.f32 %v3999, %v3710
    %v4001 = vadd.f32 %v4000, %v3992
    %v4002 = vadd.f32 %v4001, %v3994
    %4003 = vadd.xlane.f32.xlu0 %v4002
    %v4004 = vpop.xlane.xlu0 %4003
    %v4005 = vrcp.pop 1024.0
    %v4006 = vmul.f32 %v4004, %v4005
    %v4007 = vsub.f32 %v3140, %v4006
    %v4008 = vsub.f32 %v3142, %v4006
    %v4009 = vsub.f32 %v3424, %v4006
    %v4010 = vsub.f32 %v3426, %v4006
    %v4011 = vsub.f32 %v3708, %v4006
    %v4012 = vsub.f32 %v3710, %v4006
    %v4013 = vsub.f32 %v3992, %v4006
    %v4014 = vsub.f32 %v3994, %v4006
    %v4015 = vmul.f32 %v4007, %v4007
    %v4016 = vmul.f32 %v4008, %v4008
    %v4017 = vmul.f32 %v4009, %v4009
    %v4018 = vmul.f32 %v4010, %v4010
    %v4019 = vmul.f32 %v4011, %v4011
    %v4020 = vmul.f32 %v4012, %v4012
    %v4021 = vmul.f32 %v4013, %v4013
    %v4022 = vmul.f32 %v4014, %v4014
    %v4023 = vadd.f32 %v4015, %v4016
    %v4024 = vadd.f32 %v4023, %v4017
    %v4025 = vadd.f32 %v4024, %v4018
    %v4026 = vadd.f32 %v4025, %v4019
    %v4027 = vadd.f32 %v4026, %v4020
    %v4028 = vadd.f32 %v4027, %v4021
    %v4029 = vadd.f32 %v4028, %v4022
    %4030 = vadd.xlane.f32.xlu0 %v4029
    %v4031 = vpop.xlane.xlu0 %4030
    %v4032 = vmul.f32 %v4031, %v4005
    %v4033 = vadd.f32 %v4032, 1e-05
    %v4034 = vrsqrt.pop %v4033
    %v4035 = vmul.f32 %v4007, %v4034
    %v4036 = vmul.f32 %v4008, %v4034
    %v4037 = vmul.f32 %v4009, %v4034
    %v4038 = vmul.f32 %v4010, %v4034
    %v4039 = vmul.f32 %v4011, %v4034
    %v4040 = vmul.f32 %v4012, %v4034
    %v4041 = vmul.f32 %v4013, %v4034
    %v4042 = vmul.f32 %v4014, %v4034
    %v4043 = vld [vmem:[#allocation10] sm:$0xff]
    %v4045 = vlaneseq
    %v4046 = vshrl.u32 %v4045, 7
    %v4047 = vsub.s32 0, %v4046
    %v4048 = vrot.slane %v4043, %v4047
    %v4049 = vlaneseq
    %v4050 = vshrl.u32 %v4049, 7
    %v4051 = vsub.s32 1, %v4050
    %v4052 = vrot.slane %v4043, %v4051
    %v4053 = vlaneseq
    %v4054 = vshrl.u32 %v4053, 7
    %v4055 = vsub.s32 2, %v4054
    %v4056 = vrot.slane %v4043, %v4055
    %v4057 = vlaneseq
    %v4058 = vshrl.u32 %v4057, 7
    %v4059 = vsub.s32 3, %v4058
    %v4060 = vrot.slane %v4043, %v4059
    %v4061 = vlaneseq
    %v4062 = vshrl.u32 %v4061, 7
    %v4063 = vsub.s32 4, %v4062
    %v4064 = vrot.slane %v4043, %v4063
    %v4065 = vlaneseq
    %v4066 = vshrl.u32 %v4065, 7
    %v4067 = vsub.s32 5, %v4066
    %v4068 = vrot.slane %v4043, %v4067
    %v4069 = vlaneseq
    %v4070 = vshrl.u32 %v4069, 7
    %v4071 = vsub.s32 6, %v4070
    %v4072 = vrot.slane %v4043, %v4071
    %v4073 = vlaneseq
    %v4074 = vshrl.u32 %v4073, 7
    %v4075 = vsub.s32 7, %v4074
    %v4076 = vrot.slane %v4043, %v4075
    %v4085 = vmul.f32 %v4035, %v4048
    %v4086 = vmul.f32 %v4036, %v4052
    %v4087 = vmul.f32 %v4037, %v4056
    %v4088 = vmul.f32 %v4038, %v4060
    %v4089 = vmul.f32 %v4039, %v4064
    %v4090 = vmul.f32 %v4040, %v4068
    %v4091 = vmul.f32 %v4041, %v4072
    %v4092 = vmul.f32 %v4042, %v4076
    %v4093 = vld [vmem:[#allocation11] sm:$0xff]
    %v4095 = vlaneseq
    %v4096 = vshrl.u32 %v4095, 7
    %v4097 = vsub.s32 0, %v4096
    %v4098 = vrot.slane %v4093, %v4097
    %v4099 = vlaneseq
    %v4100 = vshrl.u32 %v4099, 7
    %v4101 = vsub.s32 1, %v4100
    %v4102 = vrot.slane %v4093, %v4101
    %v4103 = vlaneseq
    %v4104 = vshrl.u32 %v4103, 7
    %v4105 = vsub.s32 2, %v4104
    %v4106 = vrot.slane %v4093, %v4105
    %v4107 = vlaneseq
    %v4108 = vshrl.u32 %v4107, 7
    %v4109 = vsub.s32 3, %v4108
    %v4110 = vrot.slane %v4093, %v4109
    %v4111 = vlaneseq
    %v4112 = vshrl.u32 %v4111, 7
    %v4113 = vsub.s32 4, %v4112
    %v4114 = vrot.slane %v4093, %v4113
    %v4115 = vlaneseq
    %v4116 = vshrl.u32 %v4115, 7
    %v4117 = vsub.s32 5, %v4116
    %v4118 = vrot.slane %v4093, %v4117
    %v4119 = vlaneseq
    %v4120 = vshrl.u32 %v4119, 7
    %v4121 = vsub.s32 6, %v4120
    %v4122 = vrot.slane %v4093, %v4121
    %v4123 = vlaneseq
    %v4124 = vshrl.u32 %v4123, 7
    %v4125 = vsub.s32 7, %v4124
    %v4126 = vrot.slane %v4093, %v4125
    %v4135 = vadd.f32 %v4085, %v4098
    %v4136 = vadd.f32 %v4086, %v4102
    %v4137 = vadd.f32 %v4087, %v4106
    %v4138 = vadd.f32 %v4088, %v4110
    %v4139 = vadd.f32 %v4089, %v4114
    %v4140 = vadd.f32 %v4090, %v4118
    %v4141 = vadd.f32 %v4091, %v4122
    %v4142 = vadd.f32 %v4092, %v4126
    %v4143 = vld [vmem:[#allocation13] sm:$0xff]
    %v4144 = vld [vmem:[#allocation13 + $0x8] sm:$0xff]
    %v4145 = vld [vmem:[#allocation13 + $0x10] sm:$0xff]
    %v4146 = vld [vmem:[#allocation13 + $0x18] sm:$0xff]
    %v4147 = vld [vmem:[#allocation13 + $0x20] sm:$0xff]
    %v4148 = vld [vmem:[#allocation13 + $0x28] sm:$0xff]
    %v4149 = vld [vmem:[#allocation13 + $0x30] sm:$0xff]
    %v4150 = vld [vmem:[#allocation13 + $0x38] sm:$0xff]
    %v4151 = vld [vmem:[#allocation13 + $0x40] sm:$0xff]
    %v4152 = vld [vmem:[#allocation13 + $0x48] sm:$0xff]
    %v4153 = vld [vmem:[#allocation13 + $0x50] sm:$0xff]
    %v4154 = vld [vmem:[#allocation13 + $0x58] sm:$0xff]
    %v4155 = vld [vmem:[#allocation13 + $0x60] sm:$0xff]
    %v4156 = vld [vmem:[#allocation13 + $0x68] sm:$0xff]
    %v4157 = vld [vmem:[#allocation13 + $0x70] sm:$0xff]
    %v4158 = vld [vmem:[#allocation13 + $0x78] sm:$0xff]
    %v4159 = vld [vmem:[#allocation13 + $0x80] sm:$0xff]
    %v4160 = vld [vmem:[#allocation13 + $0x88] sm:$0xff]
    %v4161 = vld [vmem:[#allocation13 + $0x90] sm:$0xff]
    %v4162 = vld [vmem:[#allocation13 + $0x98] sm:$0xff]
    %v4163 = vld [vmem:[#allocation13 + $0xa0] sm:$0xff]
    %v4164 = vld [vmem:[#allocation13 + $0xa8] sm:$0xff]
    %v4165 = vld [vmem:[#allocation13 + $0xb0] sm:$0xff]
    %v4166 = vld [vmem:[#allocation13 + $0xb8] sm:$0xff]
    %v4167 = vld [vmem:[#allocation13 + $0xc0] sm:$0xff]
    %v4168 = vld [vmem:[#allocation13 + $0xc8] sm:$0xff]
    %v4169 = vld [vmem:[#allocation13 + $0xd0] sm:$0xff]
    %v4170 = vld [vmem:[#allocation13 + $0xd8] sm:$0xff]
    %v4171 = vld [vmem:[#allocation13 + $0xe0] sm:$0xff]
    %v4172 = vld [vmem:[#allocation13 + $0xe8] sm:$0xff]
    %v4173 = vld [vmem:[#allocation13 + $0xf0] sm:$0xff]
    %v4174 = vld [vmem:[#allocation13 + $0xf8] sm:$0xff]
    %v4175 = vld [vmem:[#allocation13 + $0x100] sm:$0xff]
    %v4176 = vld [vmem:[#allocation13 + $0x108] sm:$0xff]
    %v4177 = vld [vmem:[#allocation13 + $0x110] sm:$0xff]
    %v4178 = vld [vmem:[#allocation13 + $0x118] sm:$0xff]
    %v4179 = vld [vmem:[#allocation13 + $0x120] sm:$0xff]
    %v4180 = vld [vmem:[#allocation13 + $0x128] sm:$0xff]
    %v4181 = vld [vmem:[#allocation13 + $0x130] sm:$0xff]
    %v4182 = vld [vmem:[#allocation13 + $0x138] sm:$0xff]
    %v4183 = vld [vmem:[#allocation13 + $0x140] sm:$0xff]
    %v4184 = vld [vmem:[#allocation13 + $0x148] sm:$0xff]
    %v4185 = vld [vmem:[#allocation13 + $0x150] sm:$0xff]
    %v4186 = vld [vmem:[#allocation13 + $0x158] sm:$0xff]
    %v4187 = vld [vmem:[#allocation13 + $0x160] sm:$0xff]
    %v4188 = vld [vmem:[#allocation13 + $0x168] sm:$0xff]
    %v4189 = vld [vmem:[#allocation13 + $0x170] sm:$0xff]
    %v4190 = vld [vmem:[#allocation13 + $0x178] sm:$0xff]
    %v4191 = vld [vmem:[#allocation13 + $0x180] sm:$0xff]
    %v4192 = vld [vmem:[#allocation13 + $0x188] sm:$0xff]
    %v4193 = vld [vmem:[#allocation13 + $0x190] sm:$0xff]
    %v4194 = vld [vmem:[#allocation13 + $0x198] sm:$0xff]
    %v4195 = vld [vmem:[#allocation13 + $0x1a0] sm:$0xff]
    %v4196 = vld [vmem:[#allocation13 + $0x1a8] sm:$0xff]
    %v4197 = vld [vmem:[#allocation13 + $0x1b0] sm:$0xff]
    %v4198 = vld [vmem:[#allocation13 + $0x1b8] sm:$0xff]
    %v4199 = vld [vmem:[#allocation13 + $0x1c0] sm:$0xff]
    %v4200 = vld [vmem:[#allocation13 + $0x1c8] sm:$0xff]
    %v4201 = vld [vmem:[#allocation13 + $0x1d0] sm:$0xff]
    %v4202 = vld [vmem:[#allocation13 + $0x1d8] sm:$0xff]
    %v4203 = vld [vmem:[#allocation13 + $0x1e0] sm:$0xff]
    %v4204 = vld [vmem:[#allocation13 + $0x1e8] sm:$0xff]
    %v4205 = vld [vmem:[#allocation13 + $0x1f0] sm:$0xff]
    %v4206 = vld [vmem:[#allocation13 + $0x1f8] sm:$0xff]
    %v4207 = vld [vmem:[#allocation13 + $0x200] sm:$0xff]
    %v4208 = vld [vmem:[#allocation13 + $0x208] sm:$0xff]
    %v4209 = vld [vmem:[#allocation13 + $0x210] sm:$0xff]
    %v4210 = vld [vmem:[#allocation13 + $0x218] sm:$0xff]
    %v4211 = vld [vmem:[#allocation13 + $0x220] sm:$0xff]
    %v4212 = vld [vmem:[#allocation13 + $0x228] sm:$0xff]
    %v4213 = vld [vmem:[#allocation13 + $0x230] sm:$0xff]
    %v4214 = vld [vmem:[#allocation13 + $0x238] sm:$0xff]
    %v4215 = vld [vmem:[#allocation13 + $0x240] sm:$0xff]
    %v4216 = vld [vmem:[#allocation13 + $0x248] sm:$0xff]
    %v4217 = vld [vmem:[#allocation13 + $0x250] sm:$0xff]
    %v4218 = vld [vmem:[#allocation13 + $0x258] sm:$0xff]
    %v4219 = vld [vmem:[#allocation13 + $0x260] sm:$0xff]
    %v4220 = vld [vmem:[#allocation13 + $0x268] sm:$0xff]
    %v4221 = vld [vmem:[#allocation13 + $0x270] sm:$0xff]
    %v4222 = vld [vmem:[#allocation13 + $0x278] sm:$0xff]
    %v4223 = vld [vmem:[#allocation13 + $0x280] sm:$0xff]
    %v4224 = vld [vmem:[#allocation13 + $0x288] sm:$0xff]
    %v4225 = vld [vmem:[#allocation13 + $0x290] sm:$0xff]
    %v4226 = vld [vmem:[#allocation13 + $0x298] sm:$0xff]
    %v4227 = vld [vmem:[#allocation13 + $0x2a0] sm:$0xff]
    %v4228 = vld [vmem:[#allocation13 + $0x2a8] sm:$0xff]
    %v4229 = vld [vmem:[#allocation13 + $0x2b0] sm:$0xff]
    %v4230 = vld [vmem:[#allocation13 + $0x2b8] sm:$0xff]
    %v4231 = vld [vmem:[#allocation13 + $0x2c0] sm:$0xff]
    %v4232 = vld [vmem:[#allocation13 + $0x2c8] sm:$0xff]
    %v4233 = vld [vmem:[#allocation13 + $0x2d0] sm:$0xff]
    %v4234 = vld [vmem:[#allocation13 + $0x2d8] sm:$0xff]
    %v4235 = vld [vmem:[#allocation13 + $0x2e0] sm:$0xff]
    %v4236 = vld [vmem:[#allocation13 + $0x2e8] sm:$0xff]
    %v4237 = vld [vmem:[#allocation13 + $0x2f0] sm:$0xff]
    %v4238 = vld [vmem:[#allocation13 + $0x2f8] sm:$0xff]
    %v4239 = vld [vmem:[#allocation13 + $0x300] sm:$0xff]
    %v4240 = vld [vmem:[#allocation13 + $0x308] sm:$0xff]
    %v4241 = vld [vmem:[#allocation13 + $0x310] sm:$0xff]
    %v4242 = vld [vmem:[#allocation13 + $0x318] sm:$0xff]
    %v4243 = vld [vmem:[#allocation13 + $0x320] sm:$0xff]
    %v4244 = vld [vmem:[#allocation13 + $0x328] sm:$0xff]
    %v4245 = vld [vmem:[#allocation13 + $0x330] sm:$0xff]
    %v4246 = vld [vmem:[#allocation13 + $0x338] sm:$0xff]
    %v4247 = vld [vmem:[#allocation13 + $0x340] sm:$0xff]
    %v4248 = vld [vmem:[#allocation13 + $0x348] sm:$0xff]
    %v4249 = vld [vmem:[#allocation13 + $0x350] sm:$0xff]
    %v4250 = vld [vmem:[#allocation13 + $0x358] sm:$0xff]
    %v4251 = vld [vmem:[#allocation13 + $0x360] sm:$0xff]
    %v4252 = vld [vmem:[#allocation13 + $0x368] sm:$0xff]
    %v4253 = vld [vmem:[#allocation13 + $0x370] sm:$0xff]
    %v4254 = vld [vmem:[#allocation13 + $0x378] sm:$0xff]
    %v4255 = vld [vmem:[#allocation13 + $0x380] sm:$0xff]
    %v4256 = vld [vmem:[#allocation13 + $0x388] sm:$0xff]
    %v4257 = vld [vmem:[#allocation13 + $0x390] sm:$0xff]
    %v4258 = vld [vmem:[#allocation13 + $0x398] sm:$0xff]
    %v4259 = vld [vmem:[#allocation13 + $0x3a0] sm:$0xff]
    %v4260 = vld [vmem:[#allocation13 + $0x3a8] sm:$0xff]
    %v4261 = vld [vmem:[#allocation13 + $0x3b0] sm:$0xff]
    %v4262 = vld [vmem:[#allocation13 + $0x3b8] sm:$0xff]
    %v4263 = vld [vmem:[#allocation13 + $0x3c0] sm:$0xff]
    %v4264 = vld [vmem:[#allocation13 + $0x3c8] sm:$0xff]
    %v4265 = vld [vmem:[#allocation13 + $0x3d0] sm:$0xff]
    %v4266 = vld [vmem:[#allocation13 + $0x3d8] sm:$0xff]
    %v4267 = vld [vmem:[#allocation13 + $0x3e0] sm:$0xff]
    %v4268 = vld [vmem:[#allocation13 + $0x3e8] sm:$0xff]
    %v4269 = vld [vmem:[#allocation13 + $0x3f0] sm:$0xff]
    %v4270 = vld [vmem:[#allocation13 + $0x3f8] sm:$0xff]
    %v4271 = vld [vmem:[#allocation13 + $0x400] sm:$0xff]
    %v4272 = vld [vmem:[#allocation13 + $0x408] sm:$0xff]
    %v4273 = vld [vmem:[#allocation13 + $0x410] sm:$0xff]
    %v4274 = vld [vmem:[#allocation13 + $0x418] sm:$0xff]
    %v4275 = vld [vmem:[#allocation13 + $0x420] sm:$0xff]
    %v4276 = vld [vmem:[#allocation13 + $0x428] sm:$0xff]
    %v4277 = vld [vmem:[#allocation13 + $0x430] sm:$0xff]
    %v4278 = vld [vmem:[#allocation13 + $0x438] sm:$0xff]
    %v4279 = vld [vmem:[#allocation13 + $0x440] sm:$0xff]
    %v4280 = vld [vmem:[#allocation13 + $0x448] sm:$0xff]
    %v4281 = vld [vmem:[#allocation13 + $0x450] sm:$0xff]
    %v4282 = vld [vmem:[#allocation13 + $0x458] sm:$0xff]
    %v4283 = vld [vmem:[#allocation13 + $0x460] sm:$0xff]
    %v4284 = vld [vmem:[#allocation13 + $0x468] sm:$0xff]
    %v4285 = vld [vmem:[#allocation13 + $0x470] sm:$0xff]
    %v4286 = vld [vmem:[#allocation13 + $0x478] sm:$0xff]
    %v4287 = vld [vmem:[#allocation13 + $0x480] sm:$0xff]
    %v4288 = vld [vmem:[#allocation13 + $0x488] sm:$0xff]
    %v4289 = vld [vmem:[#allocation13 + $0x490] sm:$0xff]
    %v4290 = vld [vmem:[#allocation13 + $0x498] sm:$0xff]
    %v4291 = vld [vmem:[#allocation13 + $0x4a0] sm:$0xff]
    %v4292 = vld [vmem:[#allocation13 + $0x4a8] sm:$0xff]
    %v4293 = vld [vmem:[#allocation13 + $0x4b0] sm:$0xff]
    %v4294 = vld [vmem:[#allocation13 + $0x4b8] sm:$0xff]
    %v4295 = vld [vmem:[#allocation13 + $0x4c0] sm:$0xff]
    %v4296 = vld [vmem:[#allocation13 + $0x4c8] sm:$0xff]
    %v4297 = vld [vmem:[#allocation13 + $0x4d0] sm:$0xff]
    %v4298 = vld [vmem:[#allocation13 + $0x4d8] sm:$0xff]
    %v4299 = vld [vmem:[#allocation13 + $0x4e0] sm:$0xff]
    %v4300 = vld [vmem:[#allocation13 + $0x4e8] sm:$0xff]
    %v4301 = vld [vmem:[#allocation13 + $0x4f0] sm:$0xff]
    %v4302 = vld [vmem:[#allocation13 + $0x4f8] sm:$0xff]
    %v4303 = vld [vmem:[#allocation13 + $0x500] sm:$0xff]
    %v4304 = vld [vmem:[#allocation13 + $0x508] sm:$0xff]
    %v4305 = vld [vmem:[#allocation13 + $0x510] sm:$0xff]
    %v4306 = vld [vmem:[#allocation13 + $0x518] sm:$0xff]
    %v4307 = vld [vmem:[#allocation13 + $0x520] sm:$0xff]
    %v4308 = vld [vmem:[#allocation13 + $0x528] sm:$0xff]
    %v4309 = vld [vmem:[#allocation13 + $0x530] sm:$0xff]
    %v4310 = vld [vmem:[#allocation13 + $0x538] sm:$0xff]
    %v4311 = vld [vmem:[#allocation13 + $0x540] sm:$0xff]
    %v4312 = vld [vmem:[#allocation13 + $0x548] sm:$0xff]
    %v4313 = vld [vmem:[#allocation13 + $0x550] sm:$0xff]
    %v4314 = vld [vmem:[#allocation13 + $0x558] sm:$0xff]
    %v4315 = vld [vmem:[#allocation13 + $0x560] sm:$0xff]
    %v4316 = vld [vmem:[#allocation13 + $0x568] sm:$0xff]
    %v4317 = vld [vmem:[#allocation13 + $0x570] sm:$0xff]
    %v4318 = vld [vmem:[#allocation13 + $0x578] sm:$0xff]
    %v4319 = vld [vmem:[#allocation13 + $0x580] sm:$0xff]
    %v4320 = vld [vmem:[#allocation13 + $0x588] sm:$0xff]
    %v4321 = vld [vmem:[#allocation13 + $0x590] sm:$0xff]
    %v4322 = vld [vmem:[#allocation13 + $0x598] sm:$0xff]
    %v4323 = vld [vmem:[#allocation13 + $0x5a0] sm:$0xff]
    %v4324 = vld [vmem:[#allocation13 + $0x5a8] sm:$0xff]
    %v4325 = vld [vmem:[#allocation13 + $0x5b0] sm:$0xff]
    %v4326 = vld [vmem:[#allocation13 + $0x5b8] sm:$0xff]
    %v4327 = vld [vmem:[#allocation13 + $0x5c0] sm:$0xff]
    %v4328 = vld [vmem:[#allocation13 + $0x5c8] sm:$0xff]
    %v4329 = vld [vmem:[#allocation13 + $0x5d0] sm:$0xff]
    %v4330 = vld [vmem:[#allocation13 + $0x5d8] sm:$0xff]
    %v4331 = vld [vmem:[#allocation13 + $0x5e0] sm:$0xff]
    %v4332 = vld [vmem:[#allocation13 + $0x5e8] sm:$0xff]
    %v4333 = vld [vmem:[#allocation13 + $0x5f0] sm:$0xff]
    %v4334 = vld [vmem:[#allocation13 + $0x5f8] sm:$0xff]
    %v4335 = vld [vmem:[#allocation13 + $0x600] sm:$0xff]
    %v4336 = vld [vmem:[#allocation13 + $0x608] sm:$0xff]
    %v4337 = vld [vmem:[#allocation13 + $0x610] sm:$0xff]
    %v4338 = vld [vmem:[#allocation13 + $0x618] sm:$0xff]
    %v4339 = vld [vmem:[#allocation13 + $0x620] sm:$0xff]
    %v4340 = vld [vmem:[#allocation13 + $0x628] sm:$0xff]
    %v4341 = vld [vmem:[#allocation13 + $0x630] sm:$0xff]
    %v4342 = vld [vmem:[#allocation13 + $0x638] sm:$0xff]
    %v4343 = vld [vmem:[#allocation13 + $0x640] sm:$0xff]
    %v4344 = vld [vmem:[#allocation13 + $0x648] sm:$0xff]
    %v4345 = vld [vmem:[#allocation13 + $0x650] sm:$0xff]
    %v4346 = vld [vmem:[#allocation13 + $0x658] sm:$0xff]
    %v4347 = vld [vmem:[#allocation13 + $0x660] sm:$0xff]
    %v4348 = vld [vmem:[#allocation13 + $0x668] sm:$0xff]
    %v4349 = vld [vmem:[#allocation13 + $0x670] sm:$0xff]
    %v4350 = vld [vmem:[#allocation13 + $0x678] sm:$0xff]
    %v4351 = vld [vmem:[#allocation13 + $0x680] sm:$0xff]
    %v4352 = vld [vmem:[#allocation13 + $0x688] sm:$0xff]
    %v4353 = vld [vmem:[#allocation13 + $0x690] sm:$0xff]
    %v4354 = vld [vmem:[#allocation13 + $0x698] sm:$0xff]
    %v4355 = vld [vmem:[#allocation13 + $0x6a0] sm:$0xff]
    %v4356 = vld [vmem:[#allocation13 + $0x6a8] sm:$0xff]
    %v4357 = vld [vmem:[#allocation13 + $0x6b0] sm:$0xff]
    %v4358 = vld [vmem:[#allocation13 + $0x6b8] sm:$0xff]
    %v4359 = vld [vmem:[#allocation13 + $0x6c0] sm:$0xff]
    %v4360 = vld [vmem:[#allocation13 + $0x6c8] sm:$0xff]
    %v4361 = vld [vmem:[#allocation13 + $0x6d0] sm:$0xff]
    %v4362 = vld [vmem:[#allocation13 + $0x6d8] sm:$0xff]
    %v4363 = vld [vmem:[#allocation13 + $0x6e0] sm:$0xff]
    %v4364 = vld [vmem:[#allocation13 + $0x6e8] sm:$0xff]
    %v4365 = vld [vmem:[#allocation13 + $0x6f0] sm:$0xff]
    %v4366 = vld [vmem:[#allocation13 + $0x6f8] sm:$0xff]
    %v4367 = vld [vmem:[#allocation13 + $0x700] sm:$0xff]
    %v4368 = vld [vmem:[#allocation13 + $0x708] sm:$0xff]
    %v4369 = vld [vmem:[#allocation13 + $0x710] sm:$0xff]
    %v4370 = vld [vmem:[#allocation13 + $0x718] sm:$0xff]
    %v4371 = vld [vmem:[#allocation13 + $0x720] sm:$0xff]
    %v4372 = vld [vmem:[#allocation13 + $0x728] sm:$0xff]
    %v4373 = vld [vmem:[#allocation13 + $0x730] sm:$0xff]
    %v4374 = vld [vmem:[#allocation13 + $0x738] sm:$0xff]
    %v4375 = vld [vmem:[#allocation13 + $0x740] sm:$0xff]
    %v4376 = vld [vmem:[#allocation13 + $0x748] sm:$0xff]
    %v4377 = vld [vmem:[#allocation13 + $0x750] sm:$0xff]
    %v4378 = vld [vmem:[#allocation13 + $0x758] sm:$0xff]
    %v4379 = vld [vmem:[#allocation13 + $0x760] sm:$0xff]
    %v4380 = vld [vmem:[#allocation13 + $0x768] sm:$0xff]
    %v4381 = vld [vmem:[#allocation13 + $0x770] sm:$0xff]
    %v4382 = vld [vmem:[#allocation13 + $0x778] sm:$0xff]
    %v4383 = vld [vmem:[#allocation13 + $0x780] sm:$0xff]
    %v4384 = vld [vmem:[#allocation13 + $0x788] sm:$0xff]
    %v4385 = vld [vmem:[#allocation13 + $0x790] sm:$0xff]
    %v4386 = vld [vmem:[#allocation13 + $0x798] sm:$0xff]
    %v4387 = vld [vmem:[#allocation13 + $0x7a0] sm:$0xff]
    %v4388 = vld [vmem:[#allocation13 + $0x7a8] sm:$0xff]
    %v4389 = vld [vmem:[#allocation13 + $0x7b0] sm:$0xff]
    %v4390 = vld [vmem:[#allocation13 + $0x7b8] sm:$0xff]
    %v4391 = vld [vmem:[#allocation13 + $0x7c0] sm:$0xff]
    %v4392 = vld [vmem:[#allocation13 + $0x7c8] sm:$0xff]
    %v4393 = vld [vmem:[#allocation13 + $0x7d0] sm:$0xff]
    %v4394 = vld [vmem:[#allocation13 + $0x7d8] sm:$0xff]
    %v4395 = vld [vmem:[#allocation13 + $0x7e0] sm:$0xff]
    %v4396 = vld [vmem:[#allocation13 + $0x7e8] sm:$0xff]
    %v4397 = vld [vmem:[#allocation13 + $0x7f0] sm:$0xff]
    %v4398 = vld [vmem:[#allocation13 + $0x7f8] sm:$0xff]
    %v4399 = vld [vmem:[#allocation13 + $0x800] sm:$0xff]
    %v4400 = vld [vmem:[#allocation13 + $0x808] sm:$0xff]
    %v4401 = vld [vmem:[#allocation13 + $0x810] sm:$0xff]
    %v4402 = vld [vmem:[#allocation13 + $0x818] sm:$0xff]
    %v4403 = vld [vmem:[#allocation13 + $0x820] sm:$0xff]
    %v4404 = vld [vmem:[#allocation13 + $0x828] sm:$0xff]
    %v4405 = vld [vmem:[#allocation13 + $0x830] sm:$0xff]
    %v4406 = vld [vmem:[#allocation13 + $0x838] sm:$0xff]
    %v4407 = vld [vmem:[#allocation13 + $0x840] sm:$0xff]
    %v4408 = vld [vmem:[#allocation13 + $0x848] sm:$0xff]
    %v4409 = vld [vmem:[#allocation13 + $0x850] sm:$0xff]
    %v4410 = vld [vmem:[#allocation13 + $0x858] sm:$0xff]
    %v4411 = vld [vmem:[#allocation13 + $0x860] sm:$0xff]
    %v4412 = vld [vmem:[#allocation13 + $0x868] sm:$0xff]
    %v4413 = vld [vmem:[#allocation13 + $0x870] sm:$0xff]
    %v4414 = vld [vmem:[#allocation13 + $0x878] sm:$0xff]
    %v4415 = vld [vmem:[#allocation13 + $0x880] sm:$0xff]
    %v4416 = vld [vmem:[#allocation13 + $0x888] sm:$0xff]
    %v4417 = vld [vmem:[#allocation13 + $0x890] sm:$0xff]
    %v4418 = vld [vmem:[#allocation13 + $0x898] sm:$0xff]
    %v4419 = vld [vmem:[#allocation13 + $0x8a0] sm:$0xff]
    %v4420 = vld [vmem:[#allocation13 + $0x8a8] sm:$0xff]
    %v4421 = vld [vmem:[#allocation13 + $0x8b0] sm:$0xff]
    %v4422 = vld [vmem:[#allocation13 + $0x8b8] sm:$0xff]
    %v4423 = vld [vmem:[#allocation13 + $0x8c0] sm:$0xff]
    %v4424 = vld [vmem:[#allocation13 + $0x8c8] sm:$0xff]
    %v4425 = vld [vmem:[#allocation13 + $0x8d0] sm:$0xff]
    %v4426 = vld [vmem:[#allocation13 + $0x8d8] sm:$0xff]
    %v4427 = vld [vmem:[#allocation13 + $0x8e0] sm:$0xff]
    %v4428 = vld [vmem:[#allocation13 + $0x8e8] sm:$0xff]
    %v4429 = vld [vmem:[#allocation13 + $0x8f0] sm:$0xff]
    %v4430 = vld [vmem:[#allocation13 + $0x8f8] sm:$0xff]
    %v4431 = vld [vmem:[#allocation13 + $0x900] sm:$0xff]
    %v4432 = vld [vmem:[#allocation13 + $0x908] sm:$0xff]
    %v4433 = vld [vmem:[#allocation13 + $0x910] sm:$0xff]
    %v4434 = vld [vmem:[#allocation13 + $0x918] sm:$0xff]
    %v4435 = vld [vmem:[#allocation13 + $0x920] sm:$0xff]
    %v4436 = vld [vmem:[#allocation13 + $0x928] sm:$0xff]
    %v4437 = vld [vmem:[#allocation13 + $0x930] sm:$0xff]
    %v4438 = vld [vmem:[#allocation13 + $0x938] sm:$0xff]
    %v4439 = vld [vmem:[#allocation13 + $0x940] sm:$0xff]
    %v4440 = vld [vmem:[#allocation13 + $0x948] sm:$0xff]
    %v4441 = vld [vmem:[#allocation13 + $0x950] sm:$0xff]
    %v4442 = vld [vmem:[#allocation13 + $0x958] sm:$0xff]
    %v4443 = vld [vmem:[#allocation13 + $0x960] sm:$0xff]
    %v4444 = vld [vmem:[#allocation13 + $0x968] sm:$0xff]
    %v4445 = vld [vmem:[#allocation13 + $0x970] sm:$0xff]
    %v4446 = vld [vmem:[#allocation13 + $0x978] sm:$0xff]
    %v4447 = vld [vmem:[#allocation13 + $0x980] sm:$0xff]
    %v4448 = vld [vmem:[#allocation13 + $0x988] sm:$0xff]
    %v4449 = vld [vmem:[#allocation13 + $0x990] sm:$0xff]
    %v4450 = vld [vmem:[#allocation13 + $0x998] sm:$0xff]
    %v4451 = vld [vmem:[#allocation13 + $0x9a0] sm:$0xff]
    %v4452 = vld [vmem:[#allocation13 + $0x9a8] sm:$0xff]
    %v4453 = vld [vmem:[#allocation13 + $0x9b0] sm:$0xff]
    %v4454 = vld [vmem:[#allocation13 + $0x9b8] sm:$0xff]
    %v4455 = vld [vmem:[#allocation13 + $0x9c0] sm:$0xff]
    %v4456 = vld [vmem:[#allocation13 + $0x9c8] sm:$0xff]
    %v4457 = vld [vmem:[#allocation13 + $0x9d0] sm:$0xff]
    %v4458 = vld [vmem:[#allocation13 + $0x9d8] sm:$0xff]
    %v4459 = vld [vmem:[#allocation13 + $0x9e0] sm:$0xff]
    %v4460 = vld [vmem:[#allocation13 + $0x9e8] sm:$0xff]
    %v4461 = vld [vmem:[#allocation13 + $0x9f0] sm:$0xff]
    %v4462 = vld [vmem:[#allocation13 + $0x9f8] sm:$0xff]
    %v4463 = vld [vmem:[#allocation13 + $0xa00] sm:$0xff]
    %v4464 = vld [vmem:[#allocation13 + $0xa08] sm:$0xff]
    %v4465 = vld [vmem:[#allocation13 + $0xa10] sm:$0xff]
    %v4466 = vld [vmem:[#allocation13 + $0xa18] sm:$0xff]
    %v4467 = vld [vmem:[#allocation13 + $0xa20] sm:$0xff]
    %v4468 = vld [vmem:[#allocation13 + $0xa28] sm:$0xff]
    %v4469 = vld [vmem:[#allocation13 + $0xa30] sm:$0xff]
    %v4470 = vld [vmem:[#allocation13 + $0xa38] sm:$0xff]
    %v4471 = vld [vmem:[#allocation13 + $0xa40] sm:$0xff]
    %v4472 = vld [vmem:[#allocation13 + $0xa48] sm:$0xff]
    %v4473 = vld [vmem:[#allocation13 + $0xa50] sm:$0xff]
    %v4474 = vld [vmem:[#allocation13 + $0xa58] sm:$0xff]
    %v4475 = vld [vmem:[#allocation13 + $0xa60] sm:$0xff]
    %v4476 = vld [vmem:[#allocation13 + $0xa68] sm:$0xff]
    %v4477 = vld [vmem:[#allocation13 + $0xa70] sm:$0xff]
    %v4478 = vld [vmem:[#allocation13 + $0xa78] sm:$0xff]
    %v4479 = vld [vmem:[#allocation13 + $0xa80] sm:$0xff]
    %v4480 = vld [vmem:[#allocation13 + $0xa88] sm:$0xff]
    %v4481 = vld [vmem:[#allocation13 + $0xa90] sm:$0xff]
    %v4482 = vld [vmem:[#allocation13 + $0xa98] sm:$0xff]
    %v4483 = vld [vmem:[#allocation13 + $0xaa0] sm:$0xff]
    %v4484 = vld [vmem:[#allocation13 + $0xaa8] sm:$0xff]
    %v4485 = vld [vmem:[#allocation13 + $0xab0] sm:$0xff]
    %v4486 = vld [vmem:[#allocation13 + $0xab8] sm:$0xff]
    %v4487 = vld [vmem:[#allocation13 + $0xac0] sm:$0xff]
    %v4488 = vld [vmem:[#allocation13 + $0xac8] sm:$0xff]
    %v4489 = vld [vmem:[#allocation13 + $0xad0] sm:$0xff]
    %v4490 = vld [vmem:[#allocation13 + $0xad8] sm:$0xff]
    %v4491 = vld [vmem:[#allocation13 + $0xae0] sm:$0xff]
    %v4492 = vld [vmem:[#allocation13 + $0xae8] sm:$0xff]
    %v4493 = vld [vmem:[#allocation13 + $0xaf0] sm:$0xff]
    %v4494 = vld [vmem:[#allocation13 + $0xaf8] sm:$0xff]
    %v4495 = vld [vmem:[#allocation13 + $0xb00] sm:$0xff]
    %v4496 = vld [vmem:[#allocation13 + $0xb08] sm:$0xff]
    %v4497 = vld [vmem:[#allocation13 + $0xb10] sm:$0xff]
    %v4498 = vld [vmem:[#allocation13 + $0xb18] sm:$0xff]
    %v4499 = vld [vmem:[#allocation13 + $0xb20] sm:$0xff]
    %v4500 = vld [vmem:[#allocation13 + $0xb28] sm:$0xff]
    %v4501 = vld [vmem:[#allocation13 + $0xb30] sm:$0xff]
    %v4502 = vld [vmem:[#allocation13 + $0xb38] sm:$0xff]
    %v4503 = vld [vmem:[#allocation13 + $0xb40] sm:$0xff]
    %v4504 = vld [vmem:[#allocation13 + $0xb48] sm:$0xff]
    %v4505 = vld [vmem:[#allocation13 + $0xb50] sm:$0xff]
    %v4506 = vld [vmem:[#allocation13 + $0xb58] sm:$0xff]
    %v4507 = vld [vmem:[#allocation13 + $0xb60] sm:$0xff]
    %v4508 = vld [vmem:[#allocation13 + $0xb68] sm:$0xff]
    %v4509 = vld [vmem:[#allocation13 + $0xb70] sm:$0xff]
    %v4510 = vld [vmem:[#allocation13 + $0xb78] sm:$0xff]
    %v4511 = vld [vmem:[#allocation13 + $0xb80] sm:$0xff]
    %v4512 = vld [vmem:[#allocation13 + $0xb88] sm:$0xff]
    %v4513 = vld [vmem:[#allocation13 + $0xb90] sm:$0xff]
    %v4514 = vld [vmem:[#allocation13 + $0xb98] sm:$0xff]
    %v4515 = vld [vmem:[#allocation13 + $0xba0] sm:$0xff]
    %v4516 = vld [vmem:[#allocation13 + $0xba8] sm:$0xff]
    %v4517 = vld [vmem:[#allocation13 + $0xbb0] sm:$0xff]
    %v4518 = vld [vmem:[#allocation13 + $0xbb8] sm:$0xff]
    %v4519 = vld [vmem:[#allocation13 + $0xbc0] sm:$0xff]
    %v4520 = vld [vmem:[#allocation13 + $0xbc8] sm:$0xff]
    %v4521 = vld [vmem:[#allocation13 + $0xbd0] sm:$0xff]
    %v4522 = vld [vmem:[#allocation13 + $0xbd8] sm:$0xff]
    %v4523 = vld [vmem:[#allocation13 + $0xbe0] sm:$0xff]
    %v4524 = vld [vmem:[#allocation13 + $0xbe8] sm:$0xff]
    %v4525 = vld [vmem:[#allocation13 + $0xbf0] sm:$0xff]
    %v4526 = vld [vmem:[#allocation13 + $0xbf8] sm:$0xff]
    %v4527 = vld [vmem:[#allocation13 + $0xc00] sm:$0xff]
    %v4528 = vld [vmem:[#allocation13 + $0xc08] sm:$0xff]
    %v4529 = vld [vmem:[#allocation13 + $0xc10] sm:$0xff]
    %v4530 = vld [vmem:[#allocation13 + $0xc18] sm:$0xff]
    %v4531 = vld [vmem:[#allocation13 + $0xc20] sm:$0xff]
    %v4532 = vld [vmem:[#allocation13 + $0xc28] sm:$0xff]
    %v4533 = vld [vmem:[#allocation13 + $0xc30] sm:$0xff]
    %v4534 = vld [vmem:[#allocation13 + $0xc38] sm:$0xff]
    %v4535 = vld [vmem:[#allocation13 + $0xc40] sm:$0xff]
    %v4536 = vld [vmem:[#allocation13 + $0xc48] sm:$0xff]
    %v4537 = vld [vmem:[#allocation13 + $0xc50] sm:$0xff]
    %v4538 = vld [vmem:[#allocation13 + $0xc58] sm:$0xff]
    %v4539 = vld [vmem:[#allocation13 + $0xc60] sm:$0xff]
    %v4540 = vld [vmem:[#allocation13 + $0xc68] sm:$0xff]
    %v4541 = vld [vmem:[#allocation13 + $0xc70] sm:$0xff]
    %v4542 = vld [vmem:[#allocation13 + $0xc78] sm:$0xff]
    %v4543 = vld [vmem:[#allocation13 + $0xc80] sm:$0xff]
    %v4544 = vld [vmem:[#allocation13 + $0xc88] sm:$0xff]
    %v4545 = vld [vmem:[#allocation13 + $0xc90] sm:$0xff]
    %v4546 = vld [vmem:[#allocation13 + $0xc98] sm:$0xff]
    %v4547 = vld [vmem:[#allocation13 + $0xca0] sm:$0xff]
    %v4548 = vld [vmem:[#allocation13 + $0xca8] sm:$0xff]
    %v4549 = vld [vmem:[#allocation13 + $0xcb0] sm:$0xff]
    %v4550 = vld [vmem:[#allocation13 + $0xcb8] sm:$0xff]
    %v4551 = vld [vmem:[#allocation13 + $0xcc0] sm:$0xff]
    %v4552 = vld [vmem:[#allocation13 + $0xcc8] sm:$0xff]
    %v4553 = vld [vmem:[#allocation13 + $0xcd0] sm:$0xff]
    %v4554 = vld [vmem:[#allocation13 + $0xcd8] sm:$0xff]
    %v4555 = vld [vmem:[#allocation13 + $0xce0] sm:$0xff]
    %v4556 = vld [vmem:[#allocation13 + $0xce8] sm:$0xff]
    %v4557 = vld [vmem:[#allocation13 + $0xcf0] sm:$0xff]
    %v4558 = vld [vmem:[#allocation13 + $0xcf8] sm:$0xff]
    %v4559 = vld [vmem:[#allocation13 + $0xd00] sm:$0xff]
    %v4560 = vld [vmem:[#allocation13 + $0xd08] sm:$0xff]
    %v4561 = vld [vmem:[#allocation13 + $0xd10] sm:$0xff]
    %v4562 = vld [vmem:[#allocation13 + $0xd18] sm:$0xff]
    %v4563 = vld [vmem:[#allocation13 + $0xd20] sm:$0xff]
    %v4564 = vld [vmem:[#allocation13 + $0xd28] sm:$0xff]
    %v4565 = vld [vmem:[#allocation13 + $0xd30] sm:$0xff]
    %v4566 = vld [vmem:[#allocation13 + $0xd38] sm:$0xff]
    %v4567 = vld [vmem:[#allocation13 + $0xd40] sm:$0xff]
    %v4568 = vld [vmem:[#allocation13 + $0xd48] sm:$0xff]
    %v4569 = vld [vmem:[#allocation13 + $0xd50] sm:$0xff]
    %v4570 = vld [vmem:[#allocation13 + $0xd58] sm:$0xff]
    %v4571 = vld [vmem:[#allocation13 + $0xd60] sm:$0xff]
    %v4572 = vld [vmem:[#allocation13 + $0xd68] sm:$0xff]
    %v4573 = vld [vmem:[#allocation13 + $0xd70] sm:$0xff]
    %v4574 = vld [vmem:[#allocation13 + $0xd78] sm:$0xff]
    %v4575 = vld [vmem:[#allocation13 + $0xd80] sm:$0xff]
    %v4576 = vld [vmem:[#allocation13 + $0xd88] sm:$0xff]
    %v4577 = vld [vmem:[#allocation13 + $0xd90] sm:$0xff]
    %v4578 = vld [vmem:[#allocation13 + $0xd98] sm:$0xff]
    %v4579 = vld [vmem:[#allocation13 + $0xda0] sm:$0xff]
    %v4580 = vld [vmem:[#allocation13 + $0xda8] sm:$0xff]
    %v4581 = vld [vmem:[#allocation13 + $0xdb0] sm:$0xff]
    %v4582 = vld [vmem:[#allocation13 + $0xdb8] sm:$0xff]
    %v4583 = vld [vmem:[#allocation13 + $0xdc0] sm:$0xff]
    %v4584 = vld [vmem:[#allocation13 + $0xdc8] sm:$0xff]
    %v4585 = vld [vmem:[#allocation13 + $0xdd0] sm:$0xff]
    %v4586 = vld [vmem:[#allocation13 + $0xdd8] sm:$0xff]
    %v4587 = vld [vmem:[#allocation13 + $0xde0] sm:$0xff]
    %v4588 = vld [vmem:[#allocation13 + $0xde8] sm:$0xff]
    %v4589 = vld [vmem:[#allocation13 + $0xdf0] sm:$0xff]
    %v4590 = vld [vmem:[#allocation13 + $0xdf8] sm:$0xff]
    %v4591 = vld [vmem:[#allocation13 + $0xe00] sm:$0xff]
    %v4592 = vld [vmem:[#allocation13 + $0xe08] sm:$0xff]
    %v4593 = vld [vmem:[#allocation13 + $0xe10] sm:$0xff]
    %v4594 = vld [vmem:[#allocation13 + $0xe18] sm:$0xff]
    %v4595 = vld [vmem:[#allocation13 + $0xe20] sm:$0xff]
    %v4596 = vld [vmem:[#allocation13 + $0xe28] sm:$0xff]
    %v4597 = vld [vmem:[#allocation13 + $0xe30] sm:$0xff]
    %v4598 = vld [vmem:[#allocation13 + $0xe38] sm:$0xff]
    %v4599 = vld [vmem:[#allocation13 + $0xe40] sm:$0xff]
    %v4600 = vld [vmem:[#allocation13 + $0xe48] sm:$0xff]
    %v4601 = vld [vmem:[#allocation13 + $0xe50] sm:$0xff]
    %v4602 = vld [vmem:[#allocation13 + $0xe58] sm:$0xff]
    %v4603 = vld [vmem:[#allocation13 + $0xe60] sm:$0xff]
    %v4604 = vld [vmem:[#allocation13 + $0xe68] sm:$0xff]
    %v4605 = vld [vmem:[#allocation13 + $0xe70] sm:$0xff]
    %v4606 = vld [vmem:[#allocation13 + $0xe78] sm:$0xff]
    %v4607 = vld [vmem:[#allocation13 + $0xe80] sm:$0xff]
    %v4608 = vld [vmem:[#allocation13 + $0xe88] sm:$0xff]
    %v4609 = vld [vmem:[#allocation13 + $0xe90] sm:$0xff]
    %v4610 = vld [vmem:[#allocation13 + $0xe98] sm:$0xff]
    %v4611 = vld [vmem:[#allocation13 + $0xea0] sm:$0xff]
    %v4612 = vld [vmem:[#allocation13 + $0xea8] sm:$0xff]
    %v4613 = vld [vmem:[#allocation13 + $0xeb0] sm:$0xff]
    %v4614 = vld [vmem:[#allocation13 + $0xeb8] sm:$0xff]
    %v4615 = vld [vmem:[#allocation13 + $0xec0] sm:$0xff]
    %v4616 = vld [vmem:[#allocation13 + $0xec8] sm:$0xff]
    %v4617 = vld [vmem:[#allocation13 + $0xed0] sm:$0xff]
    %v4618 = vld [vmem:[#allocation13 + $0xed8] sm:$0xff]
    %v4619 = vld [vmem:[#allocation13 + $0xee0] sm:$0xff]
    %v4620 = vld [vmem:[#allocation13 + $0xee8] sm:$0xff]
    %v4621 = vld [vmem:[#allocation13 + $0xef0] sm:$0xff]
    %v4622 = vld [vmem:[#allocation13 + $0xef8] sm:$0xff]
    %v4623 = vld [vmem:[#allocation13 + $0xf00] sm:$0xff]
    %v4624 = vld [vmem:[#allocation13 + $0xf08] sm:$0xff]
    %v4625 = vld [vmem:[#allocation13 + $0xf10] sm:$0xff]
    %v4626 = vld [vmem:[#allocation13 + $0xf18] sm:$0xff]
    %v4627 = vld [vmem:[#allocation13 + $0xf20] sm:$0xff]
    %v4628 = vld [vmem:[#allocation13 + $0xf28] sm:$0xff]
    %v4629 = vld [vmem:[#allocation13 + $0xf30] sm:$0xff]
    %v4630 = vld [vmem:[#allocation13 + $0xf38] sm:$0xff]
    %v4631 = vld [vmem:[#allocation13 + $0xf40] sm:$0xff]
    %v4632 = vld [vmem:[#allocation13 + $0xf48] sm:$0xff]
    %v4633 = vld [vmem:[#allocation13 + $0xf50] sm:$0xff]
    %v4634 = vld [vmem:[#allocation13 + $0xf58] sm:$0xff]
    %v4635 = vld [vmem:[#allocation13 + $0xf60] sm:$0xff]
    %v4636 = vld [vmem:[#allocation13 + $0xf68] sm:$0xff]
    %v4637 = vld [vmem:[#allocation13 + $0xf70] sm:$0xff]
    %v4638 = vld [vmem:[#allocation13 + $0xf78] sm:$0xff]
    %v4639 = vld [vmem:[#allocation13 + $0xf80] sm:$0xff]
    %v4640 = vld [vmem:[#allocation13 + $0xf88] sm:$0xff]
    %v4641 = vld [vmem:[#allocation13 + $0xf90] sm:$0xff]
    %v4642 = vld [vmem:[#allocation13 + $0xf98] sm:$0xff]
    %v4643 = vld [vmem:[#allocation13 + $0xfa0] sm:$0xff]
    %v4644 = vld [vmem:[#allocation13 + $0xfa8] sm:$0xff]
    %v4645 = vld [vmem:[#allocation13 + $0xfb0] sm:$0xff]
    %v4646 = vld [vmem:[#allocation13 + $0xfb8] sm:$0xff]
    %v4647 = vld [vmem:[#allocation13 + $0xfc0] sm:$0xff]
    %v4648 = vld [vmem:[#allocation13 + $0xfc8] sm:$0xff]
    %v4649 = vld [vmem:[#allocation13 + $0xfd0] sm:$0xff]
    %v4650 = vld [vmem:[#allocation13 + $0xfd8] sm:$0xff]
    %v4651 = vld [vmem:[#allocation13 + $0xfe0] sm:$0xff]
    %v4652 = vld [vmem:[#allocation13 + $0xfe8] sm:$0xff]
    %v4653 = vld [vmem:[#allocation13 + $0xff0] sm:$0xff]
    %v4654 = vld [vmem:[#allocation13 + $0xff8] sm:$0xff]
    %v4655 = vld [vmem:[#allocation13 + $0x1000] sm:$0xff]
    %v4656 = vld [vmem:[#allocation13 + $0x1008] sm:$0xff]
    %v4657 = vld [vmem:[#allocation13 + $0x1010] sm:$0xff]
    %v4658 = vld [vmem:[#allocation13 + $0x1018] sm:$0xff]
    %v4659 = vld [vmem:[#allocation13 + $0x1020] sm:$0xff]
    %v4660 = vld [vmem:[#allocation13 + $0x1028] sm:$0xff]
    %v4661 = vld [vmem:[#allocation13 + $0x1030] sm:$0xff]
    %v4662 = vld [vmem:[#allocation13 + $0x1038] sm:$0xff]
    %v4663 = vld [vmem:[#allocation13 + $0x1040] sm:$0xff]
    %v4664 = vld [vmem:[#allocation13 + $0x1048] sm:$0xff]
    %v4665 = vld [vmem:[#allocation13 + $0x1050] sm:$0xff]
    %v4666 = vld [vmem:[#allocation13 + $0x1058] sm:$0xff]
    %v4667 = vld [vmem:[#allocation13 + $0x1060] sm:$0xff]
    %v4668 = vld [vmem:[#allocation13 + $0x1068] sm:$0xff]
    %v4669 = vld [vmem:[#allocation13 + $0x1070] sm:$0xff]
    %v4670 = vld [vmem:[#allocation13 + $0x1078] sm:$0xff]
    %v4671 = vld [vmem:[#allocation13 + $0x1080] sm:$0xff]
    %v4672 = vld [vmem:[#allocation13 + $0x1088] sm:$0xff]
    %v4673 = vld [vmem:[#allocation13 + $0x1090] sm:$0xff]
    %v4674 = vld [vmem:[#allocation13 + $0x1098] sm:$0xff]
    %v4675 = vld [vmem:[#allocation13 + $0x10a0] sm:$0xff]
    %v4676 = vld [vmem:[#allocation13 + $0x10a8] sm:$0xff]
    %v4677 = vld [vmem:[#allocation13 + $0x10b0] sm:$0xff]
    %v4678 = vld [vmem:[#allocation13 + $0x10b8] sm:$0xff]
    %v4679 = vld [vmem:[#allocation13 + $0x10c0] sm:$0xff]
    %v4680 = vld [vmem:[#allocation13 + $0x10c8] sm:$0xff]
    %v4681 = vld [vmem:[#allocation13 + $0x10d0] sm:$0xff]
    %v4682 = vld [vmem:[#allocation13 + $0x10d8] sm:$0xff]
    %v4683 = vld [vmem:[#allocation13 + $0x10e0] sm:$0xff]
    %v4684 = vld [vmem:[#allocation13 + $0x10e8] sm:$0xff]
    %v4685 = vld [vmem:[#allocation13 + $0x10f0] sm:$0xff]
    %v4686 = vld [vmem:[#allocation13 + $0x10f8] sm:$0xff]
    %v4687 = vld [vmem:[#allocation13 + $0x1100] sm:$0xff]
    %v4688 = vld [vmem:[#allocation13 + $0x1108] sm:$0xff]
    %v4689 = vld [vmem:[#allocation13 + $0x1110] sm:$0xff]
    %v4690 = vld [vmem:[#allocation13 + $0x1118] sm:$0xff]
    %v4691 = vld [vmem:[#allocation13 + $0x1120] sm:$0xff]
    %v4692 = vld [vmem:[#allocation13 + $0x1128] sm:$0xff]
    %v4693 = vld [vmem:[#allocation13 + $0x1130] sm:$0xff]
    %v4694 = vld [vmem:[#allocation13 + $0x1138] sm:$0xff]
    %v4695 = vld [vmem:[#allocation13 + $0x1140] sm:$0xff]
    %v4696 = vld [vmem:[#allocation13 + $0x1148] sm:$0xff]
    %v4697 = vld [vmem:[#allocation13 + $0x1150] sm:$0xff]
    %v4698 = vld [vmem:[#allocation13 + $0x1158] sm:$0xff]
    %v4699 = vld [vmem:[#allocation13 + $0x1160] sm:$0xff]
    %v4700 = vld [vmem:[#allocation13 + $0x1168] sm:$0xff]
    %v4701 = vld [vmem:[#allocation13 + $0x1170] sm:$0xff]
    %v4702 = vld [vmem:[#allocation13 + $0x1178] sm:$0xff]
    %v4703 = vld [vmem:[#allocation13 + $0x1180] sm:$0xff]
    %v4704 = vld [vmem:[#allocation13 + $0x1188] sm:$0xff]
    %v4705 = vld [vmem:[#allocation13 + $0x1190] sm:$0xff]
    %v4706 = vld [vmem:[#allocation13 + $0x1198] sm:$0xff]
    %v4707 = vld [vmem:[#allocation13 + $0x11a0] sm:$0xff]
    %v4708 = vld [vmem:[#allocation13 + $0x11a8] sm:$0xff]
    %v4709 = vld [vmem:[#allocation13 + $0x11b0] sm:$0xff]
    %v4710 = vld [vmem:[#allocation13 + $0x11b8] sm:$0xff]
    %v4711 = vld [vmem:[#allocation13 + $0x11c0] sm:$0xff]
    %v4712 = vld [vmem:[#allocation13 + $0x11c8] sm:$0xff]
    %v4713 = vld [vmem:[#allocation13 + $0x11d0] sm:$0xff]
    %v4714 = vld [vmem:[#allocation13 + $0x11d8] sm:$0xff]
    %v4715 = vld [vmem:[#allocation13 + $0x11e0] sm:$0xff]
    %v4716 = vld [vmem:[#allocation13 + $0x11e8] sm:$0xff]
    %v4717 = vld [vmem:[#allocation13 + $0x11f0] sm:$0xff]
    %v4718 = vld [vmem:[#allocation13 + $0x11f8] sm:$0xff]
    %v4719 = vld [vmem:[#allocation13 + $0x1200] sm:$0xff]
    %v4720 = vld [vmem:[#allocation13 + $0x1208] sm:$0xff]
    %v4721 = vld [vmem:[#allocation13 + $0x1210] sm:$0xff]
    %v4722 = vld [vmem:[#allocation13 + $0x1218] sm:$0xff]
    %v4723 = vld [vmem:[#allocation13 + $0x1220] sm:$0xff]
    %v4724 = vld [vmem:[#allocation13 + $0x1228] sm:$0xff]
    %v4725 = vld [vmem:[#allocation13 + $0x1230] sm:$0xff]
    %v4726 = vld [vmem:[#allocation13 + $0x1238] sm:$0xff]
    %v4727 = vld [vmem:[#allocation13 + $0x1240] sm:$0xff]
    %v4728 = vld [vmem:[#allocation13 + $0x1248] sm:$0xff]
    %v4729 = vld [vmem:[#allocation13 + $0x1250] sm:$0xff]
    %v4730 = vld [vmem:[#allocation13 + $0x1258] sm:$0xff]
    %v4731 = vld [vmem:[#allocation13 + $0x1260] sm:$0xff]
    %v4732 = vld [vmem:[#allocation13 + $0x1268] sm:$0xff]
    %v4733 = vld [vmem:[#allocation13 + $0x1270] sm:$0xff]
    %v4734 = vld [vmem:[#allocation13 + $0x1278] sm:$0xff]
    %v4735 = vld [vmem:[#allocation13 + $0x1280] sm:$0xff]
    %v4736 = vld [vmem:[#allocation13 + $0x1288] sm:$0xff]
    %v4737 = vld [vmem:[#allocation13 + $0x1290] sm:$0xff]
    %v4738 = vld [vmem:[#allocation13 + $0x1298] sm:$0xff]
    %v4739 = vld [vmem:[#allocation13 + $0x12a0] sm:$0xff]
    %v4740 = vld [vmem:[#allocation13 + $0x12a8] sm:$0xff]
    %v4741 = vld [vmem:[#allocation13 + $0x12b0] sm:$0xff]
    %v4742 = vld [vmem:[#allocation13 + $0x12b8] sm:$0xff]
    %v4743 = vld [vmem:[#allocation13 + $0x12c0] sm:$0xff]
    %v4744 = vld [vmem:[#allocation13 + $0x12c8] sm:$0xff]
    %v4745 = vld [vmem:[#allocation13 + $0x12d0] sm:$0xff]
    %v4746 = vld [vmem:[#allocation13 + $0x12d8] sm:$0xff]
    %v4747 = vld [vmem:[#allocation13 + $0x12e0] sm:$0xff]
    %v4748 = vld [vmem:[#allocation13 + $0x12e8] sm:$0xff]
    %v4749 = vld [vmem:[#allocation13 + $0x12f0] sm:$0xff]
    %v4750 = vld [vmem:[#allocation13 + $0x12f8] sm:$0xff]
    %v4751 = vld [vmem:[#allocation13 + $0x1300] sm:$0xff]
    %v4752 = vld [vmem:[#allocation13 + $0x1308] sm:$0xff]
    %v4753 = vld [vmem:[#allocation13 + $0x1310] sm:$0xff]
    %v4754 = vld [vmem:[#allocation13 + $0x1318] sm:$0xff]
    %v4755 = vld [vmem:[#allocation13 + $0x1320] sm:$0xff]
    %v4756 = vld [vmem:[#allocation13 + $0x1328] sm:$0xff]
    %v4757 = vld [vmem:[#allocation13 + $0x1330] sm:$0xff]
    %v4758 = vld [vmem:[#allocation13 + $0x1338] sm:$0xff]
    %v4759 = vld [vmem:[#allocation13 + $0x1340] sm:$0xff]
    %v4760 = vld [vmem:[#allocation13 + $0x1348] sm:$0xff]
    %v4761 = vld [vmem:[#allocation13 + $0x1350] sm:$0xff]
    %v4762 = vld [vmem:[#allocation13 + $0x1358] sm:$0xff]
    %v4763 = vld [vmem:[#allocation13 + $0x1360] sm:$0xff]
    %v4764 = vld [vmem:[#allocation13 + $0x1368] sm:$0xff]
    %v4765 = vld [vmem:[#allocation13 + $0x1370] sm:$0xff]
    %v4766 = vld [vmem:[#allocation13 + $0x1378] sm:$0xff]
    %v4767 = vld [vmem:[#allocation13 + $0x1380] sm:$0xff]
    %v4768 = vld [vmem:[#allocation13 + $0x1388] sm:$0xff]
    %v4769 = vld [vmem:[#allocation13 + $0x1390] sm:$0xff]
    %v4770 = vld [vmem:[#allocation13 + $0x1398] sm:$0xff]
    %v4771 = vld [vmem:[#allocation13 + $0x13a0] sm:$0xff]
    %v4772 = vld [vmem:[#allocation13 + $0x13a8] sm:$0xff]
    %v4773 = vld [vmem:[#allocation13 + $0x13b0] sm:$0xff]
    %v4774 = vld [vmem:[#allocation13 + $0x13b8] sm:$0xff]
    %v4775 = vld [vmem:[#allocation13 + $0x13c0] sm:$0xff]
    %v4776 = vld [vmem:[#allocation13 + $0x13c8] sm:$0xff]
    %v4777 = vld [vmem:[#allocation13 + $0x13d0] sm:$0xff]
    %v4778 = vld [vmem:[#allocation13 + $0x13d8] sm:$0xff]
    %v4779 = vld [vmem:[#allocation13 + $0x13e0] sm:$0xff]
    %v4780 = vld [vmem:[#allocation13 + $0x13e8] sm:$0xff]
    %v4781 = vld [vmem:[#allocation13 + $0x13f0] sm:$0xff]
    %v4782 = vld [vmem:[#allocation13 + $0x13f8] sm:$0xff]
    %v4783 = vld [vmem:[#allocation13 + $0x1400] sm:$0xff]
    %v4784 = vld [vmem:[#allocation13 + $0x1408] sm:$0xff]
    %v4785 = vld [vmem:[#allocation13 + $0x1410] sm:$0xff]
    %v4786 = vld [vmem:[#allocation13 + $0x1418] sm:$0xff]
    %v4787 = vld [vmem:[#allocation13 + $0x1420] sm:$0xff]
    %v4788 = vld [vmem:[#allocation13 + $0x1428] sm:$0xff]
    %v4789 = vld [vmem:[#allocation13 + $0x1430] sm:$0xff]
    %v4790 = vld [vmem:[#allocation13 + $0x1438] sm:$0xff]
    %v4791 = vld [vmem:[#allocation13 + $0x1440] sm:$0xff]
    %v4792 = vld [vmem:[#allocation13 + $0x1448] sm:$0xff]
    %v4793 = vld [vmem:[#allocation13 + $0x1450] sm:$0xff]
    %v4794 = vld [vmem:[#allocation13 + $0x1458] sm:$0xff]
    %v4795 = vld [vmem:[#allocation13 + $0x1460] sm:$0xff]
    %v4796 = vld [vmem:[#allocation13 + $0x1468] sm:$0xff]
    %v4797 = vld [vmem:[#allocation13 + $0x1470] sm:$0xff]
    %v4798 = vld [vmem:[#allocation13 + $0x1478] sm:$0xff]
    %v4799 = vld [vmem:[#allocation13 + $0x1480] sm:$0xff]
    %v4800 = vld [vmem:[#allocation13 + $0x1488] sm:$0xff]
    %v4801 = vld [vmem:[#allocation13 + $0x1490] sm:$0xff]
    %v4802 = vld [vmem:[#allocation13 + $0x1498] sm:$0xff]
    %v4803 = vld [vmem:[#allocation13 + $0x14a0] sm:$0xff]
    %v4804 = vld [vmem:[#allocation13 + $0x14a8] sm:$0xff]
    %v4805 = vld [vmem:[#allocation13 + $0x14b0] sm:$0xff]
    %v4806 = vld [vmem:[#allocation13 + $0x14b8] sm:$0xff]
    %v4807 = vld [vmem:[#allocation13 + $0x14c0] sm:$0xff]
    %v4808 = vld [vmem:[#allocation13 + $0x14c8] sm:$0xff]
    %v4809 = vld [vmem:[#allocation13 + $0x14d0] sm:$0xff]
    %v4810 = vld [vmem:[#allocation13 + $0x14d8] sm:$0xff]
    %v4811 = vld [vmem:[#allocation13 + $0x14e0] sm:$0xff]
    %v4812 = vld [vmem:[#allocation13 + $0x14e8] sm:$0xff]
    %v4813 = vld [vmem:[#allocation13 + $0x14f0] sm:$0xff]
    %v4814 = vld [vmem:[#allocation13 + $0x14f8] sm:$0xff]
    %v4815 = vld [vmem:[#allocation13 + $0x1500] sm:$0xff]
    %v4816 = vld [vmem:[#allocation13 + $0x1508] sm:$0xff]
    %v4817 = vld [vmem:[#allocation13 + $0x1510] sm:$0xff]
    %v4818 = vld [vmem:[#allocation13 + $0x1518] sm:$0xff]
    %v4819 = vld [vmem:[#allocation13 + $0x1520] sm:$0xff]
    %v4820 = vld [vmem:[#allocation13 + $0x1528] sm:$0xff]
    %v4821 = vld [vmem:[#allocation13 + $0x1530] sm:$0xff]
    %v4822 = vld [vmem:[#allocation13 + $0x1538] sm:$0xff]
    %v4823 = vld [vmem:[#allocation13 + $0x1540] sm:$0xff]
    %v4824 = vld [vmem:[#allocation13 + $0x1548] sm:$0xff]
    %v4825 = vld [vmem:[#allocation13 + $0x1550] sm:$0xff]
    %v4826 = vld [vmem:[#allocation13 + $0x1558] sm:$0xff]
    %v4827 = vld [vmem:[#allocation13 + $0x1560] sm:$0xff]
    %v4828 = vld [vmem:[#allocation13 + $0x1568] sm:$0xff]
    %v4829 = vld [vmem:[#allocation13 + $0x1570] sm:$0xff]
    %v4830 = vld [vmem:[#allocation13 + $0x1578] sm:$0xff]
    %v4831 = vld [vmem:[#allocation13 + $0x1580] sm:$0xff]
    %v4832 = vld [vmem:[#allocation13 + $0x1588] sm:$0xff]
    %v4833 = vld [vmem:[#allocation13 + $0x1590] sm:$0xff]
    %v4834 = vld [vmem:[#allocation13 + $0x1598] sm:$0xff]
    %v4835 = vld [vmem:[#allocation13 + $0x15a0] sm:$0xff]
    %v4836 = vld [vmem:[#allocation13 + $0x15a8] sm:$0xff]
    %v4837 = vld [vmem:[#allocation13 + $0x15b0] sm:$0xff]
    %v4838 = vld [vmem:[#allocation13 + $0x15b8] sm:$0xff]
    %v4839 = vld [vmem:[#allocation13 + $0x15c0] sm:$0xff]
    %v4840 = vld [vmem:[#allocation13 + $0x15c8] sm:$0xff]
    %v4841 = vld [vmem:[#allocation13 + $0x15d0] sm:$0xff]
    %v4842 = vld [vmem:[#allocation13 + $0x15d8] sm:$0xff]
    %v4843 = vld [vmem:[#allocation13 + $0x15e0] sm:$0xff]
    %v4844 = vld [vmem:[#allocation13 + $0x15e8] sm:$0xff]
    %v4845 = vld [vmem:[#allocation13 + $0x15f0] sm:$0xff]
    %v4846 = vld [vmem:[#allocation13 + $0x15f8] sm:$0xff]
    %v4847 = vld [vmem:[#allocation13 + $0x1600] sm:$0xff]
    %v4848 = vld [vmem:[#allocation13 + $0x1608] sm:$0xff]
    %v4849 = vld [vmem:[#allocation13 + $0x1610] sm:$0xff]
    %v4850 = vld [vmem:[#allocation13 + $0x1618] sm:$0xff]
    %v4851 = vld [vmem:[#allocation13 + $0x1620] sm:$0xff]
    %v4852 = vld [vmem:[#allocation13 + $0x1628] sm:$0xff]
    %v4853 = vld [vmem:[#allocation13 + $0x1630] sm:$0xff]
    %v4854 = vld [vmem:[#allocation13 + $0x1638] sm:$0xff]
    %v4855 = vld [vmem:[#allocation13 + $0x1640] sm:$0xff]
    %v4856 = vld [vmem:[#allocation13 + $0x1648] sm:$0xff]
    %v4857 = vld [vmem:[#allocation13 + $0x1650] sm:$0xff]
    %v4858 = vld [vmem:[#allocation13 + $0x1658] sm:$0xff]
    %v4859 = vld [vmem:[#allocation13 + $0x1660] sm:$0xff]
    %v4860 = vld [vmem:[#allocation13 + $0x1668] sm:$0xff]
    %v4861 = vld [vmem:[#allocation13 + $0x1670] sm:$0xff]
    %v4862 = vld [vmem:[#allocation13 + $0x1678] sm:$0xff]
    %v4863 = vld [vmem:[#allocation13 + $0x1680] sm:$0xff]
    %v4864 = vld [vmem:[#allocation13 + $0x1688] sm:$0xff]
    %v4865 = vld [vmem:[#allocation13 + $0x1690] sm:$0xff]
    %v4866 = vld [vmem:[#allocation13 + $0x1698] sm:$0xff]
    %v4867 = vld [vmem:[#allocation13 + $0x16a0] sm:$0xff]
    %v4868 = vld [vmem:[#allocation13 + $0x16a8] sm:$0xff]
    %v4869 = vld [vmem:[#allocation13 + $0x16b0] sm:$0xff]
    %v4870 = vld [vmem:[#allocation13 + $0x16b8] sm:$0xff]
    %v4871 = vld [vmem:[#allocation13 + $0x16c0] sm:$0xff]
    %v4872 = vld [vmem:[#allocation13 + $0x16c8] sm:$0xff]
    %v4873 = vld [vmem:[#allocation13 + $0x16d0] sm:$0xff]
    %v4874 = vld [vmem:[#allocation13 + $0x16d8] sm:$0xff]
    %v4875 = vld [vmem:[#allocation13 + $0x16e0] sm:$0xff]
    %v4876 = vld [vmem:[#allocation13 + $0x16e8] sm:$0xff]
    %v4877 = vld [vmem:[#allocation13 + $0x16f0] sm:$0xff]
    %v4878 = vld [vmem:[#allocation13 + $0x16f8] sm:$0xff]
    %v4879 = vld [vmem:[#allocation13 + $0x1700] sm:$0xff]
    %v4880 = vld [vmem:[#allocation13 + $0x1708] sm:$0xff]
    %v4881 = vld [vmem:[#allocation13 + $0x1710] sm:$0xff]
    %v4882 = vld [vmem:[#allocation13 + $0x1718] sm:$0xff]
    %v4883 = vld [vmem:[#allocation13 + $0x1720] sm:$0xff]
    %v4884 = vld [vmem:[#allocation13 + $0x1728] sm:$0xff]
    %v4885 = vld [vmem:[#allocation13 + $0x1730] sm:$0xff]
    %v4886 = vld [vmem:[#allocation13 + $0x1738] sm:$0xff]
    %v4887 = vld [vmem:[#allocation13 + $0x1740] sm:$0xff]
    %v4888 = vld [vmem:[#allocation13 + $0x1748] sm:$0xff]
    %v4889 = vld [vmem:[#allocation13 + $0x1750] sm:$0xff]
    %v4890 = vld [vmem:[#allocation13 + $0x1758] sm:$0xff]
    %v4891 = vld [vmem:[#allocation13 + $0x1760] sm:$0xff]
    %v4892 = vld [vmem:[#allocation13 + $0x1768] sm:$0xff]
    %v4893 = vld [vmem:[#allocation13 + $0x1770] sm:$0xff]
    %v4894 = vld [vmem:[#allocation13 + $0x1778] sm:$0xff]
    %v4895 = vld [vmem:[#allocation13 + $0x1780] sm:$0xff]
    %v4896 = vld [vmem:[#allocation13 + $0x1788] sm:$0xff]
    %v4897 = vld [vmem:[#allocation13 + $0x1790] sm:$0xff]
    %v4898 = vld [vmem:[#allocation13 + $0x1798] sm:$0xff]
    %v4899 = vld [vmem:[#allocation13 + $0x17a0] sm:$0xff]
    %v4900 = vld [vmem:[#allocation13 + $0x17a8] sm:$0xff]
    %v4901 = vld [vmem:[#allocation13 + $0x17b0] sm:$0xff]
    %v4902 = vld [vmem:[#allocation13 + $0x17b8] sm:$0xff]
    %v4903 = vld [vmem:[#allocation13 + $0x17c0] sm:$0xff]
    %v4904 = vld [vmem:[#allocation13 + $0x17c8] sm:$0xff]
    %v4905 = vld [vmem:[#allocation13 + $0x17d0] sm:$0xff]
    %v4906 = vld [vmem:[#allocation13 + $0x17d8] sm:$0xff]
    %v4907 = vld [vmem:[#allocation13 + $0x17e0] sm:$0xff]
    %v4908 = vld [vmem:[#allocation13 + $0x17e8] sm:$0xff]
    %v4909 = vld [vmem:[#allocation13 + $0x17f0] sm:$0xff]
    %v4910 = vld [vmem:[#allocation13 + $0x17f8] sm:$0xff]
    %v4911 = vld [vmem:[#allocation14] sm:$0x3f]
    %v4913 = vlaneseq
    %v4914 = vshrl.u32 %v4913, 7
    %v4915 = vsub.s32 0, %v4914
    %v4916 = vrot.slane %v4911, %v4915
    %v4917 = vlaneseq
    %v4918 = vshrl.u32 %v4917, 7
    %v4919 = vsub.s32 1, %v4918
    %v4920 = vrot.slane %v4911, %v4919
    %v4921 = vlaneseq
    %v4922 = vshrl.u32 %v4921, 7
    %v4923 = vsub.s32 2, %v4922
    %v4924 = vrot.slane %v4911, %v4923
    %v4925 = vlaneseq
    %v4926 = vshrl.u32 %v4925, 7
    %v4927 = vsub.s32 3, %v4926
    %v4928 = vrot.slane %v4911, %v4927
    %v4929 = vlaneseq
    %v4930 = vshrl.u32 %v4929, 7
    %v4931 = vsub.s32 4, %v4930
    %v4932 = vrot.slane %v4911, %v4931
    %v4933 = vlaneseq
    %v4934 = vshrl.u32 %v4933, 7
    %v4935 = vsub.s32 5, %v4934
    %v4936 = vrot.slane %v4911, %v4935
    %4943 = vmatprep.subr.mxu0 %v4144
    %4944 = vmatpush1.msra.mxu0 %v4143
    %4945 = vmatprep.subr.mxu0 %v4150
    %4946 = vmatpush1.msra.mxu0 %v4149
    %4947 = vmatprep.subr.mxu0 %v4156
    %4948 = vmatpush1.msra.mxu0 %v4155
    %4949 = vmatprep.subr.mxu0 %v4162
    %4950 = vmatpush1.msra.mxu0 %v4161
    %4951 = vmatprep.subr.mxu0 %v4168
    %4952 = vmatpush1.msra.mxu0 %v4167
    %4953 = vmatprep.subr.mxu0 %v4174
    %4954 = vmatpush1.msra.mxu0 %v4173
    %4955 = vmatprep.subr.mxu0 %v4180
    %4956 = vmatpush1.msra.mxu0 %v4179
    %4957 = vmatprep.subr.mxu0 %v4186
    %4958 = vmatpush1.msra.mxu0 %v4185
    %4959 = vmatprep.subr.mxu0 %v4192
    %4960 = vmatpush1.msra.mxu0 %v4191
    %4961 = vmatprep.subr.mxu0 %v4198
    %4962 = vmatpush1.msra.mxu0 %v4197
    %4963 = vmatprep.subr.mxu0 %v4204
    %4964 = vmatpush1.msra.mxu0 %v4203
    %4965 = vmatprep.subr.mxu0 %v4210
    %4966 = vmatpush1.msra.mxu0 %v4209
    %4967 = vmatprep.subr.mxu0 %v4216
    %4968 = vmatpush1.msra.mxu0 %v4215
    %4969 = vmatprep.subr.mxu0 %v4222
    %4970 = vmatpush1.msra.mxu0 %v4221
    %4971 = vmatprep.subr.mxu0 %v4228
    %4972 = vmatpush1.msra.mxu0 %v4227
    %4973 = vmatprep.subr.mxu0 %v4234
    %4974 = vmatpush1.msra.mxu0 %v4233
    %4975 = vmatprep.subr.mxu0 %v4240
    %4976 = vmatpush1.msra.mxu0 %v4239
    %4977 = vmatprep.subr.mxu0 %v4246
    %4978 = vmatpush1.msra.mxu0 %v4245
    %4979 = vmatprep.subr.mxu0 %v4252
    %4980 = vmatpush1.msra.mxu0 %v4251
    %4981 = vmatprep.subr.mxu0 %v4258
    %4982 = vmatpush1.msra.mxu0 %v4257
    %4983 = vmatprep.subr.mxu0 %v4264
    %4984 = vmatpush1.msra.mxu0 %v4263
    %4985 = vmatprep.subr.mxu0 %v4270
    %4986 = vmatpush1.msra.mxu0 %v4269
    %4987 = vmatprep.subr.mxu0 %v4276
    %4988 = vmatpush1.msra.mxu0 %v4275
    %4989 = vmatprep.subr.mxu0 %v4282
    %4990 = vmatpush1.msra.mxu0 %v4281
    %4991 = vmatprep.subr.mxu0 %v4288
    %4992 = vmatpush1.msra.mxu0 %v4287
    %4993 = vmatprep.subr.mxu0 %v4294
    %4994 = vmatpush1.msra.mxu0 %v4293
    %4995 = vmatprep.subr.mxu0 %v4300
    %4996 = vmatpush1.msra.mxu0 %v4299
    %4997 = vmatprep.subr.mxu0 %v4306
    %4998 = vmatpush1.msra.mxu0 %v4305
    %4999 = vmatprep.subr.mxu0 %v4312
    %5000 = vmatpush1.msra.mxu0 %v4311
    %5001 = vmatprep.subr.mxu0 %v4318
    %5002 = vmatpush1.msra.mxu0 %v4317
    %5003 = vmatprep.subr.mxu0 %v4324
    %5004 = vmatpush1.msra.mxu0 %v4323
    %5005 = vmatprep.subr.mxu0 %v4330
    %5006 = vmatpush1.msra.mxu0 %v4329
    %5007 = vmatprep.mubr.f32.mxu0 %v4136
    %5008 = vmatmul.mubr.f32.gmra.mrb[0].mxu0 %v4135
    %v5009 = vpop.f32.mrb[0].mxu0
    %v5010 = vadd.f32 %v4916, %v5009
    %v5011 = vpop.f32.mrb[0].mxu0
    %v5012 = vadd.f32 %v4920, %v5011
    %5013 = vdwg.mxu0
    %5014 = vmatprep.subr.mxu0 %v4336
    %5015 = vmatpush1.msra.mxu0 %v4335
    %5016 = vmatprep.subr.mxu0 %v4342
    %5017 = vmatpush1.msra.mxu0 %v4341
    %5018 = vmatprep.subr.mxu0 %v4348
    %5019 = vmatpush1.msra.mxu0 %v4347
    %5020 = vmatprep.subr.mxu0 %v4354
    %5021 = vmatpush1.msra.mxu0 %v4353
    %5022 = vmatprep.subr.mxu0 %v4360
    %5023 = vmatpush1.msra.mxu0 %v4359
    %5024 = vmatprep.subr.mxu0 %v4366
    %5025 = vmatpush1.msra.mxu0 %v4365
    %5026 = vmatprep.subr.mxu0 %v4372
    %5027 = vmatpush1.msra.mxu0 %v4371
    %5028 = vmatprep.subr.mxu0 %v4378
    %5029 = vmatpush1.msra.mxu0 %v4377
    %5030 = vmatprep.subr.mxu0 %v4384
    %5031 = vmatpush1.msra.mxu0 %v4383
    %5032 = vmatprep.subr.mxu0 %v4390
    %5033 = vmatpush1.msra.mxu0 %v4389
    %5034 = vmatprep.subr.mxu0 %v4396
    %5035 = vmatpush1.msra.mxu0 %v4395
    %5036 = vmatprep.subr.mxu0 %v4402
    %5037 = vmatpush1.msra.mxu0 %v4401
    %5038 = vmatprep.subr.mxu0 %v4408
    %5039 = vmatpush1.msra.mxu0 %v4407
    %5040 = vmatprep.subr.mxu0 %v4414
    %5041 = vmatpush1.msra.mxu0 %v4413
    %5042 = vmatprep.subr.mxu0 %v4420
    %5043 = vmatpush1.msra.mxu0 %v4419
    %5044 = vmatprep.subr.mxu0 %v4426
    %5045 = vmatpush1.msra.mxu0 %v4425
    %5046 = vmatprep.subr.mxu0 %v4432
    %5047 = vmatpush1.msra.mxu0 %v4431
    %5048 = vmatprep.subr.mxu0 %v4438
    %5049 = vmatpush1.msra.mxu0 %v4437
    %5050 = vmatprep.subr.mxu0 %v4444
    %5051 = vmatpush1.msra.mxu0 %v4443
    %5052 = vmatprep.subr.mxu0 %v4450
    %5053 = vmatpush1.msra.mxu0 %v4449
    %5054 = vmatprep.subr.mxu0 %v4456
    %5055 = vmatpush1.msra.mxu0 %v4455
    %5056 = vmatprep.subr.mxu0 %v4462
    %5057 = vmatpush1.msra.mxu0 %v4461
    %5058 = vmatprep.subr.mxu0 %v4468
    %5059 = vmatpush1.msra.mxu0 %v4467
    %5060 = vmatprep.subr.mxu0 %v4474
    %5061 = vmatpush1.msra.mxu0 %v4473
    %5062 = vmatprep.subr.mxu0 %v4480
    %5063 = vmatpush1.msra.mxu0 %v4479
    %5064 = vmatprep.subr.mxu0 %v4486
    %5065 = vmatpush1.msra.mxu0 %v4485
    %5066 = vmatprep.subr.mxu0 %v4492
    %5067 = vmatpush1.msra.mxu0 %v4491
    %5068 = vmatprep.subr.mxu0 %v4498
    %5069 = vmatpush1.msra.mxu0 %v4497
    %5070 = vmatprep.subr.mxu0 %v4504
    %5071 = vmatpush1.msra.mxu0 %v4503
    %5072 = vmatprep.subr.mxu0 %v4510
    %5073 = vmatpush1.msra.mxu0 %v4509
    %5074 = vmatprep.subr.mxu0 %v4516
    %5075 = vmatpush1.msra.mxu0 %v4515
    %5076 = vmatprep.subr.mxu0 %v4522
    %5077 = vmatpush1.msra.mxu0 %v4521
    %5078 = vmatprep.mubr.f32.mxu0 %v4138
    %5079 = vmatmul.mubr.f32.gmra.mrb[0].mxu0 %v4137
    %v5080 = vpop.f32.mrb[0].mxu0
    %v5081 = vadd.f32 %v5010, %v5080
    %v5082 = vpop.f32.mrb[0].mxu0
    %v5083 = vadd.f32 %v5012, %v5082
    %5084 = vdwg.mxu0
    %5085 = vmatprep.subr.mxu0 %v4528
    %5086 = vmatpush1.msra.mxu0 %v4527
    %5087 = vmatprep.subr.mxu0 %v4534
    %5088 = vmatpush1.msra.mxu0 %v4533
    %5089 = vmatprep.subr.mxu0 %v4540
    %5090 = vmatpush1.msra.mxu0 %v4539
    %5091 = vmatprep.subr.mxu0 %v4546
    %5092 = vmatpush1.msra.mxu0 %v4545
    %5093 = vmatprep.subr.mxu0 %v4552
    %5094 = vmatpush1.msra.mxu0 %v4551
    %5095 = vmatprep.subr.mxu0 %v4558
    %5096 = vmatpush1.msra.mxu0 %v4557
    %5097 = vmatprep.subr.mxu0 %v4564
    %5098 = vmatpush1.msra.mxu0 %v4563
    %5099 = vmatprep.subr.mxu0 %v4570
    %5100 = vmatpush1.msra.mxu0 %v4569
    %5101 = vmatprep.subr.mxu0 %v4576
    %5102 = vmatpush1.msra.mxu0 %v4575
    %5103 = vmatprep.subr.mxu0 %v4582
    %5104 = vmatpush1.msra.mxu0 %v4581
    %5105 = vmatprep.subr.mxu0 %v4588
    %5106 = vmatpush1.msra.mxu0 %v4587
    %5107 = vmatprep.subr.mxu0 %v4594
    %5108 = vmatpush1.msra.mxu0 %v4593
    %5109 = vmatprep.subr.mxu0 %v4600
    %5110 = vmatpush1.msra.mxu0 %v4599
    %5111 = vmatprep.subr.mxu0 %v4606
    %5112 = vmatpush1.msra.mxu0 %v4605
    %5113 = vmatprep.subr.mxu0 %v4612
    %5114 = vmatpush1.msra.mxu0 %v4611
    %5115 = vmatprep.subr.mxu0 %v4618
    %5116 = vmatpush1.msra.mxu0 %v4617
    %5117 = vmatprep.subr.mxu0 %v4624
    %5118 = vmatpush1.msra.mxu0 %v4623
    %5119 = vmatprep.subr.mxu0 %v4630
    %5120 = vmatpush1.msra.mxu0 %v4629
    %5121 = vmatprep.subr.mxu0 %v4636
    %5122 = vmatpush1.msra.mxu0 %v4635
    %5123 = vmatprep.subr.mxu0 %v4642
    %5124 = vmatpush1.msra.mxu0 %v4641
    %5125 = vmatprep.subr.mxu0 %v4648
    %5126 = vmatpush1.msra.mxu0 %v4647
    %5127 = vmatprep.subr.mxu0 %v4654
    %5128 = vmatpush1.msra.mxu0 %v4653
    %5129 = vmatprep.subr.mxu0 %v4660
    %5130 = vmatpush1.msra.mxu0 %v4659
    %5131 = vmatprep.subr.mxu0 %v4666
    %5132 = vmatpush1.msra.mxu0 %v4665
    %5133 = vmatprep.subr.mxu0 %v4672
    %5134 = vmatpush1.msra.mxu0 %v4671
    %5135 = vmatprep.subr.mxu0 %v4678
    %5136 = vmatpush1.msra.mxu0 %v4677
    %5137 = vmatprep.subr.mxu0 %v4684
    %5138 = vmatpush1.msra.mxu0 %v4683
    %5139 = vmatprep.subr.mxu0 %v4690
    %5140 = vmatpush1.msra.mxu0 %v4689
    %5141 = vmatprep.subr.mxu0 %v4696
    %5142 = vmatpush1.msra.mxu0 %v4695
    %5143 = vmatprep.subr.mxu0 %v4702
    %5144 = vmatpush1.msra.mxu0 %v4701
    %5145 = vmatprep.subr.mxu0 %v4708
    %5146 = vmatpush1.msra.mxu0 %v4707
    %5147 = vmatprep.subr.mxu0 %v4714
    %5148 = vmatpush1.msra.mxu0 %v4713
    %5149 = vmatprep.mubr.f32.mxu0 %v4140
    %5150 = vmatmul.mubr.f32.gmra.mrb[0].mxu0 %v4139
    %v5151 = vpop.f32.mrb[0].mxu0
    %v5152 = vadd.f32 %v5081, %v5151
    %v5153 = vpop.f32.mrb[0].mxu0
    %v5154 = vadd.f32 %v5083, %v5153
    %5155 = vdwg.mxu0
    %5156 = vmatprep.subr.mxu0 %v4720
    %5157 = vmatpush1.msra.mxu0 %v4719
    %5158 = vmatprep.subr.mxu0 %v4726
    %5159 = vmatpush1.msra.mxu0 %v4725
    %5160 = vmatprep.subr.mxu0 %v4732
    %5161 = vmatpush1.msra.mxu0 %v4731
    %5162 = vmatprep.subr.mxu0 %v4738
    %5163 = vmatpush1.msra.mxu0 %v4737
    %5164 = vmatprep.subr.mxu0 %v4744
    %5165 = vmatpush1.msra.mxu0 %v4743
    %5166 = vmatprep.subr.mxu0 %v4750
    %5167 = vmatpush1.msra.mxu0 %v4749
    %5168 = vmatprep.subr.mxu0 %v4756
    %5169 = vmatpush1.msra.mxu0 %v4755
    %5170 = vmatprep.subr.mxu0 %v4762
    %5171 = vmatpush1.msra.mxu0 %v4761
    %5172 = vmatprep.subr.mxu0 %v4768
    %5173 = vmatpush1.msra.mxu0 %v4767
    %5174 = vmatprep.subr.mxu0 %v4774
    %5175 = vmatpush1.msra.mxu0 %v4773
    %5176 = vmatprep.subr.mxu0 %v4780
    %5177 = vmatpush1.msra.mxu0 %v4779
    %5178 = vmatprep.subr.mxu0 %v4786
    %5179 = vmatpush1.msra.mxu0 %v4785
    %5180 = vmatprep.subr.mxu0 %v4792
    %5181 = vmatpush1.msra.mxu0 %v4791
    %5182 = vmatprep.subr.mxu0 %v4798
    %5183 = vmatpush1.msra.mxu0 %v4797
    %5184 = vmatprep.subr.mxu0 %v4804
    %5185 = vmatpush1.msra.mxu0 %v4803
    %5186 = vmatprep.subr.mxu0 %v4810
    %5187 = vmatpush1.msra.mxu0 %v4809
    %5188 = vmatprep.subr.mxu0 %v4816
    %5189 = vmatpush1.msra.mxu0 %v4815
    %5190 = vmatprep.subr.mxu0 %v4822
    %5191 = vmatpush1.msra.mxu0 %v4821
    %5192 = vmatprep.subr.mxu0 %v4828
    %5193 = vmatpush1.msra.mxu0 %v4827
    %5194 = vmatprep.subr.mxu0 %v4834
    %5195 = vmatpush1.msra.mxu0 %v4833
    %5196 = vmatprep.subr.mxu0 %v4840
    %5197 = vmatpush1.msra.mxu0 %v4839
    %5198 = vmatprep.subr.mxu0 %v4846
    %5199 = vmatpush1.msra.mxu0 %v4845
    %5200 = vmatprep.subr.mxu0 %v4852
    %5201 = vmatpush1.msra.mxu0 %v4851
    %5202 = vmatprep.subr.mxu0 %v4858
    %5203 = vmatpush1.msra.mxu0 %v4857
    %5204 = vmatprep.subr.mxu0 %v4864
    %5205 = vmatpush1.msra.mxu0 %v4863
    %5206 = vmatprep.subr.mxu0 %v4870
    %5207 = vmatpush1.msra.mxu0 %v4869
    %5208 = vmatprep.subr.mxu0 %v4876
    %5209 = vmatpush1.msra.mxu0 %v4875
    %5210 = vmatprep.subr.mxu0 %v4882
    %5211 = vmatpush1.msra.mxu0 %v4881
    %5212 = vmatprep.subr.mxu0 %v4888
    %5213 = vmatpush1.msra.mxu0 %v4887
    %5214 = vmatprep.subr.mxu0 %v4894
    %5215 = vmatpush1.msra.mxu0 %v4893
    %5216 = vmatprep.subr.mxu0 %v4900
    %5217 = vmatpush1.msra.mxu0 %v4899
    %5218 = vmatprep.subr.mxu0 %v4906
    %5219 = vmatpush1.msra.mxu0 %v4905
    %5220 = vmatprep.mubr.f32.mxu0 %v4142
    %5221 = vmatmul.mubr.f32.gmra.mrb[0].mxu0 %v4141
    %v5222 = vpop.f32.mrb[0].mxu0
    %v5223 = vadd.f32 %v5152, %v5222
    %v5224 = vpop.f32.mrb[0].mxu0
    %v5225 = vadd.f32 %v5154, %v5224
    %5226 = vdwg.mxu0
    %5227 = vmatprep.subr.mxu0 %v4146
    %5228 = vmatpush1.msra.mxu0 %v4145
    %5229 = vmatprep.subr.mxu0 %v4152
    %5230 = vmatpush1.msra.mxu0 %v4151
    %5231 = vmatprep.subr.mxu0 %v4158
    %5232 = vmatpush1.msra.mxu0 %v4157
    %5233 = vmatprep.subr.mxu0 %v4164
    %5234 = vmatpush1.msra.mxu0 %v4163
    %5235 = vmatprep.subr.mxu0 %v4170
    %5236 = vmatpush1.msra.mxu0 %v4169
    %5237 = vmatprep.subr.mxu0 %v4176
    %5238 = vmatpush1.msra.mxu0 %v4175
    %5239 = vmatprep.subr.mxu0 %v4182
    %5240 = vmatpush1.msra.mxu0 %v4181
    %5241 = vmatprep.subr.mxu0 %v4188
    %5242 = vmatpush1.msra.mxu0 %v4187
    %5243 = vmatprep.subr.mxu0 %v4194
    %5244 = vmatpush1.msra.mxu0 %v4193
    %5245 = vmatprep.subr.mxu0 %v4200
    %5246 = vmatpush1.msra.mxu0 %v4199
    %5247 = vmatprep.subr.mxu0 %v4206
    %5248 = vmatpush1.msra.mxu0 %v4205
    %5249 = vmatprep.subr.mxu0 %v4212
    %5250 = vmatpush1.msra.mxu0 %v4211
    %5251 = vmatprep.subr.mxu0 %v4218
    %5252 = vmatpush1.msra.mxu0 %v4217
    %5253 = vmatprep.subr.mxu0 %v4224
    %5254 = vmatpush1.msra.mxu0 %v4223
    %5255 = vmatprep.subr.mxu0 %v4230
    %5256 = vmatpush1.msra.mxu0 %v4229
    %5257 = vmatprep.subr.mxu0 %v4236
    %5258 = vmatpush1.msra.mxu0 %v4235
    %5259 = vmatprep.subr.mxu0 %v4242
    %5260 = vmatpush1.msra.mxu0 %v4241
    %5261 = vmatprep.subr.mxu0 %v4248
    %5262 = vmatpush1.msra.mxu0 %v4247
    %5263 = vmatprep.subr.mxu0 %v4254
    %5264 = vmatpush1.msra.mxu0 %v4253
    %5265 = vmatprep.subr.mxu0 %v4260
    %5266 = vmatpush1.msra.mxu0 %v4259
    %5267 = vmatprep.subr.mxu0 %v4266
    %5268 = vmatpush1.msra.mxu0 %v4265
    %5269 = vmatprep.subr.mxu0 %v4272
    %5270 = vmatpush1.msra.mxu0 %v4271
    %5271 = vmatprep.subr.mxu0 %v4278
    %5272 = vmatpush1.msra.mxu0 %v4277
    %5273 = vmatprep.subr.mxu0 %v4284
    %5274 = vmatpush1.msra.mxu0 %v4283
    %5275 = vmatprep.subr.mxu0 %v4290
    %5276 = vmatpush1.msra.mxu0 %v4289
    %5277 = vmatprep.subr.mxu0 %v4296
    %5278 = vmatpush1.msra.mxu0 %v4295
    %5279 = vmatprep.subr.mxu0 %v4302
    %5280 = vmatpush1.msra.mxu0 %v4301
    %5281 = vmatprep.subr.mxu0 %v4308
    %5282 = vmatpush1.msra.mxu0 %v4307
    %5283 = vmatprep.subr.mxu0 %v4314
    %5284 = vmatpush1.msra.mxu0 %v4313
    %5285 = vmatprep.subr.mxu0 %v4320
    %5286 = vmatpush1.msra.mxu0 %v4319
    %5287 = vmatprep.subr.mxu0 %v4326
    %5288 = vmatpush1.msra.mxu0 %v4325
    %5289 = vmatprep.subr.mxu0 %v4332
    %5290 = vmatpush1.msra.mxu0 %v4331
    %5291 = vmatprep.mubr.f32.mxu0 %v4136
    %5292 = vmatmul.mubr.f32.gmra.mrb[0].mxu0 %v4135
    %v5293 = vpop.f32.mrb[0].mxu0
    %v5294 = vadd.f32 %v4924, %v5293
    %v5295 = vpop.f32.mrb[0].mxu0
    %v5296 = vadd.f32 %v4928, %v5295
    %5297 = vdwg.mxu0
    %5298 = vmatprep.subr.mxu0 %v4338
    %5299 = vmatpush1.msra.mxu0 %v4337
    %5300 = vmatprep.subr.mxu0 %v4344
    %5301 = vmatpush1.msra.mxu0 %v4343
    %5302 = vmatprep.subr.mxu0 %v4350
    %5303 = vmatpush1.msra.mxu0 %v4349
    %5304 = vmatprep.subr.mxu0 %v4356
    %5305 = vmatpush1.msra.mxu0 %v4355
    %5306 = vmatprep.subr.mxu0 %v4362
    %5307 = vmatpush1.msra.mxu0 %v4361
    %5308 = vmatprep.subr.mxu0 %v4368
    %5309 = vmatpush1.msra.mxu0 %v4367
    %5310 = vmatprep.subr.mxu0 %v4374
    %5311 = vmatpush1.msra.mxu0 %v4373
    %5312 = vmatprep.subr.mxu0 %v4380
    %5313 = vmatpush1.msra.mxu0 %v4379
    %5314 = vmatprep.subr.mxu0 %v4386
    %5315 = vmatpush1.msra.mxu0 %v4385
    %5316 = vmatprep.subr.mxu0 %v4392
    %5317 = vmatpush1.msra.mxu0 %v4391
    %5318 = vmatprep.subr.mxu0 %v4398
    %5319 = vmatpush1.msra.mxu0 %v4397
    %5320 = vmatprep.subr.mxu0 %v4404
    %5321 = vmatpush1.msra.mxu0 %v4403
    %5322 = vmatprep.subr.mxu0 %v4410
    %5323 = vmatpush1.msra.mxu0 %v4409
    %5324 = vmatprep.subr.mxu0 %v4416
    %5325 = vmatpush1.msra.mxu0 %v4415
    %5326 = vmatprep.subr.mxu0 %v4422
    %5327 = vmatpush1.msra.mxu0 %v4421
    %5328 = vmatprep.subr.mxu0 %v4428
    %5329 = vmatpush1.msra.mxu0 %v4427
    %5330 = vmatprep.subr.mxu0 %v4434
    %5331 = vmatpush1.msra.mxu0 %v4433
    %5332 = vmatprep.subr.mxu0 %v4440
    %5333 = vmatpush1.msra.mxu0 %v4439
    %5334 = vmatprep.subr.mxu0 %v4446
    %5335 = vmatpush1.msra.mxu0 %v4445
    %5336 = vmatprep.subr.mxu0 %v4452
    %5337 = vmatpush1.msra.mxu0 %v4451
    %5338 = vmatprep.subr.mxu0 %v4458
    %5339 = vmatpush1.msra.mxu0 %v4457
    %5340 = vmatprep.subr.mxu0 %v4464
    %5341 = vmatpush1.msra.mxu0 %v4463
    %5342 = vmatprep.subr.mxu0 %v4470
    %5343 = vmatpush1.msra.mxu0 %v4469
    %5344 = vmatprep.subr.mxu0 %v4476
    %5345 = vmatpush1.msra.mxu0 %v4475
    %5346 = vmatprep.subr.mxu0 %v4482
    %5347 = vmatpush1.msra.mxu0 %v4481
    %5348 = vmatprep.subr.mxu0 %v4488
    %5349 = vmatpush1.msra.mxu0 %v4487
    %5350 = vmatprep.subr.mxu0 %v4494
    %5351 = vmatpush1.msra.mxu0 %v4493
    %5352 = vmatprep.subr.mxu0 %v4500
    %5353 = vmatpush1.msra.mxu0 %v4499
    %5354 = vmatprep.subr.mxu0 %v4506
    %5355 = vmatpush1.msra.mxu0 %v4505
    %5356 = vmatprep.subr.mxu0 %v4512
    %5357 = vmatpush1.msra.mxu0 %v4511
    %5358 = vmatprep.subr.mxu0 %v4518
    %5359 = vmatpush1.msra.mxu0 %v4517
    %5360 = vmatprep.subr.mxu0 %v4524
    %5361 = vmatpush1.msra.mxu0 %v4523
    %5362 = vmatprep.mubr.f32.mxu0 %v4138
    %5363 = vmatmul.mubr.f32.gmra.mrb[0].mxu0 %v4137
    %v5364 = vpop.f32.mrb[0].mxu0
    %v5365 = vadd.f32 %v5294, %v5364
    %v5366 = vpop.f32.mrb[0].mxu0
    %v5367 = vadd.f32 %v5296, %v5366
    %5368 = vdwg.mxu0
    %5369 = vmatprep.subr.mxu0 %v4530
    %5370 = vmatpush1.msra.mxu0 %v4529
    %5371 = vmatprep.subr.mxu0 %v4536
    %5372 = vmatpush1.msra.mxu0 %v4535
    %5373 = vmatprep.subr.mxu0 %v4542
    %5374 = vmatpush1.msra.mxu0 %v4541
    %5375 = vmatprep.subr.mxu0 %v4548
    %5376 = vmatpush1.msra.mxu0 %v4547
    %5377 = vmatprep.subr.mxu0 %v4554
    %5378 = vmatpush1.msra.mxu0 %v4553
    %5379 = vmatprep.subr.mxu0 %v4560
    %5380 = vmatpush1.msra.mxu0 %v4559
    %5381 = vmatprep.subr.mxu0 %v4566
    %5382 = vmatpush1.msra.mxu0 %v4565
    %5383 = vmatprep.subr.mxu0 %v4572
    %5384 = vmatpush1.msra.mxu0 %v4571
    %5385 = vmatprep.subr.mxu0 %v4578
    %5386 = vmatpush1.msra.mxu0 %v4577
    %5387 = vmatprep.subr.mxu0 %v4584
    %5388 = vmatpush1.msra.mxu0 %v4583
    %5389 = vmatprep.subr.mxu0 %v4590
    %5390 = vmatpush1.msra.mxu0 %v4589
    %5391 = vmatprep.subr.mxu0 %v4596
    %5392 = vmatpush1.msra.mxu0 %v4595
    %5393 = vmatprep.subr.mxu0 %v4602
    %5394 = vmatpush1.msra.mxu0 %v4601
    %5395 = vmatprep.subr.mxu0 %v4608
    %5396 = vmatpush1.msra.mxu0 %v4607
    %5397 = vmatprep.subr.mxu0 %v4614
    %5398 = vmatpush1.msra.mxu0 %v4613
    %5399 = vmatprep.subr.mxu0 %v4620
    %5400 = vmatpush1.msra.mxu0 %v4619
    %5401 = vmatprep.subr.mxu0 %v4626
    %5402 = vmatpush1.msra.mxu0 %v4625
    %5403 = vmatprep.subr.mxu0 %v4632
    %5404 = vmatpush1.msra.mxu0 %v4631
    %5405 = vmatprep.subr.mxu0 %v4638
    %5406 = vmatpush1.msra.mxu0 %v4637
    %5407 = vmatprep.subr.mxu0 %v4644
    %5408 = vmatpush1.msra.mxu0 %v4643
    %5409 = vmatprep.subr.mxu0 %v4650
    %5410 = vmatpush1.msra.mxu0 %v4649
    %5411 = vmatprep.subr.mxu0 %v4656
    %5412 = vmatpush1.msra.mxu0 %v4655
    %5413 = vmatprep.subr.mxu0 %v4662
    %5414 = vmatpush1.msra.mxu0 %v4661
    %5415 = vmatprep.subr.mxu0 %v4668
    %5416 = vmatpush1.msra.mxu0 %v4667
    %5417 = vmatprep.subr.mxu0 %v4674
    %5418 = vmatpush1.msra.mxu0 %v4673
    %5419 = vmatprep.subr.mxu0 %v4680
    %5420 = vmatpush1.msra.mxu0 %v4679
    %5421 = vmatprep.subr.mxu0 %v4686
    %5422 = vmatpush1.msra.mxu0 %v4685
    %5423 = vmatprep.subr.mxu0 %v4692
    %5424 = vmatpush1.msra.mxu0 %v4691
    %5425 = vmatprep.subr.mxu0 %v4698
    %5426 = vmatpush1.msra.mxu0 %v4697
    %5427 = vmatprep.subr.mxu0 %v4704
    %5428 = vmatpush1.msra.mxu0 %v4703
    %5429 = vmatprep.subr.mxu0 %v4710
    %5430 = vmatpush1.msra.mxu0 %v4709
    %5431 = vmatprep.subr.mxu0 %v4716
    %5432 = vmatpush1.msra.mxu0 %v4715
    %5433 = vmatprep.mubr.f32.mxu0 %v4140
    %5434 = vmatmul.mubr.f32.gmra.mrb[0].mxu0 %v4139
    %v5435 = vpop.f32.mrb[0].mxu0
    %v5436 = vadd.f32 %v5365, %v5435
    %v5437 = vpop.f32.mrb[0].mxu0
    %v5438 = vadd.f32 %v5367, %v5437
    %5439 = vdwg.mxu0
    %5440 = vmatprep.subr.mxu0 %v4722
    %5441 = vmatpush1.msra.mxu0 %v4721
    %5442 = vmatprep.subr.mxu0 %v4728
    %5443 = vmatpush1.msra.mxu0 %v4727
    %5444 = vmatprep.subr.mxu0 %v4734
    %5445 = vmatpush1.msra.mxu0 %v4733
    %5446 = vmatprep.subr.mxu0 %v4740
    %5447 = vmatpush1.msra.mxu0 %v4739
    %5448 = vmatprep.subr.mxu0 %v4746
    %5449 = vmatpush1.msra.mxu0 %v4745
    %5450 = vmatprep.subr.mxu0 %v4752
    %5451 = vmatpush1.msra.mxu0 %v4751
    %5452 = vmatprep.subr.mxu0 %v4758
    %5453 = vmatpush1.msra.mxu0 %v4757
    %5454 = vmatprep.subr.mxu0 %v4764
    %5455 = vmatpush1.msra.mxu0 %v4763
    %5456 = vmatprep.subr.mxu0 %v4770
    %5457 = vmatpush1.msra.mxu0 %v4769
    %5458 = vmatprep.subr.mxu0 %v4776
    %5459 = vmatpush1.msra.mxu0 %v4775
    %5460 = vmatprep.subr.mxu0 %v4782
    %5461 = vmatpush1.msra.mxu0 %v4781
    %5462 = vmatprep.subr.mxu0 %v4788
    %5463 = vmatpush1.msra.mxu0 %v4787
    %5464 = vmatprep.subr.mxu0 %v4794
    %5465 = vmatpush1.msra.mxu0 %v4793
    %5466 = vmatprep.subr.mxu0 %v4800
    %5467 = vmatpush1.msra.mxu0 %v4799
    %5468 = vmatprep.subr.mxu0 %v4806
    %5469 = vmatpush1.msra.mxu0 %v4805
    %5470 = vmatprep.subr.mxu0 %v4812
    %5471 = vmatpush1.msra.mxu0 %v4811
    %5472 = vmatprep.subr.mxu0 %v4818
    %5473 = vmatpush1.msra.mxu0 %v4817
    %5474 = vmatprep.subr.mxu0 %v4824
    %5475 = vmatpush1.msra.mxu0 %v4823
    %5476 = vmatprep.subr.mxu0 %v4830
    %5477 = vmatpush1.msra.mxu0 %v4829
    %5478 = vmatprep.subr.mxu0 %v4836
    %5479 = vmatpush1.msra.mxu0 %v4835
    %5480 = vmatprep.subr.mxu0 %v4842
    %5481 = vmatpush1.msra.mxu0 %v4841
    %5482 = vmatprep.subr.mxu0 %v4848
    %5483 = vmatpush1.msra.mxu0 %v4847
    %5484 = vmatprep.subr.mxu0 %v4854
    %5485 = vmatpush1.msra.mxu0 %v4853
    %5486 = vmatprep.subr.mxu0 %v4860
    %5487 = vmatpush1.msra.mxu0 %v4859
    %5488 = vmatprep.subr.mxu0 %v4866
    %5489 = vmatpush1.msra.mxu0 %v4865
    %5490 = vmatprep.subr.mxu0 %v4872
    %5491 = vmatpush1.msra.mxu0 %v4871
    %5492 = vmatprep.subr.mxu0 %v4878
    %5493 = vmatpush1.msra.mxu0 %v4877
    %5494 = vmatprep.subr.mxu0 %v4884
    %5495 = vmatpush1.msra.mxu0 %v4883
    %5496 = vmatprep.subr.mxu0 %v4890
    %5497 = vmatpush1.msra.mxu0 %v4889
    %5498 = vmatprep.subr.mxu0 %v4896
    %5499 = vmatpush1.msra.mxu0 %v4895
    %5500 = vmatprep.subr.mxu0 %v4902
    %5501 = vmatpush1.msra.mxu0 %v4901
    %5502 = vmatprep.subr.mxu0 %v4908
    %5503 = vmatpush1.msra.mxu0 %v4907
    %5504 = vmatprep.mubr.f32.mxu0 %v4142
    %5505 = vmatmul.mubr.f32.gmra.mrb[0].mxu0 %v4141
    %v5506 = vpop.f32.mrb[0].mxu0
    %v5507 = vadd.f32 %v5436, %v5506
    %v5508 = vpop.f32.mrb[0].mxu0
    %v5509 = vadd.f32 %v5438, %v5508
    %5510 = vdwg.mxu0
    %5511 = vmatprep.subr.mxu0 %v4148
    %5512 = vmatpush1.msra.mxu0 %v4147
    %5513 = vmatprep.subr.mxu0 %v4154
    %5514 = vmatpush1.msra.mxu0 %v4153
    %5515 = vmatprep.subr.mxu0 %v4160
    %5516 = vmatpush1.msra.mxu0 %v4159
    %5517 = vmatprep.subr.mxu0 %v4166
    %5518 = vmatpush1.msra.mxu0 %v4165
    %5519 = vmatprep.subr.mxu0 %v4172
    %5520 = vmatpush1.msra.mxu0 %v4171
    %5521 = vmatprep.subr.mxu0 %v4178
    %5522 = vmatpush1.msra.mxu0 %v4177
    %5523 = vmatprep.subr.mxu0 %v4184
    %5524 = vmatpush1.msra.mxu0 %v4183
    %5525 = vmatprep.subr.mxu0 %v4190
    %5526 = vmatpush1.msra.mxu0 %v4189
    %5527 = vmatprep.subr.mxu0 %v4196
    %5528 = vmatpush1.msra.mxu0 %v4195
    %5529 = vmatprep.subr.mxu0 %v4202
    %5530 = vmatpush1.msra.mxu0 %v4201
    %5531 = vmatprep.subr.mxu0 %v4208
    %5532 = vmatpush1.msra.mxu0 %v4207
    %5533 = vmatprep.subr.mxu0 %v4214
    %5534 = vmatpush1.msra.mxu0 %v4213
    %5535 = vmatprep.subr.mxu0 %v4220
    %5536 = vmatpush1.msra.mxu0 %v4219
    %5537 = vmatprep.subr.mxu0 %v4226
    %5538 = vmatpush1.msra.mxu0 %v4225
    %5539 = vmatprep.subr.mxu0 %v4232
    %5540 = vmatpush1.msra.mxu0 %v4231
    %5541 = vmatprep.subr.mxu0 %v4238
    %5542 = vmatpush1.msra.mxu0 %v4237
    %5543 = vmatprep.subr.mxu0 %v4244
    %5544 = vmatpush1.msra.mxu0 %v4243
    %5545 = vmatprep.subr.mxu0 %v4250
    %5546 = vmatpush1.msra.mxu0 %v4249
    %5547 = vmatprep.subr.mxu0 %v4256
    %5548 = vmatpush1.msra.mxu0 %v4255
    %5549 = vmatprep.subr.mxu0 %v4262
    %5550 = vmatpush1.msra.mxu0 %v4261
    %5551 = vmatprep.subr.mxu0 %v4268
    %5552 = vmatpush1.msra.mxu0 %v4267
    %5553 = vmatprep.subr.mxu0 %v4274
    %5554 = vmatpush1.msra.mxu0 %v4273
    %5555 = vmatprep.subr.mxu0 %v4280
    %5556 = vmatpush1.msra.mxu0 %v4279
    %5557 = vmatprep.subr.mxu0 %v4286
    %5558 = vmatpush1.msra.mxu0 %v4285
    %5559 = vmatprep.subr.mxu0 %v4292
    %5560 = vmatpush1.msra.mxu0 %v4291
    %5561 = vmatprep.subr.mxu0 %v4298
    %5562 = vmatpush1.msra.mxu0 %v4297
    %5563 = vmatprep.subr.mxu0 %v4304
    %5564 = vmatpush1.msra.mxu0 %v4303
    %5565 = vmatprep.subr.mxu0 %v4310
    %5566 = vmatpush1.msra.mxu0 %v4309
    %5567 = vmatprep.subr.mxu0 %v4316
    %5568 = vmatpush1.msra.mxu0 %v4315
    %5569 = vmatprep.subr.mxu0 %v4322
    %5570 = vmatpush1.msra.mxu0 %v4321
    %5571 = vmatprep.subr.mxu0 %v4328
    %5572 = vmatpush1.msra.mxu0 %v4327
    %5573 = vmatprep.subr.mxu0 %v4334
    %5574 = vmatpush1.msra.mxu0 %v4333
    %5575 = vmatprep.mubr.f32.mxu0 %v4136
    %5576 = vmatmul.mubr.f32.gmra.mrb[0].mxu0 %v4135
    %v5577 = vpop.f32.mrb[0].mxu0
    %v5578 = vadd.f32 %v4932, %v5577
    %v5579 = vpop.f32.mrb[0].mxu0
    %v5580 = vadd.f32 %v4936, %v5579
    %5581 = vdwg.mxu0
    %5582 = vmatprep.subr.mxu0 %v4340
    %5583 = vmatpush1.msra.mxu0 %v4339
    %5584 = vmatprep.subr.mxu0 %v4346
    %5585 = vmatpush1.msra.mxu0 %v4345
    %5586 = vmatprep.subr.mxu0 %v4352
    %5587 = vmatpush1.msra.mxu0 %v4351
    %5588 = vmatprep.subr.mxu0 %v4358
    %5589 = vmatpush1.msra.mxu0 %v4357
    %5590 = vmatprep.subr.mxu0 %v4364
    %5591 = vmatpush1.msra.mxu0 %v4363
    %5592 = vmatprep.subr.mxu0 %v4370
    %5593 = vmatpush1.msra.mxu0 %v4369
    %5594 = vmatprep.subr.mxu0 %v4376
    %5595 = vmatpush1.msra.mxu0 %v4375
    %5596 = vmatprep.subr.mxu0 %v4382
    %5597 = vmatpush1.msra.mxu0 %v4381
    %5598 = vmatprep.subr.mxu0 %v4388
    %5599 = vmatpush1.msra.mxu0 %v4387
    %5600 = vmatprep.subr.mxu0 %v4394
    %5601 = vmatpush1.msra.mxu0 %v4393
    %5602 = vmatprep.subr.mxu0 %v4400
    %5603 = vmatpush1.msra.mxu0 %v4399
    %5604 = vmatprep.subr.mxu0 %v4406
    %5605 = vmatpush1.msra.mxu0 %v4405
    %5606 = vmatprep.subr.mxu0 %v4412
    %5607 = vmatpush1.msra.mxu0 %v4411
    %5608 = vmatprep.subr.mxu0 %v4418
    %5609 = vmatpush1.msra.mxu0 %v4417
    %5610 = vmatprep.subr.mxu0 %v4424
    %5611 = vmatpush1.msra.mxu0 %v4423
    %5612 = vmatprep.subr.mxu0 %v4430
    %5613 = vmatpush1.msra.mxu0 %v4429
    %5614 = vmatprep.subr.mxu0 %v4436
    %5615 = vmatpush1.msra.mxu0 %v4435
    %5616 = vmatprep.subr.mxu0 %v4442
    %5617 = vmatpush1.msra.mxu0 %v4441
    %5618 = vmatprep.subr.mxu0 %v4448
    %5619 = vmatpush1.msra.mxu0 %v4447
    %5620 = vmatprep.subr.mxu0 %v4454
    %5621 = vmatpush1.msra.mxu0 %v4453
    %5622 = vmatprep.subr.mxu0 %v4460
    %5623 = vmatpush1.msra.mxu0 %v4459
    %5624 = vmatprep.subr.mxu0 %v4466
    %5625 = vmatpush1.msra.mxu0 %v4465
    %5626 = vmatprep.subr.mxu0 %v4472
    %5627 = vmatpush1.msra.mxu0 %v4471
    %5628 = vmatprep.subr.mxu0 %v4478
    %5629 = vmatpush1.msra.mxu0 %v4477
    %5630 = vmatprep.subr.mxu0 %v4484
    %5631 = vmatpush1.msra.mxu0 %v4483
    %5632 = vmatprep.subr.mxu0 %v4490
    %5633 = vmatpush1.msra.mxu0 %v4489
    %5634 = vmatprep.subr.mxu0 %v4496
    %5635 = vmatpush1.msra.mxu0 %v4495
    %5636 = vmatprep.subr.mxu0 %v4502
    %5637 = vmatpush1.msra.mxu0 %v4501
    %5638 = vmatprep.subr.mxu0 %v4508
    %5639 = vmatpush1.msra.mxu0 %v4507
    %5640 = vmatprep.subr.mxu0 %v4514
    %5641 = vmatpush1.msra.mxu0 %v4513
    %5642 = vmatprep.subr.mxu0 %v4520
    %5643 = vmatpush1.msra.mxu0 %v4519
    %5644 = vmatprep.subr.mxu0 %v4526
    %5645 = vmatpush1.msra.mxu0 %v4525
    %5646 = vmatprep.mubr.f32.mxu0 %v4138
    %5647 = vmatmul.mubr.f32.gmra.mrb[0].mxu0 %v4137
    %v5648 = vpop.f32.mrb[0].mxu0
    %v5649 = vadd.f32 %v5578, %v5648
    %v5650 = vpop.f32.mrb[0].mxu0
    %v5651 = vadd.f32 %v5580, %v5650
    %5652 = vdwg.mxu0
    %5653 = vmatprep.subr.mxu0 %v4532
    %5654 = vmatpush1.msra.mxu0 %v4531
    %5655 = vmatprep.subr.mxu0 %v4538
    %5656 = vmatpush1.msra.mxu0 %v4537
    %5657 = vmatprep.subr.mxu0 %v4544
    %5658 = vmatpush1.msra.mxu0 %v4543
    %5659 = vmatprep.subr.mxu0 %v4550
    %5660 = vmatpush1.msra.mxu0 %v4549
    %5661 = vmatprep.subr.mxu0 %v4556
    %5662 = vmatpush1.msra.mxu0 %v4555
    %5663 = vmatprep.subr.mxu0 %v4562
    %5664 = vmatpush1.msra.mxu0 %v4561
    %5665 = vmatprep.subr.mxu0 %v4568
    %5666 = vmatpush1.msra.mxu0 %v4567
    %5667 = vmatprep.subr.mxu0 %v4574
    %5668 = vmatpush1.msra.mxu0 %v4573
    %5669 = vmatprep.subr.mxu0 %v4580
    %5670 = vmatpush1.msra.mxu0 %v4579
    %5671 = vmatprep.subr.mxu0 %v4586
    %5672 = vmatpush1.msra.mxu0 %v4585
    %5673 = vmatprep.subr.mxu0 %v4592
    %5674 = vmatpush1.msra.mxu0 %v4591
    %5675 = vmatprep.subr.mxu0 %v4598
    %5676 = vmatpush1.msra.mxu0 %v4597
    %5677 = vmatprep.subr.mxu0 %v4604
    %5678 = vmatpush1.msra.mxu0 %v4603
    %5679 = vmatprep.subr.mxu0 %v4610
    %5680 = vmatpush1.msra.mxu0 %v4609
    %5681 = vmatprep.subr.mxu0 %v4616
    %5682 = vmatpush1.msra.mxu0 %v4615
    %5683 = vmatprep.subr.mxu0 %v4622
    %5684 = vmatpush1.msra.mxu0 %v4621
    %5685 = vmatprep.subr.mxu0 %v4628
    %5686 = vmatpush1.msra.mxu0 %v4627
    %5687 = vmatprep.subr.mxu0 %v4634
    %5688 = vmatpush1.msra.mxu0 %v4633
    %5689 = vmatprep.subr.mxu0 %v4640
    %5690 = vmatpush1.msra.mxu0 %v4639
    %5691 = vmatprep.subr.mxu0 %v4646
    %5692 = vmatpush1.msra.mxu0 %v4645
    %5693 = vmatprep.subr.mxu0 %v4652
    %5694 = vmatpush1.msra.mxu0 %v4651
    %5695 = vmatprep.subr.mxu0 %v4658
    %5696 = vmatpush1.msra.mxu0 %v4657
    %5697 = vmatprep.subr.mxu0 %v4664
    %5698 = vmatpush1.msra.mxu0 %v4663
    %5699 = vmatprep.subr.mxu0 %v4670
    %5700 = vmatpush1.msra.mxu0 %v4669
    %5701 = vmatprep.subr.mxu0 %v4676
    %5702 = vmatpush1.msra.mxu0 %v4675
    %5703 = vmatprep.subr.mxu0 %v4682
    %5704 = vmatpush1.msra.mxu0 %v4681
    %5705 = vmatprep.subr.mxu0 %v4688
    %5706 = vmatpush1.msra.mxu0 %v4687
    %5707 = vmatprep.subr.mxu0 %v4694
    %5708 = vmatpush1.msra.mxu0 %v4693
    %5709 = vmatprep.subr.mxu0 %v4700
    %5710 = vmatpush1.msra.mxu0 %v4699
    %5711 = vmatprep.subr.mxu0 %v4706
    %5712 = vmatpush1.msra.mxu0 %v4705
    %5713 = vmatprep.subr.mxu0 %v4712
    %5714 = vmatpush1.msra.mxu0 %v4711
    %5715 = vmatprep.subr.mxu0 %v4718
    %5716 = vmatpush1.msra.mxu0 %v4717
    %5717 = vmatprep.mubr.f32.mxu0 %v4140
    %5718 = vmatmul.mubr.f32.gmra.mrb[0].mxu0 %v4139
    %v5719 = vpop.f32.mrb[0].mxu0
    %v5720 = vadd.f32 %v5649, %v5719
    %v5721 = vpop.f32.mrb[0].mxu0
    %v5722 = vadd.f32 %v5651, %v5721
    %5723 = vdwg.mxu0
    %5724 = vmatprep.subr.mxu0 %v4724
    %5725 = vmatpush1.msra.mxu0 %v4723
    %5726 = vmatprep.subr.mxu0 %v4730
    %5727 = vmatpush1.msra.mxu0 %v4729
    %5728 = vmatprep.subr.mxu0 %v4736
    %5729 = vmatpush1.msra.mxu0 %v4735
    %5730 = vmatprep.subr.mxu0 %v4742
    %5731 = vmatpush1.msra.mxu0 %v4741
    %5732 = vmatprep.subr.mxu0 %v4748
    %5733 = vmatpush1.msra.mxu0 %v4747
    %5734 = vmatprep.subr.mxu0 %v4754
    %5735 = vmatpush1.msra.mxu0 %v4753
    %5736 = vmatprep.subr.mxu0 %v4760
    %5737 = vmatpush1.msra.mxu0 %v4759
    %5738 = vmatprep.subr.mxu0 %v4766
    %5739 = vmatpush1.msra.mxu0 %v4765
    %5740 = vmatprep.subr.mxu0 %v4772
    %5741 = vmatpush1.msra.mxu0 %v4771
    %5742 = vmatprep.subr.mxu0 %v4778
    %5743 = vmatpush1.msra.mxu0 %v4777
    %5744 = vmatprep.subr.mxu0 %v4784
    %5745 = vmatpush1.msra.mxu0 %v4783
    %5746 = vmatprep.subr.mxu0 %v4790
    %5747 = vmatpush1.msra.mxu0 %v4789
    %5748 = vmatprep.subr.mxu0 %v4796
    %5749 = vmatpush1.msra.mxu0 %v4795
    %5750 = vmatprep.subr.mxu0 %v4802
    %5751 = vmatpush1.msra.mxu0 %v4801
    %5752 = vmatprep.subr.mxu0 %v4808
    %5753 = vmatpush1.msra.mxu0 %v4807
    %5754 = vmatprep.subr.mxu0 %v4814
    %5755 = vmatpush1.msra.mxu0 %v4813
    %5756 = vmatprep.subr.mxu0 %v4820
    %5757 = vmatpush1.msra.mxu0 %v4819
    %5758 = vmatprep.subr.mxu0 %v4826
    %5759 = vmatpush1.msra.mxu0 %v4825
    %5760 = vmatprep.subr.mxu0 %v4832
    %5761 = vmatpush1.msra.mxu0 %v4831
    %5762 = vmatprep.subr.mxu0 %v4838
    %5763 = vmatpush1.msra.mxu0 %v4837
    %5764 = vmatprep.subr.mxu0 %v4844
    %5765 = vmatpush1.msra.mxu0 %v4843
    %5766 = vmatprep.subr.mxu0 %v4850
    %5767 = vmatpush1.msra.mxu0 %v4849
    %5768 = vmatprep.subr.mxu0 %v4856
    %5769 = vmatpush1.msra.mxu0 %v4855
    %5770 = vmatprep.subr.mxu0 %v4862
    %5771 = vmatpush1.msra.mxu0 %v4861
    %5772 = vmatprep.subr.mxu0 %v4868
    %5773 = vmatpush1.msra.mxu0 %v4867
    %5774 = vmatprep.subr.mxu0 %v4874
    %5775 = vmatpush1.msra.mxu0 %v4873
    %5776 = vmatprep.subr.mxu0 %v4880
    %5777 = vmatpush1.msra.mxu0 %v4879
    %5778 = vmatprep.subr.mxu0 %v4886
    %5779 = vmatpush1.msra.mxu0 %v4885
    %5780 = vmatprep.subr.mxu0 %v4892
    %5781 = vmatpush1.msra.mxu0 %v4891
    %5782 = vmatprep.subr.mxu0 %v4898
    %5783 = vmatpush1.msra.mxu0 %v4897
    %5784 = vmatprep.subr.mxu0 %v4904
    %5785 = vmatpush1.msra.mxu0 %v4903
    %5786 = vmatprep.subr.mxu0 %v4910
    %5787 = vmatpush1.msra.mxu0 %v4909
    %5788 = vmatprep.mubr.f32.mxu0 %v4142
    %5789 = vmatmul.mubr.f32.gmra.mrb[0].mxu0 %v4141
    %v5790 = vpop.f32.mrb[0].mxu0
    %v5791 = vadd.f32 %v5720, %v5790
    %v5792 = vpop.f32.mrb[0].mxu0
    %v5793 = vadd.f32 %v5722, %v5792
    %5794 = vdwg.mxu0
    %v5795 = vmul.f32 %v5223, 0.5
    %v5796 = vmul.f32 %v5225, 0.5
    %v5797 = vmul.f32 %v5507, 0.5
    %v5798 = vmul.f32 %v5509, 0.5
    %v5799 = vmul.f32 %v5791, 0.5
    %v5800 = vmul.f32 %v5793, 0.5
    %v5801 = vmul.f32 %v5223, 0.70710677
    %v5802 = vmul.f32 %v5225, 0.70710677
    %v5803 = vmul.f32 %v5507, 0.70710677
    %v5804 = vmul.f32 %v5509, 0.70710677
    %v5805 = vmul.f32 %v5791, 0.70710677
    %v5806 = vmul.f32 %v5793, 0.70710677
    %vm5807 = vcmp.ge.f32.partialorder %v5801, 0.0
    %vm5808 = vcmp.ge.f32.partialorder %v5802, 0.0
    %vm5809 = vcmp.ge.f32.partialorder %v5803, 0.0
    %vm5810 = vcmp.ge.f32.partialorder %v5804, 0.0
    %vm5811 = vcmp.ge.f32.partialorder %v5805, 0.0
    %vm5812 = vcmp.ge.f32.partialorder %v5806, 0.0
    %v5813 = vsel %vm5807, 1.0, -1.0
    %v5814 = vsel %vm5808, 1.0, -1.0
    %v5815 = vsel %vm5809, 1.0, -1.0
    %v5816 = vsel %vm5810, 1.0, -1.0
    %v5817 = vsel %vm5811, 1.0, -1.0
    %v5818 = vsel %vm5812, 1.0, -1.0
    %v5819 = vand.u32 2147483647, %v5801
    %v5820 = vand.u32 2147483647, %v5802
    %v5821 = vand.u32 2147483647, %v5803
    %v5822 = vand.u32 2147483647, %v5804
    %v5823 = vand.u32 2147483647, %v5805
    %v5824 = vand.u32 2147483647, %v5806
    %v5825 = vmul.f32 %v5819, 0.3275911
    %v5826 = vmul.f32 %v5820, 0.3275911
    %v5827 = vmul.f32 %v5821, 0.3275911
    %v5828 = vmul.f32 %v5822, 0.3275911
    %v5829 = vmul.f32 %v5823, 0.3275911
    %v5830 = vmul.f32 %v5824, 0.3275911
    %v5831 = vadd.f32 %v5825, 1.0
    %v5832 = vadd.f32 %v5826, 1.0
    %v5833 = vadd.f32 %v5827, 1.0
    %v5834 = vadd.f32 %v5828, 1.0
    %v5835 = vadd.f32 %v5829, 1.0
    %v5836 = vadd.f32 %v5830, 1.0
    %v5837 = vrcp.pop %v5831
    %v5838 = vmul.f32 1.0, %v5837
    %v5839 = vrcp.pop %v5832
    %v5840 = vmul.f32 1.0, %v5839
    %v5841 = vrcp.pop %v5833
    %v5842 = vmul.f32 1.0, %v5841
    %v5843 = vrcp.pop %v5834
    %v5844 = vmul.f32 1.0, %v5843
    %v5845 = vrcp.pop %v5835
    %v5846 = vmul.f32 1.0, %v5845
    %v5847 = vrcp.pop %v5836
    %v5848 = vmul.f32 1.0, %v5847
    %v5849 = vmul.f32 %v5838, 1.0614054
    %v5850 = vmul.f32 %v5840, 1.0614054
    %v5851 = vmul.f32 %v5842, 1.0614054
    %v5852 = vmul.f32 %v5844, 1.0614054
    %v5853 = vmul.f32 %v5846, 1.0614054
    %v5854 = vmul.f32 %v5848, 1.0614054
    %v5855 = vadd.f32 %v5849, -1.4531521
    %v5856 = vadd.f32 %v5850, -1.4531521
    %v5857 = vadd.f32 %v5851, -1.4531521
    %v5858 = vadd.f32 %v5852, -1.4531521
    %v5859 = vadd.f32 %v5853, -1.4531521
    %v5860 = vadd.f32 %v5854, -1.4531521
    %v5861 = vmul.f32 %v5855, %v5838
    %v5862 = vmul.f32 %v5856, %v5840
    %v5863 = vmul.f32 %v5857, %v5842
    %v5864 = vmul.f32 %v5858, %v5844
    %v5865 = vmul.f32 %v5859, %v5846
    %v5866 = vmul.f32 %v5860, %v5848
    %v5867 = vadd.f32 %v5861, 1.4214138
    %v5868 = vadd.f32 %v5862, 1.4214138
    %v5869 = vadd.f32 %v5863, 1.4214138
    %v5870 = vadd.f32 %v5864, 1.4214138
    %v5871 = vadd.f32 %v5865, 1.4214138
    %v5872 = vadd.f32 %v5866, 1.4214138
    %v5873 = vmul.f32 %v5867, %v5838
    %v5874 = vmul.f32 %v5868, %v5840
    %v5875 = vmul.f32 %v5869, %v5842
    %v5876 = vmul.f32 %v5870, %v5844
    %v5877 = vmul.f32 %v5871, %v5846
    %v5878 = vmul.f32 %v5872, %v5848
    %v5879 = vadd.f32 %v5873, -0.28449672
    %v5880 = vadd.f32 %v5874, -0.28449672
    %v5881 = vadd.f32 %v5875, -0.28449672
    %v5882 = vadd.f32 %v5876, -0.28449672
    %v5883 = vadd.f32 %v5877, -0.28449672
    %v5884 = vadd.f32 %v5878, -0.28449672
    %v5885 = vmul.f32 %v5879, %v5838
    %v5886 = vmul.f32 %v5880, %v5840
    %v5887 = vmul.f32 %v5881, %v5842
    %v5888 = vmul.f32 %v5882, %v5844
    %v5889 = vmul.f32 %v5883, %v5846
    %v5890 = vmul.f32 %v5884, %v5848
    %v5891 = vadd.f32 %v5885, 0.2548296
    %v5892 = vadd.f32 %v5886, 0.2548296
    %v5893 = vadd.f32 %v5887, 0.2548296
    %v5894 = vadd.f32 %v5888, 0.2548296
    %v5895 = vadd.f32 %v5889, 0.2548296
    %v5896 = vadd.f32 %v5890, 0.2548296
    %v5897 = vmul.f32 %v5891, %v5838
    %v5898 = vmul.f32 %v5892, %v5840
    %v5899 = vmul.f32 %v5893, %v5842
    %v5900 = vmul.f32 %v5894, %v5844
    %v5901 = vmul.f32 %v5895, %v5846
    %v5902 = vmul.f32 %v5896, %v5848
    %v5903 = vsub.f32 0.0, %v5819
    %v5904 = vsub.f32 0.0, %v5820
    %v5905 = vsub.f32 0.0, %v5821
    %v5906 = vsub.f32 0.0, %v5822
    %v5907 = vsub.f32 0.0, %v5823
    %v5908 = vsub.f32 0.0, %v5824
    %v5909 = vmul.f32 %v5903, %v5819
    %v5910 = vmul.f32 %v5904, %v5820
    %v5911 = vmul.f32 %v5905, %v5821
    %v5912 = vmul.f32 %v5906, %v5822
    %v5913 = vmul.f32 %v5907, %v5823
    %v5914 = vmul.f32 %v5908, %v5824
    %v5915 = vmul.f32 %v5909, 1.442695
    %v5916 = vpow.pop %v5915
    %v5917 = vmul.f32 %v5910, 1.442695
    %v5918 = vpow.pop %v5917
    %v5919 = vmul.f32 %v5911, 1.442695
    %v5920 = vpow.pop %v5919
    %v5921 = vmul.f32 %v5912, 1.442695
    %v5922 = vpow.pop %v5921
    %v5923 = vmul.f32 %v5913, 1.442695
    %v5924 = vpow.pop %v5923
    %v5925 = vmul.f32 %v5914, 1.442695
    %v5926 = vpow.pop %v5925
    %v5927 = vmul.f32 %v5897, %v5916
    %v5928 = vmul.f32 %v5898, %v5918
    %v5929 = vmul.f32 %v5899, %v5920
    %v5930 = vmul.f32 %v5900, %v5922
    %v5931 = vmul.f32 %v5901, %v5924
    %v5932 = vmul.f32 %v5902, %v5926
    %v5933 = vsub.f32 1.0, %v5927
    %v5934 = vsub.f32 1.0, %v5928
    %v5935 = vsub.f32 1.0, %v5929
    %v5936 = vsub.f32 1.0, %v5930
    %v5937 = vsub.f32 1.0, %v5931
    %v5938 = vsub.f32 1.0, %v5932
    %v5939 = vmul.f32 %v5813, %v5933
    %v5940 = vmul.f32 %v5814, %v5934
    %v5941 = vmul.f32 %v5815, %v5935
    %v5942 = vmul.f32 %v5816, %v5936
    %v5943 = vmul.f32 %v5817, %v5937
    %v5944 = vmul.f32 %v5818, %v5938
    %v5945 = vadd.f32 %v5939, 1.0
    %v5946 = vadd.f32 %v5940, 1.0
    %v5947 = vadd.f32 %v5941, 1.0
    %v5948 = vadd.f32 %v5942, 1.0
    %v5949 = vadd.f32 %v5943, 1.0
    %v5950 = vadd.f32 %v5944, 1.0
    %v5951 = vmul.f32 %v5795, %v5945
    %v5952 = vmul.f32 %v5796, %v5946
    %v5953 = vmul.f32 %v5797, %v5947
    %v5954 = vmul.f32 %v5798, %v5948
    %v5955 = vmul.f32 %v5799, %v5949
    %v5956 = vmul.f32 %v5800, %v5950
    %v5957 = vld [vmem:[#allocation16] sm:$0xff]
    %v5958 = vld [vmem:[#allocation16 + $0x8] sm:$0xff]
    %v5959 = vld [vmem:[#allocation16 + $0x10] sm:$0xff]
    %v5960 = vld [vmem:[#allocation16 + $0x18] sm:$0xff]
    %v5961 = vld [vmem:[#allocation16 + $0x20] sm:$0xff]
    %v5962 = vld [vmem:[#allocation16 + $0x28] sm:$0xff]
    %v5963 = vld [vmem:[#allocation16 + $0x30] sm:$0xff]
    %v5964 = vld [vmem:[#allocation16 + $0x38] sm:$0xff]
    %v5965 = vld [vmem:[#allocation16 + $0x40] sm:$0xff]
    %v5966 = vld [vmem:[#allocation16 + $0x48] sm:$0xff]
    %v5967 = vld [vmem:[#allocation16 + $0x50] sm:$0xff]
    %v5968 = vld [vmem:[#allocation16 + $0x58] sm:$0xff]
    %v5969 = vld [vmem:[#allocation16 + $0x60] sm:$0xff]
    %v5970 = vld [vmem:[#allocation16 + $0x68] sm:$0xff]
    %v5971 = vld [vmem:[#allocation16 + $0x70] sm:$0xff]
    %v5972 = vld [vmem:[#allocation16 + $0x78] sm:$0xff]
    %v5973 = vld [vmem:[#allocation16 + $0x80] sm:$0xff]
    %v5974 = vld [vmem:[#allocation16 + $0x88] sm:$0xff]
    %v5975 = vld [vmem:[#allocation16 + $0x90] sm:$0xff]
    %v5976 = vld [vmem:[#allocation16 + $0x98] sm:$0xff]
    %v5977 = vld [vmem:[#allocation16 + $0xa0] sm:$0xff]
    %v5978 = vld [vmem:[#allocation16 + $0xa8] sm:$0xff]
    %v5979 = vld [vmem:[#allocation16 + $0xb0] sm:$0xff]
    %v5980 = vld [vmem:[#allocation16 + $0xb8] sm:$0xff]
    %v5981 = vld [vmem:[#allocation16 + $0xc0] sm:$0xff]
    %v5982 = vld [vmem:[#allocation16 + $0xc8] sm:$0xff]
    %v5983 = vld [vmem:[#allocation16 + $0xd0] sm:$0xff]
    %v5984 = vld [vmem:[#allocation16 + $0xd8] sm:$0xff]
    %v5985 = vld [vmem:[#allocation16 + $0xe0] sm:$0xff]
    %v5986 = vld [vmem:[#allocation16 + $0xe8] sm:$0xff]
    %v5987 = vld [vmem:[#allocation16 + $0xf0] sm:$0xff]
    %v5988 = vld [vmem:[#allocation16 + $0xf8] sm:$0xff]
    %v5989 = vld [vmem:[#allocation16 + $0x100] sm:$0xff]
    %v5990 = vld [vmem:[#allocation16 + $0x108] sm:$0xff]
    %v5991 = vld [vmem:[#allocation16 + $0x110] sm:$0xff]
    %v5992 = vld [vmem:[#allocation16 + $0x118] sm:$0xff]
    %v5993 = vld [vmem:[#allocation16 + $0x120] sm:$0xff]
    %v5994 = vld [vmem:[#allocation16 + $0x128] sm:$0xff]
    %v5995 = vld [vmem:[#allocation16 + $0x130] sm:$0xff]
    %v5996 = vld [vmem:[#allocation16 + $0x138] sm:$0xff]
    %v5997 = vld [vmem:[#allocation16 + $0x140] sm:$0xff]
    %v5998 = vld [vmem:[#allocation16 + $0x148] sm:$0xff]
    %v5999 = vld [vmem:[#allocation16 + $0x150] sm:$0xff]
    %v6000 = vld [vmem:[#allocation16 + $0x158] sm:$0xff]
    %v6001 = vld [vmem:[#allocation16 + $0x160] sm:$0xff]
    %v6002 = vld [vmem:[#allocation16 + $0x168] sm:$0xff]
    %v6003 = vld [vmem:[#allocation16 + $0x170] sm:$0xff]
    %v6004 = vld [vmem:[#allocation16 + $0x178] sm:$0xff]
    %v6005 = vld [vmem:[#allocation16 + $0x180] sm:$0xff]
    %v6006 = vld [vmem:[#allocation16 + $0x188] sm:$0xff]
    %v6007 = vld [vmem:[#allocation16 + $0x190] sm:$0xff]
    %v6008 = vld [vmem:[#allocation16 + $0x198] sm:$0xff]
    %v6009 = vld [vmem:[#allocation16 + $0x1a0] sm:$0xff]
    %v6010 = vld [vmem:[#allocation16 + $0x1a8] sm:$0xff]
    %v6011 = vld [vmem:[#allocation16 + $0x1b0] sm:$0xff]
    %v6012 = vld [vmem:[#allocation16 + $0x1b8] sm:$0xff]
    %v6013 = vld [vmem:[#allocation16 + $0x1c0] sm:$0xff]
    %v6014 = vld [vmem:[#allocation16 + $0x1c8] sm:$0xff]
    %v6015 = vld [vmem:[#allocation16 + $0x1d0] sm:$0xff]
    %v6016 = vld [vmem:[#allocation16 + $0x1d8] sm:$0xff]
    %v6017 = vld [vmem:[#allocation16 + $0x1e0] sm:$0xff]
    %v6018 = vld [vmem:[#allocation16 + $0x1e8] sm:$0xff]
    %v6019 = vld [vmem:[#allocation16 + $0x1f0] sm:$0xff]
    %v6020 = vld [vmem:[#allocation16 + $0x1f8] sm:$0xff]
    %v6021 = vld [vmem:[#allocation16 + $0x200] sm:$0xff]
    %v6022 = vld [vmem:[#allocation16 + $0x208] sm:$0xff]
    %v6023 = vld [vmem:[#allocation16 + $0x210] sm:$0xff]
    %v6024 = vld [vmem:[#allocation16 + $0x218] sm:$0xff]
    %v6025 = vld [vmem:[#allocation16 + $0x220] sm:$0xff]
    %v6026 = vld [vmem:[#allocation16 + $0x228] sm:$0xff]
    %v6027 = vld [vmem:[#allocation16 + $0x230] sm:$0xff]
    %v6028 = vld [vmem:[#allocation16 + $0x238] sm:$0xff]
    %v6029 = vld [vmem:[#allocation16 + $0x240] sm:$0xff]
    %v6030 = vld [vmem:[#allocation16 + $0x248] sm:$0xff]
    %v6031 = vld [vmem:[#allocation16 + $0x250] sm:$0xff]
    %v6032 = vld [vmem:[#allocation16 + $0x258] sm:$0xff]
    %v6033 = vld [vmem:[#allocation16 + $0x260] sm:$0xff]
    %v6034 = vld [vmem:[#allocation16 + $0x268] sm:$0xff]
    %v6035 = vld [vmem:[#allocation16 + $0x270] sm:$0xff]
    %v6036 = vld [vmem:[#allocation16 + $0x278] sm:$0xff]
    %v6037 = vld [vmem:[#allocation16 + $0x280] sm:$0xff]
    %v6038 = vld [vmem:[#allocation16 + $0x288] sm:$0xff]
    %v6039 = vld [vmem:[#allocation16 + $0x290] sm:$0xff]
    %v6040 = vld [vmem:[#allocation16 + $0x298] sm:$0xff]
    %v6041 = vld [vmem:[#allocation16 + $0x2a0] sm:$0xff]
    %v6042 = vld [vmem:[#allocation16 + $0x2a8] sm:$0xff]
    %v6043 = vld [vmem:[#allocation16 + $0x2b0] sm:$0xff]
    %v6044 = vld [vmem:[#allocation16 + $0x2b8] sm:$0xff]
    %v6045 = vld [vmem:[#allocation16 + $0x2c0] sm:$0xff]
    %v6046 = vld [vmem:[#allocation16 + $0x2c8] sm:$0xff]
    %v6047 = vld [vmem:[#allocation16 + $0x2d0] sm:$0xff]
    %v6048 = vld [vmem:[#allocation16 + $0x2d8] sm:$0xff]
    %v6049 = vld [vmem:[#allocation16 + $0x2e0] sm:$0xff]
    %v6050 = vld [vmem:[#allocation16 + $0x2e8] sm:$0xff]
    %v6051 = vld [vmem:[#allocation16 + $0x2f0] sm:$0xff]
    %v6052 = vld [vmem:[#allocation16 + $0x2f8] sm:$0xff]
    %v6053 = vld [vmem:[#allocation16 + $0x300] sm:$0xff]
    %v6054 = vld [vmem:[#allocation16 + $0x308] sm:$0xff]
    %v6055 = vld [vmem:[#allocation16 + $0x310] sm:$0xff]
    %v6056 = vld [vmem:[#allocation16 + $0x318] sm:$0xff]
    %v6057 = vld [vmem:[#allocation16 + $0x320] sm:$0xff]
    %v6058 = vld [vmem:[#allocation16 + $0x328] sm:$0xff]
    %v6059 = vld [vmem:[#allocation16 + $0x330] sm:$0xff]
    %v6060 = vld [vmem:[#allocation16 + $0x338] sm:$0xff]
    %v6061 = vld [vmem:[#allocation16 + $0x340] sm:$0xff]
    %v6062 = vld [vmem:[#allocation16 + $0x348] sm:$0xff]
    %v6063 = vld [vmem:[#allocation16 + $0x350] sm:$0xff]
    %v6064 = vld [vmem:[#allocation16 + $0x358] sm:$0xff]
    %v6065 = vld [vmem:[#allocation16 + $0x360] sm:$0xff]
    %v6066 = vld [vmem:[#allocation16 + $0x368] sm:$0xff]
    %v6067 = vld [vmem:[#allocation16 + $0x370] sm:$0xff]
    %v6068 = vld [vmem:[#allocation16 + $0x378] sm:$0xff]
    %v6069 = vld [vmem:[#allocation16 + $0x380] sm:$0xff]
    %v6070 = vld [vmem:[#allocation16 + $0x388] sm:$0xff]
    %v6071 = vld [vmem:[#allocation16 + $0x390] sm:$0xff]
    %v6072 = vld [vmem:[#allocation16 + $0x398] sm:$0xff]
    %v6073 = vld [vmem:[#allocation16 + $0x3a0] sm:$0xff]
    %v6074 = vld [vmem:[#allocation16 + $0x3a8] sm:$0xff]
    %v6075 = vld [vmem:[#allocation16 + $0x3b0] sm:$0xff]
    %v6076 = vld [vmem:[#allocation16 + $0x3b8] sm:$0xff]
    %v6077 = vld [vmem:[#allocation16 + $0x3c0] sm:$0xff]
    %v6078 = vld [vmem:[#allocation16 + $0x3c8] sm:$0xff]
    %v6079 = vld [vmem:[#allocation16 + $0x3d0] sm:$0xff]
    %v6080 = vld [vmem:[#allocation16 + $0x3d8] sm:$0xff]
    %v6081 = vld [vmem:[#allocation16 + $0x3e0] sm:$0xff]
    %v6082 = vld [vmem:[#allocation16 + $0x3e8] sm:$0xff]
    %v6083 = vld [vmem:[#allocation16 + $0x3f0] sm:$0xff]
    %v6084 = vld [vmem:[#allocation16 + $0x3f8] sm:$0xff]
    %v6085 = vld [vmem:[#allocation16 + $0x400] sm:$0xff]
    %v6086 = vld [vmem:[#allocation16 + $0x408] sm:$0xff]
    %v6087 = vld [vmem:[#allocation16 + $0x410] sm:$0xff]
    %v6088 = vld [vmem:[#allocation16 + $0x418] sm:$0xff]
    %v6089 = vld [vmem:[#allocation16 + $0x420] sm:$0xff]
    %v6090 = vld [vmem:[#allocation16 + $0x428] sm:$0xff]
    %v6091 = vld [vmem:[#allocation16 + $0x430] sm:$0xff]
    %v6092 = vld [vmem:[#allocation16 + $0x438] sm:$0xff]
    %v6093 = vld [vmem:[#allocation16 + $0x440] sm:$0xff]
    %v6094 = vld [vmem:[#allocation16 + $0x448] sm:$0xff]
    %v6095 = vld [vmem:[#allocation16 + $0x450] sm:$0xff]
    %v6096 = vld [vmem:[#allocation16 + $0x458] sm:$0xff]
    %v6097 = vld [vmem:[#allocation16 + $0x460] sm:$0xff]
    %v6098 = vld [vmem:[#allocation16 + $0x468] sm:$0xff]
    %v6099 = vld [vmem:[#allocation16 + $0x470] sm:$0xff]
    %v6100 = vld [vmem:[#allocation16 + $0x478] sm:$0xff]
    %v6101 = vld [vmem:[#allocation16 + $0x480] sm:$0xff]
    %v6102 = vld [vmem:[#allocation16 + $0x488] sm:$0xff]
    %v6103 = vld [vmem:[#allocation16 + $0x490] sm:$0xff]
    %v6104 = vld [vmem:[#allocation16 + $0x498] sm:$0xff]
    %v6105 = vld [vmem:[#allocation16 + $0x4a0] sm:$0xff]
    %v6106 = vld [vmem:[#allocation16 + $0x4a8] sm:$0xff]
    %v6107 = vld [vmem:[#allocation16 + $0x4b0] sm:$0xff]
    %v6108 = vld [vmem:[#allocation16 + $0x4b8] sm:$0xff]
    %v6109 = vld [vmem:[#allocation16 + $0x4c0] sm:$0xff]
    %v6110 = vld [vmem:[#allocation16 + $0x4c8] sm:$0xff]
    %v6111 = vld [vmem:[#allocation16 + $0x4d0] sm:$0xff]
    %v6112 = vld [vmem:[#allocation16 + $0x4d8] sm:$0xff]
    %v6113 = vld [vmem:[#allocation16 + $0x4e0] sm:$0xff]
    %v6114 = vld [vmem:[#allocation16 + $0x4e8] sm:$0xff]
    %v6115 = vld [vmem:[#allocation16 + $0x4f0] sm:$0xff]
    %v6116 = vld [vmem:[#allocation16 + $0x4f8] sm:$0xff]
    %v6117 = vld [vmem:[#allocation16 + $0x500] sm:$0xff]
    %v6118 = vld [vmem:[#allocation16 + $0x508] sm:$0xff]
    %v6119 = vld [vmem:[#allocation16 + $0x510] sm:$0xff]
    %v6120 = vld [vmem:[#allocation16 + $0x518] sm:$0xff]
    %v6121 = vld [vmem:[#allocation16 + $0x520] sm:$0xff]
    %v6122 = vld [vmem:[#allocation16 + $0x528] sm:$0xff]
    %v6123 = vld [vmem:[#allocation16 + $0x530] sm:$0xff]
    %v6124 = vld [vmem:[#allocation16 + $0x538] sm:$0xff]
    %v6125 = vld [vmem:[#allocation16 + $0x540] sm:$0xff]
    %v6126 = vld [vmem:[#allocation16 + $0x548] sm:$0xff]
    %v6127 = vld [vmem:[#allocation16 + $0x550] sm:$0xff]
    %v6128 = vld [vmem:[#allocation16 + $0x558] sm:$0xff]
    %v6129 = vld [vmem:[#allocation16 + $0x560] sm:$0xff]
    %v6130 = vld [vmem:[#allocation16 + $0x568] sm:$0xff]
    %v6131 = vld [vmem:[#allocation16 + $0x570] sm:$0xff]
    %v6132 = vld [vmem:[#allocation16 + $0x578] sm:$0xff]
    %v6133 = vld [vmem:[#allocation16 + $0x580] sm:$0xff]
    %v6134 = vld [vmem:[#allocation16 + $0x588] sm:$0xff]
    %v6135 = vld [vmem:[#allocation16 + $0x590] sm:$0xff]
    %v6136 = vld [vmem:[#allocation16 + $0x598] sm:$0xff]
    %v6137 = vld [vmem:[#allocation16 + $0x5a0] sm:$0xff]
    %v6138 = vld [vmem:[#allocation16 + $0x5a8] sm:$0xff]
    %v6139 = vld [vmem:[#allocation16 + $0x5b0] sm:$0xff]
    %v6140 = vld [vmem:[#allocation16 + $0x5b8] sm:$0xff]
    %v6141 = vld [vmem:[#allocation16 + $0x5c0] sm:$0xff]
    %v6142 = vld [vmem:[#allocation16 + $0x5c8] sm:$0xff]
    %v6143 = vld [vmem:[#allocation16 + $0x5d0] sm:$0xff]
    %v6144 = vld [vmem:[#allocation16 + $0x5d8] sm:$0xff]
    %v6145 = vld [vmem:[#allocation16 + $0x5e0] sm:$0xff]
    %v6146 = vld [vmem:[#allocation16 + $0x5e8] sm:$0xff]
    %v6147 = vld [vmem:[#allocation16 + $0x5f0] sm:$0xff]
    %v6148 = vld [vmem:[#allocation16 + $0x5f8] sm:$0xff]
    %v6149 = vld [vmem:[#allocation16 + $0x600] sm:$0xff]
    %v6150 = vld [vmem:[#allocation16 + $0x608] sm:$0xff]
    %v6151 = vld [vmem:[#allocation16 + $0x610] sm:$0xff]
    %v6152 = vld [vmem:[#allocation16 + $0x618] sm:$0xff]
    %v6153 = vld [vmem:[#allocation16 + $0x620] sm:$0xff]
    %v6154 = vld [vmem:[#allocation16 + $0x628] sm:$0xff]
    %v6155 = vld [vmem:[#allocation16 + $0x630] sm:$0xff]
    %v6156 = vld [vmem:[#allocation16 + $0x638] sm:$0xff]
    %v6157 = vld [vmem:[#allocation16 + $0x640] sm:$0xff]
    %v6158 = vld [vmem:[#allocation16 + $0x648] sm:$0xff]
    %v6159 = vld [vmem:[#allocation16 + $0x650] sm:$0xff]
    %v6160 = vld [vmem:[#allocation16 + $0x658] sm:$0xff]
    %v6161 = vld [vmem:[#allocation16 + $0x660] sm:$0xff]
    %v6162 = vld [vmem:[#allocation16 + $0x668] sm:$0xff]
    %v6163 = vld [vmem:[#allocation16 + $0x670] sm:$0xff]
    %v6164 = vld [vmem:[#allocation16 + $0x678] sm:$0xff]
    %v6165 = vld [vmem:[#allocation16 + $0x680] sm:$0xff]
    %v6166 = vld [vmem:[#allocation16 + $0x688] sm:$0xff]
    %v6167 = vld [vmem:[#allocation16 + $0x690] sm:$0xff]
    %v6168 = vld [vmem:[#allocation16 + $0x698] sm:$0xff]
    %v6169 = vld [vmem:[#allocation16 + $0x6a0] sm:$0xff]
    %v6170 = vld [vmem:[#allocation16 + $0x6a8] sm:$0xff]
    %v6171 = vld [vmem:[#allocation16 + $0x6b0] sm:$0xff]
    %v6172 = vld [vmem:[#allocation16 + $0x6b8] sm:$0xff]
    %v6173 = vld [vmem:[#allocation16 + $0x6c0] sm:$0xff]
    %v6174 = vld [vmem:[#allocation16 + $0x6c8] sm:$0xff]
    %v6175 = vld [vmem:[#allocation16 + $0x6d0] sm:$0xff]
    %v6176 = vld [vmem:[#allocation16 + $0x6d8] sm:$0xff]
    %v6177 = vld [vmem:[#allocation16 + $0x6e0] sm:$0xff]
    %v6178 = vld [vmem:[#allocation16 + $0x6e8] sm:$0xff]
    %v6179 = vld [vmem:[#allocation16 + $0x6f0] sm:$0xff]
    %v6180 = vld [vmem:[#allocation16 + $0x6f8] sm:$0xff]
    %v6181 = vld [vmem:[#allocation16 + $0x700] sm:$0xff]
    %v6182 = vld [vmem:[#allocation16 + $0x708] sm:$0xff]
    %v6183 = vld [vmem:[#allocation16 + $0x710] sm:$0xff]
    %v6184 = vld [vmem:[#allocation16 + $0x718] sm:$0xff]
    %v6185 = vld [vmem:[#allocation16 + $0x720] sm:$0xff]
    %v6186 = vld [vmem:[#allocation16 + $0x728] sm:$0xff]
    %v6187 = vld [vmem:[#allocation16 + $0x730] sm:$0xff]
    %v6188 = vld [vmem:[#allocation16 + $0x738] sm:$0xff]
    %v6189 = vld [vmem:[#allocation16 + $0x740] sm:$0xff]
    %v6190 = vld [vmem:[#allocation16 + $0x748] sm:$0xff]
    %v6191 = vld [vmem:[#allocation16 + $0x750] sm:$0xff]
    %v6192 = vld [vmem:[#allocation16 + $0x758] sm:$0xff]
    %v6193 = vld [vmem:[#allocation16 + $0x760] sm:$0xff]
    %v6194 = vld [vmem:[#allocation16 + $0x768] sm:$0xff]
    %v6195 = vld [vmem:[#allocation16 + $0x770] sm:$0xff]
    %v6196 = vld [vmem:[#allocation16 + $0x778] sm:$0xff]
    %v6197 = vld [vmem:[#allocation16 + $0x780] sm:$0xff]
    %v6198 = vld [vmem:[#allocation16 + $0x788] sm:$0xff]
    %v6199 = vld [vmem:[#allocation16 + $0x790] sm:$0xff]
    %v6200 = vld [vmem:[#allocation16 + $0x798] sm:$0xff]
    %v6201 = vld [vmem:[#allocation16 + $0x7a0] sm:$0xff]
    %v6202 = vld [vmem:[#allocation16 + $0x7a8] sm:$0xff]
    %v6203 = vld [vmem:[#allocation16 + $0x7b0] sm:$0xff]
    %v6204 = vld [vmem:[#allocation16 + $0x7b8] sm:$0xff]
    %v6205 = vld [vmem:[#allocation16 + $0x7c0] sm:$0xff]
    %v6206 = vld [vmem:[#allocation16 + $0x7c8] sm:$0xff]
    %v6207 = vld [vmem:[#allocation16 + $0x7d0] sm:$0xff]
    %v6208 = vld [vmem:[#allocation16 + $0x7d8] sm:$0xff]
    %v6209 = vld [vmem:[#allocation16 + $0x7e0] sm:$0xff]
    %v6210 = vld [vmem:[#allocation16 + $0x7e8] sm:$0xff]
    %v6211 = vld [vmem:[#allocation16 + $0x7f0] sm:$0xff]
    %v6212 = vld [vmem:[#allocation16 + $0x7f8] sm:$0xff]
    %v6213 = vld [vmem:[#allocation16 + $0x800] sm:$0xff]
    %v6214 = vld [vmem:[#allocation16 + $0x808] sm:$0xff]
    %v6215 = vld [vmem:[#allocation16 + $0x810] sm:$0xff]
    %v6216 = vld [vmem:[#allocation16 + $0x818] sm:$0xff]
    %v6217 = vld [vmem:[#allocation16 + $0x820] sm:$0xff]
    %v6218 = vld [vmem:[#allocation16 + $0x828] sm:$0xff]
    %v6219 = vld [vmem:[#allocation16 + $0x830] sm:$0xff]
    %v6220 = vld [vmem:[#allocation16 + $0x838] sm:$0xff]
    %v6221 = vld [vmem:[#allocation16 + $0x840] sm:$0xff]
    %v6222 = vld [vmem:[#allocation16 + $0x848] sm:$0xff]
    %v6223 = vld [vmem:[#allocation16 + $0x850] sm:$0xff]
    %v6224 = vld [vmem:[#allocation16 + $0x858] sm:$0xff]
    %v6225 = vld [vmem:[#allocation16 + $0x860] sm:$0xff]
    %v6226 = vld [vmem:[#allocation16 + $0x868] sm:$0xff]
    %v6227 = vld [vmem:[#allocation16 + $0x870] sm:$0xff]
    %v6228 = vld [vmem:[#allocation16 + $0x878] sm:$0xff]
    %v6229 = vld [vmem:[#allocation16 + $0x880] sm:$0xff]
    %v6230 = vld [vmem:[#allocation16 + $0x888] sm:$0xff]
    %v6231 = vld [vmem:[#allocation16 + $0x890] sm:$0xff]
    %v6232 = vld [vmem:[#allocation16 + $0x898] sm:$0xff]
    %v6233 = vld [vmem:[#allocation16 + $0x8a0] sm:$0xff]
    %v6234 = vld [vmem:[#allocation16 + $0x8a8] sm:$0xff]
    %v6235 = vld [vmem:[#allocation16 + $0x8b0] sm:$0xff]
    %v6236 = vld [vmem:[#allocation16 + $0x8b8] sm:$0xff]
    %v6237 = vld [vmem:[#allocation16 + $0x8c0] sm:$0xff]
    %v6238 = vld [vmem:[#allocation16 + $0x8c8] sm:$0xff]
    %v6239 = vld [vmem:[#allocation16 + $0x8d0] sm:$0xff]
    %v6240 = vld [vmem:[#allocation16 + $0x8d8] sm:$0xff]
    %v6241 = vld [vmem:[#allocation16 + $0x8e0] sm:$0xff]
    %v6242 = vld [vmem:[#allocation16 + $0x8e8] sm:$0xff]
    %v6243 = vld [vmem:[#allocation16 + $0x8f0] sm:$0xff]
    %v6244 = vld [vmem:[#allocation16 + $0x8f8] sm:$0xff]
    %v6245 = vld [vmem:[#allocation16 + $0x900] sm:$0xff]
    %v6246 = vld [vmem:[#allocation16 + $0x908] sm:$0xff]
    %v6247 = vld [vmem:[#allocation16 + $0x910] sm:$0xff]
    %v6248 = vld [vmem:[#allocation16 + $0x918] sm:$0xff]
    %v6249 = vld [vmem:[#allocation16 + $0x920] sm:$0xff]
    %v6250 = vld [vmem:[#allocation16 + $0x928] sm:$0xff]
    %v6251 = vld [vmem:[#allocation16 + $0x930] sm:$0xff]
    %v6252 = vld [vmem:[#allocation16 + $0x938] sm:$0xff]
    %v6253 = vld [vmem:[#allocation16 + $0x940] sm:$0xff]
    %v6254 = vld [vmem:[#allocation16 + $0x948] sm:$0xff]
    %v6255 = vld [vmem:[#allocation16 + $0x950] sm:$0xff]
    %v6256 = vld [vmem:[#allocation16 + $0x958] sm:$0xff]
    %v6257 = vld [vmem:[#allocation16 + $0x960] sm:$0xff]
    %v6258 = vld [vmem:[#allocation16 + $0x968] sm:$0xff]
    %v6259 = vld [vmem:[#allocation16 + $0x970] sm:$0xff]
    %v6260 = vld [vmem:[#allocation16 + $0x978] sm:$0xff]
    %v6261 = vld [vmem:[#allocation16 + $0x980] sm:$0xff]
    %v6262 = vld [vmem:[#allocation16 + $0x988] sm:$0xff]
    %v6263 = vld [vmem:[#allocation16 + $0x990] sm:$0xff]
    %v6264 = vld [vmem:[#allocation16 + $0x998] sm:$0xff]
    %v6265 = vld [vmem:[#allocation16 + $0x9a0] sm:$0xff]
    %v6266 = vld [vmem:[#allocation16 + $0x9a8] sm:$0xff]
    %v6267 = vld [vmem:[#allocation16 + $0x9b0] sm:$0xff]
    %v6268 = vld [vmem:[#allocation16 + $0x9b8] sm:$0xff]
    %v6269 = vld [vmem:[#allocation16 + $0x9c0] sm:$0xff]
    %v6270 = vld [vmem:[#allocation16 + $0x9c8] sm:$0xff]
    %v6271 = vld [vmem:[#allocation16 + $0x9d0] sm:$0xff]
    %v6272 = vld [vmem:[#allocation16 + $0x9d8] sm:$0xff]
    %v6273 = vld [vmem:[#allocation16 + $0x9e0] sm:$0xff]
    %v6274 = vld [vmem:[#allocation16 + $0x9e8] sm:$0xff]
    %v6275 = vld [vmem:[#allocation16 + $0x9f0] sm:$0xff]
    %v6276 = vld [vmem:[#allocation16 + $0x9f8] sm:$0xff]
    %v6277 = vld [vmem:[#allocation16 + $0xa00] sm:$0xff]
    %v6278 = vld [vmem:[#allocation16 + $0xa08] sm:$0xff]
    %v6279 = vld [vmem:[#allocation16 + $0xa10] sm:$0xff]
    %v6280 = vld [vmem:[#allocation16 + $0xa18] sm:$0xff]
    %v6281 = vld [vmem:[#allocation16 + $0xa20] sm:$0xff]
    %v6282 = vld [vmem:[#allocation16 + $0xa28] sm:$0xff]
    %v6283 = vld [vmem:[#allocation16 + $0xa30] sm:$0xff]
    %v6284 = vld [vmem:[#allocation16 + $0xa38] sm:$0xff]
    %v6285 = vld [vmem:[#allocation16 + $0xa40] sm:$0xff]
    %v6286 = vld [vmem:[#allocation16 + $0xa48] sm:$0xff]
    %v6287 = vld [vmem:[#allocation16 + $0xa50] sm:$0xff]
    %v6288 = vld [vmem:[#allocation16 + $0xa58] sm:$0xff]
    %v6289 = vld [vmem:[#allocation16 + $0xa60] sm:$0xff]
    %v6290 = vld [vmem:[#allocation16 + $0xa68] sm:$0xff]
    %v6291 = vld [vmem:[#allocation16 + $0xa70] sm:$0xff]
    %v6292 = vld [vmem:[#allocation16 + $0xa78] sm:$0xff]
    %v6293 = vld [vmem:[#allocation16 + $0xa80] sm:$0xff]
    %v6294 = vld [vmem:[#allocation16 + $0xa88] sm:$0xff]
    %v6295 = vld [vmem:[#allocation16 + $0xa90] sm:$0xff]
    %v6296 = vld [vmem:[#allocation16 + $0xa98] sm:$0xff]
    %v6297 = vld [vmem:[#allocation16 + $0xaa0] sm:$0xff]
    %v6298 = vld [vmem:[#allocation16 + $0xaa8] sm:$0xff]
    %v6299 = vld [vmem:[#allocation16 + $0xab0] sm:$0xff]
    %v6300 = vld [vmem:[#allocation16 + $0xab8] sm:$0xff]
    %v6301 = vld [vmem:[#allocation16 + $0xac0] sm:$0xff]
    %v6302 = vld [vmem:[#allocation16 + $0xac8] sm:$0xff]
    %v6303 = vld [vmem:[#allocation16 + $0xad0] sm:$0xff]
    %v6304 = vld [vmem:[#allocation16 + $0xad8] sm:$0xff]
    %v6305 = vld [vmem:[#allocation16 + $0xae0] sm:$0xff]
    %v6306 = vld [vmem:[#allocation16 + $0xae8] sm:$0xff]
    %v6307 = vld [vmem:[#allocation16 + $0xaf0] sm:$0xff]
    %v6308 = vld [vmem:[#allocation16 + $0xaf8] sm:$0xff]
    %v6309 = vld [vmem:[#allocation16 + $0xb00] sm:$0xff]
    %v6310 = vld [vmem:[#allocation16 + $0xb08] sm:$0xff]
    %v6311 = vld [vmem:[#allocation16 + $0xb10] sm:$0xff]
    %v6312 = vld [vmem:[#allocation16 + $0xb18] sm:$0xff]
    %v6313 = vld [vmem:[#allocation16 + $0xb20] sm:$0xff]
    %v6314 = vld [vmem:[#allocation16 + $0xb28] sm:$0xff]
    %v6315 = vld [vmem:[#allocation16 + $0xb30] sm:$0xff]
    %v6316 = vld [vmem:[#allocation16 + $0xb38] sm:$0xff]
    %v6317 = vld [vmem:[#allocation16 + $0xb40] sm:$0xff]
    %v6318 = vld [vmem:[#allocation16 + $0xb48] sm:$0xff]
    %v6319 = vld [vmem:[#allocation16 + $0xb50] sm:$0xff]
    %v6320 = vld [vmem:[#allocation16 + $0xb58] sm:$0xff]
    %v6321 = vld [vmem:[#allocation16 + $0xb60] sm:$0xff]
    %v6322 = vld [vmem:[#allocation16 + $0xb68] sm:$0xff]
    %v6323 = vld [vmem:[#allocation16 + $0xb70] sm:$0xff]
    %v6324 = vld [vmem:[#allocation16 + $0xb78] sm:$0xff]
    %v6325 = vld [vmem:[#allocation16 + $0xb80] sm:$0xff]
    %v6326 = vld [vmem:[#allocation16 + $0xb88] sm:$0xff]
    %v6327 = vld [vmem:[#allocation16 + $0xb90] sm:$0xff]
    %v6328 = vld [vmem:[#allocation16 + $0xb98] sm:$0xff]
    %v6329 = vld [vmem:[#allocation16 + $0xba0] sm:$0xff]
    %v6330 = vld [vmem:[#allocation16 + $0xba8] sm:$0xff]
    %v6331 = vld [vmem:[#allocation16 + $0xbb0] sm:$0xff]
    %v6332 = vld [vmem:[#allocation16 + $0xbb8] sm:$0xff]
    %v6333 = vld [vmem:[#allocation16 + $0xbc0] sm:$0xff]
    %v6334 = vld [vmem:[#allocation16 + $0xbc8] sm:$0xff]
    %v6335 = vld [vmem:[#allocation16 + $0xbd0] sm:$0xff]
    %v6336 = vld [vmem:[#allocation16 + $0xbd8] sm:$0xff]
    %v6337 = vld [vmem:[#allocation16 + $0xbe0] sm:$0xff]
    %v6338 = vld [vmem:[#allocation16 + $0xbe8] sm:$0xff]
    %v6339 = vld [vmem:[#allocation16 + $0xbf0] sm:$0xff]
    %v6340 = vld [vmem:[#allocation16 + $0xbf8] sm:$0xff]
    %v6341 = vld [vmem:[#allocation16 + $0xc00] sm:$0xff]
    %v6342 = vld [vmem:[#allocation16 + $0xc08] sm:$0xff]
    %v6343 = vld [vmem:[#allocation16 + $0xc10] sm:$0xff]
    %v6344 = vld [vmem:[#allocation16 + $0xc18] sm:$0xff]
    %v6345 = vld [vmem:[#allocation16 + $0xc20] sm:$0xff]
    %v6346 = vld [vmem:[#allocation16 + $0xc28] sm:$0xff]
    %v6347 = vld [vmem:[#allocation16 + $0xc30] sm:$0xff]
    %v6348 = vld [vmem:[#allocation16 + $0xc38] sm:$0xff]
    %v6349 = vld [vmem:[#allocation16 + $0xc40] sm:$0xff]
    %v6350 = vld [vmem:[#allocation16 + $0xc48] sm:$0xff]
    %v6351 = vld [vmem:[#allocation16 + $0xc50] sm:$0xff]
    %v6352 = vld [vmem:[#allocation16 + $0xc58] sm:$0xff]
    %v6353 = vld [vmem:[#allocation16 + $0xc60] sm:$0xff]
    %v6354 = vld [vmem:[#allocation16 + $0xc68] sm:$0xff]
    %v6355 = vld [vmem:[#allocation16 + $0xc70] sm:$0xff]
    %v6356 = vld [vmem:[#allocation16 + $0xc78] sm:$0xff]
    %v6357 = vld [vmem:[#allocation16 + $0xc80] sm:$0xff]
    %v6358 = vld [vmem:[#allocation16 + $0xc88] sm:$0xff]
    %v6359 = vld [vmem:[#allocation16 + $0xc90] sm:$0xff]
    %v6360 = vld [vmem:[#allocation16 + $0xc98] sm:$0xff]
    %v6361 = vld [vmem:[#allocation16 + $0xca0] sm:$0xff]
    %v6362 = vld [vmem:[#allocation16 + $0xca8] sm:$0xff]
    %v6363 = vld [vmem:[#allocation16 + $0xcb0] sm:$0xff]
    %v6364 = vld [vmem:[#allocation16 + $0xcb8] sm:$0xff]
    %v6365 = vld [vmem:[#allocation16 + $0xcc0] sm:$0xff]
    %v6366 = vld [vmem:[#allocation16 + $0xcc8] sm:$0xff]
    %v6367 = vld [vmem:[#allocation16 + $0xcd0] sm:$0xff]
    %v6368 = vld [vmem:[#allocation16 + $0xcd8] sm:$0xff]
    %v6369 = vld [vmem:[#allocation16 + $0xce0] sm:$0xff]
    %v6370 = vld [vmem:[#allocation16 + $0xce8] sm:$0xff]
    %v6371 = vld [vmem:[#allocation16 + $0xcf0] sm:$0xff]
    %v6372 = vld [vmem:[#allocation16 + $0xcf8] sm:$0xff]
    %v6373 = vld [vmem:[#allocation16 + $0xd00] sm:$0xff]
    %v6374 = vld [vmem:[#allocation16 + $0xd08] sm:$0xff]
    %v6375 = vld [vmem:[#allocation16 + $0xd10] sm:$0xff]
    %v6376 = vld [vmem:[#allocation16 + $0xd18] sm:$0xff]
    %v6377 = vld [vmem:[#allocation16 + $0xd20] sm:$0xff]
    %v6378 = vld [vmem:[#allocation16 + $0xd28] sm:$0xff]
    %v6379 = vld [vmem:[#allocation16 + $0xd30] sm:$0xff]
    %v6380 = vld [vmem:[#allocation16 + $0xd38] sm:$0xff]
    %v6381 = vld [vmem:[#allocation16 + $0xd40] sm:$0xff]
    %v6382 = vld [vmem:[#allocation16 + $0xd48] sm:$0xff]
    %v6383 = vld [vmem:[#allocation16 + $0xd50] sm:$0xff]
    %v6384 = vld [vmem:[#allocation16 + $0xd58] sm:$0xff]
    %v6385 = vld [vmem:[#allocation16 + $0xd60] sm:$0xff]
    %v6386 = vld [vmem:[#allocation16 + $0xd68] sm:$0xff]
    %v6387 = vld [vmem:[#allocation16 + $0xd70] sm:$0xff]
    %v6388 = vld [vmem:[#allocation16 + $0xd78] sm:$0xff]
    %v6389 = vld [vmem:[#allocation16 + $0xd80] sm:$0xff]
    %v6390 = vld [vmem:[#allocation16 + $0xd88] sm:$0xff]
    %v6391 = vld [vmem:[#allocation16 + $0xd90] sm:$0xff]
    %v6392 = vld [vmem:[#allocation16 + $0xd98] sm:$0xff]
    %v6393 = vld [vmem:[#allocation16 + $0xda0] sm:$0xff]
    %v6394 = vld [vmem:[#allocation16 + $0xda8] sm:$0xff]
    %v6395 = vld [vmem:[#allocation16 + $0xdb0] sm:$0xff]
    %v6396 = vld [vmem:[#allocation16 + $0xdb8] sm:$0xff]
    %v6397 = vld [vmem:[#allocation16 + $0xdc0] sm:$0xff]
    %v6398 = vld [vmem:[#allocation16 + $0xdc8] sm:$0xff]
    %v6399 = vld [vmem:[#allocation16 + $0xdd0] sm:$0xff]
    %v6400 = vld [vmem:[#allocation16 + $0xdd8] sm:$0xff]
    %v6401 = vld [vmem:[#allocation16 + $0xde0] sm:$0xff]
    %v6402 = vld [vmem:[#allocation16 + $0xde8] sm:$0xff]
    %v6403 = vld [vmem:[#allocation16 + $0xdf0] sm:$0xff]
    %v6404 = vld [vmem:[#allocation16 + $0xdf8] sm:$0xff]
    %v6405 = vld [vmem:[#allocation16 + $0xe00] sm:$0xff]
    %v6406 = vld [vmem:[#allocation16 + $0xe08] sm:$0xff]
    %v6407 = vld [vmem:[#allocation16 + $0xe10] sm:$0xff]
    %v6408 = vld [vmem:[#allocation16 + $0xe18] sm:$0xff]
    %v6409 = vld [vmem:[#allocation16 + $0xe20] sm:$0xff]
    %v6410 = vld [vmem:[#allocation16 + $0xe28] sm:$0xff]
    %v6411 = vld [vmem:[#allocation16 + $0xe30] sm:$0xff]
    %v6412 = vld [vmem:[#allocation16 + $0xe38] sm:$0xff]
    %v6413 = vld [vmem:[#allocation16 + $0xe40] sm:$0xff]
    %v6414 = vld [vmem:[#allocation16 + $0xe48] sm:$0xff]
    %v6415 = vld [vmem:[#allocation16 + $0xe50] sm:$0xff]
    %v6416 = vld [vmem:[#allocation16 + $0xe58] sm:$0xff]
    %v6417 = vld [vmem:[#allocation16 + $0xe60] sm:$0xff]
    %v6418 = vld [vmem:[#allocation16 + $0xe68] sm:$0xff]
    %v6419 = vld [vmem:[#allocation16 + $0xe70] sm:$0xff]
    %v6420 = vld [vmem:[#allocation16 + $0xe78] sm:$0xff]
    %v6421 = vld [vmem:[#allocation16 + $0xe80] sm:$0xff]
    %v6422 = vld [vmem:[#allocation16 + $0xe88] sm:$0xff]
    %v6423 = vld [vmem:[#allocation16 + $0xe90] sm:$0xff]
    %v6424 = vld [vmem:[#allocation16 + $0xe98] sm:$0xff]
    %v6425 = vld [vmem:[#allocation16 + $0xea0] sm:$0xff]
    %v6426 = vld [vmem:[#allocation16 + $0xea8] sm:$0xff]
    %v6427 = vld [vmem:[#allocation16 + $0xeb0] sm:$0xff]
    %v6428 = vld [vmem:[#allocation16 + $0xeb8] sm:$0xff]
    %v6429 = vld [vmem:[#allocation16 + $0xec0] sm:$0xff]
    %v6430 = vld [vmem:[#allocation16 + $0xec8] sm:$0xff]
    %v6431 = vld [vmem:[#allocation16 + $0xed0] sm:$0xff]
    %v6432 = vld [vmem:[#allocation16 + $0xed8] sm:$0xff]
    %v6433 = vld [vmem:[#allocation16 + $0xee0] sm:$0xff]
    %v6434 = vld [vmem:[#allocation16 + $0xee8] sm:$0xff]
    %v6435 = vld [vmem:[#allocation16 + $0xef0] sm:$0xff]
    %v6436 = vld [vmem:[#allocation16 + $0xef8] sm:$0xff]
    %v6437 = vld [vmem:[#allocation16 + $0xf00] sm:$0xff]
    %v6438 = vld [vmem:[#allocation16 + $0xf08] sm:$0xff]
    %v6439 = vld [vmem:[#allocation16 + $0xf10] sm:$0xff]
    %v6440 = vld [vmem:[#allocation16 + $0xf18] sm:$0xff]
    %v6441 = vld [vmem:[#allocation16 + $0xf20] sm:$0xff]
    %v6442 = vld [vmem:[#allocation16 + $0xf28] sm:$0xff]
    %v6443 = vld [vmem:[#allocation16 + $0xf30] sm:$0xff]
    %v6444 = vld [vmem:[#allocation16 + $0xf38] sm:$0xff]
    %v6445 = vld [vmem:[#allocation16 + $0xf40] sm:$0xff]
    %v6446 = vld [vmem:[#allocation16 + $0xf48] sm:$0xff]
    %v6447 = vld [vmem:[#allocation16 + $0xf50] sm:$0xff]
    %v6448 = vld [vmem:[#allocation16 + $0xf58] sm:$0xff]
    %v6449 = vld [vmem:[#allocation16 + $0xf60] sm:$0xff]
    %v6450 = vld [vmem:[#allocation16 + $0xf68] sm:$0xff]
    %v6451 = vld [vmem:[#allocation16 + $0xf70] sm:$0xff]
    %v6452 = vld [vmem:[#allocation16 + $0xf78] sm:$0xff]
    %v6453 = vld [vmem:[#allocation16 + $0xf80] sm:$0xff]
    %v6454 = vld [vmem:[#allocation16 + $0xf88] sm:$0xff]
    %v6455 = vld [vmem:[#allocation16 + $0xf90] sm:$0xff]
    %v6456 = vld [vmem:[#allocation16 + $0xf98] sm:$0xff]
    %v6457 = vld [vmem:[#allocation16 + $0xfa0] sm:$0xff]
    %v6458 = vld [vmem:[#allocation16 + $0xfa8] sm:$0xff]
    %v6459 = vld [vmem:[#allocation16 + $0xfb0] sm:$0xff]
    %v6460 = vld [vmem:[#allocation16 + $0xfb8] sm:$0xff]
    %v6461 = vld [vmem:[#allocation16 + $0xfc0] sm:$0xff]
    %v6462 = vld [vmem:[#allocation16 + $0xfc8] sm:$0xff]
    %v6463 = vld [vmem:[#allocation16 + $0xfd0] sm:$0xff]
    %v6464 = vld [vmem:[#allocation16 + $0xfd8] sm:$0xff]
    %v6465 = vld [vmem:[#allocation16 + $0xfe0] sm:$0xff]
    %v6466 = vld [vmem:[#allocation16 + $0xfe8] sm:$0xff]
    %v6467 = vld [vmem:[#allocation16 + $0xff0] sm:$0xff]
    %v6468 = vld [vmem:[#allocation16 + $0xff8] sm:$0xff]
    %v6469 = vld [vmem:[#allocation16 + $0x1000] sm:$0xff]
    %v6470 = vld [vmem:[#allocation16 + $0x1008] sm:$0xff]
    %v6471 = vld [vmem:[#allocation16 + $0x1010] sm:$0xff]
    %v6472 = vld [vmem:[#allocation16 + $0x1018] sm:$0xff]
    %v6473 = vld [vmem:[#allocation16 + $0x1020] sm:$0xff]
    %v6474 = vld [vmem:[#allocation16 + $0x1028] sm:$0xff]
    %v6475 = vld [vmem:[#allocation16 + $0x1030] sm:$0xff]
    %v6476 = vld [vmem:[#allocation16 + $0x1038] sm:$0xff]
    %v6477 = vld [vmem:[#allocation16 + $0x1040] sm:$0xff]
    %v6478 = vld [vmem:[#allocation16 + $0x1048] sm:$0xff]
    %v6479 = vld [vmem:[#allocation16 + $0x1050] sm:$0xff]
    %v6480 = vld [vmem:[#allocation16 + $0x1058] sm:$0xff]
    %v6481 = vld [vmem:[#allocation16 + $0x1060] sm:$0xff]
    %v6482 = vld [vmem:[#allocation16 + $0x1068] sm:$0xff]
    %v6483 = vld [vmem:[#allocation16 + $0x1070] sm:$0xff]
    %v6484 = vld [vmem:[#allocation16 + $0x1078] sm:$0xff]
    %v6485 = vld [vmem:[#allocation16 + $0x1080] sm:$0xff]
    %v6486 = vld [vmem:[#allocation16 + $0x1088] sm:$0xff]
    %v6487 = vld [vmem:[#allocation16 + $0x1090] sm:$0xff]
    %v6488 = vld [vmem:[#allocation16 + $0x1098] sm:$0xff]
    %v6489 = vld [vmem:[#allocation16 + $0x10a0] sm:$0xff]
    %v6490 = vld [vmem:[#allocation16 + $0x10a8] sm:$0xff]
    %v6491 = vld [vmem:[#allocation16 + $0x10b0] sm:$0xff]
    %v6492 = vld [vmem:[#allocation16 + $0x10b8] sm:$0xff]
    %v6493 = vld [vmem:[#allocation16 + $0x10c0] sm:$0xff]
    %v6494 = vld [vmem:[#allocation16 + $0x10c8] sm:$0xff]
    %v6495 = vld [vmem:[#allocation16 + $0x10d0] sm:$0xff]
    %v6496 = vld [vmem:[#allocation16 + $0x10d8] sm:$0xff]
    %v6497 = vld [vmem:[#allocation16 + $0x10e0] sm:$0xff]
    %v6498 = vld [vmem:[#allocation16 + $0x10e8] sm:$0xff]
    %v6499 = vld [vmem:[#allocation16 + $0x10f0] sm:$0xff]
    %v6500 = vld [vmem:[#allocation16 + $0x10f8] sm:$0xff]
    %v6501 = vld [vmem:[#allocation16 + $0x1100] sm:$0xff]
    %v6502 = vld [vmem:[#allocation16 + $0x1108] sm:$0xff]
    %v6503 = vld [vmem:[#allocation16 + $0x1110] sm:$0xff]
    %v6504 = vld [vmem:[#allocation16 + $0x1118] sm:$0xff]
    %v6505 = vld [vmem:[#allocation16 + $0x1120] sm:$0xff]
    %v6506 = vld [vmem:[#allocation16 + $0x1128] sm:$0xff]
    %v6507 = vld [vmem:[#allocation16 + $0x1130] sm:$0xff]
    %v6508 = vld [vmem:[#allocation16 + $0x1138] sm:$0xff]
    %v6509 = vld [vmem:[#allocation16 + $0x1140] sm:$0xff]
    %v6510 = vld [vmem:[#allocation16 + $0x1148] sm:$0xff]
    %v6511 = vld [vmem:[#allocation16 + $0x1150] sm:$0xff]
    %v6512 = vld [vmem:[#allocation16 + $0x1158] sm:$0xff]
    %v6513 = vld [vmem:[#allocation16 + $0x1160] sm:$0xff]
    %v6514 = vld [vmem:[#allocation16 + $0x1168] sm:$0xff]
    %v6515 = vld [vmem:[#allocation16 + $0x1170] sm:$0xff]
    %v6516 = vld [vmem:[#allocation16 + $0x1178] sm:$0xff]
    %v6517 = vld [vmem:[#allocation16 + $0x1180] sm:$0xff]
    %v6518 = vld [vmem:[#allocation16 + $0x1188] sm:$0xff]
    %v6519 = vld [vmem:[#allocation16 + $0x1190] sm:$0xff]
    %v6520 = vld [vmem:[#allocation16 + $0x1198] sm:$0xff]
    %v6521 = vld [vmem:[#allocation16 + $0x11a0] sm:$0xff]
    %v6522 = vld [vmem:[#allocation16 + $0x11a8] sm:$0xff]
    %v6523 = vld [vmem:[#allocation16 + $0x11b0] sm:$0xff]
    %v6524 = vld [vmem:[#allocation16 + $0x11b8] sm:$0xff]
    %v6525 = vld [vmem:[#allocation16 + $0x11c0] sm:$0xff]
    %v6526 = vld [vmem:[#allocation16 + $0x11c8] sm:$0xff]
    %v6527 = vld [vmem:[#allocation16 + $0x11d0] sm:$0xff]
    %v6528 = vld [vmem:[#allocation16 + $0x11d8] sm:$0xff]
    %v6529 = vld [vmem:[#allocation16 + $0x11e0] sm:$0xff]
    %v6530 = vld [vmem:[#allocation16 + $0x11e8] sm:$0xff]
    %v6531 = vld [vmem:[#allocation16 + $0x11f0] sm:$0xff]
    %v6532 = vld [vmem:[#allocation16 + $0x11f8] sm:$0xff]
    %v6533 = vld [vmem:[#allocation17] sm:$0x3f]
    %v6535 = vlaneseq
    %v6536 = vshrl.u32 %v6535, 7
    %v6537 = vsub.s32 0, %v6536
    %v6538 = vrot.slane %v6533, %v6537
    %v6539 = vlaneseq
    %v6540 = vshrl.u32 %v6539, 7
    %v6541 = vsub.s32 1, %v6540
    %v6542 = vrot.slane %v6533, %v6541
    %v6543 = vlaneseq
    %v6544 = vshrl.u32 %v6543, 7
    %v6545 = vsub.s32 2, %v6544
    %v6546 = vrot.slane %v6533, %v6545
    %v6547 = vlaneseq
    %v6548 = vshrl.u32 %v6547, 7
    %v6549 = vsub.s32 3, %v6548
    %v6550 = vrot.slane %v6533, %v6549
    %v6551 = vlaneseq
    %v6552 = vshrl.u32 %v6551, 7
    %v6553 = vsub.s32 4, %v6552
    %v6554 = vrot.slane %v6533, %v6553
    %v6555 = vlaneseq
    %v6556 = vshrl.u32 %v6555, 7
    %v6557 = vsub.s32 5, %v6556
    %v6558 = vrot.slane %v6533, %v6557
    %6565 = vmatprep.subr.mxu0 %v5958
    %6566 = vmatpush1.msra.mxu0 %v5957
    %6567 = vmatprep.subr.mxu0 %v5964
    %6568 = vmatpush1.msra.mxu0 %v5963
    %6569 = vmatprep.subr.mxu0 %v5970
    %6570 = vmatpush1.msra.mxu0 %v5969
    %6571 = vmatprep.subr.mxu0 %v5976
    %6572 = vmatpush1.msra.mxu0 %v5975
    %6573 = vmatprep.subr.mxu0 %v5982
    %6574 = vmatpush1.msra.mxu0 %v5981
    %6575 = vmatprep.subr.mxu0 %v5988
    %6576 = vmatpush1.msra.mxu0 %v5987
    %6577 = vmatprep.subr.mxu0 %v5994
    %6578 = vmatpush1.msra.mxu0 %v5993
    %6579 = vmatprep.subr.mxu0 %v6000
    %6580 = vmatpush1.msra.mxu0 %v5999
    %6581 = vmatprep.subr.mxu0 %v6006
    %6582 = vmatpush1.msra.mxu0 %v6005
    %6583 = vmatprep.subr.mxu0 %v6012
    %6584 = vmatpush1.msra.mxu0 %v6011
    %6585 = vmatprep.subr.mxu0 %v6018
    %6586 = vmatpush1.msra.mxu0 %v6017
    %6587 = vmatprep.subr.mxu0 %v6024
    %6588 = vmatpush1.msra.mxu0 %v6023
    %6589 = vmatprep.subr.mxu0 %v6030
    %6590 = vmatpush1.msra.mxu0 %v6029
    %6591 = vmatprep.subr.mxu0 %v6036
    %6592 = vmatpush1.msra.mxu0 %v6035
    %6593 = vmatprep.subr.mxu0 %v6042
    %6594 = vmatpush1.msra.mxu0 %v6041
    %6595 = vmatprep.subr.mxu0 %v6048
    %6596 = vmatpush1.msra.mxu0 %v6047
    %6597 = vmatprep.subr.mxu0 %v6054
    %6598 = vmatpush1.msra.mxu0 %v6053
    %6599 = vmatprep.subr.mxu0 %v6060
    %6600 = vmatpush1.msra.mxu0 %v6059
    %6601 = vmatprep.subr.mxu0 %v6066
    %6602 = vmatpush1.msra.mxu0 %v6065
    %6603 = vmatprep.subr.mxu0 %v6072
    %6604 = vmatpush1.msra.mxu0 %v6071
    %6605 = vmatprep.subr.mxu0 %v6078
    %6606 = vmatpush1.msra.mxu0 %v6077
    %6607 = vmatprep.subr.mxu0 %v6084
    %6608 = vmatpush1.msra.mxu0 %v6083
    %6609 = vmatprep.subr.mxu0 %v6090
    %6610 = vmatpush1.msra.mxu0 %v6089
    %6611 = vmatprep.subr.mxu0 %v6096
    %6612 = vmatpush1.msra.mxu0 %v6095
    %6613 = vmatprep.subr.mxu0 %v6102
    %6614 = vmatpush1.msra.mxu0 %v6101
    %6615 = vmatprep.subr.mxu0 %v6108
    %6616 = vmatpush1.msra.mxu0 %v6107
    %6617 = vmatprep.subr.mxu0 %v6114
    %6618 = vmatpush1.msra.mxu0 %v6113
    %6619 = vmatprep.subr.mxu0 %v6120
    %6620 = vmatpush1.msra.mxu0 %v6119
    %6621 = vmatprep.subr.mxu0 %v6126
    %6622 = vmatpush1.msra.mxu0 %v6125
    %6623 = vmatprep.subr.mxu0 %v6132
    %6624 = vmatpush1.msra.mxu0 %v6131
    %6625 = vmatprep.subr.mxu0 %v6138
    %6626 = vmatpush1.msra.mxu0 %v6137
    %6627 = vmatprep.subr.mxu0 %v6144
    %6628 = vmatpush1.msra.mxu0 %v6143
    %6629 = vmatprep.mubr.f32.mxu0 %v5952
    %6630 = vmatmul.mubr.f32.gmra.mrb[0].mxu0 %v5951
    %v6631 = vpop.f32.mrb[0].mxu0
    %v6632 = vadd.f32 %v6538, %v6631
    %v6633 = vpop.f32.mrb[0].mxu0
    %v6634 = vadd.f32 %v6542, %v6633
    %6635 = vdwg.mxu0
    %6636 = vmatprep.subr.mxu0 %v6150
    %6637 = vmatpush1.msra.mxu0 %v6149
    %6638 = vmatprep.subr.mxu0 %v6156
    %6639 = vmatpush1.msra.mxu0 %v6155
    %6640 = vmatprep.subr.mxu0 %v6162
    %6641 = vmatpush1.msra.mxu0 %v6161
    %6642 = vmatprep.subr.mxu0 %v6168
    %6643 = vmatpush1.msra.mxu0 %v6167
    %6644 = vmatprep.subr.mxu0 %v6174
    %6645 = vmatpush1.msra.mxu0 %v6173
    %6646 = vmatprep.subr.mxu0 %v6180
    %6647 = vmatpush1.msra.mxu0 %v6179
    %6648 = vmatprep.subr.mxu0 %v6186
    %6649 = vmatpush1.msra.mxu0 %v6185
    %6650 = vmatprep.subr.mxu0 %v6192
    %6651 = vmatpush1.msra.mxu0 %v6191
    %6652 = vmatprep.subr.mxu0 %v6198
    %6653 = vmatpush1.msra.mxu0 %v6197
    %6654 = vmatprep.subr.mxu0 %v6204
    %6655 = vmatpush1.msra.mxu0 %v6203
    %6656 = vmatprep.subr.mxu0 %v6210
    %6657 = vmatpush1.msra.mxu0 %v6209
    %6658 = vmatprep.subr.mxu0 %v6216
    %6659 = vmatpush1.msra.mxu0 %v6215
    %6660 = vmatprep.subr.mxu0 %v6222
    %6661 = vmatpush1.msra.mxu0 %v6221
    %6662 = vmatprep.subr.mxu0 %v6228
    %6663 = vmatpush1.msra.mxu0 %v6227
    %6664 = vmatprep.subr.mxu0 %v6234
    %6665 = vmatpush1.msra.mxu0 %v6233
    %6666 = vmatprep.subr.mxu0 %v6240
    %6667 = vmatpush1.msra.mxu0 %v6239
    %6668 = vmatprep.subr.mxu0 %v6246
    %6669 = vmatpush1.msra.mxu0 %v6245
    %6670 = vmatprep.subr.mxu0 %v6252
    %6671 = vmatpush1.msra.mxu0 %v6251
    %6672 = vmatprep.subr.mxu0 %v6258
    %6673 = vmatpush1.msra.mxu0 %v6257
    %6674 = vmatprep.subr.mxu0 %v6264
    %6675 = vmatpush1.msra.mxu0 %v6263
    %6676 = vmatprep.subr.mxu0 %v6270
    %6677 = vmatpush1.msra.mxu0 %v6269
    %6678 = vmatprep.subr.mxu0 %v6276
    %6679 = vmatpush1.msra.mxu0 %v6275
    %6680 = vmatprep.subr.mxu0 %v6282
    %6681 = vmatpush1.msra.mxu0 %v6281
    %6682 = vmatprep.subr.mxu0 %v6288
    %6683 = vmatpush1.msra.mxu0 %v6287
    %6684 = vmatprep.subr.mxu0 %v6294
    %6685 = vmatpush1.msra.mxu0 %v6293
    %6686 = vmatprep.subr.mxu0 %v6300
    %6687 = vmatpush1.msra.mxu0 %v6299
    %6688 = vmatprep.subr.mxu0 %v6306
    %6689 = vmatpush1.msra.mxu0 %v6305
    %6690 = vmatprep.subr.mxu0 %v6312
    %6691 = vmatpush1.msra.mxu0 %v6311
    %6692 = vmatprep.subr.mxu0 %v6318
    %6693 = vmatpush1.msra.mxu0 %v6317
    %6694 = vmatprep.subr.mxu0 %v6324
    %6695 = vmatpush1.msra.mxu0 %v6323
    %6696 = vmatprep.subr.mxu0 %v6330
    %6697 = vmatpush1.msra.mxu0 %v6329
    %6698 = vmatprep.subr.mxu0 %v6336
    %6699 = vmatpush1.msra.mxu0 %v6335
    %6700 = vmatprep.mubr.f32.mxu0 %v5954
    %6701 = vmatmul.mubr.f32.gmra.mrb[0].mxu0 %v5953
    %v6702 = vpop.f32.mrb[0].mxu0
    %v6703 = vadd.f32 %v6632, %v6702
    %v6704 = vpop.f32.mrb[0].mxu0
    %v6705 = vadd.f32 %v6634, %v6704
    %6706 = vdwg.mxu0
    %6707 = vmatprep.subr.mxu0 %v6342
    %6708 = vmatpush1.msra.mxu0 %v6341
    %6709 = vmatprep.subr.mxu0 %v6348
    %6710 = vmatpush1.msra.mxu0 %v6347
    %6711 = vmatprep.subr.mxu0 %v6354
    %6712 = vmatpush1.msra.mxu0 %v6353
    %6713 = vmatprep.subr.mxu0 %v6360
    %6714 = vmatpush1.msra.mxu0 %v6359
    %6715 = vmatprep.subr.mxu0 %v6366
    %6716 = vmatpush1.msra.mxu0 %v6365
    %6717 = vmatprep.subr.mxu0 %v6372
    %6718 = vmatpush1.msra.mxu0 %v6371
    %6719 = vmatprep.subr.mxu0 %v6378
    %6720 = vmatpush1.msra.mxu0 %v6377
    %6721 = vmatprep.subr.mxu0 %v6384
    %6722 = vmatpush1.msra.mxu0 %v6383
    %6723 = vmatprep.subr.mxu0 %v6390
    %6724 = vmatpush1.msra.mxu0 %v6389
    %6725 = vmatprep.subr.mxu0 %v6396
    %6726 = vmatpush1.msra.mxu0 %v6395
    %6727 = vmatprep.subr.mxu0 %v6402
    %6728 = vmatpush1.msra.mxu0 %v6401
    %6729 = vmatprep.subr.mxu0 %v6408
    %6730 = vmatpush1.msra.mxu0 %v6407
    %6731 = vmatprep.subr.mxu0 %v6414
    %6732 = vmatpush1.msra.mxu0 %v6413
    %6733 = vmatprep.subr.mxu0 %v6420
    %6734 = vmatpush1.msra.mxu0 %v6419
    %6735 = vmatprep.subr.mxu0 %v6426
    %6736 = vmatpush1.msra.mxu0 %v6425
    %6737 = vmatprep.subr.mxu0 %v6432
    %6738 = vmatpush1.msra.mxu0 %v6431
    %6739 = vmatprep.subr.mxu0 %v6438
    %6740 = vmatpush1.msra.mxu0 %v6437
    %6741 = vmatprep.subr.mxu0 %v6444
    %6742 = vmatpush1.msra.mxu0 %v6443
    %6743 = vmatprep.subr.mxu0 %v6450
    %6744 = vmatpush1.msra.mxu0 %v6449
    %6745 = vmatprep.subr.mxu0 %v6456
    %6746 = vmatpush1.msra.mxu0 %v6455
    %6747 = vmatprep.subr.mxu0 %v6462
    %6748 = vmatpush1.msra.mxu0 %v6461
    %6749 = vmatprep.subr.mxu0 %v6468
    %6750 = vmatpush1.msra.mxu0 %v6467
    %6751 = vmatprep.subr.mxu0 %v6474
    %6752 = vmatpush1.msra.mxu0 %v6473
    %6753 = vmatprep.subr.mxu0 %v6480
    %6754 = vmatpush1.msra.mxu0 %v6479
    %6755 = vmatprep.subr.mxu0 %v6486
    %6756 = vmatpush1.msra.mxu0 %v6485
    %6757 = vmatprep.subr.mxu0 %v6492
    %6758 = vmatpush1.msra.mxu0 %v6491
    %6759 = vmatprep.subr.mxu0 %v6498
    %6760 = vmatpush1.msra.mxu0 %v6497
    %6761 = vmatprep.subr.mxu0 %v6504
    %6762 = vmatpush1.msra.mxu0 %v6503
    %6763 = vmatprep.subr.mxu0 %v6510
    %6764 = vmatpush1.msra.mxu0 %v6509
    %6765 = vmatprep.subr.mxu0 %v6516
    %6766 = vmatpush1.msra.mxu0 %v6515
    %6767 = vmatprep.subr.mxu0 %v6522
    %6768 = vmatpush1.msra.mxu0 %v6521
    %6769 = vmatprep.subr.mxu0 %v6528
    %6770 = vmatpush1.msra.mxu0 %v6527
    %6771 = vmatprep.mubr.f32.mxu0 %v5956
    %6772 = vmatmul.mubr.f32.gmra.mrb[0].mxu0 %v5955
    %v6773 = vpop.f32.mrb[0].mxu0
    %v6774 = vadd.f32 %v6703, %v6773
    %v6775 = vpop.f32.mrb[0].mxu0
    %v6776 = vadd.f32 %v6705, %v6775
    %6777 = vdwg.mxu0
    %6778 = vmatprep.subr.mxu0 %v5960
    %6779 = vmatpush1.msra.mxu0 %v5959
    %6780 = vmatprep.subr.mxu0 %v5966
    %6781 = vmatpush1.msra.mxu0 %v5965
    %6782 = vmatprep.subr.mxu0 %v5972
    %6783 = vmatpush1.msra.mxu0 %v5971
    %6784 = vmatprep.subr.mxu0 %v5978
    %6785 = vmatpush1.msra.mxu0 %v5977
    %6786 = vmatprep.subr.mxu0 %v5984
    %6787 = vmatpush1.msra.mxu0 %v5983
    %6788 = vmatprep.subr.mxu0 %v5990
    %6789 = vmatpush1.msra.mxu0 %v5989
    %6790 = vmatprep.subr.mxu0 %v5996
    %6791 = vmatpush1.msra.mxu0 %v5995
    %6792 = vmatprep.subr.mxu0 %v6002
    %6793 = vmatpush1.msra.mxu0 %v6001
    %6794 = vmatprep.subr.mxu0 %v6008
    %6795 = vmatpush1.msra.mxu0 %v6007
    %6796 = vmatprep.subr.mxu0 %v6014
    %6797 = vmatpush1.msra.mxu0 %v6013
    %6798 = vmatprep.subr.mxu0 %v6020
    %6799 = vmatpush1.msra.mxu0 %v6019
    %6800 = vmatprep.subr.mxu0 %v6026
    %6801 = vmatpush1.msra.mxu0 %v6025
    %6802 = vmatprep.subr.mxu0 %v6032
    %6803 = vmatpush1.msra.mxu0 %v6031
    %6804 = vmatprep.subr.mxu0 %v6038
    %6805 = vmatpush1.msra.mxu0 %v6037
    %6806 = vmatprep.subr.mxu0 %v6044
    %6807 = vmatpush1.msra.mxu0 %v6043
    %6808 = vmatprep.subr.mxu0 %v6050
    %6809 = vmatpush1.msra.mxu0 %v6049
    %6810 = vmatprep.subr.mxu0 %v6056
    %6811 = vmatpush1.msra.mxu0 %v6055
    %6812 = vmatprep.subr.mxu0 %v6062
    %6813 = vmatpush1.msra.mxu0 %v6061
    %6814 = vmatprep.subr.mxu0 %v6068
    %6815 = vmatpush1.msra.mxu0 %v6067
    %6816 = vmatprep.subr.mxu0 %v6074
    %6817 = vmatpush1.msra.mxu0 %v6073
    %6818 = vmatprep.subr.mxu0 %v6080
    %6819 = vmatpush1.msra.mxu0 %v6079
    %6820 = vmatprep.subr.mxu0 %v6086
    %6821 = vmatpush1.msra.mxu0 %v6085
    %6822 = vmatprep.subr.mxu0 %v6092
    %6823 = vmatpush1.msra.mxu0 %v6091
    %6824 = vmatprep.subr.mxu0 %v6098
    %6825 = vmatpush1.msra.mxu0 %v6097
    %6826 = vmatprep.subr.mxu0 %v6104
    %6827 = vmatpush1.msra.mxu0 %v6103
    %6828 = vmatprep.subr.mxu0 %v6110
    %6829 = vmatpush1.msra.mxu0 %v6109
    %6830 = vmatprep.subr.mxu0 %v6116
    %6831 = vmatpush1.msra.mxu0 %v6115
    %6832 = vmatprep.subr.mxu0 %v6122
    %6833 = vmatpush1.msra.mxu0 %v6121
    %6834 = vmatprep.subr.mxu0 %v6128
    %6835 = vmatpush1.msra.mxu0 %v6127
    %6836 = vmatprep.subr.mxu0 %v6134
    %6837 = vmatpush1.msra.mxu0 %v6133
    %6838 = vmatprep.subr.mxu0 %v6140
    %6839 = vmatpush1.msra.mxu0 %v6139
    %6840 = vmatprep.subr.mxu0 %v6146
    %6841 = vmatpush1.msra.mxu0 %v6145
    %6842 = vmatprep.mubr.f32.mxu0 %v5952
    %6843 = vmatmul.mubr.f32.gmra.mrb[0].mxu0 %v5951
    %v6844 = vpop.f32.mrb[0].mxu0
    %v6845 = vadd.f32 %v6546, %v6844
    %v6846 = vpop.f32.mrb[0].mxu0
    %v6847 = vadd.f32 %v6550, %v6846
    %6848 = vdwg.mxu0
    %6849 = vmatprep.subr.mxu0 %v6152
    %6850 = vmatpush1.msra.mxu0 %v6151
    %6851 = vmatprep.subr.mxu0 %v6158
    %6852 = vmatpush1.msra.mxu0 %v6157
    %6853 = vmatprep.subr.mxu0 %v6164
    %6854 = vmatpush1.msra.mxu0 %v6163
    %6855 = vmatprep.subr.mxu0 %v6170
    %6856 = vmatpush1.msra.mxu0 %v6169
    %6857 = vmatprep.subr.mxu0 %v6176
    %6858 = vmatpush1.msra.mxu0 %v6175
    %6859 = vmatprep.subr.mxu0 %v6182
    %6860 = vmatpush1.msra.mxu0 %v6181
    %6861 = vmatprep.subr.mxu0 %v6188
    %6862 = vmatpush1.msra.mxu0 %v6187
    %6863 = vmatprep.subr.mxu0 %v6194
    %6864 = vmatpush1.msra.mxu0 %v6193
    %6865 = vmatprep.subr.mxu0 %v6200
    %6866 = vmatpush1.msra.mxu0 %v6199
    %6867 = vmatprep.subr.mxu0 %v6206
    %6868 = vmatpush1.msra.mxu0 %v6205
    %6869 = vmatprep.subr.mxu0 %v6212
    %6870 = vmatpush1.msra.mxu0 %v6211
    %6871 = vmatprep.subr.mxu0 %v6218
    %6872 = vmatpush1.msra.mxu0 %v6217
    %6873 = vmatprep.subr.mxu0 %v6224
    %6874 = vmatpush1.msra.mxu0 %v6223
    %6875 = vmatprep.subr.mxu0 %v6230
    %6876 = vmatpush1.msra.mxu0 %v6229
    %6877 = vmatprep.subr.mxu0 %v6236
    %6878 = vmatpush1.msra.mxu0 %v6235
    %6879 = vmatprep.subr.mxu0 %v6242
    %6880 = vmatpush1.msra.mxu0 %v6241
    %6881 = vmatprep.subr.mxu0 %v6248
    %6882 = vmatpush1.msra.mxu0 %v6247
    %6883 = vmatprep.subr.mxu0 %v6254
    %6884 = vmatpush1.msra.mxu0 %v6253
    %6885 = vmatprep.subr.mxu0 %v6260
    %6886 = vmatpush1.msra.mxu0 %v6259
    %6887 = vmatprep.subr.mxu0 %v6266
    %6888 = vmatpush1.msra.mxu0 %v6265
    %6889 = vmatprep.subr.mxu0 %v6272
    %6890 = vmatpush1.msra.mxu0 %v6271
    %6891 = vmatprep.subr.mxu0 %v6278
    %6892 = vmatpush1.msra.mxu0 %v6277
    %6893 = vmatprep.subr.mxu0 %v6284
    %6894 = vmatpush1.msra.mxu0 %v6283
    %6895 = vmatprep.subr.mxu0 %v6290
    %6896 = vmatpush1.msra.mxu0 %v6289
    %6897 = vmatprep.subr.mxu0 %v6296
    %6898 = vmatpush1.msra.mxu0 %v6295
    %6899 = vmatprep.subr.mxu0 %v6302
    %6900 = vmatpush1.msra.mxu0 %v6301
    %6901 = vmatprep.subr.mxu0 %v6308
    %6902 = vmatpush1.msra.mxu0 %v6307
    %6903 = vmatprep.subr.mxu0 %v6314
    %6904 = vmatpush1.msra.mxu0 %v6313
    %6905 = vmatprep.subr.mxu0 %v6320
    %6906 = vmatpush1.msra.mxu0 %v6319
    %6907 = vmatprep.subr.mxu0 %v6326
    %6908 = vmatpush1.msra.mxu0 %v6325
    %6909 = vmatprep.subr.mxu0 %v6332
    %6910 = vmatpush1.msra.mxu0 %v6331
    %6911 = vmatprep.subr.mxu0 %v6338
    %6912 = vmatpush1.msra.mxu0 %v6337
    %6913 = vmatprep.mubr.f32.mxu0 %v5954
    %6914 = vmatmul.mubr.f32.gmra.mrb[0].mxu0 %v5953
    %v6915 = vpop.f32.mrb[0].mxu0
    %v6916 = vadd.f32 %v6845, %v6915
    %v6917 = vpop.f32.mrb[0].mxu0
    %v6918 = vadd.f32 %v6847, %v6917
    %6919 = vdwg.mxu0
    %6920 = vmatprep.subr.mxu0 %v6344
    %6921 = vmatpush1.msra.mxu0 %v6343
    %6922 = vmatprep.subr.mxu0 %v6350
    %6923 = vmatpush1.msra.mxu0 %v6349
    %6924 = vmatprep.subr.mxu0 %v6356
    %6925 = vmatpush1.msra.mxu0 %v6355
    %6926 = vmatprep.subr.mxu0 %v6362
    %6927 = vmatpush1.msra.mxu0 %v6361
    %6928 = vmatprep.subr.mxu0 %v6368
    %6929 = vmatpush1.msra.mxu0 %v6367
    %6930 = vmatprep.subr.mxu0 %v6374
    %6931 = vmatpush1.msra.mxu0 %v6373
    %6932 = vmatprep.subr.mxu0 %v6380
    %6933 = vmatpush1.msra.mxu0 %v6379
    %6934 = vmatprep.subr.mxu0 %v6386
    %6935 = vmatpush1.msra.mxu0 %v6385
    %6936 = vmatprep.subr.mxu0 %v6392
    %6937 = vmatpush1.msra.mxu0 %v6391
    %6938 = vmatprep.subr.mxu0 %v6398
    %6939 = vmatpush1.msra.mxu0 %v6397
    %6940 = vmatprep.subr.mxu0 %v6404
    %6941 = vmatpush1.msra.mxu0 %v6403
    %6942 = vmatprep.subr.mxu0 %v6410
    %6943 = vmatpush1.msra.mxu0 %v6409
    %6944 = vmatprep.subr.mxu0 %v6416
    %6945 = vmatpush1.msra.mxu0 %v6415
    %6946 = vmatprep.subr.mxu0 %v6422
    %6947 = vmatpush1.msra.mxu0 %v6421
    %6948 = vmatprep.subr.mxu0 %v6428
    %6949 = vmatpush1.msra.mxu0 %v6427
    %6950 = vmatprep.subr.mxu0 %v6434
    %6951 = vmatpush1.msra.mxu0 %v6433
    %6952 = vmatprep.subr.mxu0 %v6440
    %6953 = vmatpush1.msra.mxu0 %v6439
    %6954 = vmatprep.subr.mxu0 %v6446
    %6955 = vmatpush1.msra.mxu0 %v6445
    %6956 = vmatprep.subr.mxu0 %v6452
    %6957 = vmatpush1.msra.mxu0 %v6451
    %6958 = vmatprep.subr.mxu0 %v6458
    %6959 = vmatpush1.msra.mxu0 %v6457
    %6960 = vmatprep.subr.mxu0 %v6464
    %6961 = vmatpush1.msra.mxu0 %v6463
    %6962 = vmatprep.subr.mxu0 %v6470
    %6963 = vmatpush1.msra.mxu0 %v6469
    %6964 = vmatprep.subr.mxu0 %v6476
    %6965 = vmatpush1.msra.mxu0 %v6475
    %6966 = vmatprep.subr.mxu0 %v6482
    %6967 = vmatpush1.msra.mxu0 %v6481
    %6968 = vmatprep.subr.mxu0 %v6488
    %6969 = vmatpush1.msra.mxu0 %v6487
    %6970 = vmatprep.subr.mxu0 %v6494
    %6971 = vmatpush1.msra.mxu0 %v6493
    %6972 = vmatprep.subr.mxu0 %v6500
    %6973 = vmatpush1.msra.mxu0 %v6499
    %6974 = vmatprep.subr.mxu0 %v6506
    %6975 = vmatpush1.msra.mxu0 %v6505
    %6976 = vmatprep.subr.mxu0 %v6512
    %6977 = vmatpush1.msra.mxu0 %v6511
    %6978 = vmatprep.subr.mxu0 %v6518
    %6979 = vmatpush1.msra.mxu0 %v6517
    %6980 = vmatprep.subr.mxu0 %v6524
    %6981 = vmatpush1.msra.mxu0 %v6523
    %6982 = vmatprep.subr.mxu0 %v6530
    %6983 = vmatpush1.msra.mxu0 %v6529
    %6984 = vmatprep.mubr.f32.mxu0 %v5956
    %6985 = vmatmul.mubr.f32.gmra.mrb[0].mxu0 %v5955
    %v6986 = vpop.f32.mrb[0].mxu0
    %v6987 = vadd.f32 %v6916, %v6986
    %v6988 = vpop.f32.mrb[0].mxu0
    %v6989 = vadd.f32 %v6918, %v6988
    %6990 = vdwg.mxu0
    %6991 = vmatprep.subr.mxu0 %v5962
    %6992 = vmatpush1.msra.mxu0 %v5961
    %6993 = vmatprep.subr.mxu0 %v5968
    %6994 = vmatpush1.msra.mxu0 %v5967
    %6995 = vmatprep.subr.mxu0 %v5974
    %6996 = vmatpush1.msra.mxu0 %v5973
    %6997 = vmatprep.subr.mxu0 %v5980
    %6998 = vmatpush1.msra.mxu0 %v5979
    %6999 = vmatprep.subr.mxu0 %v5986
    %7000 = vmatpush1.msra.mxu0 %v5985
    %7001 = vmatprep.subr.mxu0 %v5992
    %7002 = vmatpush1.msra.mxu0 %v5991
    %7003 = vmatprep.subr.mxu0 %v5998
    %7004 = vmatpush1.msra.mxu0 %v5997
    %7005 = vmatprep.subr.mxu0 %v6004
    %7006 = vmatpush1.msra.mxu0 %v6003
    %7007 = vmatprep.subr.mxu0 %v6010
    %7008 = vmatpush1.msra.mxu0 %v6009
    %7009 = vmatprep.subr.mxu0 %v6016
    %7010 = vmatpush1.msra.mxu0 %v6015
    %7011 = vmatprep.subr.mxu0 %v6022
    %7012 = vmatpush1.msra.mxu0 %v6021
    %7013 = vmatprep.subr.mxu0 %v6028
    %7014 = vmatpush1.msra.mxu0 %v6027
    %7015 = vmatprep.subr.mxu0 %v6034
    %7016 = vmatpush1.msra.mxu0 %v6033
    %7017 = vmatprep.subr.mxu0 %v6040
    %7018 = vmatpush1.msra.mxu0 %v6039
    %7019 = vmatprep.subr.mxu0 %v6046
    %7020 = vmatpush1.msra.mxu0 %v6045
    %7021 = vmatprep.subr.mxu0 %v6052
    %7022 = vmatpush1.msra.mxu0 %v6051
    %7023 = vmatprep.subr.mxu0 %v6058
    %7024 = vmatpush1.msra.mxu0 %v6057
    %7025 = vmatprep.subr.mxu0 %v6064
    %7026 = vmatpush1.msra.mxu0 %v6063
    %7027 = vmatprep.subr.mxu0 %v6070
    %7028 = vmatpush1.msra.mxu0 %v6069
    %7029 = vmatprep.subr.mxu0 %v6076
    %7030 = vmatpush1.msra.mxu0 %v6075
    %7031 = vmatprep.subr.mxu0 %v6082
    %7032 = vmatpush1.msra.mxu0 %v6081
    %7033 = vmatprep.subr.mxu0 %v6088
    %7034 = vmatpush1.msra.mxu0 %v6087
    %7035 = vmatprep.subr.mxu0 %v6094
    %7036 = vmatpush1.msra.mxu0 %v6093
    %7037 = vmatprep.subr.mxu0 %v6100
    %7038 = vmatpush1.msra.mxu0 %v6099
    %7039 = vmatprep.subr.mxu0 %v6106
    %7040 = vmatpush1.msra.mxu0 %v6105
    %7041 = vmatprep.subr.mxu0 %v6112
    %7042 = vmatpush1.msra.mxu0 %v6111
    %7043 = vmatprep.subr.mxu0 %v6118
    %7044 = vmatpush1.msra.mxu0 %v6117
    %7045 = vmatprep.subr.mxu0 %v6124
    %7046 = vmatpush1.msra.mxu0 %v6123
    %7047 = vmatprep.subr.mxu0 %v6130
    %7048 = vmatpush1.msra.mxu0 %v6129
    %7049 = vmatprep.subr.mxu0 %v6136
    %7050 = vmatpush1.msra.mxu0 %v6135
    %7051 = vmatprep.subr.mxu0 %v6142
    %7052 = vmatpush1.msra.mxu0 %v6141
    %7053 = vmatprep.subr.mxu0 %v6148
    %7054 = vmatpush1.msra.mxu0 %v6147
    %7055 = vmatprep.mubr.f32.mxu0 %v5952
    %7056 = vmatmul.mubr.f32.gmra.mrb[0].mxu0 %v5951
    %v7057 = vpop.f32.mrb[0].mxu0
    %v7058 = vadd.f32 %v6554, %v7057
    %v7059 = vpop.f32.mrb[0].mxu0
    %v7060 = vadd.f32 %v6558, %v7059
    %7061 = vdwg.mxu0
    %7062 = vmatprep.subr.mxu0 %v6154
    %7063 = vmatpush1.msra.mxu0 %v6153
    %7064 = vmatprep.subr.mxu0 %v6160
    %7065 = vmatpush1.msra.mxu0 %v6159
    %7066 = vmatprep.subr.mxu0 %v6166
    %7067 = vmatpush1.msra.mxu0 %v6165
    %7068 = vmatprep.subr.mxu0 %v6172
    %7069 = vmatpush1.msra.mxu0 %v6171
    %7070 = vmatprep.subr.mxu0 %v6178
    %7071 = vmatpush1.msra.mxu0 %v6177
    %7072 = vmatprep.subr.mxu0 %v6184
    %7073 = vmatpush1.msra.mxu0 %v6183
    %7074 = vmatprep.subr.mxu0 %v6190
    %7075 = vmatpush1.msra.mxu0 %v6189
    %7076 = vmatprep.subr.mxu0 %v6196
    %7077 = vmatpush1.msra.mxu0 %v6195
    %7078 = vmatprep.subr.mxu0 %v6202
    %7079 = vmatpush1.msra.mxu0 %v6201
    %7080 = vmatprep.subr.mxu0 %v6208
    %7081 = vmatpush1.msra.mxu0 %v6207
    %7082 = vmatprep.subr.mxu0 %v6214
    %7083 = vmatpush1.msra.mxu0 %v6213
    %7084 = vmatprep.subr.mxu0 %v6220
    %7085 = vmatpush1.msra.mxu0 %v6219
    %7086 = vmatprep.subr.mxu0 %v6226
    %7087 = vmatpush1.msra.mxu0 %v6225
    %7088 = vmatprep.subr.mxu0 %v6232
    %7089 = vmatpush1.msra.mxu0 %v6231
    %7090 = vmatprep.subr.mxu0 %v6238
    %7091 = vmatpush1.msra.mxu0 %v6237
    %7092 = vmatprep.subr.mxu0 %v6244
    %7093 = vmatpush1.msra.mxu0 %v6243
    %7094 = vmatprep.subr.mxu0 %v6250
    %7095 = vmatpush1.msra.mxu0 %v6249
    %7096 = vmatprep.subr.mxu0 %v6256
    %7097 = vmatpush1.msra.mxu0 %v6255
    %7098 = vmatprep.subr.mxu0 %v6262
    %7099 = vmatpush1.msra.mxu0 %v6261
    %7100 = vmatprep.subr.mxu0 %v6268
    %7101 = vmatpush1.msra.mxu0 %v6267
    %7102 = vmatprep.subr.mxu0 %v6274
    %7103 = vmatpush1.msra.mxu0 %v6273
    %7104 = vmatprep.subr.mxu0 %v6280
    %7105 = vmatpush1.msra.mxu0 %v6279
    %7106 = vmatprep.subr.mxu0 %v6286
    %7107 = vmatpush1.msra.mxu0 %v6285
    %7108 = vmatprep.subr.mxu0 %v6292
    %7109 = vmatpush1.msra.mxu0 %v6291
    %7110 = vmatprep.subr.mxu0 %v6298
    %7111 = vmatpush1.msra.mxu0 %v6297
    %7112 = vmatprep.subr.mxu0 %v6304
    %7113 = vmatpush1.msra.mxu0 %v6303
    %7114 = vmatprep.subr.mxu0 %v6310
    %7115 = vmatpush1.msra.mxu0 %v6309
    %7116 = vmatprep.subr.mxu0 %v6316
    %7117 = vmatpush1.msra.mxu0 %v6315
    %7118 = vmatprep.subr.mxu0 %v6322
    %7119 = vmatpush1.msra.mxu0 %v6321
    %7120 = vmatprep.subr.mxu0 %v6328
    %7121 = vmatpush1.msra.mxu0 %v6327
    %7122 = vmatprep.subr.mxu0 %v6334
    %7123 = vmatpush1.msra.mxu0 %v6333
    %7124 = vmatprep.subr.mxu0 %v6340
    %7125 = vmatpush1.msra.mxu0 %v6339
    %7126 = vmatprep.mubr.f32.mxu0 %v5954
    %7127 = vmatmul.mubr.f32.gmra.mrb[0].mxu0 %v5953
    %v7128 = vpop.f32.mrb[0].mxu0
    %v7129 = vadd.f32 %v7058, %v7128
    %v7130 = vpop.f32.mrb[0].mxu0
    %v7131 = vadd.f32 %v7060, %v7130
    %7132 = vdwg.mxu0
    %7133 = vmatprep.subr.mxu0 %v6346
    %7134 = vmatpush1.msra.mxu0 %v6345
    %7135 = vmatprep.subr.mxu0 %v6352
    %7136 = vmatpush1.msra.mxu0 %v6351
    %7137 = vmatprep.subr.mxu0 %v6358
    %7138 = vmatpush1.msra.mxu0 %v6357
    %7139 = vmatprep.subr.mxu0 %v6364
    %7140 = vmatpush1.msra.mxu0 %v6363
    %7141 = vmatprep.subr.mxu0 %v6370
    %7142 = vmatpush1.msra.mxu0 %v6369
    %7143 = vmatprep.subr.mxu0 %v6376
    %7144 = vmatpush1.msra.mxu0 %v6375
    %7145 = vmatprep.subr.mxu0 %v6382
    %7146 = vmatpush1.msra.mxu0 %v6381
    %7147 = vmatprep.subr.mxu0 %v6388
    %7148 = vmatpush1.msra.mxu0 %v6387
    %7149 = vmatprep.subr.mxu0 %v6394
    %7150 = vmatpush1.msra.mxu0 %v6393
    %7151 = vmatprep.subr.mxu0 %v6400
    %7152 = vmatpush1.msra.mxu0 %v6399
    %7153 = vmatprep.subr.mxu0 %v6406
    %7154 = vmatpush1.msra.mxu0 %v6405
    %7155 = vmatprep.subr.mxu0 %v6412
    %7156 = vmatpush1.msra.mxu0 %v6411
    %7157 = vmatprep.subr.mxu0 %v6418
    %7158 = vmatpush1.msra.mxu0 %v6417
    %7159 = vmatprep.subr.mxu0 %v6424
    %7160 = vmatpush1.msra.mxu0 %v6423
    %7161 = vmatprep.subr.mxu0 %v6430
    %7162 = vmatpush1.msra.mxu0 %v6429
    %7163 = vmatprep.subr.mxu0 %v6436
    %7164 = vmatpush1.msra.mxu0 %v6435
    %7165 = vmatprep.subr.mxu0 %v6442
    %7166 = vmatpush1.msra.mxu0 %v6441
    %7167 = vmatprep.subr.mxu0 %v6448
    %7168 = vmatpush1.msra.mxu0 %v6447
    %7169 = vmatprep.subr.mxu0 %v6454
    %7170 = vmatpush1.msra.mxu0 %v6453
    %7171 = vmatprep.subr.mxu0 %v6460
    %7172 = vmatpush1.msra.mxu0 %v6459
    %7173 = vmatprep.subr.mxu0 %v6466
    %7174 = vmatpush1.msra.mxu0 %v6465
    %7175 = vmatprep.subr.mxu0 %v6472
    %7176 = vmatpush1.msra.mxu0 %v6471
    %7177 = vmatprep.subr.mxu0 %v6478
    %7178 = vmatpush1.msra.mxu0 %v6477
    %7179 = vmatprep.subr.mxu0 %v6484
    %7180 = vmatpush1.msra.mxu0 %v6483
    %7181 = vmatprep.subr.mxu0 %v6490
    %7182 = vmatpush1.msra.mxu0 %v6489
    %7183 = vmatprep.subr.mxu0 %v6496
    %7184 = vmatpush1.msra.mxu0 %v6495
    %7185 = vmatprep.subr.mxu0 %v6502
    %7186 = vmatpush1.msra.mxu0 %v6501
    %7187 = vmatprep.subr.mxu0 %v6508
    %7188 = vmatpush1.msra.mxu0 %v6507
    %7189 = vmatprep.subr.mxu0 %v6514
    %7190 = vmatpush1.msra.mxu0 %v6513
    %7191 = vmatprep.subr.mxu0 %v6520
    %7192 = vmatpush1.msra.mxu0 %v6519
    %7193 = vmatprep.subr.mxu0 %v6526
    %7194 = vmatpush1.msra.mxu0 %v6525
    %7195 = vmatprep.subr.mxu0 %v6532
    %7196 = vmatpush1.msra.mxu0 %v6531
    %7197 = vmatprep.mubr.f32.mxu0 %v5956
    %7198 = vmatmul.mubr.f32.gmra.mrb[0].mxu0 %v5955
    %v7199 = vpop.f32.mrb[0].mxu0
    %v7200 = vadd.f32 %v7129, %v7199
    %v7201 = vpop.f32.mrb[0].mxu0
    %v7202 = vadd.f32 %v7131, %v7201
    %7203 = vdwg.mxu0
    %v7204 = vmul.f32 %v6774, 0.5
    %v7205 = vmul.f32 %v6776, 0.5
    %v7206 = vmul.f32 %v6987, 0.5
    %v7207 = vmul.f32 %v6989, 0.5
    %v7208 = vmul.f32 %v7200, 0.5
    %v7209 = vmul.f32 %v7202, 0.5
    %v7210 = vmul.f32 %v6774, 0.70710677
    %v7211 = vmul.f32 %v6776, 0.70710677
    %v7212 = vmul.f32 %v6987, 0.70710677
    %v7213 = vmul.f32 %v6989, 0.70710677
    %v7214 = vmul.f32 %v7200, 0.70710677
    %v7215 = vmul.f32 %v7202, 0.70710677
    %vm7216 = vcmp.ge.f32.partialorder %v7210, 0.0
    %vm7217 = vcmp.ge.f32.partialorder %v7211, 0.0
    %vm7218 = vcmp.ge.f32.partialorder %v7212, 0.0
    %vm7219 = vcmp.ge.f32.partialorder %v7213, 0.0
    %vm7220 = vcmp.ge.f32.partialorder %v7214, 0.0
    %vm7221 = vcmp.ge.f32.partialorder %v7215, 0.0
    %v7222 = vsel %vm7216, 1.0, -1.0
    %v7223 = vsel %vm7217, 1.0, -1.0
    %v7224 = vsel %vm7218, 1.0, -1.0
    %v7225 = vsel %vm7219, 1.0, -1.0
    %v7226 = vsel %vm7220, 1.0, -1.0
    %v7227 = vsel %vm7221, 1.0, -1.0
    %v7228 = vand.u32 2147483647, %v7210
    %v7229 = vand.u32 2147483647, %v7211
    %v7230 = vand.u32 2147483647, %v7212
    %v7231 = vand.u32 2147483647, %v7213
    %v7232 = vand.u32 2147483647, %v7214
    %v7233 = vand.u32 2147483647, %v7215
    %v7234 = vmul.f32 %v7228, 0.3275911
    %v7235 = vmul.f32 %v7229, 0.3275911
    %v7236 = vmul.f32 %v7230, 0.3275911
    %v7237 = vmul.f32 %v7231, 0.3275911
    %v7238 = vmul.f32 %v7232, 0.3275911
    %v7239 = vmul.f32 %v7233, 0.3275911
    %v7240 = vadd.f32 %v7234, 1.0
    %v7241 = vadd.f32 %v7235, 1.0
    %v7242 = vadd.f32 %v7236, 1.0
    %v7243 = vadd.f32 %v7237, 1.0
    %v7244 = vadd.f32 %v7238, 1.0
    %v7245 = vadd.f32 %v7239, 1.0
    %v7246 = vrcp.pop %v7240
    %v7247 = vmul.f32 1.0, %v7246
    %v7248 = vrcp.pop %v7241
    %v7249 = vmul.f32 1.0, %v7248
    %v7250 = vrcp.pop %v7242
    %v7251 = vmul.f32 1.0, %v7250
    %v7252 = vrcp.pop %v7243
    %v7253 = vmul.f32 1.0, %v7252
    %v7254 = vrcp.pop %v7244
    %v7255 = vmul.f32 1.0, %v7254
    %v7256 = vrcp.pop %v7245
    %v7257 = vmul.f32 1.0, %v7256
    %v7258 = vmul.f32 %v7247, 1.0614054
    %v7259 = vmul.f32 %v7249, 1.0614054
    %v7260 = vmul.f32 %v7251, 1.0614054
    %v7261 = vmul.f32 %v7253, 1.0614054
    %v7262 = vmul.f32 %v7255, 1.0614054
    %v7263 = vmul.f32 %v7257, 1.0614054
    %v7264 = vadd.f32 %v7258, -1.4531521
    %v7265 = vadd.f32 %v7259, -1.4531521
    %v7266 = vadd.f32 %v7260, -1.4531521
    %v7267 = vadd.f32 %v7261, -1.4531521
    %v7268 = vadd.f32 %v7262, -1.4531521
    %v7269 = vadd.f32 %v7263, -1.4531521
    %v7270 = vmul.f32 %v7264, %v7247
    %v7271 = vmul.f32 %v7265, %v7249
    %v7272 = vmul.f32 %v7266, %v7251
    %v7273 = vmul.f32 %v7267, %v7253
    %v7274 = vmul.f32 %v7268, %v7255
    %v7275 = vmul.f32 %v7269, %v7257
    %v7276 = vadd.f32 %v7270, 1.4214138
    %v7277 = vadd.f32 %v7271, 1.4214138
    %v7278 = vadd.f32 %v7272, 1.4214138
    %v7279 = vadd.f32 %v7273, 1.4214138
    %v7280 = vadd.f32 %v7274, 1.4214138
    %v7281 = vadd.f32 %v7275, 1.4214138
    %v7282 = vmul.f32 %v7276, %v7247
    %v7283 = vmul.f32 %v7277, %v7249
    %v7284 = vmul.f32 %v7278, %v7251
    %v7285 = vmul.f32 %v7279, %v7253
    %v7286 = vmul.f32 %v7280, %v7255
    %v7287 = vmul.f32 %v7281, %v7257
    %v7288 = vadd.f32 %v7282, -0.28449672
    %v7289 = vadd.f32 %v7283, -0.28449672
    %v7290 = vadd.f32 %v7284, -0.28449672
    %v7291 = vadd.f32 %v7285, -0.28449672
    %v7292 = vadd.f32 %v7286, -0.28449672
    %v7293 = vadd.f32 %v7287, -0.28449672
    %v7294 = vmul.f32 %v7288, %v7247
    %v7295 = vmul.f32 %v7289, %v7249
    %v7296 = vmul.f32 %v7290, %v7251
    %v7297 = vmul.f32 %v7291, %v7253
    %v7298 = vmul.f32 %v7292, %v7255
    %v7299 = vmul.f32 %v7293, %v7257
    %v7300 = vadd.f32 %v7294, 0.2548296
    %v7301 = vadd.f32 %v7295, 0.2548296
    %v7302 = vadd.f32 %v7296, 0.2548296
    %v7303 = vadd.f32 %v7297, 0.2548296
    %v7304 = vadd.f32 %v7298, 0.2548296
    %v7305 = vadd.f32 %v7299, 0.2548296
    %v7306 = vmul.f32 %v7300, %v7247
    %v7307 = vmul.f32 %v7301, %v7249
    %v7308 = vmul.f32 %v7302, %v7251
    %v7309 = vmul.f32 %v7303, %v7253
    %v7310 = vmul.f32 %v7304, %v7255
    %v7311 = vmul.f32 %v7305, %v7257
    %v7312 = vsub.f32 0.0, %v7228
    %v7313 = vsub.f32 0.0, %v7229
    %v7314 = vsub.f32 0.0, %v7230
    %v7315 = vsub.f32 0.0, %v7231
    %v7316 = vsub.f32 0.0, %v7232
    %v7317 = vsub.f32 0.0, %v7233
    %v7318 = vmul.f32 %v7312, %v7228
    %v7319 = vmul.f32 %v7313, %v7229
    %v7320 = vmul.f32 %v7314, %v7230
    %v7321 = vmul.f32 %v7315, %v7231
    %v7322 = vmul.f32 %v7316, %v7232
    %v7323 = vmul.f32 %v7317, %v7233
    %v7324 = vmul.f32 %v7318, 1.442695
    %v7325 = vpow.pop %v7324
    %v7326 = vmul.f32 %v7319, 1.442695
    %v7327 = vpow.pop %v7326
    %v7328 = vmul.f32 %v7320, 1.442695
    %v7329 = vpow.pop %v7328
    %v7330 = vmul.f32 %v7321, 1.442695
    %v7331 = vpow.pop %v7330
    %v7332 = vmul.f32 %v7322, 1.442695
    %v7333 = vpow.pop %v7332
    %v7334 = vmul.f32 %v7323, 1.442695
    %v7335 = vpow.pop %v7334
    %v7336 = vmul.f32 %v7306, %v7325
    %v7337 = vmul.f32 %v7307, %v7327
    %v7338 = vmul.f32 %v7308, %v7329
    %v7339 = vmul.f32 %v7309, %v7331
    %v7340 = vmul.f32 %v7310, %v7333
    %v7341 = vmul.f32 %v7311, %v7335
    %v7342 = vsub.f32 1.0, %v7336
    %v7343 = vsub.f32 1.0, %v7337
    %v7344 = vsub.f32 1.0, %v7338
    %v7345 = vsub.f32 1.0, %v7339
    %v7346 = vsub.f32 1.0, %v7340
    %v7347 = vsub.f32 1.0, %v7341
    %v7348 = vmul.f32 %v7222, %v7342
    %v7349 = vmul.f32 %v7223, %v7343
    %v7350 = vmul.f32 %v7224, %v7344
    %v7351 = vmul.f32 %v7225, %v7345
    %v7352 = vmul.f32 %v7226, %v7346
    %v7353 = vmul.f32 %v7227, %v7347
    %v7354 = vadd.f32 %v7348, 1.0
    %v7355 = vadd.f32 %v7349, 1.0
    %v7356 = vadd.f32 %v7350, 1.0
    %v7357 = vadd.f32 %v7351, 1.0
    %v7358 = vadd.f32 %v7352, 1.0
    %v7359 = vadd.f32 %v7353, 1.0
    %v7360 = vmul.f32 %v7204, %v7354
    %v7361 = vmul.f32 %v7205, %v7355
    %v7362 = vmul.f32 %v7206, %v7356
    %v7363 = vmul.f32 %v7207, %v7357
    %v7364 = vmul.f32 %v7208, %v7358
    %v7365 = vmul.f32 %v7209, %v7359
    %7366 = vst [vmem:[#allocation19] sm:$0xff] %v7360
    %7367 = vst [vmem:[#allocation19 + $0x8] sm:$0xff] %v7361
    %7368 = vst [vmem:[#allocation19 + $0x10] sm:$0xff] %v7362
    %7369 = vst [vmem:[#allocation19 + $0x18] sm:$0xff] %v7363
    %7370 = vst [vmem:[#allocation19 + $0x20] sm:$0xff] %v7364
    %7371 = vst [vmem:[#allocation19 + $0x28] sm:$0xff] %v7365
    // Predicated region
    $region82: #{tpu_custom_call.1} parent=1 // pred_check
      _
    $region83: #{tpu_custom_call.1} parent=1 // pred_check_branch
      %7373 = sbr.rel (0) target = $region85
    $region84: #{tpu_custom_call.1} parent=1 // pred_region
      %s7375 = ssub.s32 768, 768
      %7376 = vsyncadd [#allocation4], %s7375
      %s7378 = sshll.u32 [#allocation19], 4
      %s7379 = int_to_ptr.vmem [resolvable:$true] %s7378
      %7381 = dma.vmem_to_hbm [thread:$0]  %s7379, 768, %s10, [#allocation4]
    $region85: #{tpu_custom_call.1} parent=1 // pred_fallthru
      _
    // Predicated region
    $region86: #{tpu_custom_call.1} parent=1 // pred_check
      _
    $region87: #{tpu_custom_call.1} parent=1 // pred_check_branch
      %7383 = sbr.rel (0) target = $region89
    $region88: #{tpu_custom_call.1} parent=1 // pred_region
      %7384 = dma.done [#allocation4], 768
    $region89: #{tpu_custom_call.1} parent=1 // pred_fallthru
      _
    %7385 = vsyncpa [#allocation3], 1
    %7386 = vsyncpa [#allocation6], 1
    %7387 = vsyncpa [#allocation9], 1
    %7388 = vsyncpa [#allocation12], 1
    %7389 = vsyncpa [#allocation15], 1
    %7390 = vsyncpa [#allocation18], 1
    %7391 = vsyncpa [#allocation4], 1

</llo_original>
